<compile_context>
chip_gen: v7x
topology: tpu7x:2x2x1
jax: 0.10.0
libtpu: 0.0.40
codegen_flags: <defaults>
</compile_context>

<pallas_src>
import numpy as np
import jax
import jax.numpy as jnp
from jax import lax
from jax.experimental import pallas as pl
from jax.experimental.pallas import tpu as pltpu

# ---- stand-ins for the argparse `opt` (small, consistent shapes) ----
N_CLASSES = 10
LATENT_DIM = 32
IMG_SIZE = 16
CHANNELS = 3
INIT_SIZE = IMG_SIZE // 4            # 4
P2 = INIT_SIZE * INIT_SIZE           # 16 spatial positions after l1 (4x4)
HW1 = (2 * INIT_SIZE) ** 2           # 64  (8x8 map seen by conv1)
HW2 = (4 * INIT_SIZE) ** 2           # 256 (16x16 map seen by conv2/conv3)


# ---------------------------------------------------------------------------
# Host-side constants: upsample duplication matrices + conv boundary masks
# ---------------------------------------------------------------------------
def _upsample_matrix_T(h, w):
    """(h*w, 4*h*w) 0/1 matrix so that x_up = x @ U_T (channel-major, NN 2x)."""
    H2, W2 = 2 * h, 2 * w
    P = np.arange(H2 * W2)
    src = (P // W2 // 2) * w + (P % W2) // 2
    m = np.zeros((h * w, H2 * W2), np.float32)
    m[src, P] = 1.0
    return m


def _conv_masks(h, w):
    """(9, 1, h*w) zero-padding validity masks for a 3x3 / stride 1 / pad 1 conv."""
    P = np.arange(h * w)
    hh, ww = P // w, P % w
    out = np.zeros((9, 1, h * w), np.float32)
    for ky in range(3):
        for kx in range(3):
            dy, dx = ky - 1, kx - 1
            out[ky * 3 + kx, 0] = ((hh + dy >= 0) & (hh + dy < h) &
                                   (ww + dx >= 0) & (ww + dx < w))
    return out


_UP1_T = _upsample_matrix_T(INIT_SIZE, INIT_SIZE)            # (16, 64)
_UP2_T = _upsample_matrix_T(2 * INIT_SIZE, 2 * INIT_SIZE)    # (64, 256)
_MASK8 = _conv_masks(2 * INIT_SIZE, 2 * INIT_SIZE)           # (9, 1, 64)
_MASK16 = _conv_masks(4 * INIT_SIZE, 4 * INIT_SIZE)          # (9, 1, 256)


# ---------------------------------------------------------------------------
# The fused generator kernel (single invocation, whole batch folded in lanes)
# ---------------------------------------------------------------------------
def _generator_kernel(embT_ref, noiseT_ref, w1_ref, b1_ref, sel_ref,
                      up1T_ref, up2T_ref, m8_ref, m16_ref,
                      g1_ref, be1_ref, c1w_ref, c1b_ref,
                      g2_ref, be2_ref, c2w_ref, c2b_ref,
                      g3_ref, be3_ref, c3w_ref, c3b_ref,
                      img_ref):
    f32, bf16 = jnp.float32, jnp.bfloat16
    Bf = noiseT_ref.shape[1]                   # static batch size
    W8, W16 = 2 * INIT_SIZE, 4 * INIT_SIZE

    def bn_affine(x, gamma, beta, eps):
        # train-mode BatchNorm: biased batch variance over the whole (folded)
        # lane axis; f32 stats, clamped against E[x^2]-E[x]^2 cancellation.
        n = x.shape[1]
        s = jnp.sum(x, axis=1, keepdims=True)
        q = jnp.sum(x * x, axis=1, keepdims=True)
        mean = s * (1.0 / n)
        var = jnp.maximum(q * (1.0 / n) - mean * mean, 0.0)
        scale = gamma * lax.rsqrt(var + eps)
        return scale, beta - mean * scale

    def lrelu(x):
        return jnp.where(x >= 0.0, x, 0.2 * x)

    def conv3x3(x_bf, w_ref, b_ref, masks, Wimg):
        # batch-folded, channel-major im2col: 9 lane-rolls + 0/1 pad-mask
        # multiplies entirely in bf16 (exact), one sublane concat, then ONE
        # MXU matmul (Cout, 9*Cin) @ (9*Cin, B*HW) with f32 accumulation.
        HWB = x_bf.shape[1]
        pieces = []
        for ky in range(3):
            for kx in range(3):
                d = (ky - 1) * Wimg + (kx - 1)
                amt = (-(d * Bf)) % HWB
                p_ = jnp.roll(x_bf, amt, axis=1) if amt else x_bf
                if d:
                    # mask AFTER the roll: lanes that wrapped across the
                    # image/batch seam are exactly the zero-padded ones.
                    p_ = p_ * masks[ky * 3 + kx]
                pieces.append(p_)
        xcat = jnp.concatenate(pieces, axis=0)             # (9*Cin, B*HW) bf16
        return (jnp.dot(w_ref[...], xcat, preferred_element_type=f32)
                + b_ref[...])                              # (Cout, B*HW) f32

    m8 = m8_ref[...]                                       # (9, 1, B*64)  bf16
    m16 = m16_ref[...]                                     # (9, 1, B*256) bf16

    # ---- l1: ONE matmul, batch folded into lanes (column = pos*B + b) ------
    gi = embT_ref[...] * noiseT_ref[...]                   # (L, B) f32
    g_rep = jnp.concatenate([gi] * P2, axis=1)             # (L, P2*B)
    g_rep = jnp.concatenate([g_rep] * P2, axis=0)          # (P2*L, P2*B)
    rhs = (g_rep * sel_ref[...]).astype(bf16)              # kron(I_P2, gi)
    x1 = (jnp.dot(w1_ref[...], rhs, preferred_element_type=f32)
          + b1_ref[...])                                   # (128, P2*B) f32

    # ---- block 1: BN(128, 1e-5) -> Up2x -> Conv 128->128 -------------------
    sc1, sh1 = bn_affine(x1, g1_ref[...], be1_ref[...], 1e-5)
    a1 = (x1 * sc1 + sh1).astype(bf16)                     # (128, P2*B)
    a1 = jnp.dot(a1, up1T_ref[...],
                 preferred_element_type=f32).astype(bf16)  # (128, B*64) exact
    y1 = conv3x3(a1, c1w_ref, c1b_ref, m8, W8)             # (128, B*64) f32

    # ---- block 2: BN(128, .8) -> LReLU -> Up2x -> Conv 128->64 -------------
    sc2, sh2 = bn_affine(y1, g2_ref[...], be2_ref[...], 0.8)
    y1 = y1.astype(bf16)                                   # bf16 residency
    a2 = lrelu(y1 * sc2 + sh2).astype(bf16)
    a2 = jnp.dot(a2, up2T_ref[...],
                 preferred_element_type=f32).astype(bf16)  # (128, B*256) exact
    y2 = conv3x3(a2, c2w_ref, c2b_ref, m16, W16)           # (64, B*256) f32

    # ---- block 3: BN(64, .8) -> LReLU -> Conv 64->3 -> Tanh ----------------
    sc3, sh3 = bn_affine(y2, g3_ref[...], be3_ref[...], 0.8)
    y2 = y2.astype(bf16)                                   # bf16 residency
    a3 = lrelu(y2 * sc3 + sh3).astype(bf16)
    y3 = conv3x3(a3, c3w_ref, c3b_ref, m16, W16)           # (3, B*256) f32
    img_ref[...] = jnp.tanh(y3).astype(img_ref.dtype)      # one dense store


# ---------------------------------------------------------------------------
# Wrapper: parameter layouts, batch-fold constants, pallas_call plumbing
# ---------------------------------------------------------------------------
def _full_spec(shape):
    return pl.BlockSpec(shape, lambda i, n=len(shape): (0,) * n)


def generator_forward(params, noise, labels):
    B = noise.shape[0]
    L = LATENT_DIM
    emb = params["emb"][labels]                            # (B, L)
    # TODO(synk): the data-dependent embedding row gather and the tiny (B, L)
    # transposes / final NCHW transpose stay in the XLA wrapper (layout only).

    # batch-folded (column = pos*B + b) host constants, built at trace time
    eye_b = np.eye(B, dtype=np.float32)
    sel = np.kron(np.eye(P2, dtype=np.float32),
                  np.ones((L, B), np.float32))             # (P2*L, P2*B)
    up1 = np.kron(_UP1_T, eye_b)                           # (P2*B, HW1*B)
    up2 = np.kron(_UP2_T, eye_b)                           # (HW1*B, HW2*B)
    m8 = np.repeat(_MASK8, B, axis=2)                      # (9, 1, HW1*B)
    m16 = np.repeat(_MASK16, B, axis=2)                    # (9, 1, HW2*B)
    b1f = jnp.repeat(params["l1_b"], B, axis=1)            # (128, P2*B)

    args = [
        emb.T.astype(jnp.float32),                         # (L, B)
        noise.T.astype(jnp.float32),                       # (L, B)
        params["l1_w"], b1f,
        jnp.asarray(sel, jnp.float32),
        jnp.asarray(up1, jnp.bfloat16),
        jnp.asarray(up2, jnp.bfloat16),
        jnp.asarray(m8, jnp.bfloat16),
        jnp.asarray(m16, jnp.bfloat16),
        params["bn1_g"], params["bn1_b"], params["conv1_w"], params["conv1_b"],
        params["bn2_g"], params["bn2_b"], params["conv2_w"], params["conv2_b"],
        params["bn3_g"], params["bn3_b"], params["conv3_w"], params["conv3_b"],
    ]
    out = pl.pallas_call(
        _generator_kernel,
        out_shape=jax.ShapeDtypeStruct((CHANNELS, HW2 * B), jnp.float32),
        grid=(1,),
        in_specs=[_full_spec(a.shape) for a in args],
        out_specs=_full_spec((CHANNELS, HW2 * B)),
        compiler_params=pltpu.CompilerParams(
            dimension_semantics=("arbitrary",)),
    )(*args)
    # (3, B*256) with column = pos*B + b  ->  (B, 3, 16, 16) NCHW
    img = out.reshape(CHANNELS, HW2, B).transpose(2, 0, 1)
    return img.reshape(B, CHANNELS, IMG_SIZE, IMG_SIZE)


# ---------------------------------------------------------------------------
# Pure-JAX (f32) reference of the same forward pass, same parameter layouts
# ---------------------------------------------------------------------------
def generator_reference(params, noise, labels):
    B = noise.shape[0]
    gi = params["emb"][labels] * noise                     # (B, L)
    w1 = params["l1_w"].astype(jnp.float32).reshape(128, P2, LATENT_DIM)
    x = jnp.einsum("cpk,bk->bcp", w1, gi) + params["l1_b"][None]
    x = x.reshape(B, 128, INIT_SIZE, INIT_SIZE)

    def bn(x, g, b, eps):
        m = jnp.mean(x, axis=(0, 2, 3), keepdims=True)
        v = jnp.mean((x - m) ** 2, axis=(0, 2, 3), keepdims=True)
        return ((x - m) * lax.rsqrt(v + eps) * g.reshape(1, -1, 1, 1)
                + b.reshape(1, -1, 1, 1))

    def up2x(x):
        return jnp.repeat(jnp.repeat(x, 2, axis=2), 2, axis=3)

    def conv3(x, w2d, bias):
        cout, cin = w2d.shape[0], x.shape[1]
        w = (w2d.astype(jnp.float32).reshape(cout, 3, 3, cin)
             .transpose(0, 3, 1, 2))                       # OIHW
        y = lax.conv_general_dilated(x, w, (1, 1), "SAME",
                                     dimension_numbers=("NCHW", "OIHW", "NCHW"))
        return y + bias.reshape(1, -1, 1, 1)

    def lrelu(x):
        return jnp.where(x >= 0, x, 0.2 * x)

    x = bn(x, params["bn1_g"], params["bn1_b"], 1e-5)
    x = up2x(x)
    x = conv3(x, params["conv1_w"], params["conv1_b"])
    x = lrelu(bn(x, params["bn2_g"], params["bn2_b"], 0.8))
    x = up2x(x)
    x = conv3(x, params["conv2_w"], params["conv2_b"])
    x = lrelu(bn(x, params["bn3_g"], params["bn3_b"], 0.8))
    x = conv3(x, params["conv3_w"], params["conv3_b"])
    return jnp.tanh(x)


def init_params(key):
    """Random parameters in the kernel's channel-major layouts.

    Correspondence to the PyTorch module (one-time prep):
      l1_w[c, p*L + k]       == l1.weight[c*16 + p, k]
      l1_b[c, p]             == l1.bias[c*16 + p]
      convN_w[co, t*Cin+ci]  == convN.weight[co, ci, t//3, t%3]
      convN_b[co, 0]         == convN.bias[co]
      bnN_g / bnN_b[c, 0]    == BatchNorm weight / bias (defaults 1 / 0)
    """
    ks = jax.random.split(key, 9)

    def rnd(k, shape):
        return 0.05 * jax.random.normal(k, shape, jnp.float32)

    return dict(
        emb=jax.random.normal(ks[0], (N_CLASSES, LATENT_DIM), jnp.float32),
        l1_w=rnd(ks[1], (128, P2 * LATENT_DIM)).astype(jnp.bfloat16),
        l1_b=rnd(ks[2], (128, P2)),
        conv1_w=rnd(ks[3], (128, 9 * 128)).astype(jnp.bfloat16),
        conv1_b=rnd(ks[4], (128, 1)),
        conv2_w=rnd(ks[5], (64, 9 * 128)).astype(jnp.bfloat16),
        conv2_b=rnd(ks[6], (64, 1)),
        conv3_w=rnd(ks[7], (CHANNELS, 9 * 64)).astype(jnp.bfloat16),
        conv3_b=rnd(ks[8], (CHANNELS, 1)),
        bn1_g=jnp.ones((128, 1), jnp.float32), bn1_b=jnp.zeros((128, 1), jnp.float32),
        bn2_g=jnp.ones((128, 1), jnp.float32), bn2_b=jnp.zeros((128, 1), jnp.float32),
        bn3_g=jnp.ones((64, 1), jnp.float32), bn3_b=jnp.zeros((64, 1), jnp.float32),
    )


if __name__ == "__main__":
    key = jax.random.PRNGKey(0)
    pkey, nkey, lkey = jax.random.split(key, 3)
    params = init_params(pkey)

    B = 2
    noise = jax.random.normal(nkey, (B, LATENT_DIM), jnp.float32)
    labels = jax.random.randint(lkey, (B,), 0, N_CLASSES)

    img = jax.jit(generator_forward)(params, noise, labels)
    img = jax.block_until_ready(img)
    ref = jax.block_until_ready(generator_reference(params, noise, labels))

    assert img.shape == (B, CHANNELS, IMG_SIZE, IMG_SIZE), img.shape
    assert img.dtype == jnp.float32
    assert bool(jnp.all(jnp.isfinite(img)))
    assert bool(jnp.all(jnp.abs(img) <= 1.0))          # tanh output range
    err = float(jnp.max(jnp.abs(img - ref)))
    assert err < 0.1, f"max |kernel - reference| = {err}"  # bf16 matmul tol
    print("KERNEL_OK")
</pallas_src>

<mosaic_0001>
module attributes {stable_mosaic.version = 11 : i64} {
  func.func @_generator_kernel(%arg0: i32, %arg1: memref<32x2xf32, #tpu.memory_space<vmem>>, %arg2: memref<32x2xf32, #tpu.memory_space<vmem>>, %arg3: memref<128x512xbf16, #tpu.memory_space<vmem>>, %arg4: memref<128x32xf32, #tpu.memory_space<vmem>>, %arg5: memref<512x32xf32, #tpu.memory_space<vmem>>, %arg6: memref<32x128xbf16, #tpu.memory_space<vmem>>, %arg7: memref<128x512xbf16, #tpu.memory_space<vmem>>, %arg8: memref<9x1x128xbf16, #tpu.memory_space<vmem>>, %arg9: memref<9x1x512xbf16, #tpu.memory_space<vmem>>, %arg10: memref<128x1xf32, #tpu.memory_space<vmem>>, %arg11: memref<128x1xf32, #tpu.memory_space<vmem>>, %arg12: memref<128x1152xbf16, #tpu.memory_space<vmem>>, %arg13: memref<128x1xf32, #tpu.memory_space<vmem>>, %arg14: memref<128x1xf32, #tpu.memory_space<vmem>>, %arg15: memref<128x1xf32, #tpu.memory_space<vmem>>, %arg16: memref<64x1152xbf16, #tpu.memory_space<vmem>>, %arg17: memref<64x1xf32, #tpu.memory_space<vmem>>, %arg18: memref<64x1xf32, #tpu.memory_space<vmem>>, %arg19: memref<64x1xf32, #tpu.memory_space<vmem>>, %arg20: memref<3x576xbf16, #tpu.memory_space<vmem>>, %arg21: memref<3x1xf32, #tpu.memory_space<vmem>>, %arg22: memref<3x512xf32, #tpu.memory_space<vmem>>) attributes {dimension_semantics = [#tpu.dimension_semantics<arbitrary>], iteration_bounds = array<i64: 1>, scalar_prefetch = 0 : i64, scratch_operands = 0 : i64, tpu.core_type = #tpu.core_type<tc>, window_params = [{pipeline_mode = #tpu.pipeline_mode<synchronous>, transform_indices = @transform_0, window_bounds = array<i64: 32, 2>}, {pipeline_mode = #tpu.pipeline_mode<synchronous>, transform_indices = @transform_1, window_bounds = array<i64: 32, 2>}, {pipeline_mode = #tpu.pipeline_mode<synchronous>, transform_indices = @transform_2, window_bounds = array<i64: 128, 512>}, {pipeline_mode = #tpu.pipeline_mode<synchronous>, transform_indices = @transform_3, window_bounds = array<i64: 128, 32>}, {pipeline_mode = #tpu.pipeline_mode<synchronous>, transform_indices = @transform_4, window_bounds = array<i64: 512, 32>}, {pipeline_mode = #tpu.pipeline_mode<synchronous>, transform_indices = @transform_5, window_bounds = array<i64: 32, 128>}, {pipeline_mode = #tpu.pipeline_mode<synchronous>, transform_indices = @transform_6, window_bounds = array<i64: 128, 512>}, {pipeline_mode = #tpu.pipeline_mode<synchronous>, transform_indices = @transform_7, window_bounds = array<i64: 9, 1, 128>}, {pipeline_mode = #tpu.pipeline_mode<synchronous>, transform_indices = @transform_8, window_bounds = array<i64: 9, 1, 512>}, {pipeline_mode = #tpu.pipeline_mode<synchronous>, transform_indices = @transform_9, window_bounds = array<i64: 128, 1>}, {pipeline_mode = #tpu.pipeline_mode<synchronous>, transform_indices = @transform_10, window_bounds = array<i64: 128, 1>}, {pipeline_mode = #tpu.pipeline_mode<synchronous>, transform_indices = @transform_11, window_bounds = array<i64: 128, 1152>}, {pipeline_mode = #tpu.pipeline_mode<synchronous>, transform_indices = @transform_12, window_bounds = array<i64: 128, 1>}, {pipeline_mode = #tpu.pipeline_mode<synchronous>, transform_indices = @transform_13, window_bounds = array<i64: 128, 1>}, {pipeline_mode = #tpu.pipeline_mode<synchronous>, transform_indices = @transform_14, window_bounds = array<i64: 128, 1>}, {pipeline_mode = #tpu.pipeline_mode<synchronous>, transform_indices = @transform_15, window_bounds = array<i64: 64, 1152>}, {pipeline_mode = #tpu.pipeline_mode<synchronous>, transform_indices = @transform_16, window_bounds = array<i64: 64, 1>}, {pipeline_mode = #tpu.pipeline_mode<synchronous>, transform_indices = @transform_17, window_bounds = array<i64: 64, 1>}, {pipeline_mode = #tpu.pipeline_mode<synchronous>, transform_indices = @transform_18, window_bounds = array<i64: 64, 1>}, {pipeline_mode = #tpu.pipeline_mode<synchronous>, transform_indices = @transform_19, window_bounds = array<i64: 3, 576>}, {pipeline_mode = #tpu.pipeline_mode<synchronous>, transform_indices = @transform_20, window_bounds = array<i64: 3, 1>}, {pipeline_mode = #tpu.pipeline_mode<synchronous>, transform_indices = @transform_21, window_bounds = array<i64: 3, 512>}]} {
    %c0 = arith.constant 0 : index
    %c0_0 = arith.constant 0 : index
    %c0_1 = arith.constant 0 : index
    %0 = vector.load %arg8[%c0, %c0_0, %c0_1] : memref<9x1x128xbf16, #tpu.memory_space<vmem>>, vector<9x1x128xbf16>
    %c0_2 = arith.constant 0 : index
    %c0_3 = arith.constant 0 : index
    %c0_4 = arith.constant 0 : index
    %1 = vector.load %arg9[%c0_2, %c0_3, %c0_4] : memref<9x1x512xbf16, #tpu.memory_space<vmem>>, vector<9x1x512xbf16>
    %c0_5 = arith.constant 0 : index
    %c0_6 = arith.constant 0 : index
    %2 = vector.load %arg1[%c0_5, %c0_6] : memref<32x2xf32, #tpu.memory_space<vmem>>, vector<32x2xf32>
    %c0_7 = arith.constant 0 : index
    %c0_8 = arith.constant 0 : index
    %3 = vector.load %arg2[%c0_7, %c0_8] : memref<32x2xf32, #tpu.memory_space<vmem>>, vector<32x2xf32>
    %4 = arith.mulf %2, %3 : vector<32x2xf32>
    %5 = tpu.concatenate %4, %4, %4, %4, %4, %4, %4, %4, %4, %4, %4, %4, %4, %4, %4, %4 in 1 : vector<32x2xf32>, vector<32x2xf32>, vector<32x2xf32>, vector<32x2xf32>, vector<32x2xf32>, vector<32x2xf32>, vector<32x2xf32>, vector<32x2xf32>, vector<32x2xf32>, vector<32x2xf32>, vector<32x2xf32>, vector<32x2xf32>, vector<32x2xf32>, vector<32x2xf32>, vector<32x2xf32>, vector<32x2xf32> -> vector<32x32xf32>
    %6 = tpu.concatenate %5, %5, %5, %5, %5, %5, %5, %5, %5, %5, %5, %5, %5, %5, %5, %5 in 0 : vector<32x32xf32>, vector<32x32xf32>, vector<32x32xf32>, vector<32x32xf32>, vector<32x32xf32>, vector<32x32xf32>, vector<32x32xf32>, vector<32x32xf32>, vector<32x32xf32>, vector<32x32xf32>, vector<32x32xf32>, vector<32x32xf32>, vector<32x32xf32>, vector<32x32xf32>, vector<32x32xf32>, vector<32x32xf32> -> vector<512x32xf32>
    %c0_9 = arith.constant 0 : index
    %c0_10 = arith.constant 0 : index
    %7 = vector.load %arg5[%c0_9, %c0_10] : memref<512x32xf32, #tpu.memory_space<vmem>>, vector<512x32xf32>
    %8 = arith.mulf %6, %7 : vector<512x32xf32>
    %9 = arith.truncf %8 : vector<512x32xf32> to vector<512x32xbf16>
    %c0_11 = arith.constant 0 : index
    %c0_12 = arith.constant 0 : index
    %10 = vector.load %arg3[%c0_11, %c0_12] : memref<128x512xbf16, #tpu.memory_space<vmem>>, vector<128x512xbf16>
    %cst = arith.constant dense<0.000000e+00> : vector<128x32xf32>
    %11 = tpu.matmul %10, %9, %cst {dimension_numbers = #tpu.dot_dimension_numbers<[1], [0], [0], [1], [0, 0, 1, 1], [], []>} : vector<128x512xbf16>, vector<512x32xbf16>, vector<128x32xf32> -> vector<128x32xf32>
    %c0_13 = arith.constant 0 : index
    %c0_14 = arith.constant 0 : index
    %12 = vector.load %arg4[%c0_13, %c0_14] : memref<128x32xf32, #tpu.memory_space<vmem>>, vector<128x32xf32>
    %13 = arith.addf %11, %12 : vector<128x32xf32>
    %c0_15 = arith.constant 0 : index
    %c0_16 = arith.constant 0 : index
    %14 = vector.load %arg10[%c0_15, %c0_16] : memref<128x1xf32, #tpu.memory_space<vmem>>, vector<128x1xf32>
    %c0_17 = arith.constant 0 : index
    %c0_18 = arith.constant 0 : index
    %15 = vector.load %arg11[%c0_17, %c0_18] : memref<128x1xf32, #tpu.memory_space<vmem>>, vector<128x1xf32>
    %cst_19 = arith.constant dense<0.000000e+00> : vector<128xf32>
    %16 = vector.multi_reduction <add>, %13, %cst_19 [1] : vector<128x32xf32> to vector<128xf32>
    %17 = vector.shape_cast %16 : vector<128xf32> to vector<128x1xf32>
    %18 = arith.mulf %13, %13 : vector<128x32xf32>
    %cst_20 = arith.constant dense<0.000000e+00> : vector<128xf32>
    %19 = vector.multi_reduction <add>, %18, %cst_20 [1] : vector<128x32xf32> to vector<128xf32>
    %20 = vector.shape_cast %19 : vector<128xf32> to vector<128x1xf32>
    %cst_21 = arith.constant 3.125000e-02 : f32
    %21 = vector.broadcast %cst_21 : f32 to vector<128x1xf32>
    %22 = arith.mulf %17, %21 : vector<128x1xf32>
    %cst_22 = arith.constant 3.125000e-02 : f32
    %23 = vector.broadcast %cst_22 : f32 to vector<128x1xf32>
    %24 = arith.mulf %20, %23 : vector<128x1xf32>
    %25 = arith.mulf %22, %22 : vector<128x1xf32>
    %26 = arith.subf %24, %25 : vector<128x1xf32>
    %cst_23 = arith.constant 0.000000e+00 : f32
    %27 = vector.broadcast %cst_23 : f32 to vector<128x1xf32>
    %28 = arith.maximumf %26, %27 : vector<128x1xf32>
    %cst_24 = arith.constant 9.99999974E-6 : f32
    %29 = vector.broadcast %cst_24 : f32 to vector<128x1xf32>
    %30 = arith.addf %28, %29 : vector<128x1xf32>
    %31 = math.rsqrt %30 : vector<128x1xf32>
    %32 = arith.mulf %14, %31 : vector<128x1xf32>
    %33 = arith.mulf %22, %32 : vector<128x1xf32>
    %34 = arith.subf %15, %33 : vector<128x1xf32>
    %35 = vector.broadcast %32 : vector<128x1xf32> to vector<128x32xf32>
    %36 = arith.mulf %13, %35 : vector<128x32xf32>
    %37 = vector.broadcast %34 : vector<128x1xf32> to vector<128x32xf32>
    %38 = arith.addf %36, %37 : vector<128x32xf32>
    %39 = arith.truncf %38 : vector<128x32xf32> to vector<128x32xbf16>
    %c0_25 = arith.constant 0 : index
    %c0_26 = arith.constant 0 : index
    %40 = vector.load %arg6[%c0_25, %c0_26] : memref<32x128xbf16, #tpu.memory_space<vmem>>, vector<32x128xbf16>
    %cst_27 = arith.constant dense<0.000000e+00> : vector<128x128xf32>
    %41 = tpu.matmul %39, %40, %cst_27 {dimension_numbers = #tpu.dot_dimension_numbers<[1], [0], [0], [1], [0, 0, 1, 1], [], []>} : vector<128x32xbf16>, vector<32x128xbf16>, vector<128x128xf32> -> vector<128x128xf32>
    %42 = arith.truncf %41 : vector<128x128xf32> to vector<128x128xbf16>
    %43 = vector.extract_strided_slice %42 {offsets = [0, 110], sizes = [128, 18], strides = [1, 1]} : vector<128x128xbf16> to vector<128x18xbf16>
    %44 = vector.extract_strided_slice %42 {offsets = [0, 0], sizes = [128, 110], strides = [1, 1]} : vector<128x128xbf16> to vector<128x110xbf16>
    %45 = tpu.concatenate %43, %44 in 1 : vector<128x18xbf16>, vector<128x110xbf16> -> vector<128x128xbf16>
    %46 = vector.extract_strided_slice %0 {offsets = [0, 0, 0], sizes = [1, 1, 128], strides = [1, 1, 1]} : vector<9x1x128xbf16> to vector<1x1x128xbf16>
    %47 = vector.shape_cast %46 : vector<1x1x128xbf16> to vector<1x128xbf16>
    %48 = vector.broadcast %47 : vector<1x128xbf16> to vector<128x128xbf16>
    %49 = arith.mulf %45, %48 : vector<128x128xbf16>
    %50 = vector.extract_strided_slice %42 {offsets = [0, 112], sizes = [128, 16], strides = [1, 1]} : vector<128x128xbf16> to vector<128x16xbf16>
    %51 = vector.extract_strided_slice %42 {offsets = [0, 0], sizes = [128, 112], strides = [1, 1]} : vector<128x128xbf16> to vector<128x112xbf16>
    %52 = tpu.concatenate %50, %51 in 1 : vector<128x16xbf16>, vector<128x112xbf16> -> vector<128x128xbf16>
    %53 = vector.extract_strided_slice %0 {offsets = [1, 0, 0], sizes = [1, 1, 128], strides = [1, 1, 1]} : vector<9x1x128xbf16> to vector<1x1x128xbf16>
    %54 = vector.shape_cast %53 : vector<1x1x128xbf16> to vector<1x128xbf16>
    %55 = vector.broadcast %54 : vector<1x128xbf16> to vector<128x128xbf16>
    %56 = arith.mulf %52, %55 : vector<128x128xbf16>
    %57 = vector.extract_strided_slice %42 {offsets = [0, 114], sizes = [128, 14], strides = [1, 1]} : vector<128x128xbf16> to vector<128x14xbf16>
    %58 = vector.extract_strided_slice %42 {offsets = [0, 0], sizes = [128, 114], strides = [1, 1]} : vector<128x128xbf16> to vector<128x114xbf16>
    %59 = tpu.concatenate %57, %58 in 1 : vector<128x14xbf16>, vector<128x114xbf16> -> vector<128x128xbf16>
    %60 = vector.extract_strided_slice %0 {offsets = [2, 0, 0], sizes = [1, 1, 128], strides = [1, 1, 1]} : vector<9x1x128xbf16> to vector<1x1x128xbf16>
    %61 = vector.shape_cast %60 : vector<1x1x128xbf16> to vector<1x128xbf16>
    %62 = vector.broadcast %61 : vector<1x128xbf16> to vector<128x128xbf16>
    %63 = arith.mulf %59, %62 : vector<128x128xbf16>
    %64 = vector.extract_strided_slice %42 {offsets = [0, 126], sizes = [128, 2], strides = [1, 1]} : vector<128x128xbf16> to vector<128x2xbf16>
    %65 = vector.extract_strided_slice %42 {offsets = [0, 0], sizes = [128, 126], strides = [1, 1]} : vector<128x128xbf16> to vector<128x126xbf16>
    %66 = tpu.concatenate %64, %65 in 1 : vector<128x2xbf16>, vector<128x126xbf16> -> vector<128x128xbf16>
    %67 = vector.extract_strided_slice %0 {offsets = [3, 0, 0], sizes = [1, 1, 128], strides = [1, 1, 1]} : vector<9x1x128xbf16> to vector<1x1x128xbf16>
    %68 = vector.shape_cast %67 : vector<1x1x128xbf16> to vector<1x128xbf16>
    %69 = vector.broadcast %68 : vector<1x128xbf16> to vector<128x128xbf16>
    %70 = arith.mulf %66, %69 : vector<128x128xbf16>
    %71 = vector.extract_strided_slice %42 {offsets = [0, 2], sizes = [128, 126], strides = [1, 1]} : vector<128x128xbf16> to vector<128x126xbf16>
    %72 = vector.extract_strided_slice %42 {offsets = [0, 0], sizes = [128, 2], strides = [1, 1]} : vector<128x128xbf16> to vector<128x2xbf16>
    %73 = tpu.concatenate %71, %72 in 1 : vector<128x126xbf16>, vector<128x2xbf16> -> vector<128x128xbf16>
    %74 = vector.extract_strided_slice %0 {offsets = [5, 0, 0], sizes = [1, 1, 128], strides = [1, 1, 1]} : vector<9x1x128xbf16> to vector<1x1x128xbf16>
    %75 = vector.shape_cast %74 : vector<1x1x128xbf16> to vector<1x128xbf16>
    %76 = vector.broadcast %75 : vector<1x128xbf16> to vector<128x128xbf16>
    %77 = arith.mulf %73, %76 : vector<128x128xbf16>
    %78 = vector.extract_strided_slice %42 {offsets = [0, 14], sizes = [128, 114], strides = [1, 1]} : vector<128x128xbf16> to vector<128x114xbf16>
    %79 = vector.extract_strided_slice %42 {offsets = [0, 0], sizes = [128, 14], strides = [1, 1]} : vector<128x128xbf16> to vector<128x14xbf16>
    %80 = tpu.concatenate %78, %79 in 1 : vector<128x114xbf16>, vector<128x14xbf16> -> vector<128x128xbf16>
    %81 = vector.extract_strided_slice %0 {offsets = [6, 0, 0], sizes = [1, 1, 128], strides = [1, 1, 1]} : vector<9x1x128xbf16> to vector<1x1x128xbf16>
    %82 = vector.shape_cast %81 : vector<1x1x128xbf16> to vector<1x128xbf16>
    %83 = vector.broadcast %82 : vector<1x128xbf16> to vector<128x128xbf16>
    %84 = arith.mulf %80, %83 : vector<128x128xbf16>
    %85 = vector.extract_strided_slice %42 {offsets = [0, 16], sizes = [128, 112], strides = [1, 1]} : vector<128x128xbf16> to vector<128x112xbf16>
    %86 = vector.extract_strided_slice %42 {offsets = [0, 0], sizes = [128, 16], strides = [1, 1]} : vector<128x128xbf16> to vector<128x16xbf16>
    %87 = tpu.concatenate %85, %86 in 1 : vector<128x112xbf16>, vector<128x16xbf16> -> vector<128x128xbf16>
    %88 = vector.extract_strided_slice %0 {offsets = [7, 0, 0], sizes = [1, 1, 128], strides = [1, 1, 1]} : vector<9x1x128xbf16> to vector<1x1x128xbf16>
    %89 = vector.shape_cast %88 : vector<1x1x128xbf16> to vector<1x128xbf16>
    %90 = vector.broadcast %89 : vector<1x128xbf16> to vector<128x128xbf16>
    %91 = arith.mulf %87, %90 : vector<128x128xbf16>
    %92 = vector.extract_strided_slice %42 {offsets = [0, 18], sizes = [128, 110], strides = [1, 1]} : vector<128x128xbf16> to vector<128x110xbf16>
    %93 = vector.extract_strided_slice %42 {offsets = [0, 0], sizes = [128, 18], strides = [1, 1]} : vector<128x128xbf16> to vector<128x18xbf16>
    %94 = tpu.concatenate %92, %93 in 1 : vector<128x110xbf16>, vector<128x18xbf16> -> vector<128x128xbf16>
    %95 = vector.extract_strided_slice %0 {offsets = [8, 0, 0], sizes = [1, 1, 128], strides = [1, 1, 1]} : vector<9x1x128xbf16> to vector<1x1x128xbf16>
    %96 = vector.shape_cast %95 : vector<1x1x128xbf16> to vector<1x128xbf16>
    %97 = vector.broadcast %96 : vector<1x128xbf16> to vector<128x128xbf16>
    %98 = arith.mulf %94, %97 : vector<128x128xbf16>
    %99 = tpu.concatenate %49, %56, %63, %70, %42, %77, %84, %91, %98 in 0 : vector<128x128xbf16>, vector<128x128xbf16>, vector<128x128xbf16>, vector<128x128xbf16>, vector<128x128xbf16>, vector<128x128xbf16>, vector<128x128xbf16>, vector<128x128xbf16>, vector<128x128xbf16> -> vector<1152x128xbf16>
    %c0_28 = arith.constant 0 : index
    %c0_29 = arith.constant 0 : index
    %100 = vector.load %arg12[%c0_28, %c0_29] : memref<128x1152xbf16, #tpu.memory_space<vmem>>, vector<128x1152xbf16>
    %cst_30 = arith.constant dense<0.000000e+00> : vector<128x128xf32>
    %101 = tpu.matmul %100, %99, %cst_30 {dimension_numbers = #tpu.dot_dimension_numbers<[1], [0], [0], [1], [0, 0, 1, 1], [], []>} : vector<128x1152xbf16>, vector<1152x128xbf16>, vector<128x128xf32> -> vector<128x128xf32>
    %c0_31 = arith.constant 0 : index
    %c0_32 = arith.constant 0 : index
    %102 = vector.load %arg13[%c0_31, %c0_32] : memref<128x1xf32, #tpu.memory_space<vmem>>, vector<128x1xf32>
    %103 = vector.broadcast %102 : vector<128x1xf32> to vector<128x128xf32>
    %104 = arith.addf %101, %103 : vector<128x128xf32>
    %c0_33 = arith.constant 0 : index
    %c0_34 = arith.constant 0 : index
    %105 = vector.load %arg14[%c0_33, %c0_34] : memref<128x1xf32, #tpu.memory_space<vmem>>, vector<128x1xf32>
    %c0_35 = arith.constant 0 : index
    %c0_36 = arith.constant 0 : index
    %106 = vector.load %arg15[%c0_35, %c0_36] : memref<128x1xf32, #tpu.memory_space<vmem>>, vector<128x1xf32>
    %cst_37 = arith.constant dense<0.000000e+00> : vector<128xf32>
    %107 = vector.multi_reduction <add>, %104, %cst_37 [1] : vector<128x128xf32> to vector<128xf32>
    %108 = vector.shape_cast %107 : vector<128xf32> to vector<128x1xf32>
    %109 = arith.mulf %104, %104 : vector<128x128xf32>
    %cst_38 = arith.constant dense<0.000000e+00> : vector<128xf32>
    %110 = vector.multi_reduction <add>, %109, %cst_38 [1] : vector<128x128xf32> to vector<128xf32>
    %111 = vector.shape_cast %110 : vector<128xf32> to vector<128x1xf32>
    %cst_39 = arith.constant 7.812500e-03 : f32
    %112 = vector.broadcast %cst_39 : f32 to vector<128x1xf32>
    %113 = arith.mulf %108, %112 : vector<128x1xf32>
    %cst_40 = arith.constant 7.812500e-03 : f32
    %114 = vector.broadcast %cst_40 : f32 to vector<128x1xf32>
    %115 = arith.mulf %111, %114 : vector<128x1xf32>
    %116 = arith.mulf %113, %113 : vector<128x1xf32>
    %117 = arith.subf %115, %116 : vector<128x1xf32>
    %cst_41 = arith.constant 0.000000e+00 : f32
    %118 = vector.broadcast %cst_41 : f32 to vector<128x1xf32>
    %119 = arith.maximumf %117, %118 : vector<128x1xf32>
    %cst_42 = arith.constant 8.000000e-01 : f32
    %120 = vector.broadcast %cst_42 : f32 to vector<128x1xf32>
    %121 = arith.addf %119, %120 : vector<128x1xf32>
    %122 = math.rsqrt %121 : vector<128x1xf32>
    %123 = arith.mulf %105, %122 : vector<128x1xf32>
    %124 = arith.mulf %113, %123 : vector<128x1xf32>
    %125 = arith.subf %106, %124 : vector<128x1xf32>
    %126 = arith.truncf %104 : vector<128x128xf32> to vector<128x128xbf16>
    %127 = arith.extf %126 : vector<128x128xbf16> to vector<128x128xf32>
    %128 = vector.broadcast %123 : vector<128x1xf32> to vector<128x128xf32>
    %129 = arith.mulf %127, %128 : vector<128x128xf32>
    %130 = vector.broadcast %125 : vector<128x1xf32> to vector<128x128xf32>
    %131 = arith.addf %129, %130 : vector<128x128xf32>
    %cst_43 = arith.constant 0.000000e+00 : f32
    %132 = vector.broadcast %cst_43 : f32 to vector<128x128xf32>
    %133 = arith.cmpf oge, %131, %132 : vector<128x128xf32>
    %cst_44 = arith.constant 2.000000e-01 : f32
    %134 = vector.broadcast %cst_44 : f32 to vector<128x128xf32>
    %135 = arith.mulf %134, %131 : vector<128x128xf32>
    %136 = arith.select %133, %131, %135 : vector<128x128xi1>, vector<128x128xf32>
    %137 = arith.truncf %136 : vector<128x128xf32> to vector<128x128xbf16>
    %c0_45 = arith.constant 0 : index
    %c0_46 = arith.constant 0 : index
    %138 = vector.load %arg7[%c0_45, %c0_46] : memref<128x512xbf16, #tpu.memory_space<vmem>>, vector<128x512xbf16>
    %cst_47 = arith.constant dense<0.000000e+00> : vector<128x512xf32>
    %139 = tpu.matmul %137, %138, %cst_47 {dimension_numbers = #tpu.dot_dimension_numbers<[1], [0], [0], [1], [0, 0, 1, 1], [], []>} : vector<128x128xbf16>, vector<128x512xbf16>, vector<128x512xf32> -> vector<128x512xf32>
    %140 = arith.truncf %139 : vector<128x512xf32> to vector<128x512xbf16>
    %141 = vector.extract_strided_slice %140 {offsets = [0, 478], sizes = [128, 34], strides = [1, 1]} : vector<128x512xbf16> to vector<128x34xbf16>
    %142 = vector.extract_strided_slice %140 {offsets = [0, 0], sizes = [128, 478], strides = [1, 1]} : vector<128x512xbf16> to vector<128x478xbf16>
    %143 = tpu.concatenate %141, %142 in 1 : vector<128x34xbf16>, vector<128x478xbf16> -> vector<128x512xbf16>
    %144 = vector.extract_strided_slice %1 {offsets = [0, 0, 0], sizes = [1, 1, 512], strides = [1, 1, 1]} : vector<9x1x512xbf16> to vector<1x1x512xbf16>
    %145 = vector.shape_cast %144 : vector<1x1x512xbf16> to vector<1x512xbf16>
    %146 = vector.broadcast %145 : vector<1x512xbf16> to vector<128x512xbf16>
    %147 = arith.mulf %143, %146 : vector<128x512xbf16>
    %148 = vector.extract_strided_slice %140 {offsets = [0, 480], sizes = [128, 32], strides = [1, 1]} : vector<128x512xbf16> to vector<128x32xbf16>
    %149 = vector.extract_strided_slice %140 {offsets = [0, 0], sizes = [128, 480], strides = [1, 1]} : vector<128x512xbf16> to vector<128x480xbf16>
    %150 = tpu.concatenate %148, %149 in 1 : vector<128x32xbf16>, vector<128x480xbf16> -> vector<128x512xbf16>
    %151 = vector.extract_strided_slice %1 {offsets = [1, 0, 0], sizes = [1, 1, 512], strides = [1, 1, 1]} : vector<9x1x512xbf16> to vector<1x1x512xbf16>
    %152 = vector.shape_cast %151 : vector<1x1x512xbf16> to vector<1x512xbf16>
    %153 = vector.broadcast %152 : vector<1x512xbf16> to vector<128x512xbf16>
    %154 = arith.mulf %150, %153 : vector<128x512xbf16>
    %155 = vector.extract_strided_slice %140 {offsets = [0, 482], sizes = [128, 30], strides = [1, 1]} : vector<128x512xbf16> to vector<128x30xbf16>
    %156 = vector.extract_strided_slice %140 {offsets = [0, 0], sizes = [128, 482], strides = [1, 1]} : vector<128x512xbf16> to vector<128x482xbf16>
    %157 = tpu.concatenate %155, %156 in 1 : vector<128x30xbf16>, vector<128x482xbf16> -> vector<128x512xbf16>
    %158 = vector.extract_strided_slice %1 {offsets = [2, 0, 0], sizes = [1, 1, 512], strides = [1, 1, 1]} : vector<9x1x512xbf16> to vector<1x1x512xbf16>
    %159 = vector.shape_cast %158 : vector<1x1x512xbf16> to vector<1x512xbf16>
    %160 = vector.broadcast %159 : vector<1x512xbf16> to vector<128x512xbf16>
    %161 = arith.mulf %157, %160 : vector<128x512xbf16>
    %162 = vector.extract_strided_slice %140 {offsets = [0, 510], sizes = [128, 2], strides = [1, 1]} : vector<128x512xbf16> to vector<128x2xbf16>
    %163 = vector.extract_strided_slice %140 {offsets = [0, 0], sizes = [128, 510], strides = [1, 1]} : vector<128x512xbf16> to vector<128x510xbf16>
    %164 = tpu.concatenate %162, %163 in 1 : vector<128x2xbf16>, vector<128x510xbf16> -> vector<128x512xbf16>
    %165 = vector.extract_strided_slice %1 {offsets = [3, 0, 0], sizes = [1, 1, 512], strides = [1, 1, 1]} : vector<9x1x512xbf16> to vector<1x1x512xbf16>
    %166 = vector.shape_cast %165 : vector<1x1x512xbf16> to vector<1x512xbf16>
    %167 = vector.broadcast %166 : vector<1x512xbf16> to vector<128x512xbf16>
    %168 = arith.mulf %164, %167 : vector<128x512xbf16>
    %169 = vector.extract_strided_slice %140 {offsets = [0, 2], sizes = [128, 510], strides = [1, 1]} : vector<128x512xbf16> to vector<128x510xbf16>
    %170 = vector.extract_strided_slice %140 {offsets = [0, 0], sizes = [128, 2], strides = [1, 1]} : vector<128x512xbf16> to vector<128x2xbf16>
    %171 = tpu.concatenate %169, %170 in 1 : vector<128x510xbf16>, vector<128x2xbf16> -> vector<128x512xbf16>
    %172 = vector.extract_strided_slice %1 {offsets = [5, 0, 0], sizes = [1, 1, 512], strides = [1, 1, 1]} : vector<9x1x512xbf16> to vector<1x1x512xbf16>
    %173 = vector.shape_cast %172 : vector<1x1x512xbf16> to vector<1x512xbf16>
    %174 = vector.broadcast %173 : vector<1x512xbf16> to vector<128x512xbf16>
    %175 = arith.mulf %171, %174 : vector<128x512xbf16>
    %176 = vector.extract_strided_slice %140 {offsets = [0, 30], sizes = [128, 482], strides = [1, 1]} : vector<128x512xbf16> to vector<128x482xbf16>
    %177 = vector.extract_strided_slice %140 {offsets = [0, 0], sizes = [128, 30], strides = [1, 1]} : vector<128x512xbf16> to vector<128x30xbf16>
    %178 = tpu.concatenate %176, %177 in 1 : vector<128x482xbf16>, vector<128x30xbf16> -> vector<128x512xbf16>
    %179 = vector.extract_strided_slice %1 {offsets = [6, 0, 0], sizes = [1, 1, 512], strides = [1, 1, 1]} : vector<9x1x512xbf16> to vector<1x1x512xbf16>
    %180 = vector.shape_cast %179 : vector<1x1x512xbf16> to vector<1x512xbf16>
    %181 = vector.broadcast %180 : vector<1x512xbf16> to vector<128x512xbf16>
    %182 = arith.mulf %178, %181 : vector<128x512xbf16>
    %183 = vector.extract_strided_slice %140 {offsets = [0, 32], sizes = [128, 480], strides = [1, 1]} : vector<128x512xbf16> to vector<128x480xbf16>
    %184 = vector.extract_strided_slice %140 {offsets = [0, 0], sizes = [128, 32], strides = [1, 1]} : vector<128x512xbf16> to vector<128x32xbf16>
    %185 = tpu.concatenate %183, %184 in 1 : vector<128x480xbf16>, vector<128x32xbf16> -> vector<128x512xbf16>
    %186 = vector.extract_strided_slice %1 {offsets = [7, 0, 0], sizes = [1, 1, 512], strides = [1, 1, 1]} : vector<9x1x512xbf16> to vector<1x1x512xbf16>
    %187 = vector.shape_cast %186 : vector<1x1x512xbf16> to vector<1x512xbf16>
    %188 = vector.broadcast %187 : vector<1x512xbf16> to vector<128x512xbf16>
    %189 = arith.mulf %185, %188 : vector<128x512xbf16>
    %190 = vector.extract_strided_slice %140 {offsets = [0, 34], sizes = [128, 478], strides = [1, 1]} : vector<128x512xbf16> to vector<128x478xbf16>
    %191 = vector.extract_strided_slice %140 {offsets = [0, 0], sizes = [128, 34], strides = [1, 1]} : vector<128x512xbf16> to vector<128x34xbf16>
    %192 = tpu.concatenate %190, %191 in 1 : vector<128x478xbf16>, vector<128x34xbf16> -> vector<128x512xbf16>
    %193 = vector.extract_strided_slice %1 {offsets = [8, 0, 0], sizes = [1, 1, 512], strides = [1, 1, 1]} : vector<9x1x512xbf16> to vector<1x1x512xbf16>
    %194 = vector.shape_cast %193 : vector<1x1x512xbf16> to vector<1x512xbf16>
    %195 = vector.broadcast %194 : vector<1x512xbf16> to vector<128x512xbf16>
    %196 = arith.mulf %192, %195 : vector<128x512xbf16>
    %197 = tpu.concatenate %147, %154, %161, %168, %140, %175, %182, %189, %196 in 0 : vector<128x512xbf16>, vector<128x512xbf16>, vector<128x512xbf16>, vector<128x512xbf16>, vector<128x512xbf16>, vector<128x512xbf16>, vector<128x512xbf16>, vector<128x512xbf16>, vector<128x512xbf16> -> vector<1152x512xbf16>
    %c0_48 = arith.constant 0 : index
    %c0_49 = arith.constant 0 : index
    %198 = vector.load %arg16[%c0_48, %c0_49] : memref<64x1152xbf16, #tpu.memory_space<vmem>>, vector<64x1152xbf16>
    %cst_50 = arith.constant dense<0.000000e+00> : vector<64x512xf32>
    %199 = tpu.matmul %198, %197, %cst_50 {dimension_numbers = #tpu.dot_dimension_numbers<[1], [0], [0], [1], [0, 0, 1, 1], [], []>} : vector<64x1152xbf16>, vector<1152x512xbf16>, vector<64x512xf32> -> vector<64x512xf32>
    %c0_51 = arith.constant 0 : index
    %c0_52 = arith.constant 0 : index
    %200 = vector.load %arg17[%c0_51, %c0_52] : memref<64x1xf32, #tpu.memory_space<vmem>>, vector<64x1xf32>
    %201 = vector.broadcast %200 : vector<64x1xf32> to vector<64x512xf32>
    %202 = arith.addf %199, %201 : vector<64x512xf32>
    %c0_53 = arith.constant 0 : index
    %c0_54 = arith.constant 0 : index
    %203 = vector.load %arg18[%c0_53, %c0_54] : memref<64x1xf32, #tpu.memory_space<vmem>>, vector<64x1xf32>
    %c0_55 = arith.constant 0 : index
    %c0_56 = arith.constant 0 : index
    %204 = vector.load %arg19[%c0_55, %c0_56] : memref<64x1xf32, #tpu.memory_space<vmem>>, vector<64x1xf32>
    %cst_57 = arith.constant dense<0.000000e+00> : vector<64xf32>
    %205 = vector.multi_reduction <add>, %202, %cst_57 [1] : vector<64x512xf32> to vector<64xf32>
    %206 = vector.shape_cast %205 : vector<64xf32> to vector<64x1xf32>
    %207 = arith.mulf %202, %202 : vector<64x512xf32>
    %cst_58 = arith.constant dense<0.000000e+00> : vector<64xf32>
    %208 = vector.multi_reduction <add>, %207, %cst_58 [1] : vector<64x512xf32> to vector<64xf32>
    %209 = vector.shape_cast %208 : vector<64xf32> to vector<64x1xf32>
    %cst_59 = arith.constant 0.001953125 : f32
    %210 = vector.broadcast %cst_59 : f32 to vector<64x1xf32>
    %211 = arith.mulf %206, %210 : vector<64x1xf32>
    %cst_60 = arith.constant 0.001953125 : f32
    %212 = vector.broadcast %cst_60 : f32 to vector<64x1xf32>
    %213 = arith.mulf %209, %212 : vector<64x1xf32>
    %214 = arith.mulf %211, %211 : vector<64x1xf32>
    %215 = arith.subf %213, %214 : vector<64x1xf32>
    %cst_61 = arith.constant 0.000000e+00 : f32
    %216 = vector.broadcast %cst_61 : f32 to vector<64x1xf32>
    %217 = arith.maximumf %215, %216 : vector<64x1xf32>
    %cst_62 = arith.constant 8.000000e-01 : f32
    %218 = vector.broadcast %cst_62 : f32 to vector<64x1xf32>
    %219 = arith.addf %217, %218 : vector<64x1xf32>
    %220 = math.rsqrt %219 : vector<64x1xf32>
    %221 = arith.mulf %203, %220 : vector<64x1xf32>
    %222 = arith.mulf %211, %221 : vector<64x1xf32>
    %223 = arith.subf %204, %222 : vector<64x1xf32>
    %224 = arith.truncf %202 : vector<64x512xf32> to vector<64x512xbf16>
    %225 = arith.extf %224 : vector<64x512xbf16> to vector<64x512xf32>
    %226 = vector.broadcast %221 : vector<64x1xf32> to vector<64x512xf32>
    %227 = arith.mulf %225, %226 : vector<64x512xf32>
    %228 = vector.broadcast %223 : vector<64x1xf32> to vector<64x512xf32>
    %229 = arith.addf %227, %228 : vector<64x512xf32>
    %cst_63 = arith.constant 0.000000e+00 : f32
    %230 = vector.broadcast %cst_63 : f32 to vector<64x512xf32>
    %231 = arith.cmpf oge, %229, %230 : vector<64x512xf32>
    %cst_64 = arith.constant 2.000000e-01 : f32
    %232 = vector.broadcast %cst_64 : f32 to vector<64x512xf32>
    %233 = arith.mulf %232, %229 : vector<64x512xf32>
    %234 = arith.select %231, %229, %233 : vector<64x512xi1>, vector<64x512xf32>
    %235 = arith.truncf %234 : vector<64x512xf32> to vector<64x512xbf16>
    %236 = vector.extract_strided_slice %235 {offsets = [0, 478], sizes = [64, 34], strides = [1, 1]} : vector<64x512xbf16> to vector<64x34xbf16>
    %237 = vector.extract_strided_slice %235 {offsets = [0, 0], sizes = [64, 478], strides = [1, 1]} : vector<64x512xbf16> to vector<64x478xbf16>
    %238 = tpu.concatenate %236, %237 in 1 : vector<64x34xbf16>, vector<64x478xbf16> -> vector<64x512xbf16>
    %239 = vector.extract_strided_slice %1 {offsets = [0, 0, 0], sizes = [1, 1, 512], strides = [1, 1, 1]} : vector<9x1x512xbf16> to vector<1x1x512xbf16>
    %240 = vector.shape_cast %239 : vector<1x1x512xbf16> to vector<1x512xbf16>
    %241 = vector.broadcast %240 : vector<1x512xbf16> to vector<64x512xbf16>
    %242 = arith.mulf %238, %241 : vector<64x512xbf16>
    %243 = vector.extract_strided_slice %235 {offsets = [0, 480], sizes = [64, 32], strides = [1, 1]} : vector<64x512xbf16> to vector<64x32xbf16>
    %244 = vector.extract_strided_slice %235 {offsets = [0, 0], sizes = [64, 480], strides = [1, 1]} : vector<64x512xbf16> to vector<64x480xbf16>
    %245 = tpu.concatenate %243, %244 in 1 : vector<64x32xbf16>, vector<64x480xbf16> -> vector<64x512xbf16>
    %246 = vector.extract_strided_slice %1 {offsets = [1, 0, 0], sizes = [1, 1, 512], strides = [1, 1, 1]} : vector<9x1x512xbf16> to vector<1x1x512xbf16>
    %247 = vector.shape_cast %246 : vector<1x1x512xbf16> to vector<1x512xbf16>
    %248 = vector.broadcast %247 : vector<1x512xbf16> to vector<64x512xbf16>
    %249 = arith.mulf %245, %248 : vector<64x512xbf16>
    %250 = vector.extract_strided_slice %235 {offsets = [0, 482], sizes = [64, 30], strides = [1, 1]} : vector<64x512xbf16> to vector<64x30xbf16>
    %251 = vector.extract_strided_slice %235 {offsets = [0, 0], sizes = [64, 482], strides = [1, 1]} : vector<64x512xbf16> to vector<64x482xbf16>
    %252 = tpu.concatenate %250, %251 in 1 : vector<64x30xbf16>, vector<64x482xbf16> -> vector<64x512xbf16>
    %253 = vector.extract_strided_slice %1 {offsets = [2, 0, 0], sizes = [1, 1, 512], strides = [1, 1, 1]} : vector<9x1x512xbf16> to vector<1x1x512xbf16>
    %254 = vector.shape_cast %253 : vector<1x1x512xbf16> to vector<1x512xbf16>
    %255 = vector.broadcast %254 : vector<1x512xbf16> to vector<64x512xbf16>
    %256 = arith.mulf %252, %255 : vector<64x512xbf16>
    %257 = vector.extract_strided_slice %235 {offsets = [0, 510], sizes = [64, 2], strides = [1, 1]} : vector<64x512xbf16> to vector<64x2xbf16>
    %258 = vector.extract_strided_slice %235 {offsets = [0, 0], sizes = [64, 510], strides = [1, 1]} : vector<64x512xbf16> to vector<64x510xbf16>
    %259 = tpu.concatenate %257, %258 in 1 : vector<64x2xbf16>, vector<64x510xbf16> -> vector<64x512xbf16>
    %260 = vector.extract_strided_slice %1 {offsets = [3, 0, 0], sizes = [1, 1, 512], strides = [1, 1, 1]} : vector<9x1x512xbf16> to vector<1x1x512xbf16>
    %261 = vector.shape_cast %260 : vector<1x1x512xbf16> to vector<1x512xbf16>
    %262 = vector.broadcast %261 : vector<1x512xbf16> to vector<64x512xbf16>
    %263 = arith.mulf %259, %262 : vector<64x512xbf16>
    %264 = vector.extract_strided_slice %235 {offsets = [0, 2], sizes = [64, 510], strides = [1, 1]} : vector<64x512xbf16> to vector<64x510xbf16>
    %265 = vector.extract_strided_slice %235 {offsets = [0, 0], sizes = [64, 2], strides = [1, 1]} : vector<64x512xbf16> to vector<64x2xbf16>
    %266 = tpu.concatenate %264, %265 in 1 : vector<64x510xbf16>, vector<64x2xbf16> -> vector<64x512xbf16>
    %267 = vector.extract_strided_slice %1 {offsets = [5, 0, 0], sizes = [1, 1, 512], strides = [1, 1, 1]} : vector<9x1x512xbf16> to vector<1x1x512xbf16>
    %268 = vector.shape_cast %267 : vector<1x1x512xbf16> to vector<1x512xbf16>
    %269 = vector.broadcast %268 : vector<1x512xbf16> to vector<64x512xbf16>
    %270 = arith.mulf %266, %269 : vector<64x512xbf16>
    %271 = vector.extract_strided_slice %235 {offsets = [0, 30], sizes = [64, 482], strides = [1, 1]} : vector<64x512xbf16> to vector<64x482xbf16>
    %272 = vector.extract_strided_slice %235 {offsets = [0, 0], sizes = [64, 30], strides = [1, 1]} : vector<64x512xbf16> to vector<64x30xbf16>
    %273 = tpu.concatenate %271, %272 in 1 : vector<64x482xbf16>, vector<64x30xbf16> -> vector<64x512xbf16>
    %274 = vector.extract_strided_slice %1 {offsets = [6, 0, 0], sizes = [1, 1, 512], strides = [1, 1, 1]} : vector<9x1x512xbf16> to vector<1x1x512xbf16>
    %275 = vector.shape_cast %274 : vector<1x1x512xbf16> to vector<1x512xbf16>
    %276 = vector.broadcast %275 : vector<1x512xbf16> to vector<64x512xbf16>
    %277 = arith.mulf %273, %276 : vector<64x512xbf16>
    %278 = vector.extract_strided_slice %235 {offsets = [0, 32], sizes = [64, 480], strides = [1, 1]} : vector<64x512xbf16> to vector<64x480xbf16>
    %279 = vector.extract_strided_slice %235 {offsets = [0, 0], sizes = [64, 32], strides = [1, 1]} : vector<64x512xbf16> to vector<64x32xbf16>
    %280 = tpu.concatenate %278, %279 in 1 : vector<64x480xbf16>, vector<64x32xbf16> -> vector<64x512xbf16>
    %281 = vector.extract_strided_slice %1 {offsets = [7, 0, 0], sizes = [1, 1, 512], strides = [1, 1, 1]} : vector<9x1x512xbf16> to vector<1x1x512xbf16>
    %282 = vector.shape_cast %281 : vector<1x1x512xbf16> to vector<1x512xbf16>
    %283 = vector.broadcast %282 : vector<1x512xbf16> to vector<64x512xbf16>
    %284 = arith.mulf %280, %283 : vector<64x512xbf16>
    %285 = vector.extract_strided_slice %235 {offsets = [0, 34], sizes = [64, 478], strides = [1, 1]} : vector<64x512xbf16> to vector<64x478xbf16>
    %286 = vector.extract_strided_slice %235 {offsets = [0, 0], sizes = [64, 34], strides = [1, 1]} : vector<64x512xbf16> to vector<64x34xbf16>
    %287 = tpu.concatenate %285, %286 in 1 : vector<64x478xbf16>, vector<64x34xbf16> -> vector<64x512xbf16>
    %288 = vector.extract_strided_slice %1 {offsets = [8, 0, 0], sizes = [1, 1, 512], strides = [1, 1, 1]} : vector<9x1x512xbf16> to vector<1x1x512xbf16>
    %289 = vector.shape_cast %288 : vector<1x1x512xbf16> to vector<1x512xbf16>
    %290 = vector.broadcast %289 : vector<1x512xbf16> to vector<64x512xbf16>
    %291 = arith.mulf %287, %290 : vector<64x512xbf16>
    %292 = tpu.concatenate %242, %249, %256, %263, %235, %270, %277, %284, %291 in 0 : vector<64x512xbf16>, vector<64x512xbf16>, vector<64x512xbf16>, vector<64x512xbf16>, vector<64x512xbf16>, vector<64x512xbf16>, vector<64x512xbf16>, vector<64x512xbf16>, vector<64x512xbf16> -> vector<576x512xbf16>
    %c0_65 = arith.constant 0 : index
    %c0_66 = arith.constant 0 : index
    %293 = vector.load %arg20[%c0_65, %c0_66] : memref<3x576xbf16, #tpu.memory_space<vmem>>, vector<3x576xbf16>
    %cst_67 = arith.constant dense<0.000000e+00> : vector<3x512xf32>
    %294 = tpu.matmul %293, %292, %cst_67 {dimension_numbers = #tpu.dot_dimension_numbers<[1], [0], [0], [1], [0, 0, 1, 1], [], []>} : vector<3x576xbf16>, vector<576x512xbf16>, vector<3x512xf32> -> vector<3x512xf32>
    %c0_68 = arith.constant 0 : index
    %c0_69 = arith.constant 0 : index
    %295 = vector.load %arg21[%c0_68, %c0_69] : memref<3x1xf32, #tpu.memory_space<vmem>>, vector<3x1xf32>
    %296 = vector.broadcast %295 : vector<3x1xf32> to vector<3x512xf32>
    %297 = arith.addf %294, %296 : vector<3x512xf32>
    %298 = math.tanh %297 : vector<3x512xf32>
    %c0_70 = arith.constant 0 : index
    %c0_71 = arith.constant 0 : index
    %299 = vector.load %arg22[%c0_70, %c0_71] : memref<3x512xf32, #tpu.memory_space<vmem>>, vector<3x512xf32>
    tpu.vector_store %arg22[%c0_70, %c0_71], %298 {strides = array<i32>} : memref<3x512xf32, #tpu.memory_space<vmem>>, vector<3x512xf32>,
    return
  }
  func.func @transform_0(%arg0: i32) -> (i32, i32) {
    %c0_i32 = arith.constant 0 : i32
    %c0_i32_0 = arith.constant 0 : i32
    %c0_i32_1 = arith.constant 0 : i32
    return %c0_i32, %c0_i32_0 : i32, i32
  }
  func.func @transform_1(%arg0: i32) -> (i32, i32) {
    %c0_i32 = arith.constant 0 : i32
    %c0_i32_0 = arith.constant 0 : i32
    %c0_i32_1 = arith.constant 0 : i32
    return %c0_i32, %c0_i32_0 : i32, i32
  }
  func.func @transform_2(%arg0: i32) -> (i32, i32) {
    %c0_i32 = arith.constant 0 : i32
    %c0_i32_0 = arith.constant 0 : i32
    %c0_i32_1 = arith.constant 0 : i32
    return %c0_i32, %c0_i32_0 : i32, i32
  }
  func.func @transform_3(%arg0: i32) -> (i32, i32) {
    %c0_i32 = arith.constant 0 : i32
    %c0_i32_0 = arith.constant 0 : i32
    %c0_i32_1 = arith.constant 0 : i32
    return %c0_i32, %c0_i32_0 : i32, i32
  }
  func.func @transform_4(%arg0: i32) -> (i32, i32) {
    %c0_i32 = arith.constant 0 : i32
    %c0_i32_0 = arith.constant 0 : i32
    %c0_i32_1 = arith.constant 0 : i32
    return %c0_i32, %c0_i32_0 : i32, i32
  }
  func.func @transform_5(%arg0: i32) -> (i32, i32) {
    %c0_i32 = arith.constant 0 : i32
    %c0_i32_0 = arith.constant 0 : i32
    %c0_i32_1 = arith.constant 0 : i32
    return %c0_i32, %c0_i32_0 : i32, i32
  }
  func.func @transform_6(%arg0: i32) -> (i32, i32) {
    %c0_i32 = arith.constant 0 : i32
    %c0_i32_0 = arith.constant 0 : i32
    %c0_i32_1 = arith.constant 0 : i32
    return %c0_i32, %c0_i32_0 : i32, i32
  }
  func.func @transform_7(%arg0: i32) -> (i32, i32, i32) {
    %c0_i32 = arith.constant 0 : i32
    %c0_i32_0 = arith.constant 0 : i32
    %c0_i32_1 = arith.constant 0 : i32
    %c0_i32_2 = arith.constant 0 : i32
    return %c0_i32, %c0_i32_0, %c0_i32_1 : i32, i32, i32
  }
  func.func @transform_8(%arg0: i32) -> (i32, i32, i32) {
    %c0_i32 = arith.constant 0 : i32
    %c0_i32_0 = arith.constant 0 : i32
    %c0_i32_1 = arith.constant 0 : i32
    %c0_i32_2 = arith.constant 0 : i32
    return %c0_i32, %c0_i32_0, %c0_i32_1 : i32, i32, i32
  }
  func.func @transform_9(%arg0: i32) -> (i32, i32) {
    %c0_i32 = arith.constant 0 : i32
    %c0_i32_0 = arith.constant 0 : i32
    %c0_i32_1 = arith.constant 0 : i32
    return %c0_i32, %c0_i32_0 : i32, i32
  }
  func.func @transform_10(%arg0: i32) -> (i32, i32) {
    %c0_i32 = arith.constant 0 : i32
    %c0_i32_0 = arith.constant 0 : i32
    %c0_i32_1 = arith.constant 0 : i32
    return %c0_i32, %c0_i32_0 : i32, i32
  }
  func.func @transform_11(%arg0: i32) -> (i32, i32) {
    %c0_i32 = arith.constant 0 : i32
    %c0_i32_0 = arith.constant 0 : i32
    %c0_i32_1 = arith.constant 0 : i32
    return %c0_i32, %c0_i32_0 : i32, i32
  }
  func.func @transform_12(%arg0: i32) -> (i32, i32) {
    %c0_i32 = arith.constant 0 : i32
    %c0_i32_0 = arith.constant 0 : i32
    %c0_i32_1 = arith.constant 0 : i32
    return %c0_i32, %c0_i32_0 : i32, i32
  }
  func.func @transform_13(%arg0: i32) -> (i32, i32) {
    %c0_i32 = arith.constant 0 : i32
    %c0_i32_0 = arith.constant 0 : i32
    %c0_i32_1 = arith.constant 0 : i32
    return %c0_i32, %c0_i32_0 : i32, i32
  }
  func.func @transform_14(%arg0: i32) -> (i32, i32) {
    %c0_i32 = arith.constant 0 : i32
    %c0_i32_0 = arith.constant 0 : i32
    %c0_i32_1 = arith.constant 0 : i32
    return %c0_i32, %c0_i32_0 : i32, i32
  }
  func.func @transform_15(%arg0: i32) -> (i32, i32) {
    %c0_i32 = arith.constant 0 : i32
    %c0_i32_0 = arith.constant 0 : i32
    %c0_i32_1 = arith.constant 0 : i32
    return %c0_i32, %c0_i32_0 : i32, i32
  }
  func.func @transform_16(%arg0: i32) -> (i32, i32) {
    %c0_i32 = arith.constant 0 : i32
    %c0_i32_0 = arith.constant 0 : i32
    %c0_i32_1 = arith.constant 0 : i32
    return %c0_i32, %c0_i32_0 : i32, i32
  }
  func.func @transform_17(%arg0: i32) -> (i32, i32) {
    %c0_i32 = arith.constant 0 : i32
    %c0_i32_0 = arith.constant 0 : i32
    %c0_i32_1 = arith.constant 0 : i32
    return %c0_i32, %c0_i32_0 : i32, i32
  }
  func.func @transform_18(%arg0: i32) -> (i32, i32) {
    %c0_i32 = arith.constant 0 : i32
    %c0_i32_0 = arith.constant 0 : i32
    %c0_i32_1 = arith.constant 0 : i32
    return %c0_i32, %c0_i32_0 : i32, i32
  }
  func.func @transform_19(%arg0: i32) -> (i32, i32) {
    %c0_i32 = arith.constant 0 : i32
    %c0_i32_0 = arith.constant 0 : i32
    %c0_i32_1 = arith.constant 0 : i32
    return %c0_i32, %c0_i32_0 : i32, i32
  }
  func.func @transform_20(%arg0: i32) -> (i32, i32) {
    %c0_i32 = arith.constant 0 : i32
    %c0_i32_0 = arith.constant 0 : i32
    %c0_i32_1 = arith.constant 0 : i32
    return %c0_i32, %c0_i32_0 : i32, i32
  }
  func.func @transform_21(%arg0: i32) -> (i32, i32) {
    %c0_i32 = arith.constant 0 : i32
    %c0_i32_0 = arith.constant 0 : i32
    %c0_i32_1 = arith.constant 0 : i32
    return %c0_i32, %c0_i32_0 : i32, i32
  }
}

</mosaic_0001>

<llo_original>
// kernel: generator_forward.1
$region0: #{generator_forward.1}
  #allocation0 [shape = 'u32[]', space=smem, size = 0x4, offset = 0x4, fixed_abs, tag = 'smem constant byte address 0x4 - core index']
  #allocation1 [shape = 'u32[144,128]{1,0:T(1,128)}', space=vmem, size = 0x12000, scoped, tag = 'internal scratch']
  %s0 = inlined_call_operand.vmem [shape: f32[32,2], index: 0, kind: input, shape index: {}]
  %s1 = inlined_call_operand.vmem [shape: f32[32,2], index: 1, kind: input, shape index: {}]
  %s2 = inlined_call_operand.vmem [shape: bf16[128,512], index: 2, kind: input, shape index: {}]
  %s3 = inlined_call_operand.vmem [shape: f32[128,32], index: 3, kind: input, shape index: {}]
  %s4 = inlined_call_operand.vmem [shape: f32[512,32], index: 4, kind: input, shape index: {}]
  %s5 = inlined_call_operand.vmem [shape: bf16[32,128], index: 5, kind: input, shape index: {}]
  %s6 = inlined_call_operand.vmem [shape: bf16[128,512], index: 6, kind: input, shape index: {}]
  %s7 = inlined_call_operand.vmem [shape: bf16[9,1,128], index: 7, kind: input, shape index: {}]
  %s8 = inlined_call_operand.vmem [shape: bf16[9,1,512], index: 8, kind: input, shape index: {}]
  %s9 = inlined_call_operand.vmem [shape: f32[128,1], index: 9, kind: input, shape index: {}]
  %s10 = inlined_call_operand.vmem [shape: f32[128,1], index: 10, kind: input, shape index: {}]
  %s11 = inlined_call_operand.vmem [shape: bf16[128,1152], index: 11, kind: input, shape index: {}]
  %s12 = inlined_call_operand.vmem [shape: f32[128,1], index: 12, kind: input, shape index: {}]
  %s13 = inlined_call_operand.vmem [shape: f32[128,1], index: 13, kind: input, shape index: {}]
  %s14 = inlined_call_operand.vmem [shape: f32[128,1], index: 14, kind: input, shape index: {}]
  %s15 = inlined_call_operand.vmem [shape: bf16[64,1152], index: 15, kind: input, shape index: {}]
  %s16 = inlined_call_operand.vmem [shape: f32[64,1], index: 16, kind: input, shape index: {}]
  %s17 = inlined_call_operand.vmem [shape: f32[64,1], index: 17, kind: input, shape index: {}]
  %s18 = inlined_call_operand.vmem [shape: f32[64,1], index: 18, kind: input, shape index: {}]
  %s19 = inlined_call_operand.vmem [shape: bf16[3,576], index: 19, kind: input, shape index: {}]
  %s20 = inlined_call_operand.vmem [shape: f32[3,1], index: 20, kind: input, shape index: {}]
  %s21 = inlined_call_operand.vmem [shape: f32[3,512], index: 21, kind: output, shape index: {}]
  %s22 = sld [smem:[#allocation0]]
  $region94: #{generator_forward.1} parent=0
    _
  %s24 = ssub.s32 1, %s22
  %s25 = scalar_select 0, %s24, %s22
  // Predicated region
  $region2: #{generator_forward.1} parent=0 // pred_check
    _
  $region3: #{generator_forward.1} parent=0 // pred_check_branch
    %27 = sbr.rel (0) target = $region5
  $region4: #{generator_forward.1} parent=0 // pred_region
    _
  $region5: #{generator_forward.1} parent=0 // pred_fallthru
    _
  // Predicated region
  $region6: #{generator_forward.1} parent=0 // pred_check
    _
  $region7: #{generator_forward.1} parent=0 // pred_check_branch
    %29 = sbr.rel (0) target = $region9
  $region8: #{generator_forward.1} parent=0 // pred_region
    _
  $region9: #{generator_forward.1} parent=0 // pred_fallthru
    _
  // Predicated region
  $region10: #{generator_forward.1} parent=0 // pred_check
    _
  $region11: #{generator_forward.1} parent=0 // pred_check_branch
    %31 = sbr.rel (0) target = $region13
  $region12: #{generator_forward.1} parent=0 // pred_region
    _
  $region13: #{generator_forward.1} parent=0 // pred_fallthru
    _
  // Predicated region
  $region14: #{generator_forward.1} parent=0 // pred_check
    _
  $region15: #{generator_forward.1} parent=0 // pred_check_branch
    %33 = sbr.rel (0) target = $region17
  $region16: #{generator_forward.1} parent=0 // pred_region
    _
  $region17: #{generator_forward.1} parent=0 // pred_fallthru
    _
  // Predicated region
  $region18: #{generator_forward.1} parent=0 // pred_check
    _
  $region19: #{generator_forward.1} parent=0 // pred_check_branch
    %35 = sbr.rel (0) target = $region21
  $region20: #{generator_forward.1} parent=0 // pred_region
    _
  $region21: #{generator_forward.1} parent=0 // pred_fallthru
    _
  // Predicated region
  $region22: #{generator_forward.1} parent=0 // pred_check
    _
  $region23: #{generator_forward.1} parent=0 // pred_check_branch
    %37 = sbr.rel (0) target = $region25
  $region24: #{generator_forward.1} parent=0 // pred_region
    _
  $region25: #{generator_forward.1} parent=0 // pred_fallthru
    _
  // Predicated region
  $region26: #{generator_forward.1} parent=0 // pred_check
    _
  $region27: #{generator_forward.1} parent=0 // pred_check_branch
    %39 = sbr.rel (0) target = $region29
  $region28: #{generator_forward.1} parent=0 // pred_region
    _
  $region29: #{generator_forward.1} parent=0 // pred_fallthru
    _
  // Predicated region
  $region30: #{generator_forward.1} parent=0 // pred_check
    _
  $region31: #{generator_forward.1} parent=0 // pred_check_branch
    %41 = sbr.rel (0) target = $region33
  $region32: #{generator_forward.1} parent=0 // pred_region
    _
  $region33: #{generator_forward.1} parent=0 // pred_fallthru
    _
  // Predicated region
  $region34: #{generator_forward.1} parent=0 // pred_check
    _
  $region35: #{generator_forward.1} parent=0 // pred_check_branch
    %43 = sbr.rel (0) target = $region37
  $region36: #{generator_forward.1} parent=0 // pred_region
    _
  $region37: #{generator_forward.1} parent=0 // pred_fallthru
    _
  // Predicated region
  $region38: #{generator_forward.1} parent=0 // pred_check
    _
  $region39: #{generator_forward.1} parent=0 // pred_check_branch
    %45 = sbr.rel (0) target = $region41
  $region40: #{generator_forward.1} parent=0 // pred_region
    _
  $region41: #{generator_forward.1} parent=0 // pred_fallthru
    _
  // Predicated region
  $region42: #{generator_forward.1} parent=0 // pred_check
    _
  $region43: #{generator_forward.1} parent=0 // pred_check_branch
    %47 = sbr.rel (0) target = $region45
  $region44: #{generator_forward.1} parent=0 // pred_region
    _
  $region45: #{generator_forward.1} parent=0 // pred_fallthru
    _
  // Predicated region
  $region46: #{generator_forward.1} parent=0 // pred_check
    _
  $region47: #{generator_forward.1} parent=0 // pred_check_branch
    %49 = sbr.rel (0) target = $region49
  $region48: #{generator_forward.1} parent=0 // pred_region
    _
  $region49: #{generator_forward.1} parent=0 // pred_fallthru
    _
  // Predicated region
  $region50: #{generator_forward.1} parent=0 // pred_check
    _
  $region51: #{generator_forward.1} parent=0 // pred_check_branch
    %51 = sbr.rel (0) target = $region53
  $region52: #{generator_forward.1} parent=0 // pred_region
    _
  $region53: #{generator_forward.1} parent=0 // pred_fallthru
    _
  // Predicated region
  $region54: #{generator_forward.1} parent=0 // pred_check
    _
  $region55: #{generator_forward.1} parent=0 // pred_check_branch
    %53 = sbr.rel (0) target = $region57
  $region56: #{generator_forward.1} parent=0 // pred_region
    _
  $region57: #{generator_forward.1} parent=0 // pred_fallthru
    _
  // Predicated region
  $region58: #{generator_forward.1} parent=0 // pred_check
    _
  $region59: #{generator_forward.1} parent=0 // pred_check_branch
    %55 = sbr.rel (0) target = $region61
  $region60: #{generator_forward.1} parent=0 // pred_region
    _
  $region61: #{generator_forward.1} parent=0 // pred_fallthru
    _
  // Predicated region
  $region62: #{generator_forward.1} parent=0 // pred_check
    _
  $region63: #{generator_forward.1} parent=0 // pred_check_branch
    %57 = sbr.rel (0) target = $region65
  $region64: #{generator_forward.1} parent=0 // pred_region
    _
  $region65: #{generator_forward.1} parent=0 // pred_fallthru
    _
  // Predicated region
  $region66: #{generator_forward.1} parent=0 // pred_check
    _
  $region67: #{generator_forward.1} parent=0 // pred_check_branch
    %59 = sbr.rel (0) target = $region69
  $region68: #{generator_forward.1} parent=0 // pred_region
    _
  $region69: #{generator_forward.1} parent=0 // pred_fallthru
    _
  // Predicated region
  $region70: #{generator_forward.1} parent=0 // pred_check
    _
  $region71: #{generator_forward.1} parent=0 // pred_check_branch
    %61 = sbr.rel (0) target = $region73
  $region72: #{generator_forward.1} parent=0 // pred_region
    _
  $region73: #{generator_forward.1} parent=0 // pred_fallthru
    _
  // Predicated region
  $region74: #{generator_forward.1} parent=0 // pred_check
    _
  $region75: #{generator_forward.1} parent=0 // pred_check_branch
    %63 = sbr.rel (0) target = $region77
  $region76: #{generator_forward.1} parent=0 // pred_region
    _
  $region77: #{generator_forward.1} parent=0 // pred_fallthru
    _
  // Predicated region
  $region78: #{generator_forward.1} parent=0 // pred_check
    _
  $region79: #{generator_forward.1} parent=0 // pred_check_branch
    %65 = sbr.rel (0) target = $region81
  $region80: #{generator_forward.1} parent=0 // pred_region
    _
  $region81: #{generator_forward.1} parent=0 // pred_fallthru
    _
  // Predicated region
  $region82: #{generator_forward.1} parent=0 // pred_check
    _
  $region83: #{generator_forward.1} parent=0 // pred_check_branch
    %67 = sbr.rel (0) target = $region85
  $region84: #{generator_forward.1} parent=0 // pred_region
    _
  $region85: #{generator_forward.1} parent=0 // pred_fallthru
    _
  %v69 = vld [vmem:[%s7] sm:$0x1]
  %v70 = vld [vmem:[%s7 + $0x1] sm:$0x1]
  %v71 = vld [vmem:[%s7 + $0x2] sm:$0x1]
  %v72 = vld [vmem:[%s7 + $0x3] sm:$0x1]
  %v73 = vld [vmem:[%s7 + $0x5] sm:$0x1]
  %v74 = vld [vmem:[%s7 + $0x6] sm:$0x1]
  %v75 = vld [vmem:[%s7 + $0x7] sm:$0x1]
  %v76 = vld [vmem:[%s7 + $0x8] sm:$0x1]
  %v77 = vld [vmem:[%s8] sm:$0xf]
  %v78 = vld [vmem:[%s8 + $0x4] sm:$0xf]
  %v79 = vld [vmem:[%s8 + $0x8] sm:$0xf]
  %v80 = vld [vmem:[%s8 + $0xc] sm:$0xf]
  %v81 = vld [vmem:[%s8 + $0x14] sm:$0xf]
  %v82 = vld [vmem:[%s8 + $0x18] sm:$0xf]
  %v83 = vld [vmem:[%s8 + $0x1c] sm:$0xf]
  %v84 = vld [vmem:[%s8 + $0x20] sm:$0xf]
  %v85 = vld [vmem:[%s0] sm:$0xff]
  %v86 = vld [vmem:[%s0 + $0x8] sm:$0xff]
  %v87 = vld [vmem:[%s0 + $0x10] sm:$0xff]
  %v88 = vld [vmem:[%s0 + $0x18] sm:$0xff]
  %v89 = vld [vmem:[%s1] sm:$0xff]
  %v90 = vld [vmem:[%s1 + $0x8] sm:$0xff]
  %v91 = vld [vmem:[%s1 + $0x10] sm:$0xff]
  %v92 = vld [vmem:[%s1 + $0x18] sm:$0xff]
  %v93 = vmul.f32 %v85, %v89
  %v94 = vmul.f32 %v86, %v90
  %v95 = vmul.f32 %v87, %v91
  %v96 = vmul.f32 %v88, %v92
  %101 = vrot.lane.b32.xlu0 %v93, 2
  %v102 = vpop.permute.xlu0 %101
  %103 = vrot.lane.b32.xlu0 %v94, 2
  %v104 = vpop.permute.xlu0 %103
  %105 = vrot.lane.b32.xlu0 %v95, 2
  %v106 = vpop.permute.xlu0 %105
  %107 = vrot.lane.b32.xlu0 %v96, 2
  %v108 = vpop.permute.xlu0 %107
  %113 = vrot.lane.b32.xlu0 %v93, 4
  %v114 = vpop.permute.xlu0 %113
  %115 = vrot.lane.b32.xlu0 %v94, 4
  %v116 = vpop.permute.xlu0 %115
  %117 = vrot.lane.b32.xlu0 %v95, 4
  %v118 = vpop.permute.xlu0 %117
  %119 = vrot.lane.b32.xlu0 %v96, 4
  %v120 = vpop.permute.xlu0 %119
  %125 = vrot.lane.b32.xlu0 %v93, 6
  %v126 = vpop.permute.xlu0 %125
  %127 = vrot.lane.b32.xlu0 %v94, 6
  %v128 = vpop.permute.xlu0 %127
  %129 = vrot.lane.b32.xlu0 %v95, 6
  %v130 = vpop.permute.xlu0 %129
  %131 = vrot.lane.b32.xlu0 %v96, 6
  %v132 = vpop.permute.xlu0 %131
  %137 = vrot.lane.b32.xlu0 %v93, 8
  %v138 = vpop.permute.xlu0 %137
  %139 = vrot.lane.b32.xlu0 %v94, 8
  %v140 = vpop.permute.xlu0 %139
  %141 = vrot.lane.b32.xlu0 %v95, 8
  %v142 = vpop.permute.xlu0 %141
  %143 = vrot.lane.b32.xlu0 %v96, 8
  %v144 = vpop.permute.xlu0 %143
  %149 = vrot.lane.b32.xlu0 %v93, 10
  %v150 = vpop.permute.xlu0 %149
  %151 = vrot.lane.b32.xlu0 %v94, 10
  %v152 = vpop.permute.xlu0 %151
  %153 = vrot.lane.b32.xlu0 %v95, 10
  %v154 = vpop.permute.xlu0 %153
  %155 = vrot.lane.b32.xlu0 %v96, 10
  %v156 = vpop.permute.xlu0 %155
  %161 = vrot.lane.b32.xlu0 %v93, 12
  %v162 = vpop.permute.xlu0 %161
  %163 = vrot.lane.b32.xlu0 %v94, 12
  %v164 = vpop.permute.xlu0 %163
  %165 = vrot.lane.b32.xlu0 %v95, 12
  %v166 = vpop.permute.xlu0 %165
  %167 = vrot.lane.b32.xlu0 %v96, 12
  %v168 = vpop.permute.xlu0 %167
  %173 = vrot.lane.b32.xlu0 %v93, 14
  %v174 = vpop.permute.xlu0 %173
  %175 = vrot.lane.b32.xlu0 %v94, 14
  %v176 = vpop.permute.xlu0 %175
  %177 = vrot.lane.b32.xlu0 %v95, 14
  %v178 = vpop.permute.xlu0 %177
  %179 = vrot.lane.b32.xlu0 %v96, 14
  %v180 = vpop.permute.xlu0 %179
  %185 = vrot.lane.b32.xlu0 %v93, 16
  %v186 = vpop.permute.xlu0 %185
  %187 = vrot.lane.b32.xlu0 %v94, 16
  %v188 = vpop.permute.xlu0 %187
  %189 = vrot.lane.b32.xlu0 %v95, 16
  %v190 = vpop.permute.xlu0 %189
  %191 = vrot.lane.b32.xlu0 %v96, 16
  %v192 = vpop.permute.xlu0 %191
  %197 = vrot.lane.b32.xlu0 %v93, 18
  %v198 = vpop.permute.xlu0 %197
  %199 = vrot.lane.b32.xlu0 %v94, 18
  %v200 = vpop.permute.xlu0 %199
  %201 = vrot.lane.b32.xlu0 %v95, 18
  %v202 = vpop.permute.xlu0 %201
  %203 = vrot.lane.b32.xlu0 %v96, 18
  %v204 = vpop.permute.xlu0 %203
  %209 = vrot.lane.b32.xlu0 %v93, 20
  %v210 = vpop.permute.xlu0 %209
  %211 = vrot.lane.b32.xlu0 %v94, 20
  %v212 = vpop.permute.xlu0 %211
  %213 = vrot.lane.b32.xlu0 %v95, 20
  %v214 = vpop.permute.xlu0 %213
  %215 = vrot.lane.b32.xlu0 %v96, 20
  %v216 = vpop.permute.xlu0 %215
  %221 = vrot.lane.b32.xlu0 %v93, 22
  %v222 = vpop.permute.xlu0 %221
  %223 = vrot.lane.b32.xlu0 %v94, 22
  %v224 = vpop.permute.xlu0 %223
  %225 = vrot.lane.b32.xlu0 %v95, 22
  %v226 = vpop.permute.xlu0 %225
  %227 = vrot.lane.b32.xlu0 %v96, 22
  %v228 = vpop.permute.xlu0 %227
  %233 = vrot.lane.b32.xlu0 %v93, 24
  %v234 = vpop.permute.xlu0 %233
  %235 = vrot.lane.b32.xlu0 %v94, 24
  %v236 = vpop.permute.xlu0 %235
  %237 = vrot.lane.b32.xlu0 %v95, 24
  %v238 = vpop.permute.xlu0 %237
  %239 = vrot.lane.b32.xlu0 %v96, 24
  %v240 = vpop.permute.xlu0 %239
  %245 = vrot.lane.b32.xlu0 %v93, 26
  %v246 = vpop.permute.xlu0 %245
  %247 = vrot.lane.b32.xlu0 %v94, 26
  %v248 = vpop.permute.xlu0 %247
  %249 = vrot.lane.b32.xlu0 %v95, 26
  %v250 = vpop.permute.xlu0 %249
  %251 = vrot.lane.b32.xlu0 %v96, 26
  %v252 = vpop.permute.xlu0 %251
  %257 = vrot.lane.b32.xlu0 %v93, 28
  %v258 = vpop.permute.xlu0 %257
  %259 = vrot.lane.b32.xlu0 %v94, 28
  %v260 = vpop.permute.xlu0 %259
  %261 = vrot.lane.b32.xlu0 %v95, 28
  %v262 = vpop.permute.xlu0 %261
  %263 = vrot.lane.b32.xlu0 %v96, 28
  %v264 = vpop.permute.xlu0 %263
  %269 = vrot.lane.b32.xlu0 %v93, 30
  %v270 = vpop.permute.xlu0 %269
  %271 = vrot.lane.b32.xlu0 %v94, 30
  %v272 = vpop.permute.xlu0 %271
  %273 = vrot.lane.b32.xlu0 %v95, 30
  %v274 = vpop.permute.xlu0 %273
  %275 = vrot.lane.b32.xlu0 %v96, 30
  %v276 = vpop.permute.xlu0 %275
  %vm281 = vcmask 15360
  %v282 = vsel %vm281, %v93, %v102
  %v283 = vsel %vm281, %v94, %v104
  %v284 = vsel %vm281, %v95, %v106
  %v285 = vsel %vm281, %v96, %v108
  %vm286 = vcmask 31744
  %v287 = vsel %vm286, %v282, %v114
  %v288 = vsel %vm286, %v283, %v116
  %v289 = vsel %vm286, %v284, %v118
  %v290 = vsel %vm286, %v285, %v120
  %vm291 = vcmask 48128
  %v292 = vsel %vm291, %v287, %v126
  %v293 = vsel %vm291, %v288, %v128
  %v294 = vsel %vm291, %v289, %v130
  %v295 = vsel %vm291, %v290, %v132
  %vm296 = vcmask 64512
  %v297 = vsel %vm296, %v292, %v138
  %v298 = vsel %vm296, %v293, %v140
  %v299 = vsel %vm296, %v294, %v142
  %v300 = vsel %vm296, %v295, %v144
  %vm301 = vcmask 80896
  %v302 = vsel %vm301, %v297, %v150
  %v303 = vsel %vm301, %v298, %v152
  %v304 = vsel %vm301, %v299, %v154
  %v305 = vsel %vm301, %v300, %v156
  %vm306 = vcmask 97280
  %v307 = vsel %vm306, %v302, %v162
  %v308 = vsel %vm306, %v303, %v164
  %v309 = vsel %vm306, %v304, %v166
  %v310 = vsel %vm306, %v305, %v168
  %vm311 = vcmask 113664
  %v312 = vsel %vm311, %v307, %v174
  %v313 = vsel %vm311, %v308, %v176
  %v314 = vsel %vm311, %v309, %v178
  %v315 = vsel %vm311, %v310, %v180
  %vm316 = vcmask 130048
  %v317 = vsel %vm316, %v312, %v186
  %v318 = vsel %vm316, %v313, %v188
  %v319 = vsel %vm316, %v314, %v190
  %v320 = vsel %vm316, %v315, %v192
  %vm321 = vcmask 146432
  %v322 = vsel %vm321, %v317, %v198
  %v323 = vsel %vm321, %v318, %v200
  %v324 = vsel %vm321, %v319, %v202
  %v325 = vsel %vm321, %v320, %v204
  %vm326 = vcmask 162816
  %v327 = vsel %vm326, %v322, %v210
  %v328 = vsel %vm326, %v323, %v212
  %v329 = vsel %vm326, %v324, %v214
  %v330 = vsel %vm326, %v325, %v216
  %vm331 = vcmask 179200
  %v332 = vsel %vm331, %v327, %v222
  %v333 = vsel %vm331, %v328, %v224
  %v334 = vsel %vm331, %v329, %v226
  %v335 = vsel %vm331, %v330, %v228
  %vm336 = vcmask 195584
  %v337 = vsel %vm336, %v332, %v234
  %v338 = vsel %vm336, %v333, %v236
  %v339 = vsel %vm336, %v334, %v238
  %v340 = vsel %vm336, %v335, %v240
  %vm341 = vcmask 211968
  %v342 = vsel %vm341, %v337, %v246
  %v343 = vsel %vm341, %v338, %v248
  %v344 = vsel %vm341, %v339, %v250
  %v345 = vsel %vm341, %v340, %v252
  %vm346 = vcmask 228352
  %v347 = vsel %vm346, %v342, %v258
  %v348 = vsel %vm346, %v343, %v260
  %v349 = vsel %vm346, %v344, %v262
  %v350 = vsel %vm346, %v345, %v264
  %vm351 = vcmask 244736
  %v352 = vsel %vm351, %v347, %v270
  %v353 = vsel %vm351, %v348, %v272
  %v354 = vsel %vm351, %v349, %v274
  %v355 = vsel %vm351, %v350, %v276
  %v356 = vld [vmem:[%s4] sm:$0xff]
  %v357 = vld [vmem:[%s4 + $0x8] sm:$0xff]
  %v358 = vld [vmem:[%s4 + $0x10] sm:$0xff]
  %v359 = vld [vmem:[%s4 + $0x18] sm:$0xff]
  %v360 = vld [vmem:[%s4 + $0x20] sm:$0xff]
  %v361 = vld [vmem:[%s4 + $0x28] sm:$0xff]
  %v362 = vld [vmem:[%s4 + $0x30] sm:$0xff]
  %v363 = vld [vmem:[%s4 + $0x38] sm:$0xff]
  %v364 = vld [vmem:[%s4 + $0x40] sm:$0xff]
  %v365 = vld [vmem:[%s4 + $0x48] sm:$0xff]
  %v366 = vld [vmem:[%s4 + $0x50] sm:$0xff]
  %v367 = vld [vmem:[%s4 + $0x58] sm:$0xff]
  %v368 = vld [vmem:[%s4 + $0x60] sm:$0xff]
  %v369 = vld [vmem:[%s4 + $0x68] sm:$0xff]
  %v370 = vld [vmem:[%s4 + $0x70] sm:$0xff]
  %v371 = vld [vmem:[%s4 + $0x78] sm:$0xff]
  %v372 = vld [vmem:[%s4 + $0x80] sm:$0xff]
  %v373 = vld [vmem:[%s4 + $0x88] sm:$0xff]
  %v374 = vld [vmem:[%s4 + $0x90] sm:$0xff]
  %v375 = vld [vmem:[%s4 + $0x98] sm:$0xff]
  %v376 = vld [vmem:[%s4 + $0xa0] sm:$0xff]
  %v377 = vld [vmem:[%s4 + $0xa8] sm:$0xff]
  %v378 = vld [vmem:[%s4 + $0xb0] sm:$0xff]
  %v379 = vld [vmem:[%s4 + $0xb8] sm:$0xff]
  %v380 = vld [vmem:[%s4 + $0xc0] sm:$0xff]
  %v381 = vld [vmem:[%s4 + $0xc8] sm:$0xff]
  %v382 = vld [vmem:[%s4 + $0xd0] sm:$0xff]
  %v383 = vld [vmem:[%s4 + $0xd8] sm:$0xff]
  %v384 = vld [vmem:[%s4 + $0xe0] sm:$0xff]
  %v385 = vld [vmem:[%s4 + $0xe8] sm:$0xff]
  %v386 = vld [vmem:[%s4 + $0xf0] sm:$0xff]
  %v387 = vld [vmem:[%s4 + $0xf8] sm:$0xff]
  %v388 = vld [vmem:[%s4 + $0x100] sm:$0xff]
  %v389 = vld [vmem:[%s4 + $0x108] sm:$0xff]
  %v390 = vld [vmem:[%s4 + $0x110] sm:$0xff]
  %v391 = vld [vmem:[%s4 + $0x118] sm:$0xff]
  %v392 = vld [vmem:[%s4 + $0x120] sm:$0xff]
  %v393 = vld [vmem:[%s4 + $0x128] sm:$0xff]
  %v394 = vld [vmem:[%s4 + $0x130] sm:$0xff]
  %v395 = vld [vmem:[%s4 + $0x138] sm:$0xff]
  %v396 = vld [vmem:[%s4 + $0x140] sm:$0xff]
  %v397 = vld [vmem:[%s4 + $0x148] sm:$0xff]
  %v398 = vld [vmem:[%s4 + $0x150] sm:$0xff]
  %v399 = vld [vmem:[%s4 + $0x158] sm:$0xff]
  %v400 = vld [vmem:[%s4 + $0x160] sm:$0xff]
  %v401 = vld [vmem:[%s4 + $0x168] sm:$0xff]
  %v402 = vld [vmem:[%s4 + $0x170] sm:$0xff]
  %v403 = vld [vmem:[%s4 + $0x178] sm:$0xff]
  %v404 = vld [vmem:[%s4 + $0x180] sm:$0xff]
  %v405 = vld [vmem:[%s4 + $0x188] sm:$0xff]
  %v406 = vld [vmem:[%s4 + $0x190] sm:$0xff]
  %v407 = vld [vmem:[%s4 + $0x198] sm:$0xff]
  %v408 = vld [vmem:[%s4 + $0x1a0] sm:$0xff]
  %v409 = vld [vmem:[%s4 + $0x1a8] sm:$0xff]
  %v410 = vld [vmem:[%s4 + $0x1b0] sm:$0xff]
  %v411 = vld [vmem:[%s4 + $0x1b8] sm:$0xff]
  %v412 = vld [vmem:[%s4 + $0x1c0] sm:$0xff]
  %v413 = vld [vmem:[%s4 + $0x1c8] sm:$0xff]
  %v414 = vld [vmem:[%s4 + $0x1d0] sm:$0xff]
  %v415 = vld [vmem:[%s4 + $0x1d8] sm:$0xff]
  %v416 = vld [vmem:[%s4 + $0x1e0] sm:$0xff]
  %v417 = vld [vmem:[%s4 + $0x1e8] sm:$0xff]
  %v418 = vld [vmem:[%s4 + $0x1f0] sm:$0xff]
  %v419 = vld [vmem:[%s4 + $0x1f8] sm:$0xff]
  %v420 = vmul.f32 %v352, %v356
  %v421 = vmul.f32 %v353, %v357
  %v422 = vmul.f32 %v354, %v358
  %v423 = vmul.f32 %v355, %v359
  %v424 = vmul.f32 %v352, %v360
  %v425 = vmul.f32 %v353, %v361
  %v426 = vmul.f32 %v354, %v362
  %v427 = vmul.f32 %v355, %v363
  %v428 = vmul.f32 %v352, %v364
  %v429 = vmul.f32 %v353, %v365
  %v430 = vmul.f32 %v354, %v366
  %v431 = vmul.f32 %v355, %v367
  %v432 = vmul.f32 %v352, %v368
  %v433 = vmul.f32 %v353, %v369
  %v434 = vmul.f32 %v354, %v370
  %v435 = vmul.f32 %v355, %v371
  %v436 = vmul.f32 %v352, %v372
  %v437 = vmul.f32 %v353, %v373
  %v438 = vmul.f32 %v354, %v374
  %v439 = vmul.f32 %v355, %v375
  %v440 = vmul.f32 %v352, %v376
  %v441 = vmul.f32 %v353, %v377
  %v442 = vmul.f32 %v354, %v378
  %v443 = vmul.f32 %v355, %v379
  %v444 = vmul.f32 %v352, %v380
  %v445 = vmul.f32 %v353, %v381
  %v446 = vmul.f32 %v354, %v382
  %v447 = vmul.f32 %v355, %v383
  %v448 = vmul.f32 %v352, %v384
  %v449 = vmul.f32 %v353, %v385
  %v450 = vmul.f32 %v354, %v386
  %v451 = vmul.f32 %v355, %v387
  %v452 = vmul.f32 %v352, %v388
  %v453 = vmul.f32 %v353, %v389
  %v454 = vmul.f32 %v354, %v390
  %v455 = vmul.f32 %v355, %v391
  %v456 = vmul.f32 %v352, %v392
  %v457 = vmul.f32 %v353, %v393
  %v458 = vmul.f32 %v354, %v394
  %v459 = vmul.f32 %v355, %v395
  %v460 = vmul.f32 %v352, %v396
  %v461 = vmul.f32 %v353, %v397
  %v462 = vmul.f32 %v354, %v398
  %v463 = vmul.f32 %v355, %v399
  %v464 = vmul.f32 %v352, %v400
  %v465 = vmul.f32 %v353, %v401
  %v466 = vmul.f32 %v354, %v402
  %v467 = vmul.f32 %v355, %v403
  %v468 = vmul.f32 %v352, %v404
  %v469 = vmul.f32 %v353, %v405
  %v470 = vmul.f32 %v354, %v406
  %v471 = vmul.f32 %v355, %v407
  %v472 = vmul.f32 %v352, %v408
  %v473 = vmul.f32 %v353, %v409
  %v474 = vmul.f32 %v354, %v410
  %v475 = vmul.f32 %v355, %v411
  %v476 = vmul.f32 %v352, %v412
  %v477 = vmul.f32 %v353, %v413
  %v478 = vmul.f32 %v354, %v414
  %v479 = vmul.f32 %v355, %v415
  %v480 = vmul.f32 %v352, %v416
  %v481 = vmul.f32 %v353, %v417
  %v482 = vmul.f32 %v354, %v418
  %v483 = vmul.f32 %v355, %v419
  %v484 = vpack.c.bf16 %v421, %v420
  %v485 = vpack.c.bf16 %v423, %v422
  %v486 = vpack.c.bf16 %v425, %v424
  %v487 = vpack.c.bf16 %v427, %v426
  %v488 = vpack.c.bf16 %v429, %v428
  %v489 = vpack.c.bf16 %v431, %v430
  %v490 = vpack.c.bf16 %v433, %v432
  %v491 = vpack.c.bf16 %v435, %v434
  %v492 = vpack.c.bf16 %v437, %v436
  %v493 = vpack.c.bf16 %v439, %v438
  %v494 = vpack.c.bf16 %v441, %v440
  %v495 = vpack.c.bf16 %v443, %v442
  %v496 = vpack.c.bf16 %v445, %v444
  %v497 = vpack.c.bf16 %v447, %v446
  %v498 = vpack.c.bf16 %v449, %v448
  %v499 = vpack.c.bf16 %v451, %v450
  %v500 = vpack.c.bf16 %v453, %v452
  %v501 = vpack.c.bf16 %v455, %v454
  %v502 = vpack.c.bf16 %v457, %v456
  %v503 = vpack.c.bf16 %v459, %v458
  %v504 = vpack.c.bf16 %v461, %v460
  %v505 = vpack.c.bf16 %v463, %v462
  %v506 = vpack.c.bf16 %v465, %v464
  %v507 = vpack.c.bf16 %v467, %v466
  %v508 = vpack.c.bf16 %v469, %v468
  %v509 = vpack.c.bf16 %v471, %v470
  %v510 = vpack.c.bf16 %v473, %v472
  %v511 = vpack.c.bf16 %v475, %v474
  %v512 = vpack.c.bf16 %v477, %v476
  %v513 = vpack.c.bf16 %v479, %v478
  %v514 = vpack.c.bf16 %v481, %v480
  %v515 = vpack.c.bf16 %v483, %v482
  %v516 = vld [vmem:[%s2] sm:$0xff]
  %v517 = vld [vmem:[%s2 + $0x8] sm:$0xff]
  %v518 = vld [vmem:[%s2 + $0x10] sm:$0xff]
  %v519 = vld [vmem:[%s2 + $0x18] sm:$0xff]
  %v520 = vld [vmem:[%s2 + $0x20] sm:$0xff]
  %v521 = vld [vmem:[%s2 + $0x28] sm:$0xff]
  %v522 = vld [vmem:[%s2 + $0x30] sm:$0xff]
  %v523 = vld [vmem:[%s2 + $0x38] sm:$0xff]
  %v524 = vld [vmem:[%s2 + $0x40] sm:$0xff]
  %v525 = vld [vmem:[%s2 + $0x48] sm:$0xff]
  %v526 = vld [vmem:[%s2 + $0x50] sm:$0xff]
  %v527 = vld [vmem:[%s2 + $0x58] sm:$0xff]
  %v528 = vld [vmem:[%s2 + $0x60] sm:$0xff]
  %v529 = vld [vmem:[%s2 + $0x68] sm:$0xff]
  %v530 = vld [vmem:[%s2 + $0x70] sm:$0xff]
  %v531 = vld [vmem:[%s2 + $0x78] sm:$0xff]
  %v532 = vld [vmem:[%s2 + $0x80] sm:$0xff]
  %v533 = vld [vmem:[%s2 + $0x88] sm:$0xff]
  %v534 = vld [vmem:[%s2 + $0x90] sm:$0xff]
  %v535 = vld [vmem:[%s2 + $0x98] sm:$0xff]
  %v536 = vld [vmem:[%s2 + $0xa0] sm:$0xff]
  %v537 = vld [vmem:[%s2 + $0xa8] sm:$0xff]
  %v538 = vld [vmem:[%s2 + $0xb0] sm:$0xff]
  %v539 = vld [vmem:[%s2 + $0xb8] sm:$0xff]
  %v540 = vld [vmem:[%s2 + $0xc0] sm:$0xff]
  %v541 = vld [vmem:[%s2 + $0xc8] sm:$0xff]
  %v542 = vld [vmem:[%s2 + $0xd0] sm:$0xff]
  %v543 = vld [vmem:[%s2 + $0xd8] sm:$0xff]
  %v544 = vld [vmem:[%s2 + $0xe0] sm:$0xff]
  %v545 = vld [vmem:[%s2 + $0xe8] sm:$0xff]
  %v546 = vld [vmem:[%s2 + $0xf0] sm:$0xff]
  %v547 = vld [vmem:[%s2 + $0xf8] sm:$0xff]
  %v548 = vld [vmem:[%s3] sm:$0xff]
  %v549 = vld [vmem:[%s3 + $0x8] sm:$0xff]
  %v550 = vld [vmem:[%s3 + $0x10] sm:$0xff]
  %v551 = vld [vmem:[%s3 + $0x18] sm:$0xff]
  %v552 = vld [vmem:[%s3 + $0x20] sm:$0xff]
  %v553 = vld [vmem:[%s3 + $0x28] sm:$0xff]
  %v554 = vld [vmem:[%s3 + $0x30] sm:$0xff]
  %v555 = vld [vmem:[%s3 + $0x38] sm:$0xff]
  %v556 = vld [vmem:[%s3 + $0x40] sm:$0xff]
  %v557 = vld [vmem:[%s3 + $0x48] sm:$0xff]
  %v558 = vld [vmem:[%s3 + $0x50] sm:$0xff]
  %v559 = vld [vmem:[%s3 + $0x58] sm:$0xff]
  %v560 = vld [vmem:[%s3 + $0x60] sm:$0xff]
  %v561 = vld [vmem:[%s3 + $0x68] sm:$0xff]
  %v562 = vld [vmem:[%s3 + $0x70] sm:$0xff]
  %v563 = vld [vmem:[%s3 + $0x78] sm:$0xff]
  %v596 = vunpack.c.l.b16 %v516
  %v597 = vunpack.c.h.b16 %v516
  %v598 = vunpack.c.l.b16 %v517
  %v599 = vunpack.c.h.b16 %v517
  %v600 = vunpack.c.l.b16 %v518
  %v601 = vunpack.c.h.b16 %v518
  %v602 = vunpack.c.l.b16 %v519
  %v603 = vunpack.c.h.b16 %v519
  %v604 = vunpack.c.l.b16 %v520
  %v605 = vunpack.c.h.b16 %v520
  %v606 = vunpack.c.l.b16 %v521
  %v607 = vunpack.c.h.b16 %v521
  %v608 = vunpack.c.l.b16 %v522
  %v609 = vunpack.c.h.b16 %v522
  %v610 = vunpack.c.l.b16 %v523
  %v611 = vunpack.c.h.b16 %v523
  %v612 = vunpack.c.l.b16 %v524
  %v613 = vunpack.c.h.b16 %v524
  %v614 = vunpack.c.l.b16 %v525
  %v615 = vunpack.c.h.b16 %v525
  %v616 = vunpack.c.l.b16 %v526
  %v617 = vunpack.c.h.b16 %v526
  %v618 = vunpack.c.l.b16 %v527
  %v619 = vunpack.c.h.b16 %v527
  %v620 = vunpack.c.l.b16 %v528
  %v621 = vunpack.c.h.b16 %v528
  %v622 = vunpack.c.l.b16 %v529
  %v623 = vunpack.c.h.b16 %v529
  %v624 = vunpack.c.l.b16 %v530
  %v625 = vunpack.c.h.b16 %v530
  %v626 = vunpack.c.l.b16 %v531
  %v627 = vunpack.c.h.b16 %v531
  %v628 = vunpack.c.l.b16 %v532
  %v629 = vunpack.c.h.b16 %v532
  %v630 = vunpack.c.l.b16 %v533
  %v631 = vunpack.c.h.b16 %v533
  %v632 = vunpack.c.l.b16 %v534
  %v633 = vunpack.c.h.b16 %v534
  %v634 = vunpack.c.l.b16 %v535
  %v635 = vunpack.c.h.b16 %v535
  %v636 = vunpack.c.l.b16 %v536
  %v637 = vunpack.c.h.b16 %v536
  %v638 = vunpack.c.l.b16 %v537
  %v639 = vunpack.c.h.b16 %v537
  %v640 = vunpack.c.l.b16 %v538
  %v641 = vunpack.c.h.b16 %v538
  %v642 = vunpack.c.l.b16 %v539
  %v643 = vunpack.c.h.b16 %v539
  %v644 = vunpack.c.l.b16 %v540
  %v645 = vunpack.c.h.b16 %v540
  %v646 = vunpack.c.l.b16 %v541
  %v647 = vunpack.c.h.b16 %v541
  %v648 = vunpack.c.l.b16 %v542
  %v649 = vunpack.c.h.b16 %v542
  %v650 = vunpack.c.l.b16 %v543
  %v651 = vunpack.c.h.b16 %v543
  %v652 = vunpack.c.l.b16 %v544
  %v653 = vunpack.c.h.b16 %v544
  %v654 = vunpack.c.l.b16 %v545
  %v655 = vunpack.c.h.b16 %v545
  %v656 = vunpack.c.l.b16 %v546
  %v657 = vunpack.c.h.b16 %v546
  %v658 = vunpack.c.l.b16 %v547
  %v659 = vunpack.c.h.b16 %v547
  %v660 = vpack.c.b16 %v600, %v596
  %v661 = vpack.c.b16 %v601, %v597
  %v662 = vpack.c.b16 %v602, %v598
  %v663 = vpack.c.b16 %v603, %v599
  %v664 = vpack.c.b16 %v608, %v604
  %v665 = vpack.c.b16 %v609, %v605
  %v666 = vpack.c.b16 %v610, %v606
  %v667 = vpack.c.b16 %v611, %v607
  %v668 = vpack.c.b16 %v616, %v612
  %v669 = vpack.c.b16 %v617, %v613
  %v670 = vpack.c.b16 %v618, %v614
  %v671 = vpack.c.b16 %v619, %v615
  %v672 = vpack.c.b16 %v624, %v620
  %v673 = vpack.c.b16 %v625, %v621
  %v674 = vpack.c.b16 %v626, %v622
  %v675 = vpack.c.b16 %v627, %v623
  %v676 = vpack.c.b16 %v632, %v628
  %v677 = vpack.c.b16 %v633, %v629
  %v678 = vpack.c.b16 %v634, %v630
  %v679 = vpack.c.b16 %v635, %v631
  %v680 = vpack.c.b16 %v640, %v636
  %v681 = vpack.c.b16 %v641, %v637
  %v682 = vpack.c.b16 %v642, %v638
  %v683 = vpack.c.b16 %v643, %v639
  %v684 = vpack.c.b16 %v648, %v644
  %v685 = vpack.c.b16 %v649, %v645
  %v686 = vpack.c.b16 %v650, %v646
  %v687 = vpack.c.b16 %v651, %v647
  %v688 = vpack.c.b16 %v656, %v652
  %v689 = vpack.c.b16 %v657, %v653
  %v690 = vpack.c.b16 %v658, %v654
  %v691 = vpack.c.b16 %v659, %v655
  %724 = vmatprep.subr.bf16.mxu0 0
  %725 = vmatpush1.bf16.msra.mxu0 %v484
  %726 = vmatprep.subr.bf16.mxu0 0
  %727 = vmatpush1.bf16.msra.mxu0 %v485
  %728 = vmatprep.subr.bf16.mxu0 0
  %729 = vmatpush1.bf16.msra.mxu0 %v486
  %730 = vmatprep.subr.bf16.mxu0 0
  %731 = vmatpush1.bf16.msra.mxu0 %v487
  %732 = vmatprep.subr.bf16.mxu0 0
  %733 = vmatpush1.bf16.msra.mxu0 %v488
  %734 = vmatprep.subr.bf16.mxu0 0
  %735 = vmatpush1.bf16.msra.mxu0 %v489
  %736 = vmatprep.subr.bf16.mxu0 0
  %737 = vmatpush1.bf16.msra.mxu0 %v490
  %738 = vmatprep.subr.bf16.mxu0 0
  %739 = vmatpush1.bf16.msra.mxu0 %v491
  %740 = vmatprep.subr.bf16.mxu0 0
  %741 = vmatpush1.bf16.msra.mxu0 %v492
  %742 = vmatprep.subr.bf16.mxu0 0
  %743 = vmatpush1.bf16.msra.mxu0 %v493
  %744 = vmatprep.subr.bf16.mxu0 0
  %745 = vmatpush1.bf16.msra.mxu0 %v494
  %746 = vmatprep.subr.bf16.mxu0 0
  %747 = vmatpush1.bf16.msra.mxu0 %v495
  %748 = vmatprep.subr.bf16.mxu0 0
  %749 = vmatpush1.bf16.msra.mxu0 %v496
  %750 = vmatprep.subr.bf16.mxu0 0
  %751 = vmatpush1.bf16.msra.mxu0 %v497
  %752 = vmatprep.subr.bf16.mxu0 0
  %753 = vmatpush1.bf16.msra.mxu0 %v498
  %754 = vmatprep.subr.bf16.mxu0 0
  %755 = vmatpush1.bf16.msra.mxu0 %v499
  %756 = vmatprep.mubr.bf16.mxu0 %v661
  %757 = vmatmul.mubr.bf16.gmra.mrb[0].mxu0 %v660
  %v758 = vpop.f32.mrb[0].mxu0
  %v759 = vadd.f32 %v548, %v758
  %v760 = vpop.f32.mrb[0].mxu0
  %v761 = vpop.f32.mrb[0].mxu0
  %v762 = vadd.f32 %v549, %v761
  %v763 = vpop.f32.mrb[0].mxu0
  %764 = vmatprep.mubr.bf16.mxu0 %v665
  %765 = vmatmul.mubr.bf16.gmra.mrb[0].mxu0 %v664
  %v766 = vpop.f32.mrb[0].mxu0
  %v767 = vadd.f32 %v550, %v766
  %v768 = vpop.f32.mrb[0].mxu0
  %v769 = vpop.f32.mrb[0].mxu0
  %v770 = vadd.f32 %v551, %v769
  %v771 = vpop.f32.mrb[0].mxu0
  %772 = vmatprep.mubr.bf16.mxu0 %v669
  %773 = vmatmul.mubr.bf16.gmra.mrb[0].mxu0 %v668
  %v774 = vpop.f32.mrb[0].mxu0
  %v775 = vadd.f32 %v552, %v774
  %v776 = vpop.f32.mrb[0].mxu0
  %v777 = vpop.f32.mrb[0].mxu0
  %v778 = vadd.f32 %v553, %v777
  %v779 = vpop.f32.mrb[0].mxu0
  %780 = vmatprep.mubr.bf16.mxu0 %v673
  %781 = vmatmul.mubr.bf16.gmra.mrb[0].mxu0 %v672
  %v782 = vpop.f32.mrb[0].mxu0
  %v783 = vadd.f32 %v554, %v782
  %v784 = vpop.f32.mrb[0].mxu0
  %v785 = vpop.f32.mrb[0].mxu0
  %v786 = vadd.f32 %v555, %v785
  %v787 = vpop.f32.mrb[0].mxu0
  %788 = vmatprep.mubr.bf16.mxu0 %v677
  %789 = vmatmul.mubr.bf16.gmra.mrb[0].mxu0 %v676
  %v790 = vpop.f32.mrb[0].mxu0
  %v791 = vadd.f32 %v556, %v790
  %v792 = vpop.f32.mrb[0].mxu0
  %v793 = vpop.f32.mrb[0].mxu0
  %v794 = vadd.f32 %v557, %v793
  %v795 = vpop.f32.mrb[0].mxu0
  %796 = vmatprep.mubr.bf16.mxu0 %v681
  %797 = vmatmul.mubr.bf16.gmra.mrb[0].mxu0 %v680
  %v798 = vpop.f32.mrb[0].mxu0
  %v799 = vadd.f32 %v558, %v798
  %v800 = vpop.f32.mrb[0].mxu0
  %v801 = vpop.f32.mrb[0].mxu0
  %v802 = vadd.f32 %v559, %v801
  %v803 = vpop.f32.mrb[0].mxu0
  %804 = vmatprep.mubr.bf16.mxu0 %v685
  %805 = vmatmul.mubr.bf16.gmra.mrb[0].mxu0 %v684
  %v806 = vpop.f32.mrb[0].mxu0
  %v807 = vadd.f32 %v560, %v806
  %v808 = vpop.f32.mrb[0].mxu0
  %v809 = vpop.f32.mrb[0].mxu0
  %v810 = vadd.f32 %v561, %v809
  %v811 = vpop.f32.mrb[0].mxu0
  %812 = vmatprep.mubr.bf16.mxu0 %v689
  %813 = vmatmul.mubr.bf16.gmra.mrb[0].mxu0 %v688
  %v814 = vpop.f32.mrb[0].mxu0
  %v815 = vadd.f32 %v562, %v814
  %v816 = vpop.f32.mrb[0].mxu0
  %v817 = vpop.f32.mrb[0].mxu0
  %v818 = vadd.f32 %v563, %v817
  %v819 = vpop.f32.mrb[0].mxu0
  %820 = vdwg.mxu0
  %821 = vmatprep.subr.bf16.mxu0 0
  %822 = vmatpush1.bf16.msra.mxu0 %v500
  %823 = vmatprep.subr.bf16.mxu0 0
  %824 = vmatpush1.bf16.msra.mxu0 %v501
  %825 = vmatprep.subr.bf16.mxu0 0
  %826 = vmatpush1.bf16.msra.mxu0 %v502
  %827 = vmatprep.subr.bf16.mxu0 0
  %828 = vmatpush1.bf16.msra.mxu0 %v503
  %829 = vmatprep.subr.bf16.mxu0 0
  %830 = vmatpush1.bf16.msra.mxu0 %v504
  %831 = vmatprep.subr.bf16.mxu0 0
  %832 = vmatpush1.bf16.msra.mxu0 %v505
  %833 = vmatprep.subr.bf16.mxu0 0
  %834 = vmatpush1.bf16.msra.mxu0 %v506
  %835 = vmatprep.subr.bf16.mxu0 0
  %836 = vmatpush1.bf16.msra.mxu0 %v507
  %837 = vmatprep.subr.bf16.mxu0 0
  %838 = vmatpush1.bf16.msra.mxu0 %v508
  %839 = vmatprep.subr.bf16.mxu0 0
  %840 = vmatpush1.bf16.msra.mxu0 %v509
  %841 = vmatprep.subr.bf16.mxu0 0
  %842 = vmatpush1.bf16.msra.mxu0 %v510
  %843 = vmatprep.subr.bf16.mxu0 0
  %844 = vmatpush1.bf16.msra.mxu0 %v511
  %845 = vmatprep.subr.bf16.mxu0 0
  %846 = vmatpush1.bf16.msra.mxu0 %v512
  %847 = vmatprep.subr.bf16.mxu0 0
  %848 = vmatpush1.bf16.msra.mxu0 %v513
  %849 = vmatprep.subr.bf16.mxu0 0
  %850 = vmatpush1.bf16.msra.mxu0 %v514
  %851 = vmatprep.subr.bf16.mxu0 0
  %852 = vmatpush1.bf16.msra.mxu0 %v515
  %853 = vmatprep.mubr.bf16.mxu0 %v663
  %854 = vmatmul.mubr.bf16.gmra.mrb[0].mxu0 %v662
  %v855 = vpop.f32.mrb[0].mxu0
  %v856 = vadd.f32 %v759, %v855
  %v857 = vpop.f32.mrb[0].mxu0
  %v858 = vpop.f32.mrb[0].mxu0
  %v859 = vadd.f32 %v762, %v858
  %v860 = vpop.f32.mrb[0].mxu0
  %861 = vmatprep.mubr.bf16.mxu0 %v667
  %862 = vmatmul.mubr.bf16.gmra.mrb[0].mxu0 %v666
  %v863 = vpop.f32.mrb[0].mxu0
  %v864 = vadd.f32 %v767, %v863
  %v865 = vpop.f32.mrb[0].mxu0
  %v866 = vpop.f32.mrb[0].mxu0
  %v867 = vadd.f32 %v770, %v866
  %v868 = vpop.f32.mrb[0].mxu0
  %869 = vmatprep.mubr.bf16.mxu0 %v671
  %870 = vmatmul.mubr.bf16.gmra.mrb[0].mxu0 %v670
  %v871 = vpop.f32.mrb[0].mxu0
  %v872 = vadd.f32 %v775, %v871
  %v873 = vpop.f32.mrb[0].mxu0
  %v874 = vpop.f32.mrb[0].mxu0
  %v875 = vadd.f32 %v778, %v874
  %v876 = vpop.f32.mrb[0].mxu0
  %877 = vmatprep.mubr.bf16.mxu0 %v675
  %878 = vmatmul.mubr.bf16.gmra.mrb[0].mxu0 %v674
  %v879 = vpop.f32.mrb[0].mxu0
  %v880 = vadd.f32 %v783, %v879
  %v881 = vpop.f32.mrb[0].mxu0
  %v882 = vpop.f32.mrb[0].mxu0
  %v883 = vadd.f32 %v786, %v882
  %v884 = vpop.f32.mrb[0].mxu0
  %885 = vmatprep.mubr.bf16.mxu0 %v679
  %886 = vmatmul.mubr.bf16.gmra.mrb[0].mxu0 %v678
  %v887 = vpop.f32.mrb[0].mxu0
  %v888 = vadd.f32 %v791, %v887
  %v889 = vpop.f32.mrb[0].mxu0
  %v890 = vpop.f32.mrb[0].mxu0
  %v891 = vadd.f32 %v794, %v890
  %v892 = vpop.f32.mrb[0].mxu0
  %893 = vmatprep.mubr.bf16.mxu0 %v683
  %894 = vmatmul.mubr.bf16.gmra.mrb[0].mxu0 %v682
  %v895 = vpop.f32.mrb[0].mxu0
  %v896 = vadd.f32 %v799, %v895
  %v897 = vpop.f32.mrb[0].mxu0
  %v898 = vpop.f32.mrb[0].mxu0
  %v899 = vadd.f32 %v802, %v898
  %v900 = vpop.f32.mrb[0].mxu0
  %901 = vmatprep.mubr.bf16.mxu0 %v687
  %902 = vmatmul.mubr.bf16.gmra.mrb[0].mxu0 %v686
  %v903 = vpop.f32.mrb[0].mxu0
  %v904 = vadd.f32 %v807, %v903
  %v905 = vpop.f32.mrb[0].mxu0
  %v906 = vpop.f32.mrb[0].mxu0
  %v907 = vadd.f32 %v810, %v906
  %v908 = vpop.f32.mrb[0].mxu0
  %909 = vmatprep.mubr.bf16.mxu0 %v691
  %910 = vmatmul.mubr.bf16.gmra.mrb[0].mxu0 %v690
  %v911 = vpop.f32.mrb[0].mxu0
  %v912 = vadd.f32 %v815, %v911
  %v913 = vpop.f32.mrb[0].mxu0
  %v914 = vpop.f32.mrb[0].mxu0
  %v915 = vadd.f32 %v818, %v914
  %v916 = vpop.f32.mrb[0].mxu0
  %917 = vdwg.mxu0
  %v918 = vld [vmem:[%s9] sm:$0xff]
  %v919 = vld [vmem:[%s9 + $0x8] sm:$0xff]
  %v920 = vld [vmem:[%s9 + $0x10] sm:$0xff]
  %v921 = vld [vmem:[%s9 + $0x18] sm:$0xff]
  %v922 = vld [vmem:[%s9 + $0x20] sm:$0xff]
  %v923 = vld [vmem:[%s9 + $0x28] sm:$0xff]
  %v924 = vld [vmem:[%s9 + $0x30] sm:$0xff]
  %v925 = vld [vmem:[%s9 + $0x38] sm:$0xff]
  %v926 = vld [vmem:[%s9 + $0x40] sm:$0xff]
  %v927 = vld [vmem:[%s9 + $0x48] sm:$0xff]
  %v928 = vld [vmem:[%s9 + $0x50] sm:$0xff]
  %v929 = vld [vmem:[%s9 + $0x58] sm:$0xff]
  %v930 = vld [vmem:[%s9 + $0x60] sm:$0xff]
  %v931 = vld [vmem:[%s9 + $0x68] sm:$0xff]
  %v932 = vld [vmem:[%s9 + $0x70] sm:$0xff]
  %v933 = vld [vmem:[%s9 + $0x78] sm:$0xff]
  %v934 = vld [vmem:[%s10] sm:$0xff]
  %v935 = vld [vmem:[%s10 + $0x8] sm:$0xff]
  %v936 = vld [vmem:[%s10 + $0x10] sm:$0xff]
  %v937 = vld [vmem:[%s10 + $0x18] sm:$0xff]
  %v938 = vld [vmem:[%s10 + $0x20] sm:$0xff]
  %v939 = vld [vmem:[%s10 + $0x28] sm:$0xff]
  %v940 = vld [vmem:[%s10 + $0x30] sm:$0xff]
  %v941 = vld [vmem:[%s10 + $0x38] sm:$0xff]
  %v942 = vld [vmem:[%s10 + $0x40] sm:$0xff]
  %v943 = vld [vmem:[%s10 + $0x48] sm:$0xff]
  %v944 = vld [vmem:[%s10 + $0x50] sm:$0xff]
  %v945 = vld [vmem:[%s10 + $0x58] sm:$0xff]
  %v946 = vld [vmem:[%s10 + $0x60] sm:$0xff]
  %v947 = vld [vmem:[%s10 + $0x68] sm:$0xff]
  %v948 = vld [vmem:[%s10 + $0x70] sm:$0xff]
  %v949 = vld [vmem:[%s10 + $0x78] sm:$0xff]
  %vm950 = vcmask 261120
  %v951 = vsel %vm950, %v856, 0.0
  %952 = vadd.xlane.f32.xlu0 %v951
  %v953 = vpop.xlane.xlu0 %952
  %v954 = vsel %vm950, %v859, 0.0
  %955 = vadd.xlane.f32.xlu0 %v954
  %v956 = vpop.xlane.xlu0 %955
  %v957 = vsel %vm950, %v864, 0.0
  %958 = vadd.xlane.f32.xlu0 %v957
  %v959 = vpop.xlane.xlu0 %958
  %v960 = vsel %vm950, %v867, 0.0
  %961 = vadd.xlane.f32.xlu0 %v960
  %v962 = vpop.xlane.xlu0 %961
  %v963 = vsel %vm950, %v872, 0.0
  %964 = vadd.xlane.f32.xlu0 %v963
  %v965 = vpop.xlane.xlu0 %964
  %v966 = vsel %vm950, %v875, 0.0
  %967 = vadd.xlane.f32.xlu0 %v966
  %v968 = vpop.xlane.xlu0 %967
  %v969 = vsel %vm950, %v880, 0.0
  %970 = vadd.xlane.f32.xlu0 %v969
  %v971 = vpop.xlane.xlu0 %970
  %v972 = vsel %vm950, %v883, 0.0
  %973 = vadd.xlane.f32.xlu0 %v972
  %v974 = vpop.xlane.xlu0 %973
  %v975 = vsel %vm950, %v888, 0.0
  %976 = vadd.xlane.f32.xlu0 %v975
  %v977 = vpop.xlane.xlu0 %976
  %v978 = vsel %vm950, %v891, 0.0
  %979 = vadd.xlane.f32.xlu0 %v978
  %v980 = vpop.xlane.xlu0 %979
  %v981 = vsel %vm950, %v896, 0.0
  %982 = vadd.xlane.f32.xlu0 %v981
  %v983 = vpop.xlane.xlu0 %982
  %v984 = vsel %vm950, %v899, 0.0
  %985 = vadd.xlane.f32.xlu0 %v984
  %v986 = vpop.xlane.xlu0 %985
  %v987 = vsel %vm950, %v904, 0.0
  %988 = vadd.xlane.f32.xlu0 %v987
  %v989 = vpop.xlane.xlu0 %988
  %v990 = vsel %vm950, %v907, 0.0
  %991 = vadd.xlane.f32.xlu0 %v990
  %v992 = vpop.xlane.xlu0 %991
  %v993 = vsel %vm950, %v912, 0.0
  %994 = vadd.xlane.f32.xlu0 %v993
  %v995 = vpop.xlane.xlu0 %994
  %v996 = vsel %vm950, %v915, 0.0
  %997 = vadd.xlane.f32.xlu0 %v996
  %v998 = vpop.xlane.xlu0 %997
  %v999 = vmul.f32 %v856, %v856
  %v1000 = vmul.f32 %v859, %v859
  %v1001 = vmul.f32 %v864, %v864
  %v1002 = vmul.f32 %v867, %v867
  %v1003 = vmul.f32 %v872, %v872
  %v1004 = vmul.f32 %v875, %v875
  %v1005 = vmul.f32 %v880, %v880
  %v1006 = vmul.f32 %v883, %v883
  %v1007 = vmul.f32 %v888, %v888
  %v1008 = vmul.f32 %v891, %v891
  %v1009 = vmul.f32 %v896, %v896
  %v1010 = vmul.f32 %v899, %v899
  %v1011 = vmul.f32 %v904, %v904
  %v1012 = vmul.f32 %v907, %v907
  %v1013 = vmul.f32 %v912, %v912
  %v1014 = vmul.f32 %v915, %v915
  %v1015 = vsel %vm950, %v999, 0.0
  %1016 = vadd.xlane.f32.xlu0 %v1015
  %v1017 = vpop.xlane.xlu0 %1016
  %v1018 = vsel %vm950, %v1000, 0.0
  %1019 = vadd.xlane.f32.xlu0 %v1018
  %v1020 = vpop.xlane.xlu0 %1019
  %v1021 = vsel %vm950, %v1001, 0.0
  %1022 = vadd.xlane.f32.xlu0 %v1021
  %v1023 = vpop.xlane.xlu0 %1022
  %v1024 = vsel %vm950, %v1002, 0.0
  %1025 = vadd.xlane.f32.xlu0 %v1024
  %v1026 = vpop.xlane.xlu0 %1025
  %v1027 = vsel %vm950, %v1003, 0.0
  %1028 = vadd.xlane.f32.xlu0 %v1027
  %v1029 = vpop.xlane.xlu0 %1028
  %v1030 = vsel %vm950, %v1004, 0.0
  %1031 = vadd.xlane.f32.xlu0 %v1030
  %v1032 = vpop.xlane.xlu0 %1031
  %v1033 = vsel %vm950, %v1005, 0.0
  %1034 = vadd.xlane.f32.xlu0 %v1033
  %v1035 = vpop.xlane.xlu0 %1034
  %v1036 = vsel %vm950, %v1006, 0.0
  %1037 = vadd.xlane.f32.xlu0 %v1036
  %v1038 = vpop.xlane.xlu0 %1037
  %v1039 = vsel %vm950, %v1007, 0.0
  %1040 = vadd.xlane.f32.xlu0 %v1039
  %v1041 = vpop.xlane.xlu0 %1040
  %v1042 = vsel %vm950, %v1008, 0.0
  %1043 = vadd.xlane.f32.xlu0 %v1042
  %v1044 = vpop.xlane.xlu0 %1043
  %v1045 = vsel %vm950, %v1009, 0.0
  %1046 = vadd.xlane.f32.xlu0 %v1045
  %v1047 = vpop.xlane.xlu0 %1046
  %v1048 = vsel %vm950, %v1010, 0.0
  %1049 = vadd.xlane.f32.xlu0 %v1048
  %v1050 = vpop.xlane.xlu0 %1049
  %v1051 = vsel %vm950, %v1011, 0.0
  %1052 = vadd.xlane.f32.xlu0 %v1051
  %v1053 = vpop.xlane.xlu0 %1052
  %v1054 = vsel %vm950, %v1012, 0.0
  %1055 = vadd.xlane.f32.xlu0 %v1054
  %v1056 = vpop.xlane.xlu0 %1055
  %v1057 = vsel %vm950, %v1013, 0.0
  %1058 = vadd.xlane.f32.xlu0 %v1057
  %v1059 = vpop.xlane.xlu0 %1058
  %v1060 = vsel %vm950, %v1014, 0.0
  %1061 = vadd.xlane.f32.xlu0 %v1060
  %v1062 = vpop.xlane.xlu0 %1061
  %v1063 = vmul.f32 %v953, 0.03125
  %v1064 = vmul.f32 %v956, 0.03125
  %v1065 = vmul.f32 %v959, 0.03125
  %v1066 = vmul.f32 %v962, 0.03125
  %v1067 = vmul.f32 %v965, 0.03125
  %v1068 = vmul.f32 %v968, 0.03125
  %v1069 = vmul.f32 %v971, 0.03125
  %v1070 = vmul.f32 %v974, 0.03125
  %v1071 = vmul.f32 %v977, 0.03125
  %v1072 = vmul.f32 %v980, 0.03125
  %v1073 = vmul.f32 %v983, 0.03125
  %v1074 = vmul.f32 %v986, 0.03125
  %v1075 = vmul.f32 %v989, 0.03125
  %v1076 = vmul.f32 %v992, 0.03125
  %v1077 = vmul.f32 %v995, 0.03125
  %v1078 = vmul.f32 %v998, 0.03125
  %v1079 = vmul.f32 %v1017, 0.03125
  %v1080 = vmul.f32 %v1020, 0.03125
  %v1081 = vmul.f32 %v1023, 0.03125
  %v1082 = vmul.f32 %v1026, 0.03125
  %v1083 = vmul.f32 %v1029, 0.03125
  %v1084 = vmul.f32 %v1032, 0.03125
  %v1085 = vmul.f32 %v1035, 0.03125
  %v1086 = vmul.f32 %v1038, 0.03125
  %v1087 = vmul.f32 %v1041, 0.03125
  %v1088 = vmul.f32 %v1044, 0.03125
  %v1089 = vmul.f32 %v1047, 0.03125
  %v1090 = vmul.f32 %v1050, 0.03125
  %v1091 = vmul.f32 %v1053, 0.03125
  %v1092 = vmul.f32 %v1056, 0.03125
  %v1093 = vmul.f32 %v1059, 0.03125
  %v1094 = vmul.f32 %v1062, 0.03125
  %v1095 = vmul.f32 %v1063, %v1063
  %v1096 = vmul.f32 %v1064, %v1064
  %v1097 = vmul.f32 %v1065, %v1065
  %v1098 = vmul.f32 %v1066, %v1066
  %v1099 = vmul.f32 %v1067, %v1067
  %v1100 = vmul.f32 %v1068, %v1068
  %v1101 = vmul.f32 %v1069, %v1069
  %v1102 = vmul.f32 %v1070, %v1070
  %v1103 = vmul.f32 %v1071, %v1071
  %v1104 = vmul.f32 %v1072, %v1072
  %v1105 = vmul.f32 %v1073, %v1073
  %v1106 = vmul.f32 %v1074, %v1074
  %v1107 = vmul.f32 %v1075, %v1075
  %v1108 = vmul.f32 %v1076, %v1076
  %v1109 = vmul.f32 %v1077, %v1077
  %v1110 = vmul.f32 %v1078, %v1078
  %v1111 = vsub.f32 %v1079, %v1095
  %v1112 = vsub.f32 %v1080, %v1096
  %v1113 = vsub.f32 %v1081, %v1097
  %v1114 = vsub.f32 %v1082, %v1098
  %v1115 = vsub.f32 %v1083, %v1099
  %v1116 = vsub.f32 %v1084, %v1100
  %v1117 = vsub.f32 %v1085, %v1101
  %v1118 = vsub.f32 %v1086, %v1102
  %v1119 = vsub.f32 %v1087, %v1103
  %v1120 = vsub.f32 %v1088, %v1104
  %v1121 = vsub.f32 %v1089, %v1105
  %v1122 = vsub.f32 %v1090, %v1106
  %v1123 = vsub.f32 %v1091, %v1107
  %v1124 = vsub.f32 %v1092, %v1108
  %v1125 = vsub.f32 %v1093, %v1109
  %v1126 = vsub.f32 %v1094, %v1110
  %v1127 = vmax.f32 %v1111, 0.0
  %v1128 = vmax.f32 %v1112, 0.0
  %v1129 = vmax.f32 %v1113, 0.0
  %v1130 = vmax.f32 %v1114, 0.0
  %v1131 = vmax.f32 %v1115, 0.0
  %v1132 = vmax.f32 %v1116, 0.0
  %v1133 = vmax.f32 %v1117, 0.0
  %v1134 = vmax.f32 %v1118, 0.0
  %v1135 = vmax.f32 %v1119, 0.0
  %v1136 = vmax.f32 %v1120, 0.0
  %v1137 = vmax.f32 %v1121, 0.0
  %v1138 = vmax.f32 %v1122, 0.0
  %v1139 = vmax.f32 %v1123, 0.0
  %v1140 = vmax.f32 %v1124, 0.0
  %v1141 = vmax.f32 %v1125, 0.0
  %v1142 = vmax.f32 %v1126, 0.0
  %v1143 = vadd.f32 %v1127, 1e-05
  %v1144 = vadd.f32 %v1128, 1e-05
  %v1145 = vadd.f32 %v1129, 1e-05
  %v1146 = vadd.f32 %v1130, 1e-05
  %v1147 = vadd.f32 %v1131, 1e-05
  %v1148 = vadd.f32 %v1132, 1e-05
  %v1149 = vadd.f32 %v1133, 1e-05
  %v1150 = vadd.f32 %v1134, 1e-05
  %v1151 = vadd.f32 %v1135, 1e-05
  %v1152 = vadd.f32 %v1136, 1e-05
  %v1153 = vadd.f32 %v1137, 1e-05
  %v1154 = vadd.f32 %v1138, 1e-05
  %v1155 = vadd.f32 %v1139, 1e-05
  %v1156 = vadd.f32 %v1140, 1e-05
  %v1157 = vadd.f32 %v1141, 1e-05
  %v1158 = vadd.f32 %v1142, 1e-05
  %v1159 = vrsqrt.pop %v1143
  %v1160 = vrsqrt.pop %v1144
  %v1161 = vrsqrt.pop %v1145
  %v1162 = vrsqrt.pop %v1146
  %v1163 = vrsqrt.pop %v1147
  %v1164 = vrsqrt.pop %v1148
  %v1165 = vrsqrt.pop %v1149
  %v1166 = vrsqrt.pop %v1150
  %v1167 = vrsqrt.pop %v1151
  %v1168 = vrsqrt.pop %v1152
  %v1169 = vrsqrt.pop %v1153
  %v1170 = vrsqrt.pop %v1154
  %v1171 = vrsqrt.pop %v1155
  %v1172 = vrsqrt.pop %v1156
  %v1173 = vrsqrt.pop %v1157
  %v1174 = vrsqrt.pop %v1158
  %v1175 = vmul.f32 %v918, %v1159
  %v1176 = vmul.f32 %v919, %v1160
  %v1177 = vmul.f32 %v920, %v1161
  %v1178 = vmul.f32 %v921, %v1162
  %v1179 = vmul.f32 %v922, %v1163
  %v1180 = vmul.f32 %v923, %v1164
  %v1181 = vmul.f32 %v924, %v1165
  %v1182 = vmul.f32 %v925, %v1166
  %v1183 = vmul.f32 %v926, %v1167
  %v1184 = vmul.f32 %v927, %v1168
  %v1185 = vmul.f32 %v928, %v1169
  %v1186 = vmul.f32 %v929, %v1170
  %v1187 = vmul.f32 %v930, %v1171
  %v1188 = vmul.f32 %v931, %v1172
  %v1189 = vmul.f32 %v932, %v1173
  %v1190 = vmul.f32 %v933, %v1174
  %v1191 = vmul.f32 %v1063, %v1175
  %v1192 = vmul.f32 %v1064, %v1176
  %v1193 = vmul.f32 %v1065, %v1177
  %v1194 = vmul.f32 %v1066, %v1178
  %v1195 = vmul.f32 %v1067, %v1179
  %v1196 = vmul.f32 %v1068, %v1180
  %v1197 = vmul.f32 %v1069, %v1181
  %v1198 = vmul.f32 %v1070, %v1182
  %v1199 = vmul.f32 %v1071, %v1183
  %v1200 = vmul.f32 %v1072, %v1184
  %v1201 = vmul.f32 %v1073, %v1185
  %v1202 = vmul.f32 %v1074, %v1186
  %v1203 = vmul.f32 %v1075, %v1187
  %v1204 = vmul.f32 %v1076, %v1188
  %v1205 = vmul.f32 %v1077, %v1189
  %v1206 = vmul.f32 %v1078, %v1190
  %v1207 = vsub.f32 %v934, %v1191
  %v1208 = vsub.f32 %v935, %v1192
  %v1209 = vsub.f32 %v936, %v1193
  %v1210 = vsub.f32 %v937, %v1194
  %v1211 = vsub.f32 %v938, %v1195
  %v1212 = vsub.f32 %v939, %v1196
  %v1213 = vsub.f32 %v940, %v1197
  %v1214 = vsub.f32 %v941, %v1198
  %v1215 = vsub.f32 %v942, %v1199
  %v1216 = vsub.f32 %v943, %v1200
  %v1217 = vsub.f32 %v944, %v1201
  %v1218 = vsub.f32 %v945, %v1202
  %v1219 = vsub.f32 %v946, %v1203
  %v1220 = vsub.f32 %v947, %v1204
  %v1221 = vsub.f32 %v948, %v1205
  %v1222 = vsub.f32 %v949, %v1206
  %1224 = vset.pattern.permute.xlu0 0
  %1225 = vperm.xlu0 %1224, %v1175
  %v1226 = vpop.permute.xlu0 %1225
  %1229 = vset.pattern.permute.xlu0 0
  %1230 = vperm.xlu0 %1229, %v1176
  %v1231 = vpop.permute.xlu0 %1230
  %1234 = vset.pattern.permute.xlu0 0
  %1235 = vperm.xlu0 %1234, %v1177
  %v1236 = vpop.permute.xlu0 %1235
  %1239 = vset.pattern.permute.xlu0 0
  %1240 = vperm.xlu0 %1239, %v1178
  %v1241 = vpop.permute.xlu0 %1240
  %1244 = vset.pattern.permute.xlu0 0
  %1245 = vperm.xlu0 %1244, %v1179
  %v1246 = vpop.permute.xlu0 %1245
  %1249 = vset.pattern.permute.xlu0 0
  %1250 = vperm.xlu0 %1249, %v1180
  %v1251 = vpop.permute.xlu0 %1250
  %1254 = vset.pattern.permute.xlu0 0
  %1255 = vperm.xlu0 %1254, %v1181
  %v1256 = vpop.permute.xlu0 %1255
  %1259 = vset.pattern.permute.xlu0 0
  %1260 = vperm.xlu0 %1259, %v1182
  %v1261 = vpop.permute.xlu0 %1260
  %1264 = vset.pattern.permute.xlu0 0
  %1265 = vperm.xlu0 %1264, %v1183
  %v1266 = vpop.permute.xlu0 %1265
  %1269 = vset.pattern.permute.xlu0 0
  %1270 = vperm.xlu0 %1269, %v1184
  %v1271 = vpop.permute.xlu0 %1270
  %1274 = vset.pattern.permute.xlu0 0
  %1275 = vperm.xlu0 %1274, %v1185
  %v1276 = vpop.permute.xlu0 %1275
  %1279 = vset.pattern.permute.xlu0 0
  %1280 = vperm.xlu0 %1279, %v1186
  %v1281 = vpop.permute.xlu0 %1280
  %1284 = vset.pattern.permute.xlu0 0
  %1285 = vperm.xlu0 %1284, %v1187
  %v1286 = vpop.permute.xlu0 %1285
  %1289 = vset.pattern.permute.xlu0 0
  %1290 = vperm.xlu0 %1289, %v1188
  %v1291 = vpop.permute.xlu0 %1290
  %1294 = vset.pattern.permute.xlu0 0
  %1295 = vperm.xlu0 %1294, %v1189
  %v1296 = vpop.permute.xlu0 %1295
  %1299 = vset.pattern.permute.xlu0 0
  %1300 = vperm.xlu0 %1299, %v1190
  %v1301 = vpop.permute.xlu0 %1300
  %v1303 = vmul.f32 %v856, %v1226
  %v1304 = vmul.f32 %v859, %v1231
  %v1305 = vmul.f32 %v864, %v1236
  %v1306 = vmul.f32 %v867, %v1241
  %v1307 = vmul.f32 %v872, %v1246
  %v1308 = vmul.f32 %v875, %v1251
  %v1309 = vmul.f32 %v880, %v1256
  %v1310 = vmul.f32 %v883, %v1261
  %v1311 = vmul.f32 %v888, %v1266
  %v1312 = vmul.f32 %v891, %v1271
  %v1313 = vmul.f32 %v896, %v1276
  %v1314 = vmul.f32 %v899, %v1281
  %v1315 = vmul.f32 %v904, %v1286
  %v1316 = vmul.f32 %v907, %v1291
  %v1317 = vmul.f32 %v912, %v1296
  %v1318 = vmul.f32 %v915, %v1301
  %1320 = vset.pattern.permute.xlu0 0
  %1321 = vperm.xlu0 %1320, %v1207
  %v1322 = vpop.permute.xlu0 %1321
  %1325 = vset.pattern.permute.xlu0 0
  %1326 = vperm.xlu0 %1325, %v1208
  %v1327 = vpop.permute.xlu0 %1326
  %1330 = vset.pattern.permute.xlu0 0
  %1331 = vperm.xlu0 %1330, %v1209
  %v1332 = vpop.permute.xlu0 %1331
  %1335 = vset.pattern.permute.xlu0 0
  %1336 = vperm.xlu0 %1335, %v1210
  %v1337 = vpop.permute.xlu0 %1336
  %1340 = vset.pattern.permute.xlu0 0
  %1341 = vperm.xlu0 %1340, %v1211
  %v1342 = vpop.permute.xlu0 %1341
  %1345 = vset.pattern.permute.xlu0 0
  %1346 = vperm.xlu0 %1345, %v1212
  %v1347 = vpop.permute.xlu0 %1346
  %1350 = vset.pattern.permute.xlu0 0
  %1351 = vperm.xlu0 %1350, %v1213
  %v1352 = vpop.permute.xlu0 %1351
  %1355 = vset.pattern.permute.xlu0 0
  %1356 = vperm.xlu0 %1355, %v1214
  %v1357 = vpop.permute.xlu0 %1356
  %1360 = vset.pattern.permute.xlu0 0
  %1361 = vperm.xlu0 %1360, %v1215
  %v1362 = vpop.permute.xlu0 %1361
  %1365 = vset.pattern.permute.xlu0 0
  %1366 = vperm.xlu0 %1365, %v1216
  %v1367 = vpop.permute.xlu0 %1366
  %1370 = vset.pattern.permute.xlu0 0
  %1371 = vperm.xlu0 %1370, %v1217
  %v1372 = vpop.permute.xlu0 %1371
  %1375 = vset.pattern.permute.xlu0 0
  %1376 = vperm.xlu0 %1375, %v1218
  %v1377 = vpop.permute.xlu0 %1376
  %1380 = vset.pattern.permute.xlu0 0
  %1381 = vperm.xlu0 %1380, %v1219
  %v1382 = vpop.permute.xlu0 %1381
  %1385 = vset.pattern.permute.xlu0 0
  %1386 = vperm.xlu0 %1385, %v1220
  %v1387 = vpop.permute.xlu0 %1386
  %1390 = vset.pattern.permute.xlu0 0
  %1391 = vperm.xlu0 %1390, %v1221
  %v1392 = vpop.permute.xlu0 %1391
  %1395 = vset.pattern.permute.xlu0 0
  %1396 = vperm.xlu0 %1395, %v1222
  %v1397 = vpop.permute.xlu0 %1396
  %v1399 = vadd.f32 %v1303, %v1322
  %v1400 = vadd.f32 %v1304, %v1327
  %v1401 = vadd.f32 %v1305, %v1332
  %v1402 = vadd.f32 %v1306, %v1337
  %v1403 = vadd.f32 %v1307, %v1342
  %v1404 = vadd.f32 %v1308, %v1347
  %v1405 = vadd.f32 %v1309, %v1352
  %v1406 = vadd.f32 %v1310, %v1357
  %v1407 = vadd.f32 %v1311, %v1362
  %v1408 = vadd.f32 %v1312, %v1367
  %v1409 = vadd.f32 %v1313, %v1372
  %v1410 = vadd.f32 %v1314, %v1377
  %v1411 = vadd.f32 %v1315, %v1382
  %v1412 = vadd.f32 %v1316, %v1387
  %v1413 = vadd.f32 %v1317, %v1392
  %v1414 = vadd.f32 %v1318, %v1397
  %v1415 = vpack.c.bf16 %v1400, %v1399
  %v1416 = vpack.c.bf16 %v1402, %v1401
  %v1417 = vpack.c.bf16 %v1404, %v1403
  %v1418 = vpack.c.bf16 %v1406, %v1405
  %v1419 = vpack.c.bf16 %v1408, %v1407
  %v1420 = vpack.c.bf16 %v1410, %v1409
  %v1421 = vpack.c.bf16 %v1412, %v1411
  %v1422 = vpack.c.bf16 %v1414, %v1413
  %v1423 = vld [vmem:[%s5] sm:$0xf]
  %v1424 = vld [vmem:[%s5 + $0x4] sm:$0xf]
  %v1425 = vld [vmem:[%s5 + $0x8] sm:$0xf]
  %v1426 = vld [vmem:[%s5 + $0xc] sm:$0xf]
  %v1431 = vunpack.c.l.b16 %v1423
  %v1432 = vunpack.c.l.b16 %v1424
  %v1433 = vunpack.c.l.b16 %v1425
  %v1434 = vunpack.c.l.b16 %v1426
  %v1435 = vpack.c.b16 %v1432, %v1431
  %v1436 = vpack.c.b16 %v1434, %v1433
  %v1440 = vsel %vm950, %v1415, 0
  %v1443 = vsel %vm950, %v1416, 0
  %v1446 = vsel %vm950, %v1417, 0
  %v1449 = vsel %vm950, %v1418, 0
  %v1452 = vsel %vm950, %v1419, 0
  %v1455 = vsel %vm950, %v1420, 0
  %v1458 = vsel %vm950, %v1421, 0
  %v1461 = vsel %vm950, %v1422, 0
  %1463 = vmatprep.subr.bf16.mxu0 0
  %1464 = vmatpush1.bf16.msra.mxu0 %v1435
  %1465 = vmatprep.subr.bf16.mxu0 0
  %1466 = vmatpush1.bf16.msra.mxu0 %v1436
  %1467 = vmatprep.subr.bf16.mxu0 0
  %1468 = vmatpush1.bf16.msra.mxu0 0
  %1469 = vmatprep.subr.bf16.mxu0 0
  %1470 = vmatpush1.bf16.msra.mxu0 0
  %1471 = vmatprep.subr.bf16.mxu0 0
  %1472 = vmatpush1.bf16.msra.mxu0 0
  %1473 = vmatprep.subr.bf16.mxu0 0
  %1474 = vmatpush1.bf16.msra.mxu0 0
  %1475 = vmatprep.subr.bf16.mxu0 0
  %1476 = vmatpush1.bf16.msra.mxu0 0
  %1477 = vmatprep.subr.bf16.mxu0 0
  %1478 = vmatpush1.bf16.msra.mxu0 0
  %1479 = vmatprep.subr.bf16.mxu0 0
  %1480 = vmatpush1.bf16.msra.mxu0 0
  %1481 = vmatprep.subr.bf16.mxu0 0
  %1482 = vmatpush1.bf16.msra.mxu0 0
  %1483 = vmatprep.subr.bf16.mxu0 0
  %1484 = vmatpush1.bf16.msra.mxu0 0
  %1485 = vmatprep.subr.bf16.mxu0 0
  %1486 = vmatpush1.bf16.msra.mxu0 0
  %1487 = vmatprep.subr.bf16.mxu0 0
  %1488 = vmatpush1.bf16.msra.mxu0 0
  %1489 = vmatprep.subr.bf16.mxu0 0
  %1490 = vmatpush1.bf16.msra.mxu0 0
  %1491 = vmatprep.subr.bf16.mxu0 0
  %1492 = vmatpush1.bf16.msra.mxu0 0
  %1493 = vmatprep.subr.bf16.mxu0 0
  %1494 = vmatpush1.bf16.msra.mxu0 0
  %1495 = vmatprep.mubr.bf16.mxu0 0
  %1496 = vmatmul.mubr.bf16.gmra.mrb[0].mxu0 %v1440
  %v1497 = vpop.f32.mrb[0].mxu0
  %v1498 = vadd.f32 0.0, %v1497
  %v1499 = vpop.f32.mrb[0].mxu0
  %v1500 = vpop.f32.mrb[0].mxu0
  %v1501 = vadd.f32 0.0, %v1500
  %v1502 = vpop.f32.mrb[0].mxu0
  %1503 = vmatprep.mubr.bf16.mxu0 0
  %1504 = vmatmul.mubr.bf16.gmra.mrb[0].mxu0 %v1443
  %v1505 = vpop.f32.mrb[0].mxu0
  %v1506 = vadd.f32 0.0, %v1505
  %v1507 = vpop.f32.mrb[0].mxu0
  %v1508 = vpop.f32.mrb[0].mxu0
  %v1509 = vadd.f32 0.0, %v1508
  %v1510 = vpop.f32.mrb[0].mxu0
  %1511 = vmatprep.mubr.bf16.mxu0 0
  %1512 = vmatmul.mubr.bf16.gmra.mrb[0].mxu0 %v1446
  %v1513 = vpop.f32.mrb[0].mxu0
  %v1514 = vadd.f32 0.0, %v1513
  %v1515 = vpop.f32.mrb[0].mxu0
  %v1516 = vpop.f32.mrb[0].mxu0
  %v1517 = vadd.f32 0.0, %v1516
  %v1518 = vpop.f32.mrb[0].mxu0
  %1519 = vmatprep.mubr.bf16.mxu0 0
  %1520 = vmatmul.mubr.bf16.gmra.mrb[0].mxu0 %v1449
  %v1521 = vpop.f32.mrb[0].mxu0
  %v1522 = vadd.f32 0.0, %v1521
  %v1523 = vpop.f32.mrb[0].mxu0
  %v1524 = vpop.f32.mrb[0].mxu0
  %v1525 = vadd.f32 0.0, %v1524
  %v1526 = vpop.f32.mrb[0].mxu0
  %1527 = vmatprep.mubr.bf16.mxu0 0
  %1528 = vmatmul.mubr.bf16.gmra.mrb[0].mxu0 %v1452
  %v1529 = vpop.f32.mrb[0].mxu0
  %v1530 = vadd.f32 0.0, %v1529
  %v1531 = vpop.f32.mrb[0].mxu0
  %v1532 = vpop.f32.mrb[0].mxu0
  %v1533 = vadd.f32 0.0, %v1532
  %v1534 = vpop.f32.mrb[0].mxu0
  %1535 = vmatprep.mubr.bf16.mxu0 0
  %1536 = vmatmul.mubr.bf16.gmra.mrb[0].mxu0 %v1455
  %v1537 = vpop.f32.mrb[0].mxu0
  %v1538 = vadd.f32 0.0, %v1537
  %v1539 = vpop.f32.mrb[0].mxu0
  %v1540 = vpop.f32.mrb[0].mxu0
  %v1541 = vadd.f32 0.0, %v1540
  %v1542 = vpop.f32.mrb[0].mxu0
  %1543 = vmatprep.mubr.bf16.mxu0 0
  %1544 = vmatmul.mubr.bf16.gmra.mrb[0].mxu0 %v1458
  %v1545 = vpop.f32.mrb[0].mxu0
  %v1546 = vadd.f32 0.0, %v1545
  %v1547 = vpop.f32.mrb[0].mxu0
  %v1548 = vpop.f32.mrb[0].mxu0
  %v1549 = vadd.f32 0.0, %v1548
  %v1550 = vpop.f32.mrb[0].mxu0
  %1551 = vmatprep.mubr.bf16.mxu0 0
  %1552 = vmatmul.mubr.bf16.gmra.mrb[0].mxu0 %v1461
  %v1553 = vpop.f32.mrb[0].mxu0
  %v1554 = vadd.f32 0.0, %v1553
  %v1555 = vpop.f32.mrb[0].mxu0
  %v1556 = vpop.f32.mrb[0].mxu0
  %v1557 = vadd.f32 0.0, %v1556
  %v1558 = vpop.f32.mrb[0].mxu0
  %1559 = vdwg.mxu0
  %v1560 = vpack.c.bf16 %v1501, %v1498
  %v1561 = vpack.c.bf16 %v1509, %v1506
  %v1562 = vpack.c.bf16 %v1517, %v1514
  %v1563 = vpack.c.bf16 %v1525, %v1522
  %v1564 = vpack.c.bf16 %v1533, %v1530
  %v1565 = vpack.c.bf16 %v1541, %v1538
  %v1566 = vpack.c.bf16 %v1549, %v1546
  %v1567 = vpack.c.bf16 %v1557, %v1554
  %1576 = vrot.lane.b32.xlu0 %v1560, 18
  %v1577 = vpop.permute.xlu0 %1576
  %1578 = vrot.lane.b32.xlu0 %v1561, 18
  %v1579 = vpop.permute.xlu0 %1578
  %1580 = vrot.lane.b32.xlu0 %v1562, 18
  %v1581 = vpop.permute.xlu0 %1580
  %1582 = vrot.lane.b32.xlu0 %v1563, 18
  %v1583 = vpop.permute.xlu0 %1582
  %1584 = vrot.lane.b32.xlu0 %v1564, 18
  %v1585 = vpop.permute.xlu0 %1584
  %1586 = vrot.lane.b32.xlu0 %v1565, 18
  %v1587 = vpop.permute.xlu0 %1586
  %1588 = vrot.lane.b32.xlu0 %v1566, 18
  %v1589 = vpop.permute.xlu0 %1588
  %1590 = vrot.lane.b32.xlu0 %v1567, 18
  %v1591 = vpop.permute.xlu0 %1590
  %v1609 = vpack.i.b16 %v69, %v69
  %v1611 = vlaneseq
  %v1612 = vshrl.u32 %v1611, 7
  %v1613 = vsub.s32 0, %v1612
  %v1614 = vrot.slane %v1609, %v1613
  %v1615 = vmul.bf16 %v1577, %v1614
  %v1616 = vmul.bf16 %v1579, %v1614
  %v1617 = vmul.bf16 %v1581, %v1614
  %v1618 = vmul.bf16 %v1583, %v1614
  %v1619 = vmul.bf16 %v1585, %v1614
  %v1620 = vmul.bf16 %v1587, %v1614
  %v1621 = vmul.bf16 %v1589, %v1614
  %v1622 = vmul.bf16 %v1591, %v1614
  %1623 = vrot.lane.b32.xlu0 %v1560, 16
  %v1624 = vpop.permute.xlu0 %1623
  %1625 = vrot.lane.b32.xlu0 %v1561, 16
  %v1626 = vpop.permute.xlu0 %1625
  %1627 = vrot.lane.b32.xlu0 %v1562, 16
  %v1628 = vpop.permute.xlu0 %1627
  %1629 = vrot.lane.b32.xlu0 %v1563, 16
  %v1630 = vpop.permute.xlu0 %1629
  %1631 = vrot.lane.b32.xlu0 %v1564, 16
  %v1632 = vpop.permute.xlu0 %1631
  %1633 = vrot.lane.b32.xlu0 %v1565, 16
  %v1634 = vpop.permute.xlu0 %1633
  %1635 = vrot.lane.b32.xlu0 %v1566, 16
  %v1636 = vpop.permute.xlu0 %1635
  %1637 = vrot.lane.b32.xlu0 %v1567, 16
  %v1638 = vpop.permute.xlu0 %1637
  %v1656 = vpack.i.b16 %v70, %v70
  %v1658 = vlaneseq
  %v1659 = vshrl.u32 %v1658, 7
  %v1660 = vsub.s32 0, %v1659
  %v1661 = vrot.slane %v1656, %v1660
  %v1662 = vmul.bf16 %v1624, %v1661
  %v1663 = vmul.bf16 %v1626, %v1661
  %v1664 = vmul.bf16 %v1628, %v1661
  %v1665 = vmul.bf16 %v1630, %v1661
  %v1666 = vmul.bf16 %v1632, %v1661
  %v1667 = vmul.bf16 %v1634, %v1661
  %v1668 = vmul.bf16 %v1636, %v1661
  %v1669 = vmul.bf16 %v1638, %v1661
  %1670 = vrot.lane.b32.xlu0 %v1560, 14
  %v1671 = vpop.permute.xlu0 %1670
  %1672 = vrot.lane.b32.xlu0 %v1561, 14
  %v1673 = vpop.permute.xlu0 %1672
  %1674 = vrot.lane.b32.xlu0 %v1562, 14
  %v1675 = vpop.permute.xlu0 %1674
  %1676 = vrot.lane.b32.xlu0 %v1563, 14
  %v1677 = vpop.permute.xlu0 %1676
  %1678 = vrot.lane.b32.xlu0 %v1564, 14
  %v1679 = vpop.permute.xlu0 %1678
  %1680 = vrot.lane.b32.xlu0 %v1565, 14
  %v1681 = vpop.permute.xlu0 %1680
  %1682 = vrot.lane.b32.xlu0 %v1566, 14
  %v1683 = vpop.permute.xlu0 %1682
  %1684 = vrot.lane.b32.xlu0 %v1567, 14
  %v1685 = vpop.permute.xlu0 %1684
  %v1703 = vpack.i.b16 %v71, %v71
  %v1705 = vlaneseq
  %v1706 = vshrl.u32 %v1705, 7
  %v1707 = vsub.s32 0, %v1706
  %v1708 = vrot.slane %v1703, %v1707
  %v1709 = vmul.bf16 %v1671, %v1708
  %v1710 = vmul.bf16 %v1673, %v1708
  %v1711 = vmul.bf16 %v1675, %v1708
  %v1712 = vmul.bf16 %v1677, %v1708
  %v1713 = vmul.bf16 %v1679, %v1708
  %v1714 = vmul.bf16 %v1681, %v1708
  %v1715 = vmul.bf16 %v1683, %v1708
  %v1716 = vmul.bf16 %v1685, %v1708
  %1717 = vrot.lane.b32.xlu0 %v1560, 2
  %v1718 = vpop.permute.xlu0 %1717
  %1719 = vrot.lane.b32.xlu0 %v1561, 2
  %v1720 = vpop.permute.xlu0 %1719
  %1721 = vrot.lane.b32.xlu0 %v1562, 2
  %v1722 = vpop.permute.xlu0 %1721
  %1723 = vrot.lane.b32.xlu0 %v1563, 2
  %v1724 = vpop.permute.xlu0 %1723
  %1725 = vrot.lane.b32.xlu0 %v1564, 2
  %v1726 = vpop.permute.xlu0 %1725
  %1727 = vrot.lane.b32.xlu0 %v1565, 2
  %v1728 = vpop.permute.xlu0 %1727
  %1729 = vrot.lane.b32.xlu0 %v1566, 2
  %v1730 = vpop.permute.xlu0 %1729
  %1731 = vrot.lane.b32.xlu0 %v1567, 2
  %v1732 = vpop.permute.xlu0 %1731
  %v1750 = vpack.i.b16 %v72, %v72
  %v1752 = vlaneseq
  %v1753 = vshrl.u32 %v1752, 7
  %v1754 = vsub.s32 0, %v1753
  %v1755 = vrot.slane %v1750, %v1754
  %v1756 = vmul.bf16 %v1718, %v1755
  %v1757 = vmul.bf16 %v1720, %v1755
  %v1758 = vmul.bf16 %v1722, %v1755
  %v1759 = vmul.bf16 %v1724, %v1755
  %v1760 = vmul.bf16 %v1726, %v1755
  %v1761 = vmul.bf16 %v1728, %v1755
  %v1762 = vmul.bf16 %v1730, %v1755
  %v1763 = vmul.bf16 %v1732, %v1755
  %1764 = vrot.lane.b32.xlu0 %v1560, 126
  %v1765 = vpop.permute.xlu0 %1764
  %1766 = vrot.lane.b32.xlu0 %v1561, 126
  %v1767 = vpop.permute.xlu0 %1766
  %1768 = vrot.lane.b32.xlu0 %v1562, 126
  %v1769 = vpop.permute.xlu0 %1768
  %1770 = vrot.lane.b32.xlu0 %v1563, 126
  %v1771 = vpop.permute.xlu0 %1770
  %1772 = vrot.lane.b32.xlu0 %v1564, 126
  %v1773 = vpop.permute.xlu0 %1772
  %1774 = vrot.lane.b32.xlu0 %v1565, 126
  %v1775 = vpop.permute.xlu0 %1774
  %1776 = vrot.lane.b32.xlu0 %v1566, 126
  %v1777 = vpop.permute.xlu0 %1776
  %1778 = vrot.lane.b32.xlu0 %v1567, 126
  %v1779 = vpop.permute.xlu0 %1778
  %vm1780 = vcmask 1031168
  %v1798 = vpack.i.b16 %v73, %v73
  %v1800 = vlaneseq
  %v1801 = vshrl.u32 %v1800, 7
  %v1802 = vsub.s32 0, %v1801
  %v1803 = vrot.slane %v1798, %v1802
  %v1804 = vmul.bf16 %v1765, %v1803
  %v1805 = vmul.bf16 %v1767, %v1803
  %v1806 = vmul.bf16 %v1769, %v1803
  %v1807 = vmul.bf16 %v1771, %v1803
  %v1808 = vmul.bf16 %v1773, %v1803
  %v1809 = vmul.bf16 %v1775, %v1803
  %v1810 = vmul.bf16 %v1777, %v1803
  %v1811 = vmul.bf16 %v1779, %v1803
  %1812 = vrot.lane.b32.xlu0 %v1560, 114
  %v1813 = vpop.permute.xlu0 %1812
  %1814 = vrot.lane.b32.xlu0 %v1561, 114
  %v1815 = vpop.permute.xlu0 %1814
  %1816 = vrot.lane.b32.xlu0 %v1562, 114
  %v1817 = vpop.permute.xlu0 %1816
  %1818 = vrot.lane.b32.xlu0 %v1563, 114
  %v1819 = vpop.permute.xlu0 %1818
  %1820 = vrot.lane.b32.xlu0 %v1564, 114
  %v1821 = vpop.permute.xlu0 %1820
  %1822 = vrot.lane.b32.xlu0 %v1565, 114
  %v1823 = vpop.permute.xlu0 %1822
  %1824 = vrot.lane.b32.xlu0 %v1566, 114
  %v1825 = vpop.permute.xlu0 %1824
  %1826 = vrot.lane.b32.xlu0 %v1567, 114
  %v1827 = vpop.permute.xlu0 %1826
  %v1845 = vpack.i.b16 %v74, %v74
  %v1847 = vlaneseq
  %v1848 = vshrl.u32 %v1847, 7
  %v1849 = vsub.s32 0, %v1848
  %v1850 = vrot.slane %v1845, %v1849
  %v1851 = vmul.bf16 %v1813, %v1850
  %v1852 = vmul.bf16 %v1815, %v1850
  %v1853 = vmul.bf16 %v1817, %v1850
  %v1854 = vmul.bf16 %v1819, %v1850
  %v1855 = vmul.bf16 %v1821, %v1850
  %v1856 = vmul.bf16 %v1823, %v1850
  %v1857 = vmul.bf16 %v1825, %v1850
  %v1858 = vmul.bf16 %v1827, %v1850
  %1859 = vrot.lane.b32.xlu0 %v1560, 112
  %v1860 = vpop.permute.xlu0 %1859
  %1861 = vrot.lane.b32.xlu0 %v1561, 112
  %v1862 = vpop.permute.xlu0 %1861
  %1863 = vrot.lane.b32.xlu0 %v1562, 112
  %v1864 = vpop.permute.xlu0 %1863
  %1865 = vrot.lane.b32.xlu0 %v1563, 112
  %v1866 = vpop.permute.xlu0 %1865
  %1867 = vrot.lane.b32.xlu0 %v1564, 112
  %v1868 = vpop.permute.xlu0 %1867
  %1869 = vrot.lane.b32.xlu0 %v1565, 112
  %v1870 = vpop.permute.xlu0 %1869
  %1871 = vrot.lane.b32.xlu0 %v1566, 112
  %v1872 = vpop.permute.xlu0 %1871
  %1873 = vrot.lane.b32.xlu0 %v1567, 112
  %v1874 = vpop.permute.xlu0 %1873
  %v1892 = vpack.i.b16 %v75, %v75
  %v1894 = vlaneseq
  %v1895 = vshrl.u32 %v1894, 7
  %v1896 = vsub.s32 0, %v1895
  %v1897 = vrot.slane %v1892, %v1896
  %v1898 = vmul.bf16 %v1860, %v1897
  %v1899 = vmul.bf16 %v1862, %v1897
  %v1900 = vmul.bf16 %v1864, %v1897
  %v1901 = vmul.bf16 %v1866, %v1897
  %v1902 = vmul.bf16 %v1868, %v1897
  %v1903 = vmul.bf16 %v1870, %v1897
  %v1904 = vmul.bf16 %v1872, %v1897
  %v1905 = vmul.bf16 %v1874, %v1897
  %1906 = vrot.lane.b32.xlu0 %v1560, 110
  %v1907 = vpop.permute.xlu0 %1906
  %1908 = vrot.lane.b32.xlu0 %v1561, 110
  %v1909 = vpop.permute.xlu0 %1908
  %1910 = vrot.lane.b32.xlu0 %v1562, 110
  %v1911 = vpop.permute.xlu0 %1910
  %1912 = vrot.lane.b32.xlu0 %v1563, 110
  %v1913 = vpop.permute.xlu0 %1912
  %1914 = vrot.lane.b32.xlu0 %v1564, 110
  %v1915 = vpop.permute.xlu0 %1914
  %1916 = vrot.lane.b32.xlu0 %v1565, 110
  %v1917 = vpop.permute.xlu0 %1916
  %1918 = vrot.lane.b32.xlu0 %v1566, 110
  %v1919 = vpop.permute.xlu0 %1918
  %1920 = vrot.lane.b32.xlu0 %v1567, 110
  %v1921 = vpop.permute.xlu0 %1920
  %v1939 = vpack.i.b16 %v76, %v76
  %v1941 = vlaneseq
  %v1942 = vshrl.u32 %v1941, 7
  %v1943 = vsub.s32 0, %v1942
  %v1944 = vrot.slane %v1939, %v1943
  %v1945 = vmul.bf16 %v1907, %v1944
  %v1946 = vmul.bf16 %v1909, %v1944
  %v1947 = vmul.bf16 %v1911, %v1944
  %v1948 = vmul.bf16 %v1913, %v1944
  %v1949 = vmul.bf16 %v1915, %v1944
  %v1950 = vmul.bf16 %v1917, %v1944
  %v1951 = vmul.bf16 %v1919, %v1944
  %v1952 = vmul.bf16 %v1921, %v1944
  %v1953 = vld [vmem:[%s11] sm:$0xff]
  %v1954 = vld [vmem:[%s11 + $0x8] sm:$0xff]
  %v1955 = vld [vmem:[%s11 + $0x10] sm:$0xff]
  %v1956 = vld [vmem:[%s11 + $0x18] sm:$0xff]
  %v1957 = vld [vmem:[%s11 + $0x20] sm:$0xf]
  %v1958 = vld [vmem:[%s11 + $0x24] sm:$0xff]
  %v1959 = vld [vmem:[%s11 + $0x2c] sm:$0xff]
  %v1960 = vld [vmem:[%s11 + $0x34] sm:$0xff]
  %v1961 = vld [vmem:[%s11 + $0x3c] sm:$0xff]
  %v1962 = vld [vmem:[%s11 + $0x44] sm:$0xf]
  %v1963 = vld [vmem:[%s11 + $0x48] sm:$0xff]
  %v1964 = vld [vmem:[%s11 + $0x50] sm:$0xff]
  %v1965 = vld [vmem:[%s11 + $0x58] sm:$0xff]
  %v1966 = vld [vmem:[%s11 + $0x60] sm:$0xff]
  %v1967 = vld [vmem:[%s11 + $0x68] sm:$0xf]
  %v1968 = vld [vmem:[%s11 + $0x6c] sm:$0xff]
  %v1969 = vld [vmem:[%s11 + $0x74] sm:$0xff]
  %v1970 = vld [vmem:[%s11 + $0x7c] sm:$0xff]
  %v1971 = vld [vmem:[%s11 + $0x84] sm:$0xff]
  %v1972 = vld [vmem:[%s11 + $0x8c] sm:$0xf]
  %v1973 = vld [vmem:[%s11 + $0x90] sm:$0xff]
  %v1974 = vld [vmem:[%s11 + $0x98] sm:$0xff]
  %v1975 = vld [vmem:[%s11 + $0xa0] sm:$0xff]
  %v1976 = vld [vmem:[%s11 + $0xa8] sm:$0xff]
  %v1977 = vld [vmem:[%s11 + $0xb0] sm:$0xf]
  %v1978 = vld [vmem:[%s11 + $0xb4] sm:$0xff]
  %v1979 = vld [vmem:[%s11 + $0xbc] sm:$0xff]
  %v1980 = vld [vmem:[%s11 + $0xc4] sm:$0xff]
  %v1981 = vld [vmem:[%s11 + $0xcc] sm:$0xff]
  %v1982 = vld [vmem:[%s11 + $0xd4] sm:$0xf]
  %v1983 = vld [vmem:[%s11 + $0xd8] sm:$0xff]
  %v1984 = vld [vmem:[%s11 + $0xe0] sm:$0xff]
  %v1985 = vld [vmem:[%s11 + $0xe8] sm:$0xff]
  %v1986 = vld [vmem:[%s11 + $0xf0] sm:$0xff]
  %v1987 = vld [vmem:[%s11 + $0xf8] sm:$0xf]
  %v1988 = vld [vmem:[%s11 + $0xfc] sm:$0xff]
  %v1989 = vld [vmem:[%s11 + $0x104] sm:$0xff]
  %v1990 = vld [vmem:[%s11 + $0x10c] sm:$0xff]
  %v1991 = vld [vmem:[%s11 + $0x114] sm:$0xff]
  %v1992 = vld [vmem:[%s11 + $0x11c] sm:$0xf]
  %v1993 = vld [vmem:[%s11 + $0x120] sm:$0xff]
  %v1994 = vld [vmem:[%s11 + $0x128] sm:$0xff]
  %v1995 = vld [vmem:[%s11 + $0x130] sm:$0xff]
  %v1996 = vld [vmem:[%s11 + $0x138] sm:$0xff]
  %v1997 = vld [vmem:[%s11 + $0x140] sm:$0xf]
  %v1998 = vld [vmem:[%s11 + $0x144] sm:$0xff]
  %v1999 = vld [vmem:[%s11 + $0x14c] sm:$0xff]
  %v2000 = vld [vmem:[%s11 + $0x154] sm:$0xff]
  %v2001 = vld [vmem:[%s11 + $0x15c] sm:$0xff]
  %v2002 = vld [vmem:[%s11 + $0x164] sm:$0xf]
  %v2003 = vld [vmem:[%s11 + $0x168] sm:$0xff]
  %v2004 = vld [vmem:[%s11 + $0x170] sm:$0xff]
  %v2005 = vld [vmem:[%s11 + $0x178] sm:$0xff]
  %v2006 = vld [vmem:[%s11 + $0x180] sm:$0xff]
  %v2007 = vld [vmem:[%s11 + $0x188] sm:$0xf]
  %v2008 = vld [vmem:[%s11 + $0x18c] sm:$0xff]
  %v2009 = vld [vmem:[%s11 + $0x194] sm:$0xff]
  %v2010 = vld [vmem:[%s11 + $0x19c] sm:$0xff]
  %v2011 = vld [vmem:[%s11 + $0x1a4] sm:$0xff]
  %v2012 = vld [vmem:[%s11 + $0x1ac] sm:$0xf]
  %v2013 = vld [vmem:[%s11 + $0x1b0] sm:$0xff]
  %v2014 = vld [vmem:[%s11 + $0x1b8] sm:$0xff]
  %v2015 = vld [vmem:[%s11 + $0x1c0] sm:$0xff]
  %v2016 = vld [vmem:[%s11 + $0x1c8] sm:$0xff]
  %v2017 = vld [vmem:[%s11 + $0x1d0] sm:$0xf]
  %v2018 = vld [vmem:[%s11 + $0x1d4] sm:$0xff]
  %v2019 = vld [vmem:[%s11 + $0x1dc] sm:$0xff]
  %v2020 = vld [vmem:[%s11 + $0x1e4] sm:$0xff]
  %v2021 = vld [vmem:[%s11 + $0x1ec] sm:$0xff]
  %v2022 = vld [vmem:[%s11 + $0x1f4] sm:$0xf]
  %v2023 = vld [vmem:[%s11 + $0x1f8] sm:$0xff]
  %v2024 = vld [vmem:[%s11 + $0x200] sm:$0xff]
  %v2025 = vld [vmem:[%s11 + $0x208] sm:$0xff]
  %v2026 = vld [vmem:[%s11 + $0x210] sm:$0xff]
  %v2027 = vld [vmem:[%s11 + $0x218] sm:$0xf]
  %v2028 = vld [vmem:[%s11 + $0x21c] sm:$0xff]
  %v2029 = vld [vmem:[%s11 + $0x224] sm:$0xff]
  %v2030 = vld [vmem:[%s11 + $0x22c] sm:$0xff]
  %v2031 = vld [vmem:[%s11 + $0x234] sm:$0xff]
  %v2032 = vld [vmem:[%s11 + $0x23c] sm:$0xf]
  %v2033 = vld [vmem:[%s12] sm:$0xff]
  %v2034 = vld [vmem:[%s12 + $0x8] sm:$0xff]
  %v2035 = vld [vmem:[%s12 + $0x10] sm:$0xff]
  %v2036 = vld [vmem:[%s12 + $0x18] sm:$0xff]
  %v2037 = vld [vmem:[%s12 + $0x20] sm:$0xff]
  %v2038 = vld [vmem:[%s12 + $0x28] sm:$0xff]
  %v2039 = vld [vmem:[%s12 + $0x30] sm:$0xff]
  %v2040 = vld [vmem:[%s12 + $0x38] sm:$0xff]
  %v2041 = vld [vmem:[%s12 + $0x40] sm:$0xff]
  %v2042 = vld [vmem:[%s12 + $0x48] sm:$0xff]
  %v2043 = vld [vmem:[%s12 + $0x50] sm:$0xff]
  %v2044 = vld [vmem:[%s12 + $0x58] sm:$0xff]
  %v2045 = vld [vmem:[%s12 + $0x60] sm:$0xff]
  %v2046 = vld [vmem:[%s12 + $0x68] sm:$0xff]
  %v2047 = vld [vmem:[%s12 + $0x70] sm:$0xff]
  %v2048 = vld [vmem:[%s12 + $0x78] sm:$0xff]
  %2050 = vset.pattern.permute.xlu0 0
  %2051 = vperm.xlu0 %2050, %v2033
  %v2052 = vpop.permute.xlu0 %2051
  %2055 = vset.pattern.permute.xlu0 0
  %2056 = vperm.xlu0 %2055, %v2034
  %v2057 = vpop.permute.xlu0 %2056
  %2060 = vset.pattern.permute.xlu0 0
  %2061 = vperm.xlu0 %2060, %v2035
  %v2062 = vpop.permute.xlu0 %2061
  %2065 = vset.pattern.permute.xlu0 0
  %2066 = vperm.xlu0 %2065, %v2036
  %v2067 = vpop.permute.xlu0 %2066
  %2070 = vset.pattern.permute.xlu0 0
  %2071 = vperm.xlu0 %2070, %v2037
  %v2072 = vpop.permute.xlu0 %2071
  %2075 = vset.pattern.permute.xlu0 0
  %2076 = vperm.xlu0 %2075, %v2038
  %v2077 = vpop.permute.xlu0 %2076
  %2080 = vset.pattern.permute.xlu0 0
  %2081 = vperm.xlu0 %2080, %v2039
  %v2082 = vpop.permute.xlu0 %2081
  %2085 = vset.pattern.permute.xlu0 0
  %2086 = vperm.xlu0 %2085, %v2040
  %v2087 = vpop.permute.xlu0 %2086
  %2090 = vset.pattern.permute.xlu0 0
  %2091 = vperm.xlu0 %2090, %v2041
  %v2092 = vpop.permute.xlu0 %2091
  %2095 = vset.pattern.permute.xlu0 0
  %2096 = vperm.xlu0 %2095, %v2042
  %v2097 = vpop.permute.xlu0 %2096
  %2100 = vset.pattern.permute.xlu0 0
  %2101 = vperm.xlu0 %2100, %v2043
  %v2102 = vpop.permute.xlu0 %2101
  %2105 = vset.pattern.permute.xlu0 0
  %2106 = vperm.xlu0 %2105, %v2044
  %v2107 = vpop.permute.xlu0 %2106
  %2110 = vset.pattern.permute.xlu0 0
  %2111 = vperm.xlu0 %2110, %v2045
  %v2112 = vpop.permute.xlu0 %2111
  %2115 = vset.pattern.permute.xlu0 0
  %2116 = vperm.xlu0 %2115, %v2046
  %v2117 = vpop.permute.xlu0 %2116
  %2120 = vset.pattern.permute.xlu0 0
  %2121 = vperm.xlu0 %2120, %v2047
  %v2122 = vpop.permute.xlu0 %2121
  %2125 = vset.pattern.permute.xlu0 0
  %2126 = vperm.xlu0 %2125, %v2048
  %v2127 = vpop.permute.xlu0 %2126
  %v2209 = vunpack.c.l.b16 %v1953
  %v2210 = vunpack.c.h.b16 %v1953
  %v2211 = vunpack.c.l.b16 %v1954
  %v2212 = vunpack.c.h.b16 %v1954
  %v2213 = vunpack.c.l.b16 %v1955
  %v2214 = vunpack.c.h.b16 %v1955
  %v2215 = vunpack.c.l.b16 %v1956
  %v2216 = vunpack.c.h.b16 %v1956
  %v2217 = vunpack.c.l.b16 %v1957
  %v2218 = vunpack.c.l.b16 %v1958
  %v2219 = vunpack.c.h.b16 %v1958
  %v2220 = vunpack.c.l.b16 %v1959
  %v2221 = vunpack.c.h.b16 %v1959
  %v2222 = vunpack.c.l.b16 %v1960
  %v2223 = vunpack.c.h.b16 %v1960
  %v2224 = vunpack.c.l.b16 %v1961
  %v2225 = vunpack.c.h.b16 %v1961
  %v2226 = vunpack.c.l.b16 %v1962
  %v2227 = vunpack.c.l.b16 %v1963
  %v2228 = vunpack.c.h.b16 %v1963
  %v2229 = vunpack.c.l.b16 %v1964
  %v2230 = vunpack.c.h.b16 %v1964
  %v2231 = vunpack.c.l.b16 %v1965
  %v2232 = vunpack.c.h.b16 %v1965
  %v2233 = vunpack.c.l.b16 %v1966
  %v2234 = vunpack.c.h.b16 %v1966
  %v2235 = vunpack.c.l.b16 %v1967
  %v2236 = vunpack.c.l.b16 %v1968
  %v2237 = vunpack.c.h.b16 %v1968
  %v2238 = vunpack.c.l.b16 %v1969
  %v2239 = vunpack.c.h.b16 %v1969
  %v2240 = vunpack.c.l.b16 %v1970
  %v2241 = vunpack.c.h.b16 %v1970
  %v2242 = vunpack.c.l.b16 %v1971
  %v2243 = vunpack.c.h.b16 %v1971
  %v2244 = vunpack.c.l.b16 %v1972
  %v2245 = vunpack.c.l.b16 %v1973
  %v2246 = vunpack.c.h.b16 %v1973
  %v2247 = vunpack.c.l.b16 %v1974
  %v2248 = vunpack.c.h.b16 %v1974
  %v2249 = vunpack.c.l.b16 %v1975
  %v2250 = vunpack.c.h.b16 %v1975
  %v2251 = vunpack.c.l.b16 %v1976
  %v2252 = vunpack.c.h.b16 %v1976
  %v2253 = vunpack.c.l.b16 %v1977
  %v2254 = vunpack.c.l.b16 %v1978
  %v2255 = vunpack.c.h.b16 %v1978
  %v2256 = vunpack.c.l.b16 %v1979
  %v2257 = vunpack.c.h.b16 %v1979
  %v2258 = vunpack.c.l.b16 %v1980
  %v2259 = vunpack.c.h.b16 %v1980
  %v2260 = vunpack.c.l.b16 %v1981
  %v2261 = vunpack.c.h.b16 %v1981
  %v2262 = vunpack.c.l.b16 %v1982
  %v2263 = vunpack.c.l.b16 %v1983
  %v2264 = vunpack.c.h.b16 %v1983
  %v2265 = vunpack.c.l.b16 %v1984
  %v2266 = vunpack.c.h.b16 %v1984
  %v2267 = vunpack.c.l.b16 %v1985
  %v2268 = vunpack.c.h.b16 %v1985
  %v2269 = vunpack.c.l.b16 %v1986
  %v2270 = vunpack.c.h.b16 %v1986
  %v2271 = vunpack.c.l.b16 %v1987
  %v2272 = vunpack.c.l.b16 %v1988
  %v2273 = vunpack.c.h.b16 %v1988
  %v2274 = vunpack.c.l.b16 %v1989
  %v2275 = vunpack.c.h.b16 %v1989
  %v2276 = vunpack.c.l.b16 %v1990
  %v2277 = vunpack.c.h.b16 %v1990
  %v2278 = vunpack.c.l.b16 %v1991
  %v2279 = vunpack.c.h.b16 %v1991
  %v2280 = vunpack.c.l.b16 %v1992
  %v2281 = vunpack.c.l.b16 %v1993
  %v2282 = vunpack.c.h.b16 %v1993
  %v2283 = vunpack.c.l.b16 %v1994
  %v2284 = vunpack.c.h.b16 %v1994
  %v2285 = vunpack.c.l.b16 %v1995
  %v2286 = vunpack.c.h.b16 %v1995
  %v2287 = vunpack.c.l.b16 %v1996
  %v2288 = vunpack.c.h.b16 %v1996
  %v2289 = vunpack.c.l.b16 %v1997
  %v2290 = vunpack.c.l.b16 %v1998
  %v2291 = vunpack.c.h.b16 %v1998
  %v2292 = vunpack.c.l.b16 %v1999
  %v2293 = vunpack.c.h.b16 %v1999
  %v2294 = vunpack.c.l.b16 %v2000
  %v2295 = vunpack.c.h.b16 %v2000
  %v2296 = vunpack.c.l.b16 %v2001
  %v2297 = vunpack.c.h.b16 %v2001
  %v2298 = vunpack.c.l.b16 %v2002
  %v2299 = vunpack.c.l.b16 %v2003
  %v2300 = vunpack.c.h.b16 %v2003
  %v2301 = vunpack.c.l.b16 %v2004
  %v2302 = vunpack.c.h.b16 %v2004
  %v2303 = vunpack.c.l.b16 %v2005
  %v2304 = vunpack.c.h.b16 %v2005
  %v2305 = vunpack.c.l.b16 %v2006
  %v2306 = vunpack.c.h.b16 %v2006
  %v2307 = vunpack.c.l.b16 %v2007
  %v2308 = vunpack.c.l.b16 %v2008
  %v2309 = vunpack.c.h.b16 %v2008
  %v2310 = vunpack.c.l.b16 %v2009
  %v2311 = vunpack.c.h.b16 %v2009
  %v2312 = vunpack.c.l.b16 %v2010
  %v2313 = vunpack.c.h.b16 %v2010
  %v2314 = vunpack.c.l.b16 %v2011
  %v2315 = vunpack.c.h.b16 %v2011
  %v2316 = vunpack.c.l.b16 %v2012
  %v2317 = vunpack.c.l.b16 %v2013
  %v2318 = vunpack.c.h.b16 %v2013
  %v2319 = vunpack.c.l.b16 %v2014
  %v2320 = vunpack.c.h.b16 %v2014
  %v2321 = vunpack.c.l.b16 %v2015
  %v2322 = vunpack.c.h.b16 %v2015
  %v2323 = vunpack.c.l.b16 %v2016
  %v2324 = vunpack.c.h.b16 %v2016
  %v2325 = vunpack.c.l.b16 %v2017
  %v2326 = vunpack.c.l.b16 %v2018
  %v2327 = vunpack.c.h.b16 %v2018
  %v2328 = vunpack.c.l.b16 %v2019
  %v2329 = vunpack.c.h.b16 %v2019
  %v2330 = vunpack.c.l.b16 %v2020
  %v2331 = vunpack.c.h.b16 %v2020
  %v2332 = vunpack.c.l.b16 %v2021
  %v2333 = vunpack.c.h.b16 %v2021
  %v2334 = vunpack.c.l.b16 %v2022
  %v2335 = vunpack.c.l.b16 %v2023
  %v2336 = vunpack.c.h.b16 %v2023
  %v2337 = vunpack.c.l.b16 %v2024
  %v2338 = vunpack.c.h.b16 %v2024
  %v2339 = vunpack.c.l.b16 %v2025
  %v2340 = vunpack.c.h.b16 %v2025
  %v2341 = vunpack.c.l.b16 %v2026
  %v2342 = vunpack.c.h.b16 %v2026
  %v2343 = vunpack.c.l.b16 %v2027
  %v2344 = vunpack.c.l.b16 %v2028
  %v2345 = vunpack.c.h.b16 %v2028
  %v2346 = vunpack.c.l.b16 %v2029
  %v2347 = vunpack.c.h.b16 %v2029
  %v2348 = vunpack.c.l.b16 %v2030
  %v2349 = vunpack.c.h.b16 %v2030
  %v2350 = vunpack.c.l.b16 %v2031
  %v2351 = vunpack.c.h.b16 %v2031
  %v2352 = vunpack.c.l.b16 %v2032
  %v2353 = vpack.c.b16 %v2218, %v2209
  %v2354 = vpack.c.b16 %v2219, %v2210
  %v2355 = vpack.c.b16 %v2220, %v2211
  %v2356 = vpack.c.b16 %v2221, %v2212
  %v2357 = vpack.c.b16 %v2222, %v2213
  %v2358 = vpack.c.b16 %v2223, %v2214
  %v2359 = vpack.c.b16 %v2224, %v2215
  %v2360 = vpack.c.b16 %v2225, %v2216
  %v2361 = vpack.c.b16 %v2226, %v2217
  %v2362 = vpack.c.b16 %v2236, %v2227
  %v2363 = vpack.c.b16 %v2237, %v2228
  %v2364 = vpack.c.b16 %v2238, %v2229
  %v2365 = vpack.c.b16 %v2239, %v2230
  %v2366 = vpack.c.b16 %v2240, %v2231
  %v2367 = vpack.c.b16 %v2241, %v2232
  %v2368 = vpack.c.b16 %v2242, %v2233
  %v2369 = vpack.c.b16 %v2243, %v2234
  %v2370 = vpack.c.b16 %v2244, %v2235
  %v2371 = vpack.c.b16 %v2254, %v2245
  %v2372 = vpack.c.b16 %v2255, %v2246
  %v2373 = vpack.c.b16 %v2256, %v2247
  %v2374 = vpack.c.b16 %v2257, %v2248
  %v2375 = vpack.c.b16 %v2258, %v2249
  %v2376 = vpack.c.b16 %v2259, %v2250
  %v2377 = vpack.c.b16 %v2260, %v2251
  %v2378 = vpack.c.b16 %v2261, %v2252
  %v2379 = vpack.c.b16 %v2262, %v2253
  %v2380 = vpack.c.b16 %v2272, %v2263
  %v2381 = vpack.c.b16 %v2273, %v2264
  %v2382 = vpack.c.b16 %v2274, %v2265
  %v2383 = vpack.c.b16 %v2275, %v2266
  %v2384 = vpack.c.b16 %v2276, %v2267
  %v2385 = vpack.c.b16 %v2277, %v2268
  %v2386 = vpack.c.b16 %v2278, %v2269
  %v2387 = vpack.c.b16 %v2279, %v2270
  %v2388 = vpack.c.b16 %v2280, %v2271
  %v2389 = vpack.c.b16 %v2290, %v2281
  %v2390 = vpack.c.b16 %v2291, %v2282
  %v2391 = vpack.c.b16 %v2292, %v2283
  %v2392 = vpack.c.b16 %v2293, %v2284
  %v2393 = vpack.c.b16 %v2294, %v2285
  %v2394 = vpack.c.b16 %v2295, %v2286
  %v2395 = vpack.c.b16 %v2296, %v2287
  %v2396 = vpack.c.b16 %v2297, %v2288
  %v2397 = vpack.c.b16 %v2298, %v2289
  %v2398 = vpack.c.b16 %v2308, %v2299
  %v2399 = vpack.c.b16 %v2309, %v2300
  %v2400 = vpack.c.b16 %v2310, %v2301
  %v2401 = vpack.c.b16 %v2311, %v2302
  %v2402 = vpack.c.b16 %v2312, %v2303
  %v2403 = vpack.c.b16 %v2313, %v2304
  %v2404 = vpack.c.b16 %v2314, %v2305
  %v2405 = vpack.c.b16 %v2315, %v2306
  %v2406 = vpack.c.b16 %v2316, %v2307
  %v2407 = vpack.c.b16 %v2326, %v2317
  %v2408 = vpack.c.b16 %v2327, %v2318
  %v2409 = vpack.c.b16 %v2328, %v2319
  %v2410 = vpack.c.b16 %v2329, %v2320
  %v2411 = vpack.c.b16 %v2330, %v2321
  %v2412 = vpack.c.b16 %v2331, %v2322
  %v2413 = vpack.c.b16 %v2332, %v2323
  %v2414 = vpack.c.b16 %v2333, %v2324
  %v2415 = vpack.c.b16 %v2334, %v2325
  %v2416 = vpack.c.b16 %v2344, %v2335
  %v2417 = vpack.c.b16 %v2345, %v2336
  %v2418 = vpack.c.b16 %v2346, %v2337
  %v2419 = vpack.c.b16 %v2347, %v2338
  %v2420 = vpack.c.b16 %v2348, %v2339
  %v2421 = vpack.c.b16 %v2349, %v2340
  %v2422 = vpack.c.b16 %v2350, %v2341
  %v2423 = vpack.c.b16 %v2351, %v2342
  %v2424 = vpack.c.b16 %v2352, %v2343
  %2497 = vmatprep.subr.bf16.mxu0 0
  %2498 = vmatpush1.bf16.msra.mxu0 %v1615
  %2499 = vmatprep.subr.bf16.mxu0 0
  %2500 = vmatpush1.bf16.msra.mxu0 %v1616
  %2501 = vmatprep.subr.bf16.mxu0 0
  %2502 = vmatpush1.bf16.msra.mxu0 %v1617
  %2503 = vmatprep.subr.bf16.mxu0 0
  %2504 = vmatpush1.bf16.msra.mxu0 %v1618
  %2505 = vmatprep.subr.bf16.mxu0 0
  %2506 = vmatpush1.bf16.msra.mxu0 %v1619
  %2507 = vmatprep.subr.bf16.mxu0 0
  %2508 = vmatpush1.bf16.msra.mxu0 %v1620
  %2509 = vmatprep.subr.bf16.mxu0 0
  %2510 = vmatpush1.bf16.msra.mxu0 %v1621
  %2511 = vmatprep.subr.bf16.mxu0 0
  %2512 = vmatpush1.bf16.msra.mxu0 %v1622
  %2513 = vmatprep.subr.bf16.mxu0 0
  %2514 = vmatpush1.bf16.msra.mxu0 %v1662
  %2515 = vmatprep.subr.bf16.mxu0 0
  %2516 = vmatpush1.bf16.msra.mxu0 %v1663
  %2517 = vmatprep.subr.bf16.mxu0 0
  %2518 = vmatpush1.bf16.msra.mxu0 %v1664
  %2519 = vmatprep.subr.bf16.mxu0 0
  %2520 = vmatpush1.bf16.msra.mxu0 %v1665
  %2521 = vmatprep.subr.bf16.mxu0 0
  %2522 = vmatpush1.bf16.msra.mxu0 %v1666
  %2523 = vmatprep.subr.bf16.mxu0 0
  %2524 = vmatpush1.bf16.msra.mxu0 %v1667
  %2525 = vmatprep.subr.bf16.mxu0 0
  %2526 = vmatpush1.bf16.msra.mxu0 %v1668
  %2527 = vmatprep.subr.bf16.mxu0 0
  %2528 = vmatpush1.bf16.msra.mxu0 %v1669
  %2529 = vmatprep.mubr.bf16.mxu0 %v2354
  %2530 = vmatmul.mubr.bf16.gmra.mrb[0].mxu0 %v2353
  %v2531 = vpop.f32.mrb[0].mxu0
  %v2532 = vadd.f32 %v2052, %v2531
  %v2533 = vpop.f32.mrb[0].mxu0
  %v2534 = vpop.f32.mrb[0].mxu0
  %v2535 = vadd.f32 %v2057, %v2534
  %v2536 = vpop.f32.mrb[0].mxu0
  %2537 = vmatprep.mubr.bf16.mxu0 %v2363
  %2538 = vmatmul.mubr.bf16.gmra.mrb[0].mxu0 %v2362
  %v2539 = vpop.f32.mrb[0].mxu0
  %v2540 = vadd.f32 %v2062, %v2539
  %v2541 = vpop.f32.mrb[0].mxu0
  %v2542 = vpop.f32.mrb[0].mxu0
  %v2543 = vadd.f32 %v2067, %v2542
  %v2544 = vpop.f32.mrb[0].mxu0
  %2545 = vmatprep.mubr.bf16.mxu0 %v2372
  %2546 = vmatmul.mubr.bf16.gmra.mrb[0].mxu0 %v2371
  %v2547 = vpop.f32.mrb[0].mxu0
  %v2548 = vadd.f32 %v2072, %v2547
  %v2549 = vpop.f32.mrb[0].mxu0
  %v2550 = vpop.f32.mrb[0].mxu0
  %v2551 = vadd.f32 %v2077, %v2550
  %v2552 = vpop.f32.mrb[0].mxu0
  %2553 = vmatprep.mubr.bf16.mxu0 %v2381
  %2554 = vmatmul.mubr.bf16.gmra.mrb[0].mxu0 %v2380
  %v2555 = vpop.f32.mrb[0].mxu0
  %v2556 = vadd.f32 %v2082, %v2555
  %v2557 = vpop.f32.mrb[0].mxu0
  %v2558 = vpop.f32.mrb[0].mxu0
  %v2559 = vadd.f32 %v2087, %v2558
  %v2560 = vpop.f32.mrb[0].mxu0
  %2561 = vmatprep.mubr.bf16.mxu0 %v2390
  %2562 = vmatmul.mubr.bf16.gmra.mrb[0].mxu0 %v2389
  %v2563 = vpop.f32.mrb[0].mxu0
  %v2564 = vadd.f32 %v2092, %v2563
  %v2565 = vpop.f32.mrb[0].mxu0
  %v2566 = vpop.f32.mrb[0].mxu0
  %v2567 = vadd.f32 %v2097, %v2566
  %v2568 = vpop.f32.mrb[0].mxu0
  %2569 = vmatprep.mubr.bf16.mxu0 %v2399
  %2570 = vmatmul.mubr.bf16.gmra.mrb[0].mxu0 %v2398
  %v2571 = vpop.f32.mrb[0].mxu0
  %v2572 = vadd.f32 %v2102, %v2571
  %v2573 = vpop.f32.mrb[0].mxu0
  %v2574 = vpop.f32.mrb[0].mxu0
  %v2575 = vadd.f32 %v2107, %v2574
  %v2576 = vpop.f32.mrb[0].mxu0
  %2577 = vmatprep.mubr.bf16.mxu0 %v2408
  %2578 = vmatmul.mubr.bf16.gmra.mrb[0].mxu0 %v2407
  %v2579 = vpop.f32.mrb[0].mxu0
  %v2580 = vadd.f32 %v2112, %v2579
  %v2581 = vpop.f32.mrb[0].mxu0
  %v2582 = vpop.f32.mrb[0].mxu0
  %v2583 = vadd.f32 %v2117, %v2582
  %v2584 = vpop.f32.mrb[0].mxu0
  %2585 = vmatprep.mubr.bf16.mxu0 %v2417
  %2586 = vmatmul.mubr.bf16.gmra.mrb[0].mxu0 %v2416
  %v2587 = vpop.f32.mrb[0].mxu0
  %v2588 = vadd.f32 %v2122, %v2587
  %v2589 = vpop.f32.mrb[0].mxu0
  %v2590 = vpop.f32.mrb[0].mxu0
  %v2591 = vadd.f32 %v2127, %v2590
  %v2592 = vpop.f32.mrb[0].mxu0
  %2593 = vdwg.mxu0
  %2594 = vmatprep.subr.bf16.mxu0 0
  %2595 = vmatpush1.bf16.msra.mxu0 %v1709
  %2596 = vmatprep.subr.bf16.mxu0 0
  %2597 = vmatpush1.bf16.msra.mxu0 %v1710
  %2598 = vmatprep.subr.bf16.mxu0 0
  %2599 = vmatpush1.bf16.msra.mxu0 %v1711
  %2600 = vmatprep.subr.bf16.mxu0 0
  %2601 = vmatpush1.bf16.msra.mxu0 %v1712
  %2602 = vmatprep.subr.bf16.mxu0 0
  %2603 = vmatpush1.bf16.msra.mxu0 %v1713
  %2604 = vmatprep.subr.bf16.mxu0 0
  %2605 = vmatpush1.bf16.msra.mxu0 %v1714
  %2606 = vmatprep.subr.bf16.mxu0 0
  %2607 = vmatpush1.bf16.msra.mxu0 %v1715
  %2608 = vmatprep.subr.bf16.mxu0 0
  %2609 = vmatpush1.bf16.msra.mxu0 %v1716
  %2610 = vmatprep.subr.bf16.mxu0 0
  %2611 = vmatpush1.bf16.msra.mxu0 %v1756
  %2612 = vmatprep.subr.bf16.mxu0 0
  %2613 = vmatpush1.bf16.msra.mxu0 %v1757
  %2614 = vmatprep.subr.bf16.mxu0 0
  %2615 = vmatpush1.bf16.msra.mxu0 %v1758
  %2616 = vmatprep.subr.bf16.mxu0 0
  %2617 = vmatpush1.bf16.msra.mxu0 %v1759
  %2618 = vmatprep.subr.bf16.mxu0 0
  %2619 = vmatpush1.bf16.msra.mxu0 %v1760
  %2620 = vmatprep.subr.bf16.mxu0 0
  %2621 = vmatpush1.bf16.msra.mxu0 %v1761
  %2622 = vmatprep.subr.bf16.mxu0 0
  %2623 = vmatpush1.bf16.msra.mxu0 %v1762
  %2624 = vmatprep.subr.bf16.mxu0 0
  %2625 = vmatpush1.bf16.msra.mxu0 %v1763
  %2626 = vmatprep.mubr.bf16.mxu0 %v2356
  %2627 = vmatmul.mubr.bf16.gmra.mrb[0].mxu0 %v2355
  %v2628 = vpop.f32.mrb[0].mxu0
  %v2629 = vadd.f32 %v2532, %v2628
  %v2630 = vpop.f32.mrb[0].mxu0
  %v2631 = vpop.f32.mrb[0].mxu0
  %v2632 = vadd.f32 %v2535, %v2631
  %v2633 = vpop.f32.mrb[0].mxu0
  %2634 = vmatprep.mubr.bf16.mxu0 %v2365
  %2635 = vmatmul.mubr.bf16.gmra.mrb[0].mxu0 %v2364
  %v2636 = vpop.f32.mrb[0].mxu0
  %v2637 = vadd.f32 %v2540, %v2636
  %v2638 = vpop.f32.mrb[0].mxu0
  %v2639 = vpop.f32.mrb[0].mxu0
  %v2640 = vadd.f32 %v2543, %v2639
  %v2641 = vpop.f32.mrb[0].mxu0
  %2642 = vmatprep.mubr.bf16.mxu0 %v2374
  %2643 = vmatmul.mubr.bf16.gmra.mrb[0].mxu0 %v2373
  %v2644 = vpop.f32.mrb[0].mxu0
  %v2645 = vadd.f32 %v2548, %v2644
  %v2646 = vpop.f32.mrb[0].mxu0
  %v2647 = vpop.f32.mrb[0].mxu0
  %v2648 = vadd.f32 %v2551, %v2647
  %v2649 = vpop.f32.mrb[0].mxu0
  %2650 = vmatprep.mubr.bf16.mxu0 %v2383
  %2651 = vmatmul.mubr.bf16.gmra.mrb[0].mxu0 %v2382
  %v2652 = vpop.f32.mrb[0].mxu0
  %v2653 = vadd.f32 %v2556, %v2652
  %v2654 = vpop.f32.mrb[0].mxu0
  %v2655 = vpop.f32.mrb[0].mxu0
  %v2656 = vadd.f32 %v2559, %v2655
  %v2657 = vpop.f32.mrb[0].mxu0
  %2658 = vmatprep.mubr.bf16.mxu0 %v2392
  %2659 = vmatmul.mubr.bf16.gmra.mrb[0].mxu0 %v2391
  %v2660 = vpop.f32.mrb[0].mxu0
  %v2661 = vadd.f32 %v2564, %v2660
  %v2662 = vpop.f32.mrb[0].mxu0
  %v2663 = vpop.f32.mrb[0].mxu0
  %v2664 = vadd.f32 %v2567, %v2663
  %v2665 = vpop.f32.mrb[0].mxu0
  %2666 = vmatprep.mubr.bf16.mxu0 %v2401
  %2667 = vmatmul.mubr.bf16.gmra.mrb[0].mxu0 %v2400
  %v2668 = vpop.f32.mrb[0].mxu0
  %v2669 = vadd.f32 %v2572, %v2668
  %v2670 = vpop.f32.mrb[0].mxu0
  %v2671 = vpop.f32.mrb[0].mxu0
  %v2672 = vadd.f32 %v2575, %v2671
  %v2673 = vpop.f32.mrb[0].mxu0
  %2674 = vmatprep.mubr.bf16.mxu0 %v2410
  %2675 = vmatmul.mubr.bf16.gmra.mrb[0].mxu0 %v2409
  %v2676 = vpop.f32.mrb[0].mxu0
  %v2677 = vadd.f32 %v2580, %v2676
  %v2678 = vpop.f32.mrb[0].mxu0
  %v2679 = vpop.f32.mrb[0].mxu0
  %v2680 = vadd.f32 %v2583, %v2679
  %v2681 = vpop.f32.mrb[0].mxu0
  %2682 = vmatprep.mubr.bf16.mxu0 %v2419
  %2683 = vmatmul.mubr.bf16.gmra.mrb[0].mxu0 %v2418
  %v2684 = vpop.f32.mrb[0].mxu0
  %v2685 = vadd.f32 %v2588, %v2684
  %v2686 = vpop.f32.mrb[0].mxu0
  %v2687 = vpop.f32.mrb[0].mxu0
  %v2688 = vadd.f32 %v2591, %v2687
  %v2689 = vpop.f32.mrb[0].mxu0
  %2690 = vdwg.mxu0
  %2691 = vmatprep.subr.bf16.mxu0 0
  %2692 = vmatpush1.bf16.msra.mxu0 %v1560
  %2693 = vmatprep.subr.bf16.mxu0 0
  %2694 = vmatpush1.bf16.msra.mxu0 %v1561
  %2695 = vmatprep.subr.bf16.mxu0 0
  %2696 = vmatpush1.bf16.msra.mxu0 %v1562
  %2697 = vmatprep.subr.bf16.mxu0 0
  %2698 = vmatpush1.bf16.msra.mxu0 %v1563
  %2699 = vmatprep.subr.bf16.mxu0 0
  %2700 = vmatpush1.bf16.msra.mxu0 %v1564
  %2701 = vmatprep.subr.bf16.mxu0 0
  %2702 = vmatpush1.bf16.msra.mxu0 %v1565
  %2703 = vmatprep.subr.bf16.mxu0 0
  %2704 = vmatpush1.bf16.msra.mxu0 %v1566
  %2705 = vmatprep.subr.bf16.mxu0 0
  %2706 = vmatpush1.bf16.msra.mxu0 %v1567
  %2707 = vmatprep.subr.bf16.mxu0 0
  %2708 = vmatpush1.bf16.msra.mxu0 %v1804
  %2709 = vmatprep.subr.bf16.mxu0 0
  %2710 = vmatpush1.bf16.msra.mxu0 %v1805
  %2711 = vmatprep.subr.bf16.mxu0 0
  %2712 = vmatpush1.bf16.msra.mxu0 %v1806
  %2713 = vmatprep.subr.bf16.mxu0 0
  %2714 = vmatpush1.bf16.msra.mxu0 %v1807
  %2715 = vmatprep.subr.bf16.mxu0 0
  %2716 = vmatpush1.bf16.msra.mxu0 %v1808
  %2717 = vmatprep.subr.bf16.mxu0 0
  %2718 = vmatpush1.bf16.msra.mxu0 %v1809
  %2719 = vmatprep.subr.bf16.mxu0 0
  %2720 = vmatpush1.bf16.msra.mxu0 %v1810
  %2721 = vmatprep.subr.bf16.mxu0 0
  %2722 = vmatpush1.bf16.msra.mxu0 %v1811
  %2723 = vmatprep.mubr.bf16.mxu0 %v2358
  %2724 = vmatmul.mubr.bf16.gmra.mrb[0].mxu0 %v2357
  %v2725 = vpop.f32.mrb[0].mxu0
  %v2726 = vadd.f32 %v2629, %v2725
  %v2727 = vpop.f32.mrb[0].mxu0
  %v2728 = vpop.f32.mrb[0].mxu0
  %v2729 = vadd.f32 %v2632, %v2728
  %v2730 = vpop.f32.mrb[0].mxu0
  %2731 = vmatprep.mubr.bf16.mxu0 %v2367
  %2732 = vmatmul.mubr.bf16.gmra.mrb[0].mxu0 %v2366
  %v2733 = vpop.f32.mrb[0].mxu0
  %v2734 = vadd.f32 %v2637, %v2733
  %v2735 = vpop.f32.mrb[0].mxu0
  %v2736 = vpop.f32.mrb[0].mxu0
  %v2737 = vadd.f32 %v2640, %v2736
  %v2738 = vpop.f32.mrb[0].mxu0
  %2739 = vmatprep.mubr.bf16.mxu0 %v2376
  %2740 = vmatmul.mubr.bf16.gmra.mrb[0].mxu0 %v2375
  %v2741 = vpop.f32.mrb[0].mxu0
  %v2742 = vadd.f32 %v2645, %v2741
  %v2743 = vpop.f32.mrb[0].mxu0
  %v2744 = vpop.f32.mrb[0].mxu0
  %v2745 = vadd.f32 %v2648, %v2744
  %v2746 = vpop.f32.mrb[0].mxu0
  %2747 = vmatprep.mubr.bf16.mxu0 %v2385
  %2748 = vmatmul.mubr.bf16.gmra.mrb[0].mxu0 %v2384
  %v2749 = vpop.f32.mrb[0].mxu0
  %v2750 = vadd.f32 %v2653, %v2749
  %v2751 = vpop.f32.mrb[0].mxu0
  %v2752 = vpop.f32.mrb[0].mxu0
  %v2753 = vadd.f32 %v2656, %v2752
  %v2754 = vpop.f32.mrb[0].mxu0
  %2755 = vmatprep.mubr.bf16.mxu0 %v2394
  %2756 = vmatmul.mubr.bf16.gmra.mrb[0].mxu0 %v2393
  %v2757 = vpop.f32.mrb[0].mxu0
  %v2758 = vadd.f32 %v2661, %v2757
  %v2759 = vpop.f32.mrb[0].mxu0
  %v2760 = vpop.f32.mrb[0].mxu0
  %v2761 = vadd.f32 %v2664, %v2760
  %v2762 = vpop.f32.mrb[0].mxu0
  %2763 = vmatprep.mubr.bf16.mxu0 %v2403
  %2764 = vmatmul.mubr.bf16.gmra.mrb[0].mxu0 %v2402
  %v2765 = vpop.f32.mrb[0].mxu0
  %v2766 = vadd.f32 %v2669, %v2765
  %v2767 = vpop.f32.mrb[0].mxu0
  %v2768 = vpop.f32.mrb[0].mxu0
  %v2769 = vadd.f32 %v2672, %v2768
  %v2770 = vpop.f32.mrb[0].mxu0
  %2771 = vmatprep.mubr.bf16.mxu0 %v2412
  %2772 = vmatmul.mubr.bf16.gmra.mrb[0].mxu0 %v2411
  %v2773 = vpop.f32.mrb[0].mxu0
  %v2774 = vadd.f32 %v2677, %v2773
  %v2775 = vpop.f32.mrb[0].mxu0
  %v2776 = vpop.f32.mrb[0].mxu0
  %v2777 = vadd.f32 %v2680, %v2776
  %v2778 = vpop.f32.mrb[0].mxu0
  %2779 = vmatprep.mubr.bf16.mxu0 %v2421
  %2780 = vmatmul.mubr.bf16.gmra.mrb[0].mxu0 %v2420
  %v2781 = vpop.f32.mrb[0].mxu0
  %v2782 = vadd.f32 %v2685, %v2781
  %v2783 = vpop.f32.mrb[0].mxu0
  %v2784 = vpop.f32.mrb[0].mxu0
  %v2785 = vadd.f32 %v2688, %v2784
  %v2786 = vpop.f32.mrb[0].mxu0
  %2787 = vdwg.mxu0
  %2788 = vmatprep.subr.bf16.mxu0 0
  %2789 = vmatpush1.bf16.msra.mxu0 %v1851
  %2790 = vmatprep.subr.bf16.mxu0 0
  %2791 = vmatpush1.bf16.msra.mxu0 %v1852
  %2792 = vmatprep.subr.bf16.mxu0 0
  %2793 = vmatpush1.bf16.msra.mxu0 %v1853
  %2794 = vmatprep.subr.bf16.mxu0 0
  %2795 = vmatpush1.bf16.msra.mxu0 %v1854
  %2796 = vmatprep.subr.bf16.mxu0 0
  %2797 = vmatpush1.bf16.msra.mxu0 %v1855
  %2798 = vmatprep.subr.bf16.mxu0 0
  %2799 = vmatpush1.bf16.msra.mxu0 %v1856
  %2800 = vmatprep.subr.bf16.mxu0 0
  %2801 = vmatpush1.bf16.msra.mxu0 %v1857
  %2802 = vmatprep.subr.bf16.mxu0 0
  %2803 = vmatpush1.bf16.msra.mxu0 %v1858
  %2804 = vmatprep.subr.bf16.mxu0 0
  %2805 = vmatpush1.bf16.msra.mxu0 %v1898
  %2806 = vmatprep.subr.bf16.mxu0 0
  %2807 = vmatpush1.bf16.msra.mxu0 %v1899
  %2808 = vmatprep.subr.bf16.mxu0 0
  %2809 = vmatpush1.bf16.msra.mxu0 %v1900
  %2810 = vmatprep.subr.bf16.mxu0 0
  %2811 = vmatpush1.bf16.msra.mxu0 %v1901
  %2812 = vmatprep.subr.bf16.mxu0 0
  %2813 = vmatpush1.bf16.msra.mxu0 %v1902
  %2814 = vmatprep.subr.bf16.mxu0 0
  %2815 = vmatpush1.bf16.msra.mxu0 %v1903
  %2816 = vmatprep.subr.bf16.mxu0 0
  %2817 = vmatpush1.bf16.msra.mxu0 %v1904
  %2818 = vmatprep.subr.bf16.mxu0 0
  %2819 = vmatpush1.bf16.msra.mxu0 %v1905
  %2820 = vmatprep.mubr.bf16.mxu0 %v2360
  %2821 = vmatmul.mubr.bf16.gmra.mrb[0].mxu0 %v2359
  %v2822 = vpop.f32.mrb[0].mxu0
  %v2823 = vadd.f32 %v2726, %v2822
  %v2824 = vpop.f32.mrb[0].mxu0
  %v2825 = vpop.f32.mrb[0].mxu0
  %v2826 = vadd.f32 %v2729, %v2825
  %v2827 = vpop.f32.mrb[0].mxu0
  %2828 = vmatprep.mubr.bf16.mxu0 %v2369
  %2829 = vmatmul.mubr.bf16.gmra.mrb[0].mxu0 %v2368
  %v2830 = vpop.f32.mrb[0].mxu0
  %v2831 = vadd.f32 %v2734, %v2830
  %v2832 = vpop.f32.mrb[0].mxu0
  %v2833 = vpop.f32.mrb[0].mxu0
  %v2834 = vadd.f32 %v2737, %v2833
  %v2835 = vpop.f32.mrb[0].mxu0
  %2836 = vmatprep.mubr.bf16.mxu0 %v2378
  %2837 = vmatmul.mubr.bf16.gmra.mrb[0].mxu0 %v2377
  %v2838 = vpop.f32.mrb[0].mxu0
  %v2839 = vadd.f32 %v2742, %v2838
  %v2840 = vpop.f32.mrb[0].mxu0
  %v2841 = vpop.f32.mrb[0].mxu0
  %v2842 = vadd.f32 %v2745, %v2841
  %v2843 = vpop.f32.mrb[0].mxu0
  %2844 = vmatprep.mubr.bf16.mxu0 %v2387
  %2845 = vmatmul.mubr.bf16.gmra.mrb[0].mxu0 %v2386
  %v2846 = vpop.f32.mrb[0].mxu0
  %v2847 = vadd.f32 %v2750, %v2846
  %v2848 = vpop.f32.mrb[0].mxu0
  %v2849 = vpop.f32.mrb[0].mxu0
  %v2850 = vadd.f32 %v2753, %v2849
  %v2851 = vpop.f32.mrb[0].mxu0
  %2852 = vmatprep.mubr.bf16.mxu0 %v2396
  %2853 = vmatmul.mubr.bf16.gmra.mrb[0].mxu0 %v2395
  %v2854 = vpop.f32.mrb[0].mxu0
  %v2855 = vadd.f32 %v2758, %v2854
  %v2856 = vpop.f32.mrb[0].mxu0
  %v2857 = vpop.f32.mrb[0].mxu0
  %v2858 = vadd.f32 %v2761, %v2857
  %v2859 = vpop.f32.mrb[0].mxu0
  %2860 = vmatprep.mubr.bf16.mxu0 %v2405
  %2861 = vmatmul.mubr.bf16.gmra.mrb[0].mxu0 %v2404
  %v2862 = vpop.f32.mrb[0].mxu0
  %v2863 = vadd.f32 %v2766, %v2862
  %v2864 = vpop.f32.mrb[0].mxu0
  %v2865 = vpop.f32.mrb[0].mxu0
  %v2866 = vadd.f32 %v2769, %v2865
  %v2867 = vpop.f32.mrb[0].mxu0
  %2868 = vmatprep.mubr.bf16.mxu0 %v2414
  %2869 = vmatmul.mubr.bf16.gmra.mrb[0].mxu0 %v2413
  %v2870 = vpop.f32.mrb[0].mxu0
  %v2871 = vadd.f32 %v2774, %v2870
  %v2872 = vpop.f32.mrb[0].mxu0
  %v2873 = vpop.f32.mrb[0].mxu0
  %v2874 = vadd.f32 %v2777, %v2873
  %v2875 = vpop.f32.mrb[0].mxu0
  %2876 = vmatprep.mubr.bf16.mxu0 %v2423
  %2877 = vmatmul.mubr.bf16.gmra.mrb[0].mxu0 %v2422
  %v2878 = vpop.f32.mrb[0].mxu0
  %v2879 = vadd.f32 %v2782, %v2878
  %v2880 = vpop.f32.mrb[0].mxu0
  %v2881 = vpop.f32.mrb[0].mxu0
  %v2882 = vadd.f32 %v2785, %v2881
  %v2883 = vpop.f32.mrb[0].mxu0
  %2884 = vdwg.mxu0
  %2885 = vmatprep.subr.bf16.mxu0 0
  %2886 = vmatpush1.bf16.msra.mxu0 %v1945
  %2887 = vmatprep.subr.bf16.mxu0 0
  %2888 = vmatpush1.bf16.msra.mxu0 %v1946
  %2889 = vmatprep.subr.bf16.mxu0 0
  %2890 = vmatpush1.bf16.msra.mxu0 %v1947
  %2891 = vmatprep.subr.bf16.mxu0 0
  %2892 = vmatpush1.bf16.msra.mxu0 %v1948
  %2893 = vmatprep.subr.bf16.mxu0 0
  %2894 = vmatpush1.bf16.msra.mxu0 %v1949
  %2895 = vmatprep.subr.bf16.mxu0 0
  %2896 = vmatpush1.bf16.msra.mxu0 %v1950
  %2897 = vmatprep.subr.bf16.mxu0 0
  %2898 = vmatpush1.bf16.msra.mxu0 %v1951
  %2899 = vmatprep.subr.bf16.mxu0 0
  %2900 = vmatpush1.bf16.msra.mxu0 %v1952
  %2901 = vmatprep.subr.bf16.mxu0 0
  %2902 = vmatpush1.bf16.msra.mxu0 0
  %2903 = vmatprep.subr.bf16.mxu0 0
  %2904 = vmatpush1.bf16.msra.mxu0 0
  %2905 = vmatprep.subr.bf16.mxu0 0
  %2906 = vmatpush1.bf16.msra.mxu0 0
  %2907 = vmatprep.subr.bf16.mxu0 0
  %2908 = vmatpush1.bf16.msra.mxu0 0
  %2909 = vmatprep.subr.bf16.mxu0 0
  %2910 = vmatpush1.bf16.msra.mxu0 0
  %2911 = vmatprep.subr.bf16.mxu0 0
  %2912 = vmatpush1.bf16.msra.mxu0 0
  %2913 = vmatprep.subr.bf16.mxu0 0
  %2914 = vmatpush1.bf16.msra.mxu0 0
  %2915 = vmatprep.subr.bf16.mxu0 0
  %2916 = vmatpush1.bf16.msra.mxu0 0
  %2917 = vmatprep.mubr.bf16.mxu0 0
  %2918 = vmatmul.mubr.bf16.gmra.mrb[0].mxu0 %v2361
  %v2919 = vpop.f32.mrb[0].mxu0
  %v2920 = vadd.f32 %v2823, %v2919
  %v2921 = vpop.f32.mrb[0].mxu0
  %v2922 = vpop.f32.mrb[0].mxu0
  %v2923 = vadd.f32 %v2826, %v2922
  %v2924 = vpop.f32.mrb[0].mxu0
  %2925 = vmatprep.mubr.bf16.mxu0 0
  %2926 = vmatmul.mubr.bf16.gmra.mrb[0].mxu0 %v2370
  %v2927 = vpop.f32.mrb[0].mxu0
  %v2928 = vadd.f32 %v2831, %v2927
  %v2929 = vpop.f32.mrb[0].mxu0
  %v2930 = vpop.f32.mrb[0].mxu0
  %v2931 = vadd.f32 %v2834, %v2930
  %v2932 = vpop.f32.mrb[0].mxu0
  %2933 = vmatprep.mubr.bf16.mxu0 0
  %2934 = vmatmul.mubr.bf16.gmra.mrb[0].mxu0 %v2379
  %v2935 = vpop.f32.mrb[0].mxu0
  %v2936 = vadd.f32 %v2839, %v2935
  %v2937 = vpop.f32.mrb[0].mxu0
  %v2938 = vpop.f32.mrb[0].mxu0
  %v2939 = vadd.f32 %v2842, %v2938
  %v2940 = vpop.f32.mrb[0].mxu0
  %2941 = vmatprep.mubr.bf16.mxu0 0
  %2942 = vmatmul.mubr.bf16.gmra.mrb[0].mxu0 %v2388
  %v2943 = vpop.f32.mrb[0].mxu0
  %v2944 = vadd.f32 %v2847, %v2943
  %v2945 = vpop.f32.mrb[0].mxu0
  %v2946 = vpop.f32.mrb[0].mxu0
  %v2947 = vadd.f32 %v2850, %v2946
  %v2948 = vpop.f32.mrb[0].mxu0
  %2949 = vmatprep.mubr.bf16.mxu0 0
  %2950 = vmatmul.mubr.bf16.gmra.mrb[0].mxu0 %v2397
  %v2951 = vpop.f32.mrb[0].mxu0
  %v2952 = vadd.f32 %v2855, %v2951
  %v2953 = vpop.f32.mrb[0].mxu0
  %v2954 = vpop.f32.mrb[0].mxu0
  %v2955 = vadd.f32 %v2858, %v2954
  %v2956 = vpop.f32.mrb[0].mxu0
  %2957 = vmatprep.mubr.bf16.mxu0 0
  %2958 = vmatmul.mubr.bf16.gmra.mrb[0].mxu0 %v2406
  %v2959 = vpop.f32.mrb[0].mxu0
  %v2960 = vadd.f32 %v2863, %v2959
  %v2961 = vpop.f32.mrb[0].mxu0
  %v2962 = vpop.f32.mrb[0].mxu0
  %v2963 = vadd.f32 %v2866, %v2962
  %v2964 = vpop.f32.mrb[0].mxu0
  %2965 = vmatprep.mubr.bf16.mxu0 0
  %2966 = vmatmul.mubr.bf16.gmra.mrb[0].mxu0 %v2415
  %v2967 = vpop.f32.mrb[0].mxu0
  %v2968 = vadd.f32 %v2871, %v2967
  %v2969 = vpop.f32.mrb[0].mxu0
  %v2970 = vpop.f32.mrb[0].mxu0
  %v2971 = vadd.f32 %v2874, %v2970
  %v2972 = vpop.f32.mrb[0].mxu0
  %2973 = vmatprep.mubr.bf16.mxu0 0
  %2974 = vmatmul.mubr.bf16.gmra.mrb[0].mxu0 %v2424
  %v2975 = vpop.f32.mrb[0].mxu0
  %v2976 = vadd.f32 %v2879, %v2975
  %v2977 = vpop.f32.mrb[0].mxu0
  %v2978 = vpop.f32.mrb[0].mxu0
  %v2979 = vadd.f32 %v2882, %v2978
  %v2980 = vpop.f32.mrb[0].mxu0
  %2981 = vdwg.mxu0
  %v2982 = vld [vmem:[%s13] sm:$0xff]
  %v2983 = vld [vmem:[%s13 + $0x8] sm:$0xff]
  %v2984 = vld [vmem:[%s13 + $0x10] sm:$0xff]
  %v2985 = vld [vmem:[%s13 + $0x18] sm:$0xff]
  %v2986 = vld [vmem:[%s13 + $0x20] sm:$0xff]
  %v2987 = vld [vmem:[%s13 + $0x28] sm:$0xff]
  %v2988 = vld [vmem:[%s13 + $0x30] sm:$0xff]
  %v2989 = vld [vmem:[%s13 + $0x38] sm:$0xff]
  %v2990 = vld [vmem:[%s13 + $0x40] sm:$0xff]
  %v2991 = vld [vmem:[%s13 + $0x48] sm:$0xff]
  %v2992 = vld [vmem:[%s13 + $0x50] sm:$0xff]
  %v2993 = vld [vmem:[%s13 + $0x58] sm:$0xff]
  %v2994 = vld [vmem:[%s13 + $0x60] sm:$0xff]
  %v2995 = vld [vmem:[%s13 + $0x68] sm:$0xff]
  %v2996 = vld [vmem:[%s13 + $0x70] sm:$0xff]
  %v2997 = vld [vmem:[%s13 + $0x78] sm:$0xff]
  %v2998 = vld [vmem:[%s14] sm:$0xff]
  %v2999 = vld [vmem:[%s14 + $0x8] sm:$0xff]
  %v3000 = vld [vmem:[%s14 + $0x10] sm:$0xff]
  %v3001 = vld [vmem:[%s14 + $0x18] sm:$0xff]
  %v3002 = vld [vmem:[%s14 + $0x20] sm:$0xff]
  %v3003 = vld [vmem:[%s14 + $0x28] sm:$0xff]
  %v3004 = vld [vmem:[%s14 + $0x30] sm:$0xff]
  %v3005 = vld [vmem:[%s14 + $0x38] sm:$0xff]
  %v3006 = vld [vmem:[%s14 + $0x40] sm:$0xff]
  %v3007 = vld [vmem:[%s14 + $0x48] sm:$0xff]
  %v3008 = vld [vmem:[%s14 + $0x50] sm:$0xff]
  %v3009 = vld [vmem:[%s14 + $0x58] sm:$0xff]
  %v3010 = vld [vmem:[%s14 + $0x60] sm:$0xff]
  %v3011 = vld [vmem:[%s14 + $0x68] sm:$0xff]
  %v3012 = vld [vmem:[%s14 + $0x70] sm:$0xff]
  %v3013 = vld [vmem:[%s14 + $0x78] sm:$0xff]
  %3014 = vadd.xlane.f32.xlu0 %v2920
  %v3015 = vpop.xlane.xlu0 %3014
  %3016 = vadd.xlane.f32.xlu0 %v2923
  %v3017 = vpop.xlane.xlu0 %3016
  %3018 = vadd.xlane.f32.xlu0 %v2928
  %v3019 = vpop.xlane.xlu0 %3018
  %3020 = vadd.xlane.f32.xlu0 %v2931
  %v3021 = vpop.xlane.xlu0 %3020
  %3022 = vadd.xlane.f32.xlu0 %v2936
  %v3023 = vpop.xlane.xlu0 %3022
  %3024 = vadd.xlane.f32.xlu0 %v2939
  %v3025 = vpop.xlane.xlu0 %3024
  %3026 = vadd.xlane.f32.xlu0 %v2944
  %v3027 = vpop.xlane.xlu0 %3026
  %3028 = vadd.xlane.f32.xlu0 %v2947
  %v3029 = vpop.xlane.xlu0 %3028
  %3030 = vadd.xlane.f32.xlu0 %v2952
  %v3031 = vpop.xlane.xlu0 %3030
  %3032 = vadd.xlane.f32.xlu0 %v2955
  %v3033 = vpop.xlane.xlu0 %3032
  %3034 = vadd.xlane.f32.xlu0 %v2960
  %v3035 = vpop.xlane.xlu0 %3034
  %3036 = vadd.xlane.f32.xlu0 %v2963
  %v3037 = vpop.xlane.xlu0 %3036
  %3038 = vadd.xlane.f32.xlu0 %v2968
  %v3039 = vpop.xlane.xlu0 %3038
  %3040 = vadd.xlane.f32.xlu0 %v2971
  %v3041 = vpop.xlane.xlu0 %3040
  %3042 = vadd.xlane.f32.xlu0 %v2976
  %v3043 = vpop.xlane.xlu0 %3042
  %3044 = vadd.xlane.f32.xlu0 %v2979
  %v3045 = vpop.xlane.xlu0 %3044
  %v3046 = vmul.f32 %v2920, %v2920
  %v3047 = vmul.f32 %v2923, %v2923
  %v3048 = vmul.f32 %v2928, %v2928
  %v3049 = vmul.f32 %v2931, %v2931
  %v3050 = vmul.f32 %v2936, %v2936
  %v3051 = vmul.f32 %v2939, %v2939
  %v3052 = vmul.f32 %v2944, %v2944
  %v3053 = vmul.f32 %v2947, %v2947
  %v3054 = vmul.f32 %v2952, %v2952
  %v3055 = vmul.f32 %v2955, %v2955
  %v3056 = vmul.f32 %v2960, %v2960
  %v3057 = vmul.f32 %v2963, %v2963
  %v3058 = vmul.f32 %v2968, %v2968
  %v3059 = vmul.f32 %v2971, %v2971
  %v3060 = vmul.f32 %v2976, %v2976
  %v3061 = vmul.f32 %v2979, %v2979
  %3062 = vadd.xlane.f32.xlu0 %v3046
  %v3063 = vpop.xlane.xlu0 %3062
  %3064 = vadd.xlane.f32.xlu0 %v3047
  %v3065 = vpop.xlane.xlu0 %3064
  %3066 = vadd.xlane.f32.xlu0 %v3048
  %v3067 = vpop.xlane.xlu0 %3066
  %3068 = vadd.xlane.f32.xlu0 %v3049
  %v3069 = vpop.xlane.xlu0 %3068
  %3070 = vadd.xlane.f32.xlu0 %v3050
  %v3071 = vpop.xlane.xlu0 %3070
  %3072 = vadd.xlane.f32.xlu0 %v3051
  %v3073 = vpop.xlane.xlu0 %3072
  %3074 = vadd.xlane.f32.xlu0 %v3052
  %v3075 = vpop.xlane.xlu0 %3074
  %3076 = vadd.xlane.f32.xlu0 %v3053
  %v3077 = vpop.xlane.xlu0 %3076
  %3078 = vadd.xlane.f32.xlu0 %v3054
  %v3079 = vpop.xlane.xlu0 %3078
  %3080 = vadd.xlane.f32.xlu0 %v3055
  %v3081 = vpop.xlane.xlu0 %3080
  %3082 = vadd.xlane.f32.xlu0 %v3056
  %v3083 = vpop.xlane.xlu0 %3082
  %3084 = vadd.xlane.f32.xlu0 %v3057
  %v3085 = vpop.xlane.xlu0 %3084
  %3086 = vadd.xlane.f32.xlu0 %v3058
  %v3087 = vpop.xlane.xlu0 %3086
  %3088 = vadd.xlane.f32.xlu0 %v3059
  %v3089 = vpop.xlane.xlu0 %3088
  %3090 = vadd.xlane.f32.xlu0 %v3060
  %v3091 = vpop.xlane.xlu0 %3090
  %3092 = vadd.xlane.f32.xlu0 %v3061
  %v3093 = vpop.xlane.xlu0 %3092
  %v3094 = vmul.f32 %v3015, 0.0078125
  %v3095 = vmul.f32 %v3017, 0.0078125
  %v3096 = vmul.f32 %v3019, 0.0078125
  %v3097 = vmul.f32 %v3021, 0.0078125
  %v3098 = vmul.f32 %v3023, 0.0078125
  %v3099 = vmul.f32 %v3025, 0.0078125
  %v3100 = vmul.f32 %v3027, 0.0078125
  %v3101 = vmul.f32 %v3029, 0.0078125
  %v3102 = vmul.f32 %v3031, 0.0078125
  %v3103 = vmul.f32 %v3033, 0.0078125
  %v3104 = vmul.f32 %v3035, 0.0078125
  %v3105 = vmul.f32 %v3037, 0.0078125
  %v3106 = vmul.f32 %v3039, 0.0078125
  %v3107 = vmul.f32 %v3041, 0.0078125
  %v3108 = vmul.f32 %v3043, 0.0078125
  %v3109 = vmul.f32 %v3045, 0.0078125
  %v3110 = vmul.f32 %v3063, 0.0078125
  %v3111 = vmul.f32 %v3065, 0.0078125
  %v3112 = vmul.f32 %v3067, 0.0078125
  %v3113 = vmul.f32 %v3069, 0.0078125
  %v3114 = vmul.f32 %v3071, 0.0078125
  %v3115 = vmul.f32 %v3073, 0.0078125
  %v3116 = vmul.f32 %v3075, 0.0078125
  %v3117 = vmul.f32 %v3077, 0.0078125
  %v3118 = vmul.f32 %v3079, 0.0078125
  %v3119 = vmul.f32 %v3081, 0.0078125
  %v3120 = vmul.f32 %v3083, 0.0078125
  %v3121 = vmul.f32 %v3085, 0.0078125
  %v3122 = vmul.f32 %v3087, 0.0078125
  %v3123 = vmul.f32 %v3089, 0.0078125
  %v3124 = vmul.f32 %v3091, 0.0078125
  %v3125 = vmul.f32 %v3093, 0.0078125
  %v3126 = vmul.f32 %v3094, %v3094
  %v3127 = vmul.f32 %v3095, %v3095
  %v3128 = vmul.f32 %v3096, %v3096
  %v3129 = vmul.f32 %v3097, %v3097
  %v3130 = vmul.f32 %v3098, %v3098
  %v3131 = vmul.f32 %v3099, %v3099
  %v3132 = vmul.f32 %v3100, %v3100
  %v3133 = vmul.f32 %v3101, %v3101
  %v3134 = vmul.f32 %v3102, %v3102
  %v3135 = vmul.f32 %v3103, %v3103
  %v3136 = vmul.f32 %v3104, %v3104
  %v3137 = vmul.f32 %v3105, %v3105
  %v3138 = vmul.f32 %v3106, %v3106
  %v3139 = vmul.f32 %v3107, %v3107
  %v3140 = vmul.f32 %v3108, %v3108
  %v3141 = vmul.f32 %v3109, %v3109
  %v3142 = vsub.f32 %v3110, %v3126
  %v3143 = vsub.f32 %v3111, %v3127
  %v3144 = vsub.f32 %v3112, %v3128
  %v3145 = vsub.f32 %v3113, %v3129
  %v3146 = vsub.f32 %v3114, %v3130
  %v3147 = vsub.f32 %v3115, %v3131
  %v3148 = vsub.f32 %v3116, %v3132
  %v3149 = vsub.f32 %v3117, %v3133
  %v3150 = vsub.f32 %v3118, %v3134
  %v3151 = vsub.f32 %v3119, %v3135
  %v3152 = vsub.f32 %v3120, %v3136
  %v3153 = vsub.f32 %v3121, %v3137
  %v3154 = vsub.f32 %v3122, %v3138
  %v3155 = vsub.f32 %v3123, %v3139
  %v3156 = vsub.f32 %v3124, %v3140
  %v3157 = vsub.f32 %v3125, %v3141
  %v3158 = vmax.f32 %v3142, 0.0
  %v3159 = vmax.f32 %v3143, 0.0
  %v3160 = vmax.f32 %v3144, 0.0
  %v3161 = vmax.f32 %v3145, 0.0
  %v3162 = vmax.f32 %v3146, 0.0
  %v3163 = vmax.f32 %v3147, 0.0
  %v3164 = vmax.f32 %v3148, 0.0
  %v3165 = vmax.f32 %v3149, 0.0
  %v3166 = vmax.f32 %v3150, 0.0
  %v3167 = vmax.f32 %v3151, 0.0
  %v3168 = vmax.f32 %v3152, 0.0
  %v3169 = vmax.f32 %v3153, 0.0
  %v3170 = vmax.f32 %v3154, 0.0
  %v3171 = vmax.f32 %v3155, 0.0
  %v3172 = vmax.f32 %v3156, 0.0
  %v3173 = vmax.f32 %v3157, 0.0
  %v3174 = vadd.f32 %v3158, 0.8
  %v3175 = vadd.f32 %v3159, 0.8
  %v3176 = vadd.f32 %v3160, 0.8
  %v3177 = vadd.f32 %v3161, 0.8
  %v3178 = vadd.f32 %v3162, 0.8
  %v3179 = vadd.f32 %v3163, 0.8
  %v3180 = vadd.f32 %v3164, 0.8
  %v3181 = vadd.f32 %v3165, 0.8
  %v3182 = vadd.f32 %v3166, 0.8
  %v3183 = vadd.f32 %v3167, 0.8
  %v3184 = vadd.f32 %v3168, 0.8
  %v3185 = vadd.f32 %v3169, 0.8
  %v3186 = vadd.f32 %v3170, 0.8
  %v3187 = vadd.f32 %v3171, 0.8
  %v3188 = vadd.f32 %v3172, 0.8
  %v3189 = vadd.f32 %v3173, 0.8
  %v3190 = vrsqrt.pop %v3174
  %v3191 = vrsqrt.pop %v3175
  %v3192 = vrsqrt.pop %v3176
  %v3193 = vrsqrt.pop %v3177
  %v3194 = vrsqrt.pop %v3178
  %v3195 = vrsqrt.pop %v3179
  %v3196 = vrsqrt.pop %v3180
  %v3197 = vrsqrt.pop %v3181
  %v3198 = vrsqrt.pop %v3182
  %v3199 = vrsqrt.pop %v3183
  %v3200 = vrsqrt.pop %v3184
  %v3201 = vrsqrt.pop %v3185
  %v3202 = vrsqrt.pop %v3186
  %v3203 = vrsqrt.pop %v3187
  %v3204 = vrsqrt.pop %v3188
  %v3205 = vrsqrt.pop %v3189
  %v3206 = vmul.f32 %v2982, %v3190
  %v3207 = vmul.f32 %v2983, %v3191
  %v3208 = vmul.f32 %v2984, %v3192
  %v3209 = vmul.f32 %v2985, %v3193
  %v3210 = vmul.f32 %v2986, %v3194
  %v3211 = vmul.f32 %v2987, %v3195
  %v3212 = vmul.f32 %v2988, %v3196
  %v3213 = vmul.f32 %v2989, %v3197
  %v3214 = vmul.f32 %v2990, %v3198
  %v3215 = vmul.f32 %v2991, %v3199
  %v3216 = vmul.f32 %v2992, %v3200
  %v3217 = vmul.f32 %v2993, %v3201
  %v3218 = vmul.f32 %v2994, %v3202
  %v3219 = vmul.f32 %v2995, %v3203
  %v3220 = vmul.f32 %v2996, %v3204
  %v3221 = vmul.f32 %v2997, %v3205
  %v3222 = vmul.f32 %v3094, %v3206
  %v3223 = vmul.f32 %v3095, %v3207
  %v3224 = vmul.f32 %v3096, %v3208
  %v3225 = vmul.f32 %v3097, %v3209
  %v3226 = vmul.f32 %v3098, %v3210
  %v3227 = vmul.f32 %v3099, %v3211
  %v3228 = vmul.f32 %v3100, %v3212
  %v3229 = vmul.f32 %v3101, %v3213
  %v3230 = vmul.f32 %v3102, %v3214
  %v3231 = vmul.f32 %v3103, %v3215
  %v3232 = vmul.f32 %v3104, %v3216
  %v3233 = vmul.f32 %v3105, %v3217
  %v3234 = vmul.f32 %v3106, %v3218
  %v3235 = vmul.f32 %v3107, %v3219
  %v3236 = vmul.f32 %v3108, %v3220
  %v3237 = vmul.f32 %v3109, %v3221
  %v3238 = vsub.f32 %v2998, %v3222
  %v3239 = vsub.f32 %v2999, %v3223
  %v3240 = vsub.f32 %v3000, %v3224
  %v3241 = vsub.f32 %v3001, %v3225
  %v3242 = vsub.f32 %v3002, %v3226
  %v3243 = vsub.f32 %v3003, %v3227
  %v3244 = vsub.f32 %v3004, %v3228
  %v3245 = vsub.f32 %v3005, %v3229
  %v3246 = vsub.f32 %v3006, %v3230
  %v3247 = vsub.f32 %v3007, %v3231
  %v3248 = vsub.f32 %v3008, %v3232
  %v3249 = vsub.f32 %v3009, %v3233
  %v3250 = vsub.f32 %v3010, %v3234
  %v3251 = vsub.f32 %v3011, %v3235
  %v3252 = vsub.f32 %v3012, %v3236
  %v3253 = vsub.f32 %v3013, %v3237
  %v3254 = vpack.c.bf16 %v2923, %v2920
  %v3255 = vpack.c.bf16 %v2931, %v2928
  %v3256 = vpack.c.bf16 %v2939, %v2936
  %v3257 = vpack.c.bf16 %v2947, %v2944
  %v3258 = vpack.c.bf16 %v2955, %v2952
  %v3259 = vpack.c.bf16 %v2963, %v2960
  %v3260 = vpack.c.bf16 %v2971, %v2968
  %v3261 = vpack.c.bf16 %v2979, %v2976
  %v3262 = vunpack.c.l.bf16 %v3254
  %v3263 = vunpack.c.h.bf16 %v3254
  %v3264 = vunpack.c.l.bf16 %v3255
  %v3265 = vunpack.c.h.bf16 %v3255
  %v3266 = vunpack.c.l.bf16 %v3256
  %v3267 = vunpack.c.h.bf16 %v3256
  %v3268 = vunpack.c.l.bf16 %v3257
  %v3269 = vunpack.c.h.bf16 %v3257
  %v3270 = vunpack.c.l.bf16 %v3258
  %v3271 = vunpack.c.h.bf16 %v3258
  %v3272 = vunpack.c.l.bf16 %v3259
  %v3273 = vunpack.c.h.bf16 %v3259
  %v3274 = vunpack.c.l.bf16 %v3260
  %v3275 = vunpack.c.h.bf16 %v3260
  %v3276 = vunpack.c.l.bf16 %v3261
  %v3277 = vunpack.c.h.bf16 %v3261
  %3279 = vset.pattern.permute.xlu0 0
  %3280 = vperm.xlu0 %3279, %v3206
  %v3281 = vpop.permute.xlu0 %3280
  %3284 = vset.pattern.permute.xlu0 0
  %3285 = vperm.xlu0 %3284, %v3207
  %v3286 = vpop.permute.xlu0 %3285
  %3289 = vset.pattern.permute.xlu0 0
  %3290 = vperm.xlu0 %3289, %v3208
  %v3291 = vpop.permute.xlu0 %3290
  %3294 = vset.pattern.permute.xlu0 0
  %3295 = vperm.xlu0 %3294, %v3209
  %v3296 = vpop.permute.xlu0 %3295
  %3299 = vset.pattern.permute.xlu0 0
  %3300 = vperm.xlu0 %3299, %v3210
  %v3301 = vpop.permute.xlu0 %3300
  %3304 = vset.pattern.permute.xlu0 0
  %3305 = vperm.xlu0 %3304, %v3211
  %v3306 = vpop.permute.xlu0 %3305
  %3309 = vset.pattern.permute.xlu0 0
  %3310 = vperm.xlu0 %3309, %v3212
  %v3311 = vpop.permute.xlu0 %3310
  %3314 = vset.pattern.permute.xlu0 0
  %3315 = vperm.xlu0 %3314, %v3213
  %v3316 = vpop.permute.xlu0 %3315
  %3319 = vset.pattern.permute.xlu0 0
  %3320 = vperm.xlu0 %3319, %v3214
  %v3321 = vpop.permute.xlu0 %3320
  %3324 = vset.pattern.permute.xlu0 0
  %3325 = vperm.xlu0 %3324, %v3215
  %v3326 = vpop.permute.xlu0 %3325
  %3329 = vset.pattern.permute.xlu0 0
  %3330 = vperm.xlu0 %3329, %v3216
  %v3331 = vpop.permute.xlu0 %3330
  %3334 = vset.pattern.permute.xlu0 0
  %3335 = vperm.xlu0 %3334, %v3217
  %v3336 = vpop.permute.xlu0 %3335
  %3339 = vset.pattern.permute.xlu0 0
  %3340 = vperm.xlu0 %3339, %v3218
  %v3341 = vpop.permute.xlu0 %3340
  %3344 = vset.pattern.permute.xlu0 0
  %3345 = vperm.xlu0 %3344, %v3219
  %v3346 = vpop.permute.xlu0 %3345
  %3349 = vset.pattern.permute.xlu0 0
  %3350 = vperm.xlu0 %3349, %v3220
  %v3351 = vpop.permute.xlu0 %3350
  %3354 = vset.pattern.permute.xlu0 0
  %3355 = vperm.xlu0 %3354, %v3221
  %v3356 = vpop.permute.xlu0 %3355
  %v3358 = vmul.f32 %v3262, %v3281
  %v3359 = vmul.f32 %v3263, %v3286
  %v3360 = vmul.f32 %v3264, %v3291
  %v3361 = vmul.f32 %v3265, %v3296
  %v3362 = vmul.f32 %v3266, %v3301
  %v3363 = vmul.f32 %v3267, %v3306
  %v3364 = vmul.f32 %v3268, %v3311
  %v3365 = vmul.f32 %v3269, %v3316
  %v3366 = vmul.f32 %v3270, %v3321
  %v3367 = vmul.f32 %v3271, %v3326
  %v3368 = vmul.f32 %v3272, %v3331
  %v3369 = vmul.f32 %v3273, %v3336
  %v3370 = vmul.f32 %v3274, %v3341
  %v3371 = vmul.f32 %v3275, %v3346
  %v3372 = vmul.f32 %v3276, %v3351
  %v3373 = vmul.f32 %v3277, %v3356
  %3375 = vset.pattern.permute.xlu0 0
  %3376 = vperm.xlu0 %3375, %v3238
  %v3377 = vpop.permute.xlu0 %3376
  %3380 = vset.pattern.permute.xlu0 0
  %3381 = vperm.xlu0 %3380, %v3239
  %v3382 = vpop.permute.xlu0 %3381
  %3385 = vset.pattern.permute.xlu0 0
  %3386 = vperm.xlu0 %3385, %v3240
  %v3387 = vpop.permute.xlu0 %3386
  %3390 = vset.pattern.permute.xlu0 0
  %3391 = vperm.xlu0 %3390, %v3241
  %v3392 = vpop.permute.xlu0 %3391
  %3395 = vset.pattern.permute.xlu0 0
  %3396 = vperm.xlu0 %3395, %v3242
  %v3397 = vpop.permute.xlu0 %3396
  %3400 = vset.pattern.permute.xlu0 0
  %3401 = vperm.xlu0 %3400, %v3243
  %v3402 = vpop.permute.xlu0 %3401
  %3405 = vset.pattern.permute.xlu0 0
  %3406 = vperm.xlu0 %3405, %v3244
  %v3407 = vpop.permute.xlu0 %3406
  %3410 = vset.pattern.permute.xlu0 0
  %3411 = vperm.xlu0 %3410, %v3245
  %v3412 = vpop.permute.xlu0 %3411
  %3415 = vset.pattern.permute.xlu0 0
  %3416 = vperm.xlu0 %3415, %v3246
  %v3417 = vpop.permute.xlu0 %3416
  %3420 = vset.pattern.permute.xlu0 0
  %3421 = vperm.xlu0 %3420, %v3247
  %v3422 = vpop.permute.xlu0 %3421
  %3425 = vset.pattern.permute.xlu0 0
  %3426 = vperm.xlu0 %3425, %v3248
  %v3427 = vpop.permute.xlu0 %3426
  %3430 = vset.pattern.permute.xlu0 0
  %3431 = vperm.xlu0 %3430, %v3249
  %v3432 = vpop.permute.xlu0 %3431
  %3435 = vset.pattern.permute.xlu0 0
  %3436 = vperm.xlu0 %3435, %v3250
  %v3437 = vpop.permute.xlu0 %3436
  %3440 = vset.pattern.permute.xlu0 0
  %3441 = vperm.xlu0 %3440, %v3251
  %v3442 = vpop.permute.xlu0 %3441
  %3445 = vset.pattern.permute.xlu0 0
  %3446 = vperm.xlu0 %3445, %v3252
  %v3447 = vpop.permute.xlu0 %3446
  %3450 = vset.pattern.permute.xlu0 0
  %3451 = vperm.xlu0 %3450, %v3253
  %v3452 = vpop.permute.xlu0 %3451
  %v3454 = vadd.f32 %v3358, %v3377
  %v3455 = vadd.f32 %v3359, %v3382
  %v3456 = vadd.f32 %v3360, %v3387
  %v3457 = vadd.f32 %v3361, %v3392
  %v3458 = vadd.f32 %v3362, %v3397
  %v3459 = vadd.f32 %v3363, %v3402
  %v3460 = vadd.f32 %v3364, %v3407
  %v3461 = vadd.f32 %v3365, %v3412
  %v3462 = vadd.f32 %v3366, %v3417
  %v3463 = vadd.f32 %v3367, %v3422
  %v3464 = vadd.f32 %v3368, %v3427
  %v3465 = vadd.f32 %v3369, %v3432
  %v3466 = vadd.f32 %v3370, %v3437
  %v3467 = vadd.f32 %v3371, %v3442
  %v3468 = vadd.f32 %v3372, %v3447
  %v3469 = vadd.f32 %v3373, %v3452
  %vm3470 = vcmp.ge.f32.partialorder %v3454, 0.0
  %vm3471 = vcmp.ge.f32.partialorder %v3455, 0.0
  %vm3472 = vcmp.ge.f32.partialorder %v3456, 0.0
  %vm3473 = vcmp.ge.f32.partialorder %v3457, 0.0
  %vm3474 = vcmp.ge.f32.partialorder %v3458, 0.0
  %vm3475 = vcmp.ge.f32.partialorder %v3459, 0.0
  %vm3476 = vcmp.ge.f32.partialorder %v3460, 0.0
  %vm3477 = vcmp.ge.f32.partialorder %v3461, 0.0
  %vm3478 = vcmp.ge.f32.partialorder %v3462, 0.0
  %vm3479 = vcmp.ge.f32.partialorder %v3463, 0.0
  %vm3480 = vcmp.ge.f32.partialorder %v3464, 0.0
  %vm3481 = vcmp.ge.f32.partialorder %v3465, 0.0
  %vm3482 = vcmp.ge.f32.partialorder %v3466, 0.0
  %vm3483 = vcmp.ge.f32.partialorder %v3467, 0.0
  %vm3484 = vcmp.ge.f32.partialorder %v3468, 0.0
  %vm3485 = vcmp.ge.f32.partialorder %v3469, 0.0
  %v3486 = vmul.f32 %v3454, 0.2
  %v3487 = vmul.f32 %v3455, 0.2
  %v3488 = vmul.f32 %v3456, 0.2
  %v3489 = vmul.f32 %v3457, 0.2
  %v3490 = vmul.f32 %v3458, 0.2
  %v3491 = vmul.f32 %v3459, 0.2
  %v3492 = vmul.f32 %v3460, 0.2
  %v3493 = vmul.f32 %v3461, 0.2
  %v3494 = vmul.f32 %v3462, 0.2
  %v3495 = vmul.f32 %v3463, 0.2
  %v3496 = vmul.f32 %v3464, 0.2
  %v3497 = vmul.f32 %v3465, 0.2
  %v3498 = vmul.f32 %v3466, 0.2
  %v3499 = vmul.f32 %v3467, 0.2
  %v3500 = vmul.f32 %v3468, 0.2
  %v3501 = vmul.f32 %v3469, 0.2
  %v3502 = vsel %vm3470, %v3454, %v3486
  %v3503 = vsel %vm3471, %v3455, %v3487
  %v3504 = vsel %vm3472, %v3456, %v3488
  %v3505 = vsel %vm3473, %v3457, %v3489
  %v3506 = vsel %vm3474, %v3458, %v3490
  %v3507 = vsel %vm3475, %v3459, %v3491
  %v3508 = vsel %vm3476, %v3460, %v3492
  %v3509 = vsel %vm3477, %v3461, %v3493
  %v3510 = vsel %vm3478, %v3462, %v3494
  %v3511 = vsel %vm3479, %v3463, %v3495
  %v3512 = vsel %vm3480, %v3464, %v3496
  %v3513 = vsel %vm3481, %v3465, %v3497
  %v3514 = vsel %vm3482, %v3466, %v3498
  %v3515 = vsel %vm3483, %v3467, %v3499
  %v3516 = vsel %vm3484, %v3468, %v3500
  %v3517 = vsel %vm3485, %v3469, %v3501
  %v3518 = vpack.c.bf16 %v3503, %v3502
  %v3519 = vpack.c.bf16 %v3505, %v3504
  %v3520 = vpack.c.bf16 %v3507, %v3506
  %v3521 = vpack.c.bf16 %v3509, %v3508
  %v3522 = vpack.c.bf16 %v3511, %v3510
  %v3523 = vpack.c.bf16 %v3513, %v3512
  %v3524 = vpack.c.bf16 %v3515, %v3514
  %v3525 = vpack.c.bf16 %v3517, %v3516
  %v3526 = vld [vmem:[%s6] sm:$0xff]
  %v3527 = vld [vmem:[%s6 + $0x8] sm:$0xff]
  %v3528 = vld [vmem:[%s6 + $0x10] sm:$0xff]
  %v3529 = vld [vmem:[%s6 + $0x18] sm:$0xff]
  %v3530 = vld [vmem:[%s6 + $0x20] sm:$0xff]
  %v3531 = vld [vmem:[%s6 + $0x28] sm:$0xff]
  %v3532 = vld [vmem:[%s6 + $0x30] sm:$0xff]
  %v3533 = vld [vmem:[%s6 + $0x38] sm:$0xff]
  %v3534 = vld [vmem:[%s6 + $0x40] sm:$0xff]
  %v3535 = vld [vmem:[%s6 + $0x48] sm:$0xff]
  %v3536 = vld [vmem:[%s6 + $0x50] sm:$0xff]
  %v3537 = vld [vmem:[%s6 + $0x58] sm:$0xff]
  %v3538 = vld [vmem:[%s6 + $0x60] sm:$0xff]
  %v3539 = vld [vmem:[%s6 + $0x68] sm:$0xff]
  %v3540 = vld [vmem:[%s6 + $0x70] sm:$0xff]
  %v3541 = vld [vmem:[%s6 + $0x78] sm:$0xff]
  %v3542 = vld [vmem:[%s6 + $0x80] sm:$0xff]
  %v3543 = vld [vmem:[%s6 + $0x88] sm:$0xff]
  %v3544 = vld [vmem:[%s6 + $0x90] sm:$0xff]
  %v3545 = vld [vmem:[%s6 + $0x98] sm:$0xff]
  %v3546 = vld [vmem:[%s6 + $0xa0] sm:$0xff]
  %v3547 = vld [vmem:[%s6 + $0xa8] sm:$0xff]
  %v3548 = vld [vmem:[%s6 + $0xb0] sm:$0xff]
  %v3549 = vld [vmem:[%s6 + $0xb8] sm:$0xff]
  %v3550 = vld [vmem:[%s6 + $0xc0] sm:$0xff]
  %v3551 = vld [vmem:[%s6 + $0xc8] sm:$0xff]
  %v3552 = vld [vmem:[%s6 + $0xd0] sm:$0xff]
  %v3553 = vld [vmem:[%s6 + $0xd8] sm:$0xff]
  %v3554 = vld [vmem:[%s6 + $0xe0] sm:$0xff]
  %v3555 = vld [vmem:[%s6 + $0xe8] sm:$0xff]
  %v3556 = vld [vmem:[%s6 + $0xf0] sm:$0xff]
  %v3557 = vld [vmem:[%s6 + $0xf8] sm:$0xff]
  %v3590 = vunpack.c.l.b16 %v3526
  %v3591 = vunpack.c.h.b16 %v3526
  %v3592 = vunpack.c.l.b16 %v3527
  %v3593 = vunpack.c.h.b16 %v3527
  %v3594 = vunpack.c.l.b16 %v3528
  %v3595 = vunpack.c.h.b16 %v3528
  %v3596 = vunpack.c.l.b16 %v3529
  %v3597 = vunpack.c.h.b16 %v3529
  %v3598 = vunpack.c.l.b16 %v3530
  %v3599 = vunpack.c.h.b16 %v3530
  %v3600 = vunpack.c.l.b16 %v3531
  %v3601 = vunpack.c.h.b16 %v3531
  %v3602 = vunpack.c.l.b16 %v3532
  %v3603 = vunpack.c.h.b16 %v3532
  %v3604 = vunpack.c.l.b16 %v3533
  %v3605 = vunpack.c.h.b16 %v3533
  %v3606 = vunpack.c.l.b16 %v3534
  %v3607 = vunpack.c.h.b16 %v3534
  %v3608 = vunpack.c.l.b16 %v3535
  %v3609 = vunpack.c.h.b16 %v3535
  %v3610 = vunpack.c.l.b16 %v3536
  %v3611 = vunpack.c.h.b16 %v3536
  %v3612 = vunpack.c.l.b16 %v3537
  %v3613 = vunpack.c.h.b16 %v3537
  %v3614 = vunpack.c.l.b16 %v3538
  %v3615 = vunpack.c.h.b16 %v3538
  %v3616 = vunpack.c.l.b16 %v3539
  %v3617 = vunpack.c.h.b16 %v3539
  %v3618 = vunpack.c.l.b16 %v3540
  %v3619 = vunpack.c.h.b16 %v3540
  %v3620 = vunpack.c.l.b16 %v3541
  %v3621 = vunpack.c.h.b16 %v3541
  %v3622 = vunpack.c.l.b16 %v3542
  %v3623 = vunpack.c.h.b16 %v3542
  %v3624 = vunpack.c.l.b16 %v3543
  %v3625 = vunpack.c.h.b16 %v3543
  %v3626 = vunpack.c.l.b16 %v3544
  %v3627 = vunpack.c.h.b16 %v3544
  %v3628 = vunpack.c.l.b16 %v3545
  %v3629 = vunpack.c.h.b16 %v3545
  %v3630 = vunpack.c.l.b16 %v3546
  %v3631 = vunpack.c.h.b16 %v3546
  %v3632 = vunpack.c.l.b16 %v3547
  %v3633 = vunpack.c.h.b16 %v3547
  %v3634 = vunpack.c.l.b16 %v3548
  %v3635 = vunpack.c.h.b16 %v3548
  %v3636 = vunpack.c.l.b16 %v3549
  %v3637 = vunpack.c.h.b16 %v3549
  %v3638 = vunpack.c.l.b16 %v3550
  %v3639 = vunpack.c.h.b16 %v3550
  %v3640 = vunpack.c.l.b16 %v3551
  %v3641 = vunpack.c.h.b16 %v3551
  %v3642 = vunpack.c.l.b16 %v3552
  %v3643 = vunpack.c.h.b16 %v3552
  %v3644 = vunpack.c.l.b16 %v3553
  %v3645 = vunpack.c.h.b16 %v3553
  %v3646 = vunpack.c.l.b16 %v3554
  %v3647 = vunpack.c.h.b16 %v3554
  %v3648 = vunpack.c.l.b16 %v3555
  %v3649 = vunpack.c.h.b16 %v3555
  %v3650 = vunpack.c.l.b16 %v3556
  %v3651 = vunpack.c.h.b16 %v3556
  %v3652 = vunpack.c.l.b16 %v3557
  %v3653 = vunpack.c.h.b16 %v3557
  %v3654 = vpack.c.b16 %v3594, %v3590
  %v3655 = vpack.c.b16 %v3595, %v3591
  %v3656 = vpack.c.b16 %v3596, %v3592
  %v3657 = vpack.c.b16 %v3597, %v3593
  %v3658 = vpack.c.b16 %v3602, %v3598
  %v3659 = vpack.c.b16 %v3603, %v3599
  %v3660 = vpack.c.b16 %v3604, %v3600
  %v3661 = vpack.c.b16 %v3605, %v3601
  %v3662 = vpack.c.b16 %v3610, %v3606
  %v3663 = vpack.c.b16 %v3611, %v3607
  %v3664 = vpack.c.b16 %v3612, %v3608
  %v3665 = vpack.c.b16 %v3613, %v3609
  %v3666 = vpack.c.b16 %v3618, %v3614
  %v3667 = vpack.c.b16 %v3619, %v3615
  %v3668 = vpack.c.b16 %v3620, %v3616
  %v3669 = vpack.c.b16 %v3621, %v3617
  %v3670 = vpack.c.b16 %v3626, %v3622
  %v3671 = vpack.c.b16 %v3627, %v3623
  %v3672 = vpack.c.b16 %v3628, %v3624
  %v3673 = vpack.c.b16 %v3629, %v3625
  %v3674 = vpack.c.b16 %v3634, %v3630
  %v3675 = vpack.c.b16 %v3635, %v3631
  %v3676 = vpack.c.b16 %v3636, %v3632
  %v3677 = vpack.c.b16 %v3637, %v3633
  %v3678 = vpack.c.b16 %v3642, %v3638
  %v3679 = vpack.c.b16 %v3643, %v3639
  %v3680 = vpack.c.b16 %v3644, %v3640
  %v3681 = vpack.c.b16 %v3645, %v3641
  %v3682 = vpack.c.b16 %v3650, %v3646
  %v3683 = vpack.c.b16 %v3651, %v3647
  %v3684 = vpack.c.b16 %v3652, %v3648
  %v3685 = vpack.c.b16 %v3653, %v3649
  %3718 = vmatprep.subr.bf16.mxu0 %v3655
  %3719 = vmatpush1.bf16.msra.mxu0 %v3654
  %3720 = vmatprep.subr.bf16.mxu0 %v3659
  %3721 = vmatpush1.bf16.msra.mxu0 %v3658
  %3722 = vmatprep.subr.bf16.mxu0 %v3663
  %3723 = vmatpush1.bf16.msra.mxu0 %v3662
  %3724 = vmatprep.subr.bf16.mxu0 %v3667
  %3725 = vmatpush1.bf16.msra.mxu0 %v3666
  %3726 = vmatprep.subr.bf16.mxu0 %v3671
  %3727 = vmatpush1.bf16.msra.mxu0 %v3670
  %3728 = vmatprep.subr.bf16.mxu0 %v3675
  %3729 = vmatpush1.bf16.msra.mxu0 %v3674
  %3730 = vmatprep.subr.bf16.mxu0 %v3679
  %3731 = vmatpush1.bf16.msra.mxu0 %v3678
  %3732 = vmatprep.subr.bf16.mxu0 %v3683
  %3733 = vmatpush1.bf16.msra.mxu0 %v3682
  %3734 = vmatprep.subr.bf16.mxu0 0
  %3735 = vmatpush1.bf16.msra.mxu0 0
  %3736 = vmatprep.subr.bf16.mxu0 0
  %3737 = vmatpush1.bf16.msra.mxu0 0
  %3738 = vmatprep.subr.bf16.mxu0 0
  %3739 = vmatpush1.bf16.msra.mxu0 0
  %3740 = vmatprep.subr.bf16.mxu0 0
  %3741 = vmatpush1.bf16.msra.mxu0 0
  %3742 = vmatprep.subr.bf16.mxu0 0
  %3743 = vmatpush1.bf16.msra.mxu0 0
  %3744 = vmatprep.subr.bf16.mxu0 0
  %3745 = vmatpush1.bf16.msra.mxu0 0
  %3746 = vmatprep.subr.bf16.mxu0 0
  %3747 = vmatpush1.bf16.msra.mxu0 0
  %3748 = vmatprep.subr.bf16.mxu0 0
  %3749 = vmatpush1.bf16.msra.mxu0 0
  %3750 = vmatprep.mubr.bf16.mxu0 0
  %3751 = vmatmul.mubr.bf16.gmra.mrb[0].mxu0 %v3518
  %v3752 = vpop.f32.mrb[0].mxu0
  %v3753 = vadd.f32 0.0, %v3752
  %v3754 = vpop.f32.mrb[0].mxu0
  %v3755 = vadd.f32 0.0, %v3754
  %v3756 = vpop.f32.mrb[0].mxu0
  %v3757 = vadd.f32 0.0, %v3756
  %v3758 = vpop.f32.mrb[0].mxu0
  %v3759 = vadd.f32 0.0, %v3758
  %3760 = vmatprep.mubr.bf16.mxu0 0
  %3761 = vmatmul.mubr.bf16.gmra.mrb[0].mxu0 %v3519
  %v3762 = vpop.f32.mrb[0].mxu0
  %v3763 = vadd.f32 0.0, %v3762
  %v3764 = vpop.f32.mrb[0].mxu0
  %v3765 = vadd.f32 0.0, %v3764
  %v3766 = vpop.f32.mrb[0].mxu0
  %v3767 = vadd.f32 0.0, %v3766
  %v3768 = vpop.f32.mrb[0].mxu0
  %v3769 = vadd.f32 0.0, %v3768
  %3770 = vmatprep.mubr.bf16.mxu0 0
  %3771 = vmatmul.mubr.bf16.gmra.mrb[0].mxu0 %v3520
  %v3772 = vpop.f32.mrb[0].mxu0
  %v3773 = vadd.f32 0.0, %v3772
  %v3774 = vpop.f32.mrb[0].mxu0
  %v3775 = vadd.f32 0.0, %v3774
  %v3776 = vpop.f32.mrb[0].mxu0
  %v3777 = vadd.f32 0.0, %v3776
  %v3778 = vpop.f32.mrb[0].mxu0
  %v3779 = vadd.f32 0.0, %v3778
  %3780 = vmatprep.mubr.bf16.mxu0 0
  %3781 = vmatmul.mubr.bf16.gmra.mrb[0].mxu0 %v3521
  %v3782 = vpop.f32.mrb[0].mxu0
  %v3783 = vadd.f32 0.0, %v3782
  %v3784 = vpop.f32.mrb[0].mxu0
  %v3785 = vadd.f32 0.0, %v3784
  %v3786 = vpop.f32.mrb[0].mxu0
  %v3787 = vadd.f32 0.0, %v3786
  %v3788 = vpop.f32.mrb[0].mxu0
  %v3789 = vadd.f32 0.0, %v3788
  %3790 = vmatprep.mubr.bf16.mxu0 0
  %3791 = vmatmul.mubr.bf16.gmra.mrb[0].mxu0 %v3522
  %v3792 = vpop.f32.mrb[0].mxu0
  %v3793 = vadd.f32 0.0, %v3792
  %v3794 = vpop.f32.mrb[0].mxu0
  %v3795 = vadd.f32 0.0, %v3794
  %v3796 = vpop.f32.mrb[0].mxu0
  %v3797 = vadd.f32 0.0, %v3796
  %v3798 = vpop.f32.mrb[0].mxu0
  %v3799 = vadd.f32 0.0, %v3798
  %3800 = vmatprep.mubr.bf16.mxu0 0
  %3801 = vmatmul.mubr.bf16.gmra.mrb[0].mxu0 %v3523
  %v3802 = vpop.f32.mrb[0].mxu0
  %v3803 = vadd.f32 0.0, %v3802
  %v3804 = vpop.f32.mrb[0].mxu0
  %v3805 = vadd.f32 0.0, %v3804
  %v3806 = vpop.f32.mrb[0].mxu0
  %v3807 = vadd.f32 0.0, %v3806
  %v3808 = vpop.f32.mrb[0].mxu0
  %v3809 = vadd.f32 0.0, %v3808
  %3810 = vmatprep.mubr.bf16.mxu0 0
  %3811 = vmatmul.mubr.bf16.gmra.mrb[0].mxu0 %v3524
  %v3812 = vpop.f32.mrb[0].mxu0
  %v3813 = vadd.f32 0.0, %v3812
  %v3814 = vpop.f32.mrb[0].mxu0
  %v3815 = vadd.f32 0.0, %v3814
  %v3816 = vpop.f32.mrb[0].mxu0
  %v3817 = vadd.f32 0.0, %v3816
  %v3818 = vpop.f32.mrb[0].mxu0
  %v3819 = vadd.f32 0.0, %v3818
  %3820 = vmatprep.mubr.bf16.mxu0 0
  %3821 = vmatmul.mubr.bf16.gmra.mrb[0].mxu0 %v3525
  %v3822 = vpop.f32.mrb[0].mxu0
  %v3823 = vadd.f32 0.0, %v3822
  %v3824 = vpop.f32.mrb[0].mxu0
  %v3825 = vadd.f32 0.0, %v3824
  %v3826 = vpop.f32.mrb[0].mxu0
  %v3827 = vadd.f32 0.0, %v3826
  %v3828 = vpop.f32.mrb[0].mxu0
  %v3829 = vadd.f32 0.0, %v3828
  %3830 = vdwg.mxu0
  %3831 = vmatprep.subr.bf16.mxu0 %v3657
  %3832 = vmatpush1.bf16.msra.mxu0 %v3656
  %3833 = vmatprep.subr.bf16.mxu0 %v3661
  %3834 = vmatpush1.bf16.msra.mxu0 %v3660
  %3835 = vmatprep.subr.bf16.mxu0 %v3665
  %3836 = vmatpush1.bf16.msra.mxu0 %v3664
  %3837 = vmatprep.subr.bf16.mxu0 %v3669
  %3838 = vmatpush1.bf16.msra.mxu0 %v3668
  %3839 = vmatprep.subr.bf16.mxu0 %v3673
  %3840 = vmatpush1.bf16.msra.mxu0 %v3672
  %3841 = vmatprep.subr.bf16.mxu0 %v3677
  %3842 = vmatpush1.bf16.msra.mxu0 %v3676
  %3843 = vmatprep.subr.bf16.mxu0 %v3681
  %3844 = vmatpush1.bf16.msra.mxu0 %v3680
  %3845 = vmatprep.subr.bf16.mxu0 %v3685
  %3846 = vmatpush1.bf16.msra.mxu0 %v3684
  %3847 = vmatprep.subr.bf16.mxu0 0
  %3848 = vmatpush1.bf16.msra.mxu0 0
  %3849 = vmatprep.subr.bf16.mxu0 0
  %3850 = vmatpush1.bf16.msra.mxu0 0
  %3851 = vmatprep.subr.bf16.mxu0 0
  %3852 = vmatpush1.bf16.msra.mxu0 0
  %3853 = vmatprep.subr.bf16.mxu0 0
  %3854 = vmatpush1.bf16.msra.mxu0 0
  %3855 = vmatprep.subr.bf16.mxu0 0
  %3856 = vmatpush1.bf16.msra.mxu0 0
  %3857 = vmatprep.subr.bf16.mxu0 0
  %3858 = vmatpush1.bf16.msra.mxu0 0
  %3859 = vmatprep.subr.bf16.mxu0 0
  %3860 = vmatpush1.bf16.msra.mxu0 0
  %3861 = vmatprep.subr.bf16.mxu0 0
  %3862 = vmatpush1.bf16.msra.mxu0 0
  %3863 = vmatprep.mubr.bf16.mxu0 0
  %3864 = vmatmul.mubr.bf16.gmra.mrb[0].mxu0 %v3518
  %v3865 = vpop.f32.mrb[0].mxu0
  %v3866 = vadd.f32 0.0, %v3865
  %v3867 = vpop.f32.mrb[0].mxu0
  %v3868 = vadd.f32 0.0, %v3867
  %v3869 = vpop.f32.mrb[0].mxu0
  %v3870 = vadd.f32 0.0, %v3869
  %v3871 = vpop.f32.mrb[0].mxu0
  %v3872 = vadd.f32 0.0, %v3871
  %3873 = vmatprep.mubr.bf16.mxu0 0
  %3874 = vmatmul.mubr.bf16.gmra.mrb[0].mxu0 %v3519
  %v3875 = vpop.f32.mrb[0].mxu0
  %v3876 = vadd.f32 0.0, %v3875
  %v3877 = vpop.f32.mrb[0].mxu0
  %v3878 = vadd.f32 0.0, %v3877
  %v3879 = vpop.f32.mrb[0].mxu0
  %v3880 = vadd.f32 0.0, %v3879
  %v3881 = vpop.f32.mrb[0].mxu0
  %v3882 = vadd.f32 0.0, %v3881
  %3883 = vmatprep.mubr.bf16.mxu0 0
  %3884 = vmatmul.mubr.bf16.gmra.mrb[0].mxu0 %v3520
  %v3885 = vpop.f32.mrb[0].mxu0
  %v3886 = vadd.f32 0.0, %v3885
  %v3887 = vpop.f32.mrb[0].mxu0
  %v3888 = vadd.f32 0.0, %v3887
  %v3889 = vpop.f32.mrb[0].mxu0
  %v3890 = vadd.f32 0.0, %v3889
  %v3891 = vpop.f32.mrb[0].mxu0
  %v3892 = vadd.f32 0.0, %v3891
  %3893 = vmatprep.mubr.bf16.mxu0 0
  %3894 = vmatmul.mubr.bf16.gmra.mrb[0].mxu0 %v3521
  %v3895 = vpop.f32.mrb[0].mxu0
  %v3896 = vadd.f32 0.0, %v3895
  %v3897 = vpop.f32.mrb[0].mxu0
  %v3898 = vadd.f32 0.0, %v3897
  %v3899 = vpop.f32.mrb[0].mxu0
  %v3900 = vadd.f32 0.0, %v3899
  %v3901 = vpop.f32.mrb[0].mxu0
  %v3902 = vadd.f32 0.0, %v3901
  %3903 = vmatprep.mubr.bf16.mxu0 0
  %3904 = vmatmul.mubr.bf16.gmra.mrb[0].mxu0 %v3522
  %v3905 = vpop.f32.mrb[0].mxu0
  %v3906 = vadd.f32 0.0, %v3905
  %v3907 = vpop.f32.mrb[0].mxu0
  %v3908 = vadd.f32 0.0, %v3907
  %v3909 = vpop.f32.mrb[0].mxu0
  %v3910 = vadd.f32 0.0, %v3909
  %v3911 = vpop.f32.mrb[0].mxu0
  %v3912 = vadd.f32 0.0, %v3911
  %3913 = vmatprep.mubr.bf16.mxu0 0
  %3914 = vmatmul.mubr.bf16.gmra.mrb[0].mxu0 %v3523
  %v3915 = vpop.f32.mrb[0].mxu0
  %v3916 = vadd.f32 0.0, %v3915
  %v3917 = vpop.f32.mrb[0].mxu0
  %v3918 = vadd.f32 0.0, %v3917
  %v3919 = vpop.f32.mrb[0].mxu0
  %v3920 = vadd.f32 0.0, %v3919
  %v3921 = vpop.f32.mrb[0].mxu0
  %v3922 = vadd.f32 0.0, %v3921
  %3923 = vmatprep.mubr.bf16.mxu0 0
  %3924 = vmatmul.mubr.bf16.gmra.mrb[0].mxu0 %v3524
  %v3925 = vpop.f32.mrb[0].mxu0
  %v3926 = vadd.f32 0.0, %v3925
  %v3927 = vpop.f32.mrb[0].mxu0
  %v3928 = vadd.f32 0.0, %v3927
  %v3929 = vpop.f32.mrb[0].mxu0
  %v3930 = vadd.f32 0.0, %v3929
  %v3931 = vpop.f32.mrb[0].mxu0
  %v3932 = vadd.f32 0.0, %v3931
  %3933 = vmatprep.mubr.bf16.mxu0 0
  %3934 = vmatmul.mubr.bf16.gmra.mrb[0].mxu0 %v3525
  %v3935 = vpop.f32.mrb[0].mxu0
  %v3936 = vadd.f32 0.0, %v3935
  %v3937 = vpop.f32.mrb[0].mxu0
  %v3938 = vadd.f32 0.0, %v3937
  %v3939 = vpop.f32.mrb[0].mxu0
  %v3940 = vadd.f32 0.0, %v3939
  %v3941 = vpop.f32.mrb[0].mxu0
  %v3942 = vadd.f32 0.0, %v3941
  %3943 = vdwg.mxu0
  %v3944 = vpack.c.bf16 %v3757, %v3753
  %v3945 = vpack.c.bf16 %v3759, %v3755
  %v3946 = vpack.c.bf16 %v3870, %v3866
  %v3947 = vpack.c.bf16 %v3872, %v3868
  %v3948 = vpack.c.bf16 %v3767, %v3763
  %v3949 = vpack.c.bf16 %v3769, %v3765
  %v3950 = vpack.c.bf16 %v3880, %v3876
  %v3951 = vpack.c.bf16 %v3882, %v3878
  %v3952 = vpack.c.bf16 %v3777, %v3773
  %v3953 = vpack.c.bf16 %v3779, %v3775
  %v3954 = vpack.c.bf16 %v3890, %v3886
  %v3955 = vpack.c.bf16 %v3892, %v3888
  %v3956 = vpack.c.bf16 %v3787, %v3783
  %v3957 = vpack.c.bf16 %v3789, %v3785
  %v3958 = vpack.c.bf16 %v3900, %v3896
  %v3959 = vpack.c.bf16 %v3902, %v3898
  %v3960 = vpack.c.bf16 %v3797, %v3793
  %v3961 = vpack.c.bf16 %v3799, %v3795
  %v3962 = vpack.c.bf16 %v3910, %v3906
  %v3963 = vpack.c.bf16 %v3912, %v3908
  %v3964 = vpack.c.bf16 %v3807, %v3803
  %v3965 = vpack.c.bf16 %v3809, %v3805
  %v3966 = vpack.c.bf16 %v3920, %v3916
  %v3967 = vpack.c.bf16 %v3922, %v3918
  %v3968 = vpack.c.bf16 %v3817, %v3813
  %v3969 = vpack.c.bf16 %v3819, %v3815
  %v3970 = vpack.c.bf16 %v3930, %v3926
  %v3971 = vpack.c.bf16 %v3932, %v3928
  %v3972 = vpack.c.bf16 %v3827, %v3823
  %v3973 = vpack.c.bf16 %v3829, %v3825
  %v3974 = vpack.c.bf16 %v3940, %v3936
  %v3975 = vpack.c.bf16 %v3942, %v3938
  %3984 = vrot.lane.b32.xlu0 %v3947, 34
  %v3985 = vpop.permute.xlu0 %3984
  %3986 = vrot.lane.b32.xlu0 %v3951, 34
  %v3987 = vpop.permute.xlu0 %3986
  %3988 = vrot.lane.b32.xlu0 %v3955, 34
  %v3989 = vpop.permute.xlu0 %3988
  %3990 = vrot.lane.b32.xlu0 %v3959, 34
  %v3991 = vpop.permute.xlu0 %3990
  %3992 = vrot.lane.b32.xlu0 %v3963, 34
  %v3993 = vpop.permute.xlu0 %3992
  %3994 = vrot.lane.b32.xlu0 %v3967, 34
  %v3995 = vpop.permute.xlu0 %3994
  %3996 = vrot.lane.b32.xlu0 %v3971, 34
  %v3997 = vpop.permute.xlu0 %3996
  %3998 = vrot.lane.b32.xlu0 %v3975, 34
  %v3999 = vpop.permute.xlu0 %3998
  %4024 = vrot.lane.b32.xlu0 %v3944, 34
  %v4025 = vpop.permute.xlu0 %4024
  %4026 = vrot.lane.b32.xlu0 %v3945, 34
  %v4027 = vpop.permute.xlu0 %4026
  %4028 = vrot.lane.b32.xlu0 %v3946, 34
  %v4029 = vpop.permute.xlu0 %4028
  %4030 = vrot.lane.b32.xlu0 %v3948, 34
  %v4031 = vpop.permute.xlu0 %4030
  %4032 = vrot.lane.b32.xlu0 %v3949, 34
  %v4033 = vpop.permute.xlu0 %4032
  %4034 = vrot.lane.b32.xlu0 %v3950, 34
  %v4035 = vpop.permute.xlu0 %4034
  %4036 = vrot.lane.b32.xlu0 %v3952, 34
  %v4037 = vpop.permute.xlu0 %4036
  %4038 = vrot.lane.b32.xlu0 %v3953, 34
  %v4039 = vpop.permute.xlu0 %4038
  %4040 = vrot.lane.b32.xlu0 %v3954, 34
  %v4041 = vpop.permute.xlu0 %4040
  %4042 = vrot.lane.b32.xlu0 %v3956, 34
  %v4043 = vpop.permute.xlu0 %4042
  %4044 = vrot.lane.b32.xlu0 %v3957, 34
  %v4045 = vpop.permute.xlu0 %4044
  %4046 = vrot.lane.b32.xlu0 %v3958, 34
  %v4047 = vpop.permute.xlu0 %4046
  %4048 = vrot.lane.b32.xlu0 %v3960, 34
  %v4049 = vpop.permute.xlu0 %4048
  %4050 = vrot.lane.b32.xlu0 %v3961, 34
  %v4051 = vpop.permute.xlu0 %4050
  %4052 = vrot.lane.b32.xlu0 %v3962, 34
  %v4053 = vpop.permute.xlu0 %4052
  %4054 = vrot.lane.b32.xlu0 %v3964, 34
  %v4055 = vpop.permute.xlu0 %4054
  %4056 = vrot.lane.b32.xlu0 %v3965, 34
  %v4057 = vpop.permute.xlu0 %4056
  %4058 = vrot.lane.b32.xlu0 %v3966, 34
  %v4059 = vpop.permute.xlu0 %4058
  %4060 = vrot.lane.b32.xlu0 %v3968, 34
  %v4061 = vpop.permute.xlu0 %4060
  %4062 = vrot.lane.b32.xlu0 %v3969, 34
  %v4063 = vpop.permute.xlu0 %4062
  %4064 = vrot.lane.b32.xlu0 %v3970, 34
  %v4065 = vpop.permute.xlu0 %4064
  %4066 = vrot.lane.b32.xlu0 %v3972, 34
  %v4067 = vpop.permute.xlu0 %4066
  %4068 = vrot.lane.b32.xlu0 %v3973, 34
  %v4069 = vpop.permute.xlu0 %4068
  %4070 = vrot.lane.b32.xlu0 %v3974, 34
  %v4071 = vpop.permute.xlu0 %4070
  %vm4072 = vcmask 277504
  %v4073 = vsel %vm4072, %v4025, %v4027
  %v4074 = vsel %vm4072, %v4027, %v4029
  %v4075 = vsel %vm4072, %v4029, %v3985
  %v4076 = vsel %vm4072, %v4031, %v4033
  %v4077 = vsel %vm4072, %v4033, %v4035
  %v4078 = vsel %vm4072, %v4035, %v3987
  %v4079 = vsel %vm4072, %v4037, %v4039
  %v4080 = vsel %vm4072, %v4039, %v4041
  %v4081 = vsel %vm4072, %v4041, %v3989
  %v4082 = vsel %vm4072, %v4043, %v4045
  %v4083 = vsel %vm4072, %v4045, %v4047
  %v4084 = vsel %vm4072, %v4047, %v3991
  %v4085 = vsel %vm4072, %v4049, %v4051
  %v4086 = vsel %vm4072, %v4051, %v4053
  %v4087 = vsel %vm4072, %v4053, %v3993
  %v4088 = vsel %vm4072, %v4055, %v4057
  %v4089 = vsel %vm4072, %v4057, %v4059
  %v4090 = vsel %vm4072, %v4059, %v3995
  %v4091 = vsel %vm4072, %v4061, %v4063
  %v4092 = vsel %vm4072, %v4063, %v4065
  %v4093 = vsel %vm4072, %v4065, %v3997
  %v4094 = vsel %vm4072, %v4067, %v4069
  %v4095 = vsel %vm4072, %v4069, %v4071
  %v4096 = vsel %vm4072, %v4071, %v3999
  %vm4121 = vcmask 277504
  %v4124 = vsel %vm4121, %v3985, %v4025
  %v4128 = vsel %vm4121, %v3987, %v4031
  %v4132 = vsel %vm4121, %v3989, %v4037
  %v4136 = vsel %vm4121, %v3991, %v4043
  %v4140 = vsel %vm4121, %v3993, %v4049
  %v4144 = vsel %vm4121, %v3995, %v4055
  %v4148 = vsel %vm4121, %v3997, %v4061
  %v4152 = vsel %vm4121, %v3999, %v4067
  %v4156 = vunpack.c.l.s4 1966171168
  %v4157 = vunpack.c.0.s8 %v4156
  %v4158 = vlaneseq
  %v4159 = vshrl.u32 %v4158, 7
  %v4160 = vsub.s32 %v4157, %v4159
  %v4161 = vrot.slane %v77, %v4160
  %v4162 = vcombine.high %v4161, %v4161
  %v4164 = vunpack.c.l.s4 1966171168
  %v4165 = vunpack.c.0.s8 %v4164
  %v4166 = vlaneseq
  %v4167 = vshrl.u32 %v4166, 7
  %v4168 = vsub.s32 %v4165, %v4167
  %v4169 = vrot.slane %v4161, %v4168
  %v4171 = vunpack.c.l.s4 1966171168
  %v4172 = vunpack.c.0.s8 %v4171
  %v4173 = vlaneseq
  %v4174 = vshrl.u32 %v4173, 7
  %v4175 = vsub.s32 %v4172, %v4174
  %v4176 = vrot.slane %v4162, %v4175
  %v4177 = vcombine.high %v4169, %v4169
  %v4178 = vcombine.high %v4176, %v4176
  %v4180 = vpack.i.b16 %v4169, %v4169
  %v4182 = vlaneseq
  %v4183 = vshrl.u32 %v4182, 7
  %v4184 = vsub.s32 0, %v4183
  %v4185 = vrot.slane %v4180, %v4184
  %v4187 = vpack.i.b16 %v4176, %v4176
  %v4189 = vlaneseq
  %v4190 = vshrl.u32 %v4189, 7
  %v4191 = vsub.s32 0, %v4190
  %v4192 = vrot.slane %v4187, %v4191
  %v4194 = vpack.i.b16 %v4177, %v4177
  %v4196 = vlaneseq
  %v4197 = vshrl.u32 %v4196, 7
  %v4198 = vsub.s32 0, %v4197
  %v4199 = vrot.slane %v4194, %v4198
  %v4201 = vpack.i.b16 %v4178, %v4178
  %v4203 = vlaneseq
  %v4204 = vshrl.u32 %v4203, 7
  %v4205 = vsub.s32 0, %v4204
  %v4206 = vrot.slane %v4201, %v4205
  %v4207 = vmul.bf16 %v4124, %v4185
  %v4208 = vmul.bf16 %v4073, %v4192
  %v4209 = vmul.bf16 %v4074, %v4199
  %v4210 = vmul.bf16 %v4075, %v4206
  %v4211 = vmul.bf16 %v4128, %v4185
  %v4212 = vmul.bf16 %v4076, %v4192
  %v4213 = vmul.bf16 %v4077, %v4199
  %v4214 = vmul.bf16 %v4078, %v4206
  %v4215 = vmul.bf16 %v4132, %v4185
  %v4216 = vmul.bf16 %v4079, %v4192
  %v4217 = vmul.bf16 %v4080, %v4199
  %v4218 = vmul.bf16 %v4081, %v4206
  %v4219 = vmul.bf16 %v4136, %v4185
  %v4220 = vmul.bf16 %v4082, %v4192
  %v4221 = vmul.bf16 %v4083, %v4199
  %v4222 = vmul.bf16 %v4084, %v4206
  %v4223 = vmul.bf16 %v4140, %v4185
  %v4224 = vmul.bf16 %v4085, %v4192
  %v4225 = vmul.bf16 %v4086, %v4199
  %v4226 = vmul.bf16 %v4087, %v4206
  %v4227 = vmul.bf16 %v4144, %v4185
  %v4228 = vmul.bf16 %v4088, %v4192
  %v4229 = vmul.bf16 %v4089, %v4199
  %v4230 = vmul.bf16 %v4090, %v4206
  %v4231 = vmul.bf16 %v4148, %v4185
  %v4232 = vmul.bf16 %v4091, %v4192
  %v4233 = vmul.bf16 %v4092, %v4199
  %v4234 = vmul.bf16 %v4093, %v4206
  %v4235 = vmul.bf16 %v4152, %v4185
  %v4236 = vmul.bf16 %v4094, %v4192
  %v4237 = vmul.bf16 %v4095, %v4199
  %v4238 = vmul.bf16 %v4096, %v4206
  %4239 = vrot.lane.b32.xlu0 %v3947, 32
  %v4240 = vpop.permute.xlu0 %4239
  %4241 = vrot.lane.b32.xlu0 %v3951, 32
  %v4242 = vpop.permute.xlu0 %4241
  %4243 = vrot.lane.b32.xlu0 %v3955, 32
  %v4244 = vpop.permute.xlu0 %4243
  %4245 = vrot.lane.b32.xlu0 %v3959, 32
  %v4246 = vpop.permute.xlu0 %4245
  %4247 = vrot.lane.b32.xlu0 %v3963, 32
  %v4248 = vpop.permute.xlu0 %4247
  %4249 = vrot.lane.b32.xlu0 %v3967, 32
  %v4250 = vpop.permute.xlu0 %4249
  %4251 = vrot.lane.b32.xlu0 %v3971, 32
  %v4252 = vpop.permute.xlu0 %4251
  %4253 = vrot.lane.b32.xlu0 %v3975, 32
  %v4254 = vpop.permute.xlu0 %4253
  %4255 = vrot.lane.b32.xlu0 %v3944, 32
  %v4256 = vpop.permute.xlu0 %4255
  %4257 = vrot.lane.b32.xlu0 %v3945, 32
  %v4258 = vpop.permute.xlu0 %4257
  %4259 = vrot.lane.b32.xlu0 %v3946, 32
  %v4260 = vpop.permute.xlu0 %4259
  %4261 = vrot.lane.b32.xlu0 %v3948, 32
  %v4262 = vpop.permute.xlu0 %4261
  %4263 = vrot.lane.b32.xlu0 %v3949, 32
  %v4264 = vpop.permute.xlu0 %4263
  %4265 = vrot.lane.b32.xlu0 %v3950, 32
  %v4266 = vpop.permute.xlu0 %4265
  %4267 = vrot.lane.b32.xlu0 %v3952, 32
  %v4268 = vpop.permute.xlu0 %4267
  %4269 = vrot.lane.b32.xlu0 %v3953, 32
  %v4270 = vpop.permute.xlu0 %4269
  %4271 = vrot.lane.b32.xlu0 %v3954, 32
  %v4272 = vpop.permute.xlu0 %4271
  %4273 = vrot.lane.b32.xlu0 %v3956, 32
  %v4274 = vpop.permute.xlu0 %4273
  %4275 = vrot.lane.b32.xlu0 %v3957, 32
  %v4276 = vpop.permute.xlu0 %4275
  %4277 = vrot.lane.b32.xlu0 %v3958, 32
  %v4278 = vpop.permute.xlu0 %4277
  %4279 = vrot.lane.b32.xlu0 %v3960, 32
  %v4280 = vpop.permute.xlu0 %4279
  %4281 = vrot.lane.b32.xlu0 %v3961, 32
  %v4282 = vpop.permute.xlu0 %4281
  %4283 = vrot.lane.b32.xlu0 %v3962, 32
  %v4284 = vpop.permute.xlu0 %4283
  %4285 = vrot.lane.b32.xlu0 %v3964, 32
  %v4286 = vpop.permute.xlu0 %4285
  %4287 = vrot.lane.b32.xlu0 %v3965, 32
  %v4288 = vpop.permute.xlu0 %4287
  %4289 = vrot.lane.b32.xlu0 %v3966, 32
  %v4290 = vpop.permute.xlu0 %4289
  %4291 = vrot.lane.b32.xlu0 %v3968, 32
  %v4292 = vpop.permute.xlu0 %4291
  %4293 = vrot.lane.b32.xlu0 %v3969, 32
  %v4294 = vpop.permute.xlu0 %4293
  %4295 = vrot.lane.b32.xlu0 %v3970, 32
  %v4296 = vpop.permute.xlu0 %4295
  %4297 = vrot.lane.b32.xlu0 %v3972, 32
  %v4298 = vpop.permute.xlu0 %4297
  %4299 = vrot.lane.b32.xlu0 %v3973, 32
  %v4300 = vpop.permute.xlu0 %4299
  %4301 = vrot.lane.b32.xlu0 %v3974, 32
  %v4302 = vpop.permute.xlu0 %4301
  %vm4303 = vcmask 261120
  %v4304 = vsel %vm4303, %v4256, %v4258
  %v4305 = vsel %vm4303, %v4258, %v4260
  %v4306 = vsel %vm4303, %v4260, %v4240
  %v4307 = vsel %vm4303, %v4262, %v4264
  %v4308 = vsel %vm4303, %v4264, %v4266
  %v4309 = vsel %vm4303, %v4266, %v4242
  %v4310 = vsel %vm4303, %v4268, %v4270
  %v4311 = vsel %vm4303, %v4270, %v4272
  %v4312 = vsel %vm4303, %v4272, %v4244
  %v4313 = vsel %vm4303, %v4274, %v4276
  %v4314 = vsel %vm4303, %v4276, %v4278
  %v4315 = vsel %vm4303, %v4278, %v4246
  %v4316 = vsel %vm4303, %v4280, %v4282
  %v4317 = vsel %vm4303, %v4282, %v4284
  %v4318 = vsel %vm4303, %v4284, %v4248
  %v4319 = vsel %vm4303, %v4286, %v4288
  %v4320 = vsel %vm4303, %v4288, %v4290
  %v4321 = vsel %vm4303, %v4290, %v4250
  %v4322 = vsel %vm4303, %v4292, %v4294
  %v4323 = vsel %vm4303, %v4294, %v4296
  %v4324 = vsel %vm4303, %v4296, %v4252
  %v4325 = vsel %vm4303, %v4298, %v4300
  %v4326 = vsel %vm4303, %v4300, %v4302
  %v4327 = vsel %vm4303, %v4302, %v4254
  %v4354 = vsel %vm950, %v4240, %v4256
  %v4358 = vsel %vm950, %v4242, %v4262
  %v4362 = vsel %vm950, %v4244, %v4268
  %v4366 = vsel %vm950, %v4246, %v4274
  %v4370 = vsel %vm950, %v4248, %v4280
  %v4374 = vsel %vm950, %v4250, %v4286
  %v4378 = vsel %vm950, %v4252, %v4292
  %v4382 = vsel %vm950, %v4254, %v4298
  %v4386 = vunpack.c.l.s4 1966171168
  %v4387 = vunpack.c.0.s8 %v4386
  %v4388 = vlaneseq
  %v4389 = vshrl.u32 %v4388, 7
  %v4390 = vsub.s32 %v4387, %v4389
  %v4391 = vrot.slane %v78, %v4390
  %v4392 = vcombine.high %v4391, %v4391
  %v4394 = vunpack.c.l.s4 1966171168
  %v4395 = vunpack.c.0.s8 %v4394
  %v4396 = vlaneseq
  %v4397 = vshrl.u32 %v4396, 7
  %v4398 = vsub.s32 %v4395, %v4397
  %v4399 = vrot.slane %v4391, %v4398
  %v4401 = vunpack.c.l.s4 1966171168
  %v4402 = vunpack.c.0.s8 %v4401
  %v4403 = vlaneseq
  %v4404 = vshrl.u32 %v4403, 7
  %v4405 = vsub.s32 %v4402, %v4404
  %v4406 = vrot.slane %v4392, %v4405
  %v4407 = vcombine.high %v4399, %v4399
  %v4408 = vcombine.high %v4406, %v4406
  %v4410 = vpack.i.b16 %v4399, %v4399
  %v4412 = vlaneseq
  %v4413 = vshrl.u32 %v4412, 7
  %v4414 = vsub.s32 0, %v4413
  %v4415 = vrot.slane %v4410, %v4414
  %v4417 = vpack.i.b16 %v4406, %v4406
  %v4419 = vlaneseq
  %v4420 = vshrl.u32 %v4419, 7
  %v4421 = vsub.s32 0, %v4420
  %v4422 = vrot.slane %v4417, %v4421
  %v4424 = vpack.i.b16 %v4407, %v4407
  %v4426 = vlaneseq
  %v4427 = vshrl.u32 %v4426, 7
  %v4428 = vsub.s32 0, %v4427
  %v4429 = vrot.slane %v4424, %v4428
  %v4431 = vpack.i.b16 %v4408, %v4408
  %v4433 = vlaneseq
  %v4434 = vshrl.u32 %v4433, 7
  %v4435 = vsub.s32 0, %v4434
  %v4436 = vrot.slane %v4431, %v4435
  %v4437 = vmul.bf16 %v4354, %v4415
  %v4438 = vmul.bf16 %v4304, %v4422
  %v4439 = vmul.bf16 %v4305, %v4429
  %v4440 = vmul.bf16 %v4306, %v4436
  %v4441 = vmul.bf16 %v4358, %v4415
  %v4442 = vmul.bf16 %v4307, %v4422
  %v4443 = vmul.bf16 %v4308, %v4429
  %v4444 = vmul.bf16 %v4309, %v4436
  %v4445 = vmul.bf16 %v4362, %v4415
  %v4446 = vmul.bf16 %v4310, %v4422
  %v4447 = vmul.bf16 %v4311, %v4429
  %v4448 = vmul.bf16 %v4312, %v4436
  %v4449 = vmul.bf16 %v4366, %v4415
  %v4450 = vmul.bf16 %v4313, %v4422
  %v4451 = vmul.bf16 %v4314, %v4429
  %v4452 = vmul.bf16 %v4315, %v4436
  %v4453 = vmul.bf16 %v4370, %v4415
  %v4454 = vmul.bf16 %v4316, %v4422
  %v4455 = vmul.bf16 %v4317, %v4429
  %v4456 = vmul.bf16 %v4318, %v4436
  %v4457 = vmul.bf16 %v4374, %v4415
  %v4458 = vmul.bf16 %v4319, %v4422
  %v4459 = vmul.bf16 %v4320, %v4429
  %v4460 = vmul.bf16 %v4321, %v4436
  %v4461 = vmul.bf16 %v4378, %v4415
  %v4462 = vmul.bf16 %v4322, %v4422
  %v4463 = vmul.bf16 %v4323, %v4429
  %v4464 = vmul.bf16 %v4324, %v4436
  %v4465 = vmul.bf16 %v4382, %v4415
  %v4466 = vmul.bf16 %v4325, %v4422
  %v4467 = vmul.bf16 %v4326, %v4429
  %v4468 = vmul.bf16 %v4327, %v4436
  %4469 = vrot.lane.b32.xlu0 %v3947, 30
  %v4470 = vpop.permute.xlu0 %4469
  %4471 = vrot.lane.b32.xlu0 %v3951, 30
  %v4472 = vpop.permute.xlu0 %4471
  %4473 = vrot.lane.b32.xlu0 %v3955, 30
  %v4474 = vpop.permute.xlu0 %4473
  %4475 = vrot.lane.b32.xlu0 %v3959, 30
  %v4476 = vpop.permute.xlu0 %4475
  %4477 = vrot.lane.b32.xlu0 %v3963, 30
  %v4478 = vpop.permute.xlu0 %4477
  %4479 = vrot.lane.b32.xlu0 %v3967, 30
  %v4480 = vpop.permute.xlu0 %4479
  %4481 = vrot.lane.b32.xlu0 %v3971, 30
  %v4482 = vpop.permute.xlu0 %4481
  %4483 = vrot.lane.b32.xlu0 %v3975, 30
  %v4484 = vpop.permute.xlu0 %4483
  %4485 = vrot.lane.b32.xlu0 %v3944, 30
  %v4486 = vpop.permute.xlu0 %4485
  %4487 = vrot.lane.b32.xlu0 %v3945, 30
  %v4488 = vpop.permute.xlu0 %4487
  %4489 = vrot.lane.b32.xlu0 %v3946, 30
  %v4490 = vpop.permute.xlu0 %4489
  %4491 = vrot.lane.b32.xlu0 %v3948, 30
  %v4492 = vpop.permute.xlu0 %4491
  %4493 = vrot.lane.b32.xlu0 %v3949, 30
  %v4494 = vpop.permute.xlu0 %4493
  %4495 = vrot.lane.b32.xlu0 %v3950, 30
  %v4496 = vpop.permute.xlu0 %4495
  %4497 = vrot.lane.b32.xlu0 %v3952, 30
  %v4498 = vpop.permute.xlu0 %4497
  %4499 = vrot.lane.b32.xlu0 %v3953, 30
  %v4500 = vpop.permute.xlu0 %4499
  %4501 = vrot.lane.b32.xlu0 %v3954, 30
  %v4502 = vpop.permute.xlu0 %4501
  %4503 = vrot.lane.b32.xlu0 %v3956, 30
  %v4504 = vpop.permute.xlu0 %4503
  %4505 = vrot.lane.b32.xlu0 %v3957, 30
  %v4506 = vpop.permute.xlu0 %4505
  %4507 = vrot.lane.b32.xlu0 %v3958, 30
  %v4508 = vpop.permute.xlu0 %4507
  %4509 = vrot.lane.b32.xlu0 %v3960, 30
  %v4510 = vpop.permute.xlu0 %4509
  %4511 = vrot.lane.b32.xlu0 %v3961, 30
  %v4512 = vpop.permute.xlu0 %4511
  %4513 = vrot.lane.b32.xlu0 %v3962, 30
  %v4514 = vpop.permute.xlu0 %4513
  %4515 = vrot.lane.b32.xlu0 %v3964, 30
  %v4516 = vpop.permute.xlu0 %4515
  %4517 = vrot.lane.b32.xlu0 %v3965, 30
  %v4518 = vpop.permute.xlu0 %4517
  %4519 = vrot.lane.b32.xlu0 %v3966, 30
  %v4520 = vpop.permute.xlu0 %4519
  %4521 = vrot.lane.b32.xlu0 %v3968, 30
  %v4522 = vpop.permute.xlu0 %4521
  %4523 = vrot.lane.b32.xlu0 %v3969, 30
  %v4524 = vpop.permute.xlu0 %4523
  %4525 = vrot.lane.b32.xlu0 %v3970, 30
  %v4526 = vpop.permute.xlu0 %4525
  %4527 = vrot.lane.b32.xlu0 %v3972, 30
  %v4528 = vpop.permute.xlu0 %4527
  %4529 = vrot.lane.b32.xlu0 %v3973, 30
  %v4530 = vpop.permute.xlu0 %4529
  %4531 = vrot.lane.b32.xlu0 %v3974, 30
  %v4532 = vpop.permute.xlu0 %4531
  %vm4533 = vcmask 244736
  %v4534 = vsel %vm4533, %v4486, %v4488
  %v4535 = vsel %vm4533, %v4488, %v4490
  %v4536 = vsel %vm4533, %v4490, %v4470
  %v4537 = vsel %vm4533, %v4492, %v4494
  %v4538 = vsel %vm4533, %v4494, %v4496
  %v4539 = vsel %vm4533, %v4496, %v4472
  %v4540 = vsel %vm4533, %v4498, %v4500
  %v4541 = vsel %vm4533, %v4500, %v4502
  %v4542 = vsel %vm4533, %v4502, %v4474
  %v4543 = vsel %vm4533, %v4504, %v4506
  %v4544 = vsel %vm4533, %v4506, %v4508
  %v4545 = vsel %vm4533, %v4508, %v4476
  %v4546 = vsel %vm4533, %v4510, %v4512
  %v4547 = vsel %vm4533, %v4512, %v4514
  %v4548 = vsel %vm4533, %v4514, %v4478
  %v4549 = vsel %vm4533, %v4516, %v4518
  %v4550 = vsel %vm4533, %v4518, %v4520
  %v4551 = vsel %vm4533, %v4520, %v4480
  %v4552 = vsel %vm4533, %v4522, %v4524
  %v4553 = vsel %vm4533, %v4524, %v4526
  %v4554 = vsel %vm4533, %v4526, %v4482
  %v4555 = vsel %vm4533, %v4528, %v4530
  %v4556 = vsel %vm4533, %v4530, %v4532
  %v4557 = vsel %vm4533, %v4532, %v4484
  %v4584 = vsel %vm351, %v4470, %v4486
  %v4588 = vsel %vm351, %v4472, %v4492
  %v4592 = vsel %vm351, %v4474, %v4498
  %v4596 = vsel %vm351, %v4476, %v4504
  %v4600 = vsel %vm351, %v4478, %v4510
  %v4604 = vsel %vm351, %v4480, %v4516
  %v4608 = vsel %vm351, %v4482, %v4522
  %v4612 = vsel %vm351, %v4484, %v4528
  %v4616 = vunpack.c.l.s4 1966171168
  %v4617 = vunpack.c.0.s8 %v4616
  %v4618 = vlaneseq
  %v4619 = vshrl.u32 %v4618, 7
  %v4620 = vsub.s32 %v4617, %v4619
  %v4621 = vrot.slane %v79, %v4620
  %v4622 = vcombine.high %v4621, %v4621
  %v4624 = vunpack.c.l.s4 1966171168
  %v4625 = vunpack.c.0.s8 %v4624
  %v4626 = vlaneseq
  %v4627 = vshrl.u32 %v4626, 7
  %v4628 = vsub.s32 %v4625, %v4627
  %v4629 = vrot.slane %v4621, %v4628
  %v4631 = vunpack.c.l.s4 1966171168
  %v4632 = vunpack.c.0.s8 %v4631
  %v4633 = vlaneseq
  %v4634 = vshrl.u32 %v4633, 7
  %v4635 = vsub.s32 %v4632, %v4634
  %v4636 = vrot.slane %v4622, %v4635
  %v4637 = vcombine.high %v4629, %v4629
  %v4638 = vcombine.high %v4636, %v4636
  %v4640 = vpack.i.b16 %v4629, %v4629
  %v4642 = vlaneseq
  %v4643 = vshrl.u32 %v4642, 7
  %v4644 = vsub.s32 0, %v4643
  %v4645 = vrot.slane %v4640, %v4644
  %v4647 = vpack.i.b16 %v4636, %v4636
  %v4649 = vlaneseq
  %v4650 = vshrl.u32 %v4649, 7
  %v4651 = vsub.s32 0, %v4650
  %v4652 = vrot.slane %v4647, %v4651
  %v4654 = vpack.i.b16 %v4637, %v4637
  %v4656 = vlaneseq
  %v4657 = vshrl.u32 %v4656, 7
  %v4658 = vsub.s32 0, %v4657
  %v4659 = vrot.slane %v4654, %v4658
  %v4661 = vpack.i.b16 %v4638, %v4638
  %v4663 = vlaneseq
  %v4664 = vshrl.u32 %v4663, 7
  %v4665 = vsub.s32 0, %v4664
  %v4666 = vrot.slane %v4661, %v4665
  %v4667 = vmul.bf16 %v4584, %v4645
  %v4668 = vmul.bf16 %v4534, %v4652
  %v4669 = vmul.bf16 %v4535, %v4659
  %v4670 = vmul.bf16 %v4536, %v4666
  %v4671 = vmul.bf16 %v4588, %v4645
  %v4672 = vmul.bf16 %v4537, %v4652
  %v4673 = vmul.bf16 %v4538, %v4659
  %v4674 = vmul.bf16 %v4539, %v4666
  %v4675 = vmul.bf16 %v4592, %v4645
  %v4676 = vmul.bf16 %v4540, %v4652
  %v4677 = vmul.bf16 %v4541, %v4659
  %v4678 = vmul.bf16 %v4542, %v4666
  %v4679 = vmul.bf16 %v4596, %v4645
  %v4680 = vmul.bf16 %v4543, %v4652
  %v4681 = vmul.bf16 %v4544, %v4659
  %v4682 = vmul.bf16 %v4545, %v4666
  %v4683 = vmul.bf16 %v4600, %v4645
  %v4684 = vmul.bf16 %v4546, %v4652
  %v4685 = vmul.bf16 %v4547, %v4659
  %v4686 = vmul.bf16 %v4548, %v4666
  %v4687 = vmul.bf16 %v4604, %v4645
  %v4688 = vmul.bf16 %v4549, %v4652
  %v4689 = vmul.bf16 %v4550, %v4659
  %v4690 = vmul.bf16 %v4551, %v4666
  %v4691 = vmul.bf16 %v4608, %v4645
  %v4692 = vmul.bf16 %v4552, %v4652
  %v4693 = vmul.bf16 %v4553, %v4659
  %v4694 = vmul.bf16 %v4554, %v4666
  %v4695 = vmul.bf16 %v4612, %v4645
  %v4696 = vmul.bf16 %v4555, %v4652
  %v4697 = vmul.bf16 %v4556, %v4659
  %v4698 = vmul.bf16 %v4557, %v4666
  %4699 = vrot.lane.b32.xlu0 %v3947, 2
  %v4700 = vpop.permute.xlu0 %4699
  %4701 = vrot.lane.b32.xlu0 %v3951, 2
  %v4702 = vpop.permute.xlu0 %4701
  %4703 = vrot.lane.b32.xlu0 %v3955, 2
  %v4704 = vpop.permute.xlu0 %4703
  %4705 = vrot.lane.b32.xlu0 %v3959, 2
  %v4706 = vpop.permute.xlu0 %4705
  %4707 = vrot.lane.b32.xlu0 %v3963, 2
  %v4708 = vpop.permute.xlu0 %4707
  %4709 = vrot.lane.b32.xlu0 %v3967, 2
  %v4710 = vpop.permute.xlu0 %4709
  %4711 = vrot.lane.b32.xlu0 %v3971, 2
  %v4712 = vpop.permute.xlu0 %4711
  %4713 = vrot.lane.b32.xlu0 %v3975, 2
  %v4714 = vpop.permute.xlu0 %4713
  %4715 = vrot.lane.b32.xlu0 %v3944, 2
  %v4716 = vpop.permute.xlu0 %4715
  %4717 = vrot.lane.b32.xlu0 %v3945, 2
  %v4718 = vpop.permute.xlu0 %4717
  %4719 = vrot.lane.b32.xlu0 %v3946, 2
  %v4720 = vpop.permute.xlu0 %4719
  %4721 = vrot.lane.b32.xlu0 %v3948, 2
  %v4722 = vpop.permute.xlu0 %4721
  %4723 = vrot.lane.b32.xlu0 %v3949, 2
  %v4724 = vpop.permute.xlu0 %4723
  %4725 = vrot.lane.b32.xlu0 %v3950, 2
  %v4726 = vpop.permute.xlu0 %4725
  %4727 = vrot.lane.b32.xlu0 %v3952, 2
  %v4728 = vpop.permute.xlu0 %4727
  %4729 = vrot.lane.b32.xlu0 %v3953, 2
  %v4730 = vpop.permute.xlu0 %4729
  %4731 = vrot.lane.b32.xlu0 %v3954, 2
  %v4732 = vpop.permute.xlu0 %4731
  %4733 = vrot.lane.b32.xlu0 %v3956, 2
  %v4734 = vpop.permute.xlu0 %4733
  %4735 = vrot.lane.b32.xlu0 %v3957, 2
  %v4736 = vpop.permute.xlu0 %4735
  %4737 = vrot.lane.b32.xlu0 %v3958, 2
  %v4738 = vpop.permute.xlu0 %4737
  %4739 = vrot.lane.b32.xlu0 %v3960, 2
  %v4740 = vpop.permute.xlu0 %4739
  %4741 = vrot.lane.b32.xlu0 %v3961, 2
  %v4742 = vpop.permute.xlu0 %4741
  %4743 = vrot.lane.b32.xlu0 %v3962, 2
  %v4744 = vpop.permute.xlu0 %4743
  %4745 = vrot.lane.b32.xlu0 %v3964, 2
  %v4746 = vpop.permute.xlu0 %4745
  %4747 = vrot.lane.b32.xlu0 %v3965, 2
  %v4748 = vpop.permute.xlu0 %4747
  %4749 = vrot.lane.b32.xlu0 %v3966, 2
  %v4750 = vpop.permute.xlu0 %4749
  %4751 = vrot.lane.b32.xlu0 %v3968, 2
  %v4752 = vpop.permute.xlu0 %4751
  %4753 = vrot.lane.b32.xlu0 %v3969, 2
  %v4754 = vpop.permute.xlu0 %4753
  %4755 = vrot.lane.b32.xlu0 %v3970, 2
  %v4756 = vpop.permute.xlu0 %4755
  %4757 = vrot.lane.b32.xlu0 %v3972, 2
  %v4758 = vpop.permute.xlu0 %4757
  %4759 = vrot.lane.b32.xlu0 %v3973, 2
  %v4760 = vpop.permute.xlu0 %4759
  %4761 = vrot.lane.b32.xlu0 %v3974, 2
  %v4762 = vpop.permute.xlu0 %4761
  %vm4763 = vcmask 15360
  %v4764 = vsel %vm4763, %v4716, %v4718
  %v4765 = vsel %vm4763, %v4718, %v4720
  %v4766 = vsel %vm4763, %v4720, %v4700
  %v4767 = vsel %vm4763, %v4722, %v4724
  %v4768 = vsel %vm4763, %v4724, %v4726
  %v4769 = vsel %vm4763, %v4726, %v4702
  %v4770 = vsel %vm4763, %v4728, %v4730
  %v4771 = vsel %vm4763, %v4730, %v4732
  %v4772 = vsel %vm4763, %v4732, %v4704
  %v4773 = vsel %vm4763, %v4734, %v4736
  %v4774 = vsel %vm4763, %v4736, %v4738
  %v4775 = vsel %vm4763, %v4738, %v4706
  %v4776 = vsel %vm4763, %v4740, %v4742
  %v4777 = vsel %vm4763, %v4742, %v4744
  %v4778 = vsel %vm4763, %v4744, %v4708
  %v4779 = vsel %vm4763, %v4746, %v4748
  %v4780 = vsel %vm4763, %v4748, %v4750
  %v4781 = vsel %vm4763, %v4750, %v4710
  %v4782 = vsel %vm4763, %v4752, %v4754
  %v4783 = vsel %vm4763, %v4754, %v4756
  %v4784 = vsel %vm4763, %v4756, %v4712
  %v4785 = vsel %vm4763, %v4758, %v4760
  %v4786 = vsel %vm4763, %v4760, %v4762
  %v4787 = vsel %vm4763, %v4762, %v4714
  %v4814 = vsel %vm281, %v4700, %v4716
  %v4818 = vsel %vm281, %v4702, %v4722
  %v4822 = vsel %vm281, %v4704, %v4728
  %v4826 = vsel %vm281, %v4706, %v4734
  %v4830 = vsel %vm281, %v4708, %v4740
  %v4834 = vsel %vm281, %v4710, %v4746
  %v4838 = vsel %vm281, %v4712, %v4752
  %v4842 = vsel %vm281, %v4714, %v4758
  %v4846 = vunpack.c.l.s4 1966171168
  %v4847 = vunpack.c.0.s8 %v4846
  %v4848 = vlaneseq
  %v4849 = vshrl.u32 %v4848, 7
  %v4850 = vsub.s32 %v4847, %v4849
  %v4851 = vrot.slane %v80, %v4850
  %v4852 = vcombine.high %v4851, %v4851
  %v4854 = vunpack.c.l.s4 1966171168
  %v4855 = vunpack.c.0.s8 %v4854
  %v4856 = vlaneseq
  %v4857 = vshrl.u32 %v4856, 7
  %v4858 = vsub.s32 %v4855, %v4857
  %v4859 = vrot.slane %v4851, %v4858
  %v4861 = vunpack.c.l.s4 1966171168
  %v4862 = vunpack.c.0.s8 %v4861
  %v4863 = vlaneseq
  %v4864 = vshrl.u32 %v4863, 7
  %v4865 = vsub.s32 %v4862, %v4864
  %v4866 = vrot.slane %v4852, %v4865
  %v4867 = vcombine.high %v4859, %v4859
  %v4868 = vcombine.high %v4866, %v4866
  %v4870 = vpack.i.b16 %v4859, %v4859
  %v4872 = vlaneseq
  %v4873 = vshrl.u32 %v4872, 7
  %v4874 = vsub.s32 0, %v4873
  %v4875 = vrot.slane %v4870, %v4874
  %v4877 = vpack.i.b16 %v4866, %v4866
  %v4879 = vlaneseq
  %v4880 = vshrl.u32 %v4879, 7
  %v4881 = vsub.s32 0, %v4880
  %v4882 = vrot.slane %v4877, %v4881
  %v4884 = vpack.i.b16 %v4867, %v4867
  %v4886 = vlaneseq
  %v4887 = vshrl.u32 %v4886, 7
  %v4888 = vsub.s32 0, %v4887
  %v4889 = vrot.slane %v4884, %v4888
  %v4891 = vpack.i.b16 %v4868, %v4868
  %v4893 = vlaneseq
  %v4894 = vshrl.u32 %v4893, 7
  %v4895 = vsub.s32 0, %v4894
  %v4896 = vrot.slane %v4891, %v4895
  %v4897 = vmul.bf16 %v4814, %v4875
  %v4898 = vmul.bf16 %v4764, %v4882
  %v4899 = vmul.bf16 %v4765, %v4889
  %v4900 = vmul.bf16 %v4766, %v4896
  %v4901 = vmul.bf16 %v4818, %v4875
  %v4902 = vmul.bf16 %v4767, %v4882
  %v4903 = vmul.bf16 %v4768, %v4889
  %v4904 = vmul.bf16 %v4769, %v4896
  %v4905 = vmul.bf16 %v4822, %v4875
  %v4906 = vmul.bf16 %v4770, %v4882
  %v4907 = vmul.bf16 %v4771, %v4889
  %v4908 = vmul.bf16 %v4772, %v4896
  %v4909 = vmul.bf16 %v4826, %v4875
  %v4910 = vmul.bf16 %v4773, %v4882
  %v4911 = vmul.bf16 %v4774, %v4889
  %v4912 = vmul.bf16 %v4775, %v4896
  %v4913 = vmul.bf16 %v4830, %v4875
  %v4914 = vmul.bf16 %v4776, %v4882
  %v4915 = vmul.bf16 %v4777, %v4889
  %v4916 = vmul.bf16 %v4778, %v4896
  %v4917 = vmul.bf16 %v4834, %v4875
  %v4918 = vmul.bf16 %v4779, %v4882
  %v4919 = vmul.bf16 %v4780, %v4889
  %v4920 = vmul.bf16 %v4781, %v4896
  %v4921 = vmul.bf16 %v4838, %v4875
  %v4922 = vmul.bf16 %v4782, %v4882
  %v4923 = vmul.bf16 %v4783, %v4889
  %v4924 = vmul.bf16 %v4784, %v4896
  %v4925 = vmul.bf16 %v4842, %v4875
  %v4926 = vmul.bf16 %v4785, %v4882
  %v4927 = vmul.bf16 %v4786, %v4889
  %v4928 = vmul.bf16 %v4787, %v4896
  %4929 = vrot.lane.b32.xlu0 %v3944, 126
  %v4930 = vpop.permute.xlu0 %4929
  %4931 = vrot.lane.b32.xlu0 %v3945, 126
  %v4932 = vpop.permute.xlu0 %4931
  %4933 = vrot.lane.b32.xlu0 %v3946, 126
  %v4934 = vpop.permute.xlu0 %4933
  %4935 = vrot.lane.b32.xlu0 %v3947, 126
  %v4936 = vpop.permute.xlu0 %4935
  %4937 = vrot.lane.b32.xlu0 %v3948, 126
  %v4938 = vpop.permute.xlu0 %4937
  %4939 = vrot.lane.b32.xlu0 %v3949, 126
  %v4940 = vpop.permute.xlu0 %4939
  %4941 = vrot.lane.b32.xlu0 %v3950, 126
  %v4942 = vpop.permute.xlu0 %4941
  %4943 = vrot.lane.b32.xlu0 %v3951, 126
  %v4944 = vpop.permute.xlu0 %4943
  %4945 = vrot.lane.b32.xlu0 %v3952, 126
  %v4946 = vpop.permute.xlu0 %4945
  %4947 = vrot.lane.b32.xlu0 %v3953, 126
  %v4948 = vpop.permute.xlu0 %4947
  %4949 = vrot.lane.b32.xlu0 %v3954, 126
  %v4950 = vpop.permute.xlu0 %4949
  %4951 = vrot.lane.b32.xlu0 %v3955, 126
  %v4952 = vpop.permute.xlu0 %4951
  %4953 = vrot.lane.b32.xlu0 %v3956, 126
  %v4954 = vpop.permute.xlu0 %4953
  %4955 = vrot.lane.b32.xlu0 %v3957, 126
  %v4956 = vpop.permute.xlu0 %4955
  %4957 = vrot.lane.b32.xlu0 %v3958, 126
  %v4958 = vpop.permute.xlu0 %4957
  %4959 = vrot.lane.b32.xlu0 %v3959, 126
  %v4960 = vpop.permute.xlu0 %4959
  %4961 = vrot.lane.b32.xlu0 %v3960, 126
  %v4962 = vpop.permute.xlu0 %4961
  %4963 = vrot.lane.b32.xlu0 %v3961, 126
  %v4964 = vpop.permute.xlu0 %4963
  %4965 = vrot.lane.b32.xlu0 %v3962, 126
  %v4966 = vpop.permute.xlu0 %4965
  %4967 = vrot.lane.b32.xlu0 %v3963, 126
  %v4968 = vpop.permute.xlu0 %4967
  %4969 = vrot.lane.b32.xlu0 %v3964, 126
  %v4970 = vpop.permute.xlu0 %4969
  %4971 = vrot.lane.b32.xlu0 %v3965, 126
  %v4972 = vpop.permute.xlu0 %4971
  %4973 = vrot.lane.b32.xlu0 %v3966, 126
  %v4974 = vpop.permute.xlu0 %4973
  %4975 = vrot.lane.b32.xlu0 %v3967, 126
  %v4976 = vpop.permute.xlu0 %4975
  %4977 = vrot.lane.b32.xlu0 %v3968, 126
  %v4978 = vpop.permute.xlu0 %4977
  %4979 = vrot.lane.b32.xlu0 %v3969, 126
  %v4980 = vpop.permute.xlu0 %4979
  %4981 = vrot.lane.b32.xlu0 %v3970, 126
  %v4982 = vpop.permute.xlu0 %4981
  %4983 = vrot.lane.b32.xlu0 %v3971, 126
  %v4984 = vpop.permute.xlu0 %4983
  %4985 = vrot.lane.b32.xlu0 %v3972, 126
  %v4986 = vpop.permute.xlu0 %4985
  %4987 = vrot.lane.b32.xlu0 %v3973, 126
  %v4988 = vpop.permute.xlu0 %4987
  %4989 = vrot.lane.b32.xlu0 %v3974, 126
  %v4990 = vpop.permute.xlu0 %4989
  %4991 = vrot.lane.b32.xlu0 %v3975, 126
  %v4992 = vpop.permute.xlu0 %4991
  %vm4993 = vcmask 1031168
  %v4994 = vsel %vm4993, %v4930, %v4932
  %v4995 = vsel %vm4993, %v4932, %v4934
  %v4996 = vsel %vm4993, %v4934, %v4936
  %v4997 = vsel %vm4993, %v4938, %v4940
  %v4998 = vsel %vm4993, %v4940, %v4942
  %v4999 = vsel %vm4993, %v4942, %v4944
  %v5000 = vsel %vm4993, %v4946, %v4948
  %v5001 = vsel %vm4993, %v4948, %v4950
  %v5002 = vsel %vm4993, %v4950, %v4952
  %v5003 = vsel %vm4993, %v4954, %v4956
  %v5004 = vsel %vm4993, %v4956, %v4958
  %v5005 = vsel %vm4993, %v4958, %v4960
  %v5006 = vsel %vm4993, %v4962, %v4964
  %v5007 = vsel %vm4993, %v4964, %v4966
  %v5008 = vsel %vm4993, %v4966, %v4968
  %v5009 = vsel %vm4993, %v4970, %v4972
  %v5010 = vsel %vm4993, %v4972, %v4974
  %v5011 = vsel %vm4993, %v4974, %v4976
  %v5012 = vsel %vm4993, %v4978, %v4980
  %v5013 = vsel %vm4993, %v4980, %v4982
  %v5014 = vsel %vm4993, %v4982, %v4984
  %v5015 = vsel %vm4993, %v4986, %v4988
  %v5016 = vsel %vm4993, %v4988, %v4990
  %v5017 = vsel %vm4993, %v4990, %v4992
  %v5044 = vsel %vm1780, %v4936, %v4930
  %v5048 = vsel %vm1780, %v4944, %v4938
  %v5052 = vsel %vm1780, %v4952, %v4946
  %v5056 = vsel %vm1780, %v4960, %v4954
  %v5060 = vsel %vm1780, %v4968, %v4962
  %v5064 = vsel %vm1780, %v4976, %v4970
  %v5068 = vsel %vm1780, %v4984, %v4978
  %v5072 = vsel %vm1780, %v4992, %v4986
  %v5076 = vunpack.c.l.s4 1966171168
  %v5077 = vunpack.c.0.s8 %v5076
  %v5078 = vlaneseq
  %v5079 = vshrl.u32 %v5078, 7
  %v5080 = vsub.s32 %v5077, %v5079
  %v5081 = vrot.slane %v81, %v5080
  %v5082 = vcombine.high %v5081, %v5081
  %v5084 = vunpack.c.l.s4 1966171168
  %v5085 = vunpack.c.0.s8 %v5084
  %v5086 = vlaneseq
  %v5087 = vshrl.u32 %v5086, 7
  %v5088 = vsub.s32 %v5085, %v5087
  %v5089 = vrot.slane %v5081, %v5088
  %v5091 = vunpack.c.l.s4 1966171168
  %v5092 = vunpack.c.0.s8 %v5091
  %v5093 = vlaneseq
  %v5094 = vshrl.u32 %v5093, 7
  %v5095 = vsub.s32 %v5092, %v5094
  %v5096 = vrot.slane %v5082, %v5095
  %v5097 = vcombine.high %v5089, %v5089
  %v5098 = vcombine.high %v5096, %v5096
  %v5100 = vpack.i.b16 %v5089, %v5089
  %v5102 = vlaneseq
  %v5103 = vshrl.u32 %v5102, 7
  %v5104 = vsub.s32 0, %v5103
  %v5105 = vrot.slane %v5100, %v5104
  %v5107 = vpack.i.b16 %v5096, %v5096
  %v5109 = vlaneseq
  %v5110 = vshrl.u32 %v5109, 7
  %v5111 = vsub.s32 0, %v5110
  %v5112 = vrot.slane %v5107, %v5111
  %v5114 = vpack.i.b16 %v5097, %v5097
  %v5116 = vlaneseq
  %v5117 = vshrl.u32 %v5116, 7
  %v5118 = vsub.s32 0, %v5117
  %v5119 = vrot.slane %v5114, %v5118
  %v5121 = vpack.i.b16 %v5098, %v5098
  %v5123 = vlaneseq
  %v5124 = vshrl.u32 %v5123, 7
  %v5125 = vsub.s32 0, %v5124
  %v5126 = vrot.slane %v5121, %v5125
  %v5127 = vmul.bf16 %v4994, %v5105
  %v5128 = vmul.bf16 %v4995, %v5112
  %v5129 = vmul.bf16 %v4996, %v5119
  %v5130 = vmul.bf16 %v5044, %v5126
  %v5131 = vmul.bf16 %v4997, %v5105
  %v5132 = vmul.bf16 %v4998, %v5112
  %v5133 = vmul.bf16 %v4999, %v5119
  %v5134 = vmul.bf16 %v5048, %v5126
  %v5135 = vmul.bf16 %v5000, %v5105
  %v5136 = vmul.bf16 %v5001, %v5112
  %v5137 = vmul.bf16 %v5002, %v5119
  %v5138 = vmul.bf16 %v5052, %v5126
  %v5139 = vmul.bf16 %v5003, %v5105
  %v5140 = vmul.bf16 %v5004, %v5112
  %v5141 = vmul.bf16 %v5005, %v5119
  %v5142 = vmul.bf16 %v5056, %v5126
  %v5143 = vmul.bf16 %v5006, %v5105
  %v5144 = vmul.bf16 %v5007, %v5112
  %v5145 = vmul.bf16 %v5008, %v5119
  %v5146 = vmul.bf16 %v5060, %v5126
  %v5147 = vmul.bf16 %v5009, %v5105
  %v5148 = vmul.bf16 %v5010, %v5112
  %v5149 = vmul.bf16 %v5011, %v5119
  %v5150 = vmul.bf16 %v5064, %v5126
  %v5151 = vmul.bf16 %v5012, %v5105
  %v5152 = vmul.bf16 %v5013, %v5112
  %v5153 = vmul.bf16 %v5014, %v5119
  %v5154 = vmul.bf16 %v5068, %v5126
  %v5155 = vmul.bf16 %v5015, %v5105
  %v5156 = vmul.bf16 %v5016, %v5112
  %v5157 = vmul.bf16 %v5017, %v5119
  %v5158 = vmul.bf16 %v5072, %v5126
  %5159 = vrot.lane.b32.xlu0 %v3944, 98
  %v5160 = vpop.permute.xlu0 %5159
  %5161 = vrot.lane.b32.xlu0 %v3945, 98
  %v5162 = vpop.permute.xlu0 %5161
  %5163 = vrot.lane.b32.xlu0 %v3946, 98
  %v5164 = vpop.permute.xlu0 %5163
  %5165 = vrot.lane.b32.xlu0 %v3947, 98
  %v5166 = vpop.permute.xlu0 %5165
  %5167 = vrot.lane.b32.xlu0 %v3948, 98
  %v5168 = vpop.permute.xlu0 %5167
  %5169 = vrot.lane.b32.xlu0 %v3949, 98
  %v5170 = vpop.permute.xlu0 %5169
  %5171 = vrot.lane.b32.xlu0 %v3950, 98
  %v5172 = vpop.permute.xlu0 %5171
  %5173 = vrot.lane.b32.xlu0 %v3951, 98
  %v5174 = vpop.permute.xlu0 %5173
  %5175 = vrot.lane.b32.xlu0 %v3952, 98
  %v5176 = vpop.permute.xlu0 %5175
  %5177 = vrot.lane.b32.xlu0 %v3953, 98
  %v5178 = vpop.permute.xlu0 %5177
  %5179 = vrot.lane.b32.xlu0 %v3954, 98
  %v5180 = vpop.permute.xlu0 %5179
  %5181 = vrot.lane.b32.xlu0 %v3955, 98
  %v5182 = vpop.permute.xlu0 %5181
  %5183 = vrot.lane.b32.xlu0 %v3956, 98
  %v5184 = vpop.permute.xlu0 %5183
  %5185 = vrot.lane.b32.xlu0 %v3957, 98
  %v5186 = vpop.permute.xlu0 %5185
  %5187 = vrot.lane.b32.xlu0 %v3958, 98
  %v5188 = vpop.permute.xlu0 %5187
  %5189 = vrot.lane.b32.xlu0 %v3959, 98
  %v5190 = vpop.permute.xlu0 %5189
  %5191 = vrot.lane.b32.xlu0 %v3960, 98
  %v5192 = vpop.permute.xlu0 %5191
  %5193 = vrot.lane.b32.xlu0 %v3961, 98
  %v5194 = vpop.permute.xlu0 %5193
  %5195 = vrot.lane.b32.xlu0 %v3962, 98
  %v5196 = vpop.permute.xlu0 %5195
  %5197 = vrot.lane.b32.xlu0 %v3963, 98
  %v5198 = vpop.permute.xlu0 %5197
  %5199 = vrot.lane.b32.xlu0 %v3964, 98
  %v5200 = vpop.permute.xlu0 %5199
  %5201 = vrot.lane.b32.xlu0 %v3965, 98
  %v5202 = vpop.permute.xlu0 %5201
  %5203 = vrot.lane.b32.xlu0 %v3966, 98
  %v5204 = vpop.permute.xlu0 %5203
  %5205 = vrot.lane.b32.xlu0 %v3967, 98
  %v5206 = vpop.permute.xlu0 %5205
  %5207 = vrot.lane.b32.xlu0 %v3968, 98
  %v5208 = vpop.permute.xlu0 %5207
  %5209 = vrot.lane.b32.xlu0 %v3969, 98
  %v5210 = vpop.permute.xlu0 %5209
  %5211 = vrot.lane.b32.xlu0 %v3970, 98
  %v5212 = vpop.permute.xlu0 %5211
  %5213 = vrot.lane.b32.xlu0 %v3971, 98
  %v5214 = vpop.permute.xlu0 %5213
  %5215 = vrot.lane.b32.xlu0 %v3972, 98
  %v5216 = vpop.permute.xlu0 %5215
  %5217 = vrot.lane.b32.xlu0 %v3973, 98
  %v5218 = vpop.permute.xlu0 %5217
  %5219 = vrot.lane.b32.xlu0 %v3974, 98
  %v5220 = vpop.permute.xlu0 %5219
  %5221 = vrot.lane.b32.xlu0 %v3975, 98
  %v5222 = vpop.permute.xlu0 %5221
  %vm5223 = vcmask 801792
  %v5224 = vsel %vm5223, %v5160, %v5162
  %v5225 = vsel %vm5223, %v5162, %v5164
  %v5226 = vsel %vm5223, %v5164, %v5166
  %v5227 = vsel %vm5223, %v5168, %v5170
  %v5228 = vsel %vm5223, %v5170, %v5172
  %v5229 = vsel %vm5223, %v5172, %v5174
  %v5230 = vsel %vm5223, %v5176, %v5178
  %v5231 = vsel %vm5223, %v5178, %v5180
  %v5232 = vsel %vm5223, %v5180, %v5182
  %v5233 = vsel %vm5223, %v5184, %v5186
  %v5234 = vsel %vm5223, %v5186, %v5188
  %v5235 = vsel %vm5223, %v5188, %v5190
  %v5236 = vsel %vm5223, %v5192, %v5194
  %v5237 = vsel %vm5223, %v5194, %v5196
  %v5238 = vsel %vm5223, %v5196, %v5198
  %v5239 = vsel %vm5223, %v5200, %v5202
  %v5240 = vsel %vm5223, %v5202, %v5204
  %v5241 = vsel %vm5223, %v5204, %v5206
  %v5242 = vsel %vm5223, %v5208, %v5210
  %v5243 = vsel %vm5223, %v5210, %v5212
  %v5244 = vsel %vm5223, %v5212, %v5214
  %v5245 = vsel %vm5223, %v5216, %v5218
  %v5246 = vsel %vm5223, %v5218, %v5220
  %v5247 = vsel %vm5223, %v5220, %v5222
  %vm5272 = vcmask 801792
  %v5275 = vsel %vm5272, %v5166, %v5160
  %v5279 = vsel %vm5272, %v5174, %v5168
  %v5283 = vsel %vm5272, %v5182, %v5176
  %v5287 = vsel %vm5272, %v5190, %v5184
  %v5291 = vsel %vm5272, %v5198, %v5192
  %v5295 = vsel %vm5272, %v5206, %v5200
  %v5299 = vsel %vm5272, %v5214, %v5208
  %v5303 = vsel %vm5272, %v5222, %v5216
  %v5307 = vunpack.c.l.s4 1966171168
  %v5308 = vunpack.c.0.s8 %v5307
  %v5309 = vlaneseq
  %v5310 = vshrl.u32 %v5309, 7
  %v5311 = vsub.s32 %v5308, %v5310
  %v5312 = vrot.slane %v82, %v5311
  %v5313 = vcombine.high %v5312, %v5312
  %v5315 = vunpack.c.l.s4 1966171168
  %v5316 = vunpack.c.0.s8 %v5315
  %v5317 = vlaneseq
  %v5318 = vshrl.u32 %v5317, 7
  %v5319 = vsub.s32 %v5316, %v5318
  %v5320 = vrot.slane %v5312, %v5319
  %v5322 = vunpack.c.l.s4 1966171168
  %v5323 = vunpack.c.0.s8 %v5322
  %v5324 = vlaneseq
  %v5325 = vshrl.u32 %v5324, 7
  %v5326 = vsub.s32 %v5323, %v5325
  %v5327 = vrot.slane %v5313, %v5326
  %v5328 = vcombine.high %v5320, %v5320
  %v5329 = vcombine.high %v5327, %v5327
  %v5331 = vpack.i.b16 %v5320, %v5320
  %v5333 = vlaneseq
  %v5334 = vshrl.u32 %v5333, 7
  %v5335 = vsub.s32 0, %v5334
  %v5336 = vrot.slane %v5331, %v5335
  %v5338 = vpack.i.b16 %v5327, %v5327
  %v5340 = vlaneseq
  %v5341 = vshrl.u32 %v5340, 7
  %v5342 = vsub.s32 0, %v5341
  %v5343 = vrot.slane %v5338, %v5342
  %v5345 = vpack.i.b16 %v5328, %v5328
  %v5347 = vlaneseq
  %v5348 = vshrl.u32 %v5347, 7
  %v5349 = vsub.s32 0, %v5348
  %v5350 = vrot.slane %v5345, %v5349
  %v5352 = vpack.i.b16 %v5329, %v5329
  %v5354 = vlaneseq
  %v5355 = vshrl.u32 %v5354, 7
  %v5356 = vsub.s32 0, %v5355
  %v5357 = vrot.slane %v5352, %v5356
  %v5358 = vmul.bf16 %v5224, %v5336
  %v5359 = vmul.bf16 %v5225, %v5343
  %v5360 = vmul.bf16 %v5226, %v5350
  %v5361 = vmul.bf16 %v5275, %v5357
  %v5362 = vmul.bf16 %v5227, %v5336
  %v5363 = vmul.bf16 %v5228, %v5343
  %v5364 = vmul.bf16 %v5229, %v5350
  %v5365 = vmul.bf16 %v5279, %v5357
  %v5366 = vmul.bf16 %v5230, %v5336
  %v5367 = vmul.bf16 %v5231, %v5343
  %v5368 = vmul.bf16 %v5232, %v5350
  %v5369 = vmul.bf16 %v5283, %v5357
  %v5370 = vmul.bf16 %v5233, %v5336
  %v5371 = vmul.bf16 %v5234, %v5343
  %v5372 = vmul.bf16 %v5235, %v5350
  %v5373 = vmul.bf16 %v5287, %v5357
  %v5374 = vmul.bf16 %v5236, %v5336
  %v5375 = vmul.bf16 %v5237, %v5343
  %v5376 = vmul.bf16 %v5238, %v5350
  %v5377 = vmul.bf16 %v5291, %v5357
  %v5378 = vmul.bf16 %v5239, %v5336
  %v5379 = vmul.bf16 %v5240, %v5343
  %v5380 = vmul.bf16 %v5241, %v5350
  %v5381 = vmul.bf16 %v5295, %v5357
  %v5382 = vmul.bf16 %v5242, %v5336
  %v5383 = vmul.bf16 %v5243, %v5343
  %v5384 = vmul.bf16 %v5244, %v5350
  %v5385 = vmul.bf16 %v5299, %v5357
  %v5386 = vmul.bf16 %v5245, %v5336
  %v5387 = vmul.bf16 %v5246, %v5343
  %v5388 = vmul.bf16 %v5247, %v5350
  %v5389 = vmul.bf16 %v5303, %v5357
  %5390 = vrot.lane.b32.xlu0 %v3944, 96
  %v5391 = vpop.permute.xlu0 %5390
  %5392 = vrot.lane.b32.xlu0 %v3945, 96
  %v5393 = vpop.permute.xlu0 %5392
  %5394 = vrot.lane.b32.xlu0 %v3946, 96
  %v5395 = vpop.permute.xlu0 %5394
  %5396 = vrot.lane.b32.xlu0 %v3947, 96
  %v5397 = vpop.permute.xlu0 %5396
  %5398 = vrot.lane.b32.xlu0 %v3948, 96
  %v5399 = vpop.permute.xlu0 %5398
  %5400 = vrot.lane.b32.xlu0 %v3949, 96
  %v5401 = vpop.permute.xlu0 %5400
  %5402 = vrot.lane.b32.xlu0 %v3950, 96
  %v5403 = vpop.permute.xlu0 %5402
  %5404 = vrot.lane.b32.xlu0 %v3951, 96
  %v5405 = vpop.permute.xlu0 %5404
  %5406 = vrot.lane.b32.xlu0 %v3952, 96
  %v5407 = vpop.permute.xlu0 %5406
  %5408 = vrot.lane.b32.xlu0 %v3953, 96
  %v5409 = vpop.permute.xlu0 %5408
  %5410 = vrot.lane.b32.xlu0 %v3954, 96
  %v5411 = vpop.permute.xlu0 %5410
  %5412 = vrot.lane.b32.xlu0 %v3955, 96
  %v5413 = vpop.permute.xlu0 %5412
  %5414 = vrot.lane.b32.xlu0 %v3956, 96
  %v5415 = vpop.permute.xlu0 %5414
  %5416 = vrot.lane.b32.xlu0 %v3957, 96
  %v5417 = vpop.permute.xlu0 %5416
  %5418 = vrot.lane.b32.xlu0 %v3958, 96
  %v5419 = vpop.permute.xlu0 %5418
  %5420 = vrot.lane.b32.xlu0 %v3959, 96
  %v5421 = vpop.permute.xlu0 %5420
  %5422 = vrot.lane.b32.xlu0 %v3960, 96
  %v5423 = vpop.permute.xlu0 %5422
  %5424 = vrot.lane.b32.xlu0 %v3961, 96
  %v5425 = vpop.permute.xlu0 %5424
  %5426 = vrot.lane.b32.xlu0 %v3962, 96
  %v5427 = vpop.permute.xlu0 %5426
  %5428 = vrot.lane.b32.xlu0 %v3963, 96
  %v5429 = vpop.permute.xlu0 %5428
  %5430 = vrot.lane.b32.xlu0 %v3964, 96
  %v5431 = vpop.permute.xlu0 %5430
  %5432 = vrot.lane.b32.xlu0 %v3965, 96
  %v5433 = vpop.permute.xlu0 %5432
  %5434 = vrot.lane.b32.xlu0 %v3966, 96
  %v5435 = vpop.permute.xlu0 %5434
  %5436 = vrot.lane.b32.xlu0 %v3967, 96
  %v5437 = vpop.permute.xlu0 %5436
  %5438 = vrot.lane.b32.xlu0 %v3968, 96
  %v5439 = vpop.permute.xlu0 %5438
  %5440 = vrot.lane.b32.xlu0 %v3969, 96
  %v5441 = vpop.permute.xlu0 %5440
  %5442 = vrot.lane.b32.xlu0 %v3970, 96
  %v5443 = vpop.permute.xlu0 %5442
  %5444 = vrot.lane.b32.xlu0 %v3971, 96
  %v5445 = vpop.permute.xlu0 %5444
  %5446 = vrot.lane.b32.xlu0 %v3972, 96
  %v5447 = vpop.permute.xlu0 %5446
  %5448 = vrot.lane.b32.xlu0 %v3973, 96
  %v5449 = vpop.permute.xlu0 %5448
  %5450 = vrot.lane.b32.xlu0 %v3974, 96
  %v5451 = vpop.permute.xlu0 %5450
  %5452 = vrot.lane.b32.xlu0 %v3975, 96
  %v5453 = vpop.permute.xlu0 %5452
  %vm5454 = vcmask 785408
  %v5455 = vsel %vm5454, %v5391, %v5393
  %v5456 = vsel %vm5454, %v5393, %v5395
  %v5457 = vsel %vm5454, %v5395, %v5397
  %v5458 = vsel %vm5454, %v5399, %v5401
  %v5459 = vsel %vm5454, %v5401, %v5403
  %v5460 = vsel %vm5454, %v5403, %v5405
  %v5461 = vsel %vm5454, %v5407, %v5409
  %v5462 = vsel %vm5454, %v5409, %v5411
  %v5463 = vsel %vm5454, %v5411, %v5413
  %v5464 = vsel %vm5454, %v5415, %v5417
  %v5465 = vsel %vm5454, %v5417, %v5419
  %v5466 = vsel %vm5454, %v5419, %v5421
  %v5467 = vsel %vm5454, %v5423, %v5425
  %v5468 = vsel %vm5454, %v5425, %v5427
  %v5469 = vsel %vm5454, %v5427, %v5429
  %v5470 = vsel %vm5454, %v5431, %v5433
  %v5471 = vsel %vm5454, %v5433, %v5435
  %v5472 = vsel %vm5454, %v5435, %v5437
  %v5473 = vsel %vm5454, %v5439, %v5441
  %v5474 = vsel %vm5454, %v5441, %v5443
  %v5475 = vsel %vm5454, %v5443, %v5445
  %v5476 = vsel %vm5454, %v5447, %v5449
  %v5477 = vsel %vm5454, %v5449, %v5451
  %v5478 = vsel %vm5454, %v5451, %v5453
  %vm5503 = vcmask 785408
  %v5506 = vsel %vm5503, %v5397, %v5391
  %v5510 = vsel %vm5503, %v5405, %v5399
  %v5514 = vsel %vm5503, %v5413, %v5407
  %v5518 = vsel %vm5503, %v5421, %v5415
  %v5522 = vsel %vm5503, %v5429, %v5423
  %v5526 = vsel %vm5503, %v5437, %v5431
  %v5530 = vsel %vm5503, %v5445, %v5439
  %v5534 = vsel %vm5503, %v5453, %v5447
  %v5538 = vunpack.c.l.s4 1966171168
  %v5539 = vunpack.c.0.s8 %v5538
  %v5540 = vlaneseq
  %v5541 = vshrl.u32 %v5540, 7
  %v5542 = vsub.s32 %v5539, %v5541
  %v5543 = vrot.slane %v83, %v5542
  %v5544 = vcombine.high %v5543, %v5543
  %v5546 = vunpack.c.l.s4 1966171168
  %v5547 = vunpack.c.0.s8 %v5546
  %v5548 = vlaneseq
  %v5549 = vshrl.u32 %v5548, 7
  %v5550 = vsub.s32 %v5547, %v5549
  %v5551 = vrot.slane %v5543, %v5550
  %v5553 = vunpack.c.l.s4 1966171168
  %v5554 = vunpack.c.0.s8 %v5553
  %v5555 = vlaneseq
  %v5556 = vshrl.u32 %v5555, 7
  %v5557 = vsub.s32 %v5554, %v5556
  %v5558 = vrot.slane %v5544, %v5557
  %v5559 = vcombine.high %v5551, %v5551
  %v5560 = vcombine.high %v5558, %v5558
  %v5562 = vpack.i.b16 %v5551, %v5551
  %v5564 = vlaneseq
  %v5565 = vshrl.u32 %v5564, 7
  %v5566 = vsub.s32 0, %v5565
  %v5567 = vrot.slane %v5562, %v5566
  %v5569 = vpack.i.b16 %v5558, %v5558
  %v5571 = vlaneseq
  %v5572 = vshrl.u32 %v5571, 7
  %v5573 = vsub.s32 0, %v5572
  %v5574 = vrot.slane %v5569, %v5573
  %v5576 = vpack.i.b16 %v5559, %v5559
  %v5578 = vlaneseq
  %v5579 = vshrl.u32 %v5578, 7
  %v5580 = vsub.s32 0, %v5579
  %v5581 = vrot.slane %v5576, %v5580
  %v5583 = vpack.i.b16 %v5560, %v5560
  %v5585 = vlaneseq
  %v5586 = vshrl.u32 %v5585, 7
  %v5587 = vsub.s32 0, %v5586
  %v5588 = vrot.slane %v5583, %v5587
  %v5589 = vmul.bf16 %v5455, %v5567
  %v5590 = vmul.bf16 %v5456, %v5574
  %v5591 = vmul.bf16 %v5457, %v5581
  %v5592 = vmul.bf16 %v5506, %v5588
  %v5593 = vmul.bf16 %v5458, %v5567
  %v5594 = vmul.bf16 %v5459, %v5574
  %v5595 = vmul.bf16 %v5460, %v5581
  %v5596 = vmul.bf16 %v5510, %v5588
  %v5597 = vmul.bf16 %v5461, %v5567
  %v5598 = vmul.bf16 %v5462, %v5574
  %v5599 = vmul.bf16 %v5463, %v5581
  %v5600 = vmul.bf16 %v5514, %v5588
  %v5601 = vmul.bf16 %v5464, %v5567
  %v5602 = vmul.bf16 %v5465, %v5574
  %v5603 = vmul.bf16 %v5466, %v5581
  %v5604 = vmul.bf16 %v5518, %v5588
  %v5605 = vmul.bf16 %v5467, %v5567
  %v5606 = vmul.bf16 %v5468, %v5574
  %v5607 = vmul.bf16 %v5469, %v5581
  %v5608 = vmul.bf16 %v5522, %v5588
  %v5609 = vmul.bf16 %v5470, %v5567
  %v5610 = vmul.bf16 %v5471, %v5574
  %v5611 = vmul.bf16 %v5472, %v5581
  %v5612 = vmul.bf16 %v5526, %v5588
  %v5613 = vmul.bf16 %v5473, %v5567
  %v5614 = vmul.bf16 %v5474, %v5574
  %v5615 = vmul.bf16 %v5475, %v5581
  %v5616 = vmul.bf16 %v5530, %v5588
  %v5617 = vmul.bf16 %v5476, %v5567
  %v5618 = vmul.bf16 %v5477, %v5574
  %v5619 = vmul.bf16 %v5478, %v5581
  %v5620 = vmul.bf16 %v5534, %v5588
  %5621 = vrot.lane.b32.xlu0 %v3944, 94
  %v5622 = vpop.permute.xlu0 %5621
  %5623 = vrot.lane.b32.xlu0 %v3945, 94
  %v5624 = vpop.permute.xlu0 %5623
  %5625 = vrot.lane.b32.xlu0 %v3946, 94
  %v5626 = vpop.permute.xlu0 %5625
  %5627 = vrot.lane.b32.xlu0 %v3947, 94
  %v5628 = vpop.permute.xlu0 %5627
  %5629 = vrot.lane.b32.xlu0 %v3948, 94
  %v5630 = vpop.permute.xlu0 %5629
  %5631 = vrot.lane.b32.xlu0 %v3949, 94
  %v5632 = vpop.permute.xlu0 %5631
  %5633 = vrot.lane.b32.xlu0 %v3950, 94
  %v5634 = vpop.permute.xlu0 %5633
  %5635 = vrot.lane.b32.xlu0 %v3951, 94
  %v5636 = vpop.permute.xlu0 %5635
  %5637 = vrot.lane.b32.xlu0 %v3952, 94
  %v5638 = vpop.permute.xlu0 %5637
  %5639 = vrot.lane.b32.xlu0 %v3953, 94
  %v5640 = vpop.permute.xlu0 %5639
  %5641 = vrot.lane.b32.xlu0 %v3954, 94
  %v5642 = vpop.permute.xlu0 %5641
  %5643 = vrot.lane.b32.xlu0 %v3955, 94
  %v5644 = vpop.permute.xlu0 %5643
  %5645 = vrot.lane.b32.xlu0 %v3956, 94
  %v5646 = vpop.permute.xlu0 %5645
  %5647 = vrot.lane.b32.xlu0 %v3957, 94
  %v5648 = vpop.permute.xlu0 %5647
  %5649 = vrot.lane.b32.xlu0 %v3958, 94
  %v5650 = vpop.permute.xlu0 %5649
  %5651 = vrot.lane.b32.xlu0 %v3959, 94
  %v5652 = vpop.permute.xlu0 %5651
  %5653 = vrot.lane.b32.xlu0 %v3960, 94
  %v5654 = vpop.permute.xlu0 %5653
  %5655 = vrot.lane.b32.xlu0 %v3961, 94
  %v5656 = vpop.permute.xlu0 %5655
  %5657 = vrot.lane.b32.xlu0 %v3962, 94
  %v5658 = vpop.permute.xlu0 %5657
  %5659 = vrot.lane.b32.xlu0 %v3963, 94
  %v5660 = vpop.permute.xlu0 %5659
  %5661 = vrot.lane.b32.xlu0 %v3964, 94
  %v5662 = vpop.permute.xlu0 %5661
  %5663 = vrot.lane.b32.xlu0 %v3965, 94
  %v5664 = vpop.permute.xlu0 %5663
  %5665 = vrot.lane.b32.xlu0 %v3966, 94
  %v5666 = vpop.permute.xlu0 %5665
  %5667 = vrot.lane.b32.xlu0 %v3967, 94
  %v5668 = vpop.permute.xlu0 %5667
  %5669 = vrot.lane.b32.xlu0 %v3968, 94
  %v5670 = vpop.permute.xlu0 %5669
  %5671 = vrot.lane.b32.xlu0 %v3969, 94
  %v5672 = vpop.permute.xlu0 %5671
  %5673 = vrot.lane.b32.xlu0 %v3970, 94
  %v5674 = vpop.permute.xlu0 %5673
  %5675 = vrot.lane.b32.xlu0 %v3971, 94
  %v5676 = vpop.permute.xlu0 %5675
  %5677 = vrot.lane.b32.xlu0 %v3972, 94
  %v5678 = vpop.permute.xlu0 %5677
  %5679 = vrot.lane.b32.xlu0 %v3973, 94
  %v5680 = vpop.permute.xlu0 %5679
  %5681 = vrot.lane.b32.xlu0 %v3974, 94
  %v5682 = vpop.permute.xlu0 %5681
  %5683 = vrot.lane.b32.xlu0 %v3975, 94
  %v5684 = vpop.permute.xlu0 %5683
  %vm5685 = vcmask 769024
  %v5686 = vsel %vm5685, %v5622, %v5624
  %v5687 = vsel %vm5685, %v5624, %v5626
  %v5688 = vsel %vm5685, %v5626, %v5628
  %v5689 = vsel %vm5685, %v5630, %v5632
  %v5690 = vsel %vm5685, %v5632, %v5634
  %v5691 = vsel %vm5685, %v5634, %v5636
  %v5692 = vsel %vm5685, %v5638, %v5640
  %v5693 = vsel %vm5685, %v5640, %v5642
  %v5694 = vsel %vm5685, %v5642, %v5644
  %v5695 = vsel %vm5685, %v5646, %v5648
  %v5696 = vsel %vm5685, %v5648, %v5650
  %v5697 = vsel %vm5685, %v5650, %v5652
  %v5698 = vsel %vm5685, %v5654, %v5656
  %v5699 = vsel %vm5685, %v5656, %v5658
  %v5700 = vsel %vm5685, %v5658, %v5660
  %v5701 = vsel %vm5685, %v5662, %v5664
  %v5702 = vsel %vm5685, %v5664, %v5666
  %v5703 = vsel %vm5685, %v5666, %v5668
  %v5704 = vsel %vm5685, %v5670, %v5672
  %v5705 = vsel %vm5685, %v5672, %v5674
  %v5706 = vsel %vm5685, %v5674, %v5676
  %v5707 = vsel %vm5685, %v5678, %v5680
  %v5708 = vsel %vm5685, %v5680, %v5682
  %v5709 = vsel %vm5685, %v5682, %v5684
  %vm5734 = vcmask 769024
  %v5737 = vsel %vm5734, %v5628, %v5622
  %v5741 = vsel %vm5734, %v5636, %v5630
  %v5745 = vsel %vm5734, %v5644, %v5638
  %v5749 = vsel %vm5734, %v5652, %v5646
  %v5753 = vsel %vm5734, %v5660, %v5654
  %v5757 = vsel %vm5734, %v5668, %v5662
  %v5761 = vsel %vm5734, %v5676, %v5670
  %v5765 = vsel %vm5734, %v5684, %v5678
  %v5769 = vunpack.c.l.s4 1966171168
  %v5770 = vunpack.c.0.s8 %v5769
  %v5771 = vlaneseq
  %v5772 = vshrl.u32 %v5771, 7
  %v5773 = vsub.s32 %v5770, %v5772
  %v5774 = vrot.slane %v84, %v5773
  %v5775 = vcombine.high %v5774, %v5774
  %v5777 = vunpack.c.l.s4 1966171168
  %v5778 = vunpack.c.0.s8 %v5777
  %v5779 = vlaneseq
  %v5780 = vshrl.u32 %v5779, 7
  %v5781 = vsub.s32 %v5778, %v5780
  %v5782 = vrot.slane %v5774, %v5781
  %v5784 = vunpack.c.l.s4 1966171168
  %v5785 = vunpack.c.0.s8 %v5784
  %v5786 = vlaneseq
  %v5787 = vshrl.u32 %v5786, 7
  %v5788 = vsub.s32 %v5785, %v5787
  %v5789 = vrot.slane %v5775, %v5788
  %v5790 = vcombine.high %v5782, %v5782
  %v5791 = vcombine.high %v5789, %v5789
  %v5793 = vpack.i.b16 %v5782, %v5782
  %v5795 = vlaneseq
  %v5796 = vshrl.u32 %v5795, 7
  %v5797 = vsub.s32 0, %v5796
  %v5798 = vrot.slane %v5793, %v5797
  %v5800 = vpack.i.b16 %v5789, %v5789
  %v5802 = vlaneseq
  %v5803 = vshrl.u32 %v5802, 7
  %v5804 = vsub.s32 0, %v5803
  %v5805 = vrot.slane %v5800, %v5804
  %v5807 = vpack.i.b16 %v5790, %v5790
  %v5809 = vlaneseq
  %v5810 = vshrl.u32 %v5809, 7
  %v5811 = vsub.s32 0, %v5810
  %v5812 = vrot.slane %v5807, %v5811
  %v5814 = vpack.i.b16 %v5791, %v5791
  %v5816 = vlaneseq
  %v5817 = vshrl.u32 %v5816, 7
  %v5818 = vsub.s32 0, %v5817
  %v5819 = vrot.slane %v5814, %v5818
  %v5820 = vmul.bf16 %v5686, %v5798
  %v5821 = vmul.bf16 %v5687, %v5805
  %v5822 = vmul.bf16 %v5688, %v5812
  %v5823 = vmul.bf16 %v5737, %v5819
  %v5824 = vmul.bf16 %v5689, %v5798
  %v5825 = vmul.bf16 %v5690, %v5805
  %v5826 = vmul.bf16 %v5691, %v5812
  %v5827 = vmul.bf16 %v5741, %v5819
  %v5828 = vmul.bf16 %v5692, %v5798
  %v5829 = vmul.bf16 %v5693, %v5805
  %v5830 = vmul.bf16 %v5694, %v5812
  %v5831 = vmul.bf16 %v5745, %v5819
  %v5832 = vmul.bf16 %v5695, %v5798
  %v5833 = vmul.bf16 %v5696, %v5805
  %v5834 = vmul.bf16 %v5697, %v5812
  %v5835 = vmul.bf16 %v5749, %v5819
  %v5836 = vmul.bf16 %v5698, %v5798
  %v5837 = vmul.bf16 %v5699, %v5805
  %v5838 = vmul.bf16 %v5700, %v5812
  %v5839 = vmul.bf16 %v5753, %v5819
  %v5840 = vmul.bf16 %v5701, %v5798
  %v5841 = vmul.bf16 %v5702, %v5805
  %v5842 = vmul.bf16 %v5703, %v5812
  %v5843 = vmul.bf16 %v5757, %v5819
  %v5844 = vmul.bf16 %v5704, %v5798
  %v5845 = vmul.bf16 %v5705, %v5805
  %v5846 = vmul.bf16 %v5706, %v5812
  %v5847 = vmul.bf16 %v5761, %v5819
  %v5848 = vmul.bf16 %v5707, %v5798
  %v5849 = vmul.bf16 %v5708, %v5805
  %v5850 = vmul.bf16 %v5709, %v5812
  %v5851 = vmul.bf16 %v5765, %v5819
  %v5852 = vld [vmem:[%s15] sm:$0xff]
  %v5853 = vld [vmem:[%s15 + $0x8] sm:$0xff]
  %v5854 = vld [vmem:[%s15 + $0x10] sm:$0xff]
  %v5855 = vld [vmem:[%s15 + $0x18] sm:$0xff]
  %v5856 = vld [vmem:[%s15 + $0x20] sm:$0xf]
  %v5857 = vld [vmem:[%s15 + $0x24] sm:$0xff]
  %v5858 = vld [vmem:[%s15 + $0x2c] sm:$0xff]
  %v5859 = vld [vmem:[%s15 + $0x34] sm:$0xff]
  %v5860 = vld [vmem:[%s15 + $0x3c] sm:$0xff]
  %v5861 = vld [vmem:[%s15 + $0x44] sm:$0xf]
  %v5862 = vld [vmem:[%s15 + $0x48] sm:$0xff]
  %v5863 = vld [vmem:[%s15 + $0x50] sm:$0xff]
  %v5864 = vld [vmem:[%s15 + $0x58] sm:$0xff]
  %v5865 = vld [vmem:[%s15 + $0x60] sm:$0xff]
  %v5866 = vld [vmem:[%s15 + $0x68] sm:$0xf]
  %v5867 = vld [vmem:[%s15 + $0x6c] sm:$0xff]
  %v5868 = vld [vmem:[%s15 + $0x74] sm:$0xff]
  %v5869 = vld [vmem:[%s15 + $0x7c] sm:$0xff]
  %v5870 = vld [vmem:[%s15 + $0x84] sm:$0xff]
  %v5871 = vld [vmem:[%s15 + $0x8c] sm:$0xf]
  %v5872 = vld [vmem:[%s15 + $0x90] sm:$0xff]
  %v5873 = vld [vmem:[%s15 + $0x98] sm:$0xff]
  %v5874 = vld [vmem:[%s15 + $0xa0] sm:$0xff]
  %v5875 = vld [vmem:[%s15 + $0xa8] sm:$0xff]
  %v5876 = vld [vmem:[%s15 + $0xb0] sm:$0xf]
  %v5877 = vld [vmem:[%s15 + $0xb4] sm:$0xff]
  %v5878 = vld [vmem:[%s15 + $0xbc] sm:$0xff]
  %v5879 = vld [vmem:[%s15 + $0xc4] sm:$0xff]
  %v5880 = vld [vmem:[%s15 + $0xcc] sm:$0xff]
  %v5881 = vld [vmem:[%s15 + $0xd4] sm:$0xf]
  %v5882 = vld [vmem:[%s15 + $0xd8] sm:$0xff]
  %v5883 = vld [vmem:[%s15 + $0xe0] sm:$0xff]
  %v5884 = vld [vmem:[%s15 + $0xe8] sm:$0xff]
  %v5885 = vld [vmem:[%s15 + $0xf0] sm:$0xff]
  %v5886 = vld [vmem:[%s15 + $0xf8] sm:$0xf]
  %v5887 = vld [vmem:[%s15 + $0xfc] sm:$0xff]
  %v5888 = vld [vmem:[%s15 + $0x104] sm:$0xff]
  %v5889 = vld [vmem:[%s15 + $0x10c] sm:$0xff]
  %v5890 = vld [vmem:[%s15 + $0x114] sm:$0xff]
  %v5891 = vld [vmem:[%s15 + $0x11c] sm:$0xf]
  %v5892 = vld [vmem:[%s16] sm:$0xff]
  %v5893 = vld [vmem:[%s16 + $0x8] sm:$0xff]
  %v5894 = vld [vmem:[%s16 + $0x10] sm:$0xff]
  %v5895 = vld [vmem:[%s16 + $0x18] sm:$0xff]
  %v5896 = vld [vmem:[%s16 + $0x20] sm:$0xff]
  %v5897 = vld [vmem:[%s16 + $0x28] sm:$0xff]
  %v5898 = vld [vmem:[%s16 + $0x30] sm:$0xff]
  %v5899 = vld [vmem:[%s16 + $0x38] sm:$0xff]
  %5901 = vset.pattern.permute.xlu0 0
  %5902 = vperm.xlu0 %5901, %v5892
  %v5903 = vpop.permute.xlu0 %5902
  %5906 = vset.pattern.permute.xlu0 0
  %5907 = vperm.xlu0 %5906, %v5893
  %v5908 = vpop.permute.xlu0 %5907
  %5911 = vset.pattern.permute.xlu0 0
  %5912 = vperm.xlu0 %5911, %v5894
  %v5913 = vpop.permute.xlu0 %5912
  %5916 = vset.pattern.permute.xlu0 0
  %5917 = vperm.xlu0 %5916, %v5895
  %v5918 = vpop.permute.xlu0 %5917
  %5921 = vset.pattern.permute.xlu0 0
  %5922 = vperm.xlu0 %5921, %v5896
  %v5923 = vpop.permute.xlu0 %5922
  %5926 = vset.pattern.permute.xlu0 0
  %5927 = vperm.xlu0 %5926, %v5897
  %v5928 = vpop.permute.xlu0 %5927
  %5931 = vset.pattern.permute.xlu0 0
  %5932 = vperm.xlu0 %5931, %v5898
  %v5933 = vpop.permute.xlu0 %5932
  %5936 = vset.pattern.permute.xlu0 0
  %5937 = vperm.xlu0 %5936, %v5899
  %v5938 = vpop.permute.xlu0 %5937
  %v5980 = vunpack.c.l.b16 %v5852
  %v5981 = vunpack.c.h.b16 %v5852
  %v5982 = vunpack.c.l.b16 %v5853
  %v5983 = vunpack.c.h.b16 %v5853
  %v5984 = vunpack.c.l.b16 %v5854
  %v5985 = vunpack.c.h.b16 %v5854
  %v5986 = vunpack.c.l.b16 %v5855
  %v5987 = vunpack.c.h.b16 %v5855
  %v5988 = vunpack.c.l.b16 %v5856
  %v5989 = vunpack.c.l.b16 %v5857
  %v5990 = vunpack.c.h.b16 %v5857
  %v5991 = vunpack.c.l.b16 %v5858
  %v5992 = vunpack.c.h.b16 %v5858
  %v5993 = vunpack.c.l.b16 %v5859
  %v5994 = vunpack.c.h.b16 %v5859
  %v5995 = vunpack.c.l.b16 %v5860
  %v5996 = vunpack.c.h.b16 %v5860
  %v5997 = vunpack.c.l.b16 %v5861
  %v5998 = vunpack.c.l.b16 %v5862
  %v5999 = vunpack.c.h.b16 %v5862
  %v6000 = vunpack.c.l.b16 %v5863
  %v6001 = vunpack.c.h.b16 %v5863
  %v6002 = vunpack.c.l.b16 %v5864
  %v6003 = vunpack.c.h.b16 %v5864
  %v6004 = vunpack.c.l.b16 %v5865
  %v6005 = vunpack.c.h.b16 %v5865
  %v6006 = vunpack.c.l.b16 %v5866
  %v6007 = vunpack.c.l.b16 %v5867
  %v6008 = vunpack.c.h.b16 %v5867
  %v6009 = vunpack.c.l.b16 %v5868
  %v6010 = vunpack.c.h.b16 %v5868
  %v6011 = vunpack.c.l.b16 %v5869
  %v6012 = vunpack.c.h.b16 %v5869
  %v6013 = vunpack.c.l.b16 %v5870
  %v6014 = vunpack.c.h.b16 %v5870
  %v6015 = vunpack.c.l.b16 %v5871
  %v6016 = vunpack.c.l.b16 %v5872
  %v6017 = vunpack.c.h.b16 %v5872
  %v6018 = vunpack.c.l.b16 %v5873
  %v6019 = vunpack.c.h.b16 %v5873
  %v6020 = vunpack.c.l.b16 %v5874
  %v6021 = vunpack.c.h.b16 %v5874
  %v6022 = vunpack.c.l.b16 %v5875
  %v6023 = vunpack.c.h.b16 %v5875
  %v6024 = vunpack.c.l.b16 %v5876
  %v6025 = vunpack.c.l.b16 %v5877
  %v6026 = vunpack.c.h.b16 %v5877
  %v6027 = vunpack.c.l.b16 %v5878
  %v6028 = vunpack.c.h.b16 %v5878
  %v6029 = vunpack.c.l.b16 %v5879
  %v6030 = vunpack.c.h.b16 %v5879
  %v6031 = vunpack.c.l.b16 %v5880
  %v6032 = vunpack.c.h.b16 %v5880
  %v6033 = vunpack.c.l.b16 %v5881
  %v6034 = vunpack.c.l.b16 %v5882
  %v6035 = vunpack.c.h.b16 %v5882
  %v6036 = vunpack.c.l.b16 %v5883
  %v6037 = vunpack.c.h.b16 %v5883
  %v6038 = vunpack.c.l.b16 %v5884
  %v6039 = vunpack.c.h.b16 %v5884
  %v6040 = vunpack.c.l.b16 %v5885
  %v6041 = vunpack.c.h.b16 %v5885
  %v6042 = vunpack.c.l.b16 %v5886
  %v6043 = vunpack.c.l.b16 %v5887
  %v6044 = vunpack.c.h.b16 %v5887
  %v6045 = vunpack.c.l.b16 %v5888
  %v6046 = vunpack.c.h.b16 %v5888
  %v6047 = vunpack.c.l.b16 %v5889
  %v6048 = vunpack.c.h.b16 %v5889
  %v6049 = vunpack.c.l.b16 %v5890
  %v6050 = vunpack.c.h.b16 %v5890
  %v6051 = vunpack.c.l.b16 %v5891
  %v6052 = vpack.c.b16 %v5989, %v5980
  %v6053 = vpack.c.b16 %v5990, %v5981
  %v6054 = vpack.c.b16 %v5991, %v5982
  %v6055 = vpack.c.b16 %v5992, %v5983
  %v6056 = vpack.c.b16 %v5993, %v5984
  %v6057 = vpack.c.b16 %v5994, %v5985
  %v6058 = vpack.c.b16 %v5995, %v5986
  %v6059 = vpack.c.b16 %v5996, %v5987
  %v6060 = vpack.c.b16 %v5997, %v5988
  %v6061 = vpack.c.b16 %v6007, %v5998
  %v6062 = vpack.c.b16 %v6008, %v5999
  %v6063 = vpack.c.b16 %v6009, %v6000
  %v6064 = vpack.c.b16 %v6010, %v6001
  %v6065 = vpack.c.b16 %v6011, %v6002
  %v6066 = vpack.c.b16 %v6012, %v6003
  %v6067 = vpack.c.b16 %v6013, %v6004
  %v6068 = vpack.c.b16 %v6014, %v6005
  %v6069 = vpack.c.b16 %v6015, %v6006
  %v6070 = vpack.c.b16 %v6025, %v6016
  %v6071 = vpack.c.b16 %v6026, %v6017
  %v6072 = vpack.c.b16 %v6027, %v6018
  %v6073 = vpack.c.b16 %v6028, %v6019
  %v6074 = vpack.c.b16 %v6029, %v6020
  %v6075 = vpack.c.b16 %v6030, %v6021
  %v6076 = vpack.c.b16 %v6031, %v6022
  %v6077 = vpack.c.b16 %v6032, %v6023
  %v6078 = vpack.c.b16 %v6033, %v6024
  %v6079 = vpack.c.b16 %v6043, %v6034
  %v6080 = vpack.c.b16 %v6044, %v6035
  %v6081 = vpack.c.b16 %v6045, %v6036
  %v6082 = vpack.c.b16 %v6046, %v6037
  %v6083 = vpack.c.b16 %v6047, %v6038
  %v6084 = vpack.c.b16 %v6048, %v6039
  %v6085 = vpack.c.b16 %v6049, %v6040
  %v6086 = vpack.c.b16 %v6050, %v6041
  %v6087 = vpack.c.b16 %v6051, %v6042
  %6124 = vmatprep.subr.bf16.mxu0 %v4208
  %6125 = vmatpush1.bf16.msra.mxu0 %v4207
  %6126 = vmatprep.subr.bf16.mxu0 %v4212
  %6127 = vmatpush1.bf16.msra.mxu0 %v4211
  %6128 = vmatprep.subr.bf16.mxu0 %v4216
  %6129 = vmatpush1.bf16.msra.mxu0 %v4215
  %6130 = vmatprep.subr.bf16.mxu0 %v4220
  %6131 = vmatpush1.bf16.msra.mxu0 %v4219
  %6132 = vmatprep.subr.bf16.mxu0 %v4224
  %6133 = vmatpush1.bf16.msra.mxu0 %v4223
  %6134 = vmatprep.subr.bf16.mxu0 %v4228
  %6135 = vmatpush1.bf16.msra.mxu0 %v4227
  %6136 = vmatprep.subr.bf16.mxu0 %v4232
  %6137 = vmatpush1.bf16.msra.mxu0 %v4231
  %6138 = vmatprep.subr.bf16.mxu0 %v4236
  %6139 = vmatpush1.bf16.msra.mxu0 %v4235
  %6140 = vmatprep.subr.bf16.mxu0 %v4438
  %6141 = vmatpush1.bf16.msra.mxu0 %v4437
  %6142 = vmatprep.subr.bf16.mxu0 %v4442
  %6143 = vmatpush1.bf16.msra.mxu0 %v4441
  %6144 = vmatprep.subr.bf16.mxu0 %v4446
  %6145 = vmatpush1.bf16.msra.mxu0 %v4445
  %6146 = vmatprep.subr.bf16.mxu0 %v4450
  %6147 = vmatpush1.bf16.msra.mxu0 %v4449
  %6148 = vmatprep.subr.bf16.mxu0 %v4454
  %6149 = vmatpush1.bf16.msra.mxu0 %v4453
  %6150 = vmatprep.subr.bf16.mxu0 %v4458
  %6151 = vmatpush1.bf16.msra.mxu0 %v4457
  %6152 = vmatprep.subr.bf16.mxu0 %v4462
  %6153 = vmatpush1.bf16.msra.mxu0 %v4461
  %6154 = vmatprep.subr.bf16.mxu0 %v4466
  %6155 = vmatpush1.bf16.msra.mxu0 %v4465
  %6156 = vmatprep.mubr.bf16.mxu0 %v6053
  %6157 = vmatmul.mubr.bf16.gmra.mrb[0].mxu0 %v6052
  %v6158 = vpop.f32.mrb[0].mxu0
  %v6159 = vadd.f32 %v5903, %v6158
  %v6160 = vpop.f32.mrb[0].mxu0
  %v6161 = vadd.f32 %v5903, %v6160
  %v6162 = vpop.f32.mrb[0].mxu0
  %v6163 = vadd.f32 %v5908, %v6162
  %v6164 = vpop.f32.mrb[0].mxu0
  %v6165 = vadd.f32 %v5908, %v6164
  %6166 = vmatprep.mubr.bf16.mxu0 %v6062
  %6167 = vmatmul.mubr.bf16.gmra.mrb[0].mxu0 %v6061
  %v6168 = vpop.f32.mrb[0].mxu0
  %v6169 = vadd.f32 %v5913, %v6168
  %v6170 = vpop.f32.mrb[0].mxu0
  %v6171 = vadd.f32 %v5913, %v6170
  %v6172 = vpop.f32.mrb[0].mxu0
  %v6173 = vadd.f32 %v5918, %v6172
  %v6174 = vpop.f32.mrb[0].mxu0
  %v6175 = vadd.f32 %v5918, %v6174
  %6176 = vmatprep.mubr.bf16.mxu0 %v6071
  %6177 = vmatmul.mubr.bf16.gmra.mrb[0].mxu0 %v6070
  %v6178 = vpop.f32.mrb[0].mxu0
  %v6179 = vadd.f32 %v5923, %v6178
  %v6180 = vpop.f32.mrb[0].mxu0
  %v6181 = vadd.f32 %v5923, %v6180
  %v6182 = vpop.f32.mrb[0].mxu0
  %v6183 = vadd.f32 %v5928, %v6182
  %v6184 = vpop.f32.mrb[0].mxu0
  %v6185 = vadd.f32 %v5928, %v6184
  %6186 = vmatprep.mubr.bf16.mxu0 %v6080
  %6187 = vmatmul.mubr.bf16.gmra.mrb[0].mxu0 %v6079
  %v6188 = vpop.f32.mrb[0].mxu0
  %v6189 = vadd.f32 %v5933, %v6188
  %v6190 = vpop.f32.mrb[0].mxu0
  %v6191 = vadd.f32 %v5933, %v6190
  %v6192 = vpop.f32.mrb[0].mxu0
  %v6193 = vadd.f32 %v5938, %v6192
  %v6194 = vpop.f32.mrb[0].mxu0
  %v6195 = vadd.f32 %v5938, %v6194
  %6196 = vdwg.mxu0
  %6197 = vmatprep.subr.bf16.mxu0 %v4668
  %6198 = vmatpush1.bf16.msra.mxu0 %v4667
  %6199 = vmatprep.subr.bf16.mxu0 %v4672
  %6200 = vmatpush1.bf16.msra.mxu0 %v4671
  %6201 = vmatprep.subr.bf16.mxu0 %v4676
  %6202 = vmatpush1.bf16.msra.mxu0 %v4675
  %6203 = vmatprep.subr.bf16.mxu0 %v4680
  %6204 = vmatpush1.bf16.msra.mxu0 %v4679
  %6205 = vmatprep.subr.bf16.mxu0 %v4684
  %6206 = vmatpush1.bf16.msra.mxu0 %v4683
  %6207 = vmatprep.subr.bf16.mxu0 %v4688
  %6208 = vmatpush1.bf16.msra.mxu0 %v4687
  %6209 = vmatprep.subr.bf16.mxu0 %v4692
  %6210 = vmatpush1.bf16.msra.mxu0 %v4691
  %6211 = vmatprep.subr.bf16.mxu0 %v4696
  %6212 = vmatpush1.bf16.msra.mxu0 %v4695
  %6213 = vmatprep.subr.bf16.mxu0 %v4898
  %6214 = vmatpush1.bf16.msra.mxu0 %v4897
  %6215 = vmatprep.subr.bf16.mxu0 %v4902
  %6216 = vmatpush1.bf16.msra.mxu0 %v4901
  %6217 = vmatprep.subr.bf16.mxu0 %v4906
  %6218 = vmatpush1.bf16.msra.mxu0 %v4905
  %6219 = vmatprep.subr.bf16.mxu0 %v4910
  %6220 = vmatpush1.bf16.msra.mxu0 %v4909
  %6221 = vmatprep.subr.bf16.mxu0 %v4914
  %6222 = vmatpush1.bf16.msra.mxu0 %v4913
  %6223 = vmatprep.subr.bf16.mxu0 %v4918
  %6224 = vmatpush1.bf16.msra.mxu0 %v4917
  %6225 = vmatprep.subr.bf16.mxu0 %v4922
  %6226 = vmatpush1.bf16.msra.mxu0 %v4921
  %6227 = vmatprep.subr.bf16.mxu0 %v4926
  %6228 = vmatpush1.bf16.msra.mxu0 %v4925
  %6229 = vmatprep.mubr.bf16.mxu0 %v6055
  %6230 = vmatmul.mubr.bf16.gmra.mrb[0].mxu0 %v6054
  %v6231 = vpop.f32.mrb[0].mxu0
  %v6232 = vadd.f32 %v6159, %v6231
  %v6233 = vpop.f32.mrb[0].mxu0
  %v6234 = vadd.f32 %v6161, %v6233
  %v6235 = vpop.f32.mrb[0].mxu0
  %v6236 = vadd.f32 %v6163, %v6235
  %v6237 = vpop.f32.mrb[0].mxu0
  %v6238 = vadd.f32 %v6165, %v6237
  %6239 = vmatprep.mubr.bf16.mxu0 %v6064
  %6240 = vmatmul.mubr.bf16.gmra.mrb[0].mxu0 %v6063
  %v6241 = vpop.f32.mrb[0].mxu0
  %v6242 = vadd.f32 %v6169, %v6241
  %v6243 = vpop.f32.mrb[0].mxu0
  %v6244 = vadd.f32 %v6171, %v6243
  %v6245 = vpop.f32.mrb[0].mxu0
  %v6246 = vadd.f32 %v6173, %v6245
  %v6247 = vpop.f32.mrb[0].mxu0
  %v6248 = vadd.f32 %v6175, %v6247
  %6249 = vmatprep.mubr.bf16.mxu0 %v6073
  %6250 = vmatmul.mubr.bf16.gmra.mrb[0].mxu0 %v6072
  %v6251 = vpop.f32.mrb[0].mxu0
  %v6252 = vadd.f32 %v6179, %v6251
  %v6253 = vpop.f32.mrb[0].mxu0
  %v6254 = vadd.f32 %v6181, %v6253
  %v6255 = vpop.f32.mrb[0].mxu0
  %v6256 = vadd.f32 %v6183, %v6255
  %v6257 = vpop.f32.mrb[0].mxu0
  %v6258 = vadd.f32 %v6185, %v6257
  %6259 = vmatprep.mubr.bf16.mxu0 %v6082
  %6260 = vmatmul.mubr.bf16.gmra.mrb[0].mxu0 %v6081
  %v6261 = vpop.f32.mrb[0].mxu0
  %v6262 = vadd.f32 %v6189, %v6261
  %v6263 = vpop.f32.mrb[0].mxu0
  %v6264 = vadd.f32 %v6191, %v6263
  %v6265 = vpop.f32.mrb[0].mxu0
  %v6266 = vadd.f32 %v6193, %v6265
  %v6267 = vpop.f32.mrb[0].mxu0
  %v6268 = vadd.f32 %v6195, %v6267
  %6269 = vdwg.mxu0
  %6270 = vmatprep.subr.bf16.mxu0 %v3945
  %6271 = vmatpush1.bf16.msra.mxu0 %v3944
  %6272 = vmatprep.subr.bf16.mxu0 %v3949
  %6273 = vmatpush1.bf16.msra.mxu0 %v3948
  %6274 = vmatprep.subr.bf16.mxu0 %v3953
  %6275 = vmatpush1.bf16.msra.mxu0 %v3952
  %6276 = vmatprep.subr.bf16.mxu0 %v3957
  %6277 = vmatpush1.bf16.msra.mxu0 %v3956
  %6278 = vmatprep.subr.bf16.mxu0 %v3961
  %6279 = vmatpush1.bf16.msra.mxu0 %v3960
  %6280 = vmatprep.subr.bf16.mxu0 %v3965
  %6281 = vmatpush1.bf16.msra.mxu0 %v3964
  %6282 = vmatprep.subr.bf16.mxu0 %v3969
  %6283 = vmatpush1.bf16.msra.mxu0 %v3968
  %6284 = vmatprep.subr.bf16.mxu0 %v3973
  %6285 = vmatpush1.bf16.msra.mxu0 %v3972
  %6286 = vmatprep.subr.bf16.mxu0 %v5128
  %6287 = vmatpush1.bf16.msra.mxu0 %v5127
  %6288 = vmatprep.subr.bf16.mxu0 %v5132
  %6289 = vmatpush1.bf16.msra.mxu0 %v5131
  %6290 = vmatprep.subr.bf16.mxu0 %v5136
  %6291 = vmatpush1.bf16.msra.mxu0 %v5135
  %6292 = vmatprep.subr.bf16.mxu0 %v5140
  %6293 = vmatpush1.bf16.msra.mxu0 %v5139
  %6294 = vmatprep.subr.bf16.mxu0 %v5144
  %6295 = vmatpush1.bf16.msra.mxu0 %v5143
  %6296 = vmatprep.subr.bf16.mxu0 %v5148
  %6297 = vmatpush1.bf16.msra.mxu0 %v5147
  %6298 = vmatprep.subr.bf16.mxu0 %v5152
  %6299 = vmatpush1.bf16.msra.mxu0 %v5151
  %6300 = vmatprep.subr.bf16.mxu0 %v5156
  %6301 = vmatpush1.bf16.msra.mxu0 %v5155
  %6302 = vmatprep.mubr.bf16.mxu0 %v6057
  %6303 = vmatmul.mubr.bf16.gmra.mrb[0].mxu0 %v6056
  %v6304 = vpop.f32.mrb[0].mxu0
  %v6305 = vadd.f32 %v6232, %v6304
  %v6306 = vpop.f32.mrb[0].mxu0
  %v6307 = vadd.f32 %v6234, %v6306
  %v6308 = vpop.f32.mrb[0].mxu0
  %v6309 = vadd.f32 %v6236, %v6308
  %v6310 = vpop.f32.mrb[0].mxu0
  %v6311 = vadd.f32 %v6238, %v6310
  %6312 = vmatprep.mubr.bf16.mxu0 %v6066
  %6313 = vmatmul.mubr.bf16.gmra.mrb[0].mxu0 %v6065
  %v6314 = vpop.f32.mrb[0].mxu0
  %v6315 = vadd.f32 %v6242, %v6314
  %v6316 = vpop.f32.mrb[0].mxu0
  %v6317 = vadd.f32 %v6244, %v6316
  %v6318 = vpop.f32.mrb[0].mxu0
  %v6319 = vadd.f32 %v6246, %v6318
  %v6320 = vpop.f32.mrb[0].mxu0
  %v6321 = vadd.f32 %v6248, %v6320
  %6322 = vmatprep.mubr.bf16.mxu0 %v6075
  %6323 = vmatmul.mubr.bf16.gmra.mrb[0].mxu0 %v6074
  %v6324 = vpop.f32.mrb[0].mxu0
  %v6325 = vadd.f32 %v6252, %v6324
  %v6326 = vpop.f32.mrb[0].mxu0
  %v6327 = vadd.f32 %v6254, %v6326
  %v6328 = vpop.f32.mrb[0].mxu0
  %v6329 = vadd.f32 %v6256, %v6328
  %v6330 = vpop.f32.mrb[0].mxu0
  %v6331 = vadd.f32 %v6258, %v6330
  %6332 = vmatprep.mubr.bf16.mxu0 %v6084
  %6333 = vmatmul.mubr.bf16.gmra.mrb[0].mxu0 %v6083
  %v6334 = vpop.f32.mrb[0].mxu0
  %v6335 = vadd.f32 %v6262, %v6334
  %v6336 = vpop.f32.mrb[0].mxu0
  %v6337 = vadd.f32 %v6264, %v6336
  %v6338 = vpop.f32.mrb[0].mxu0
  %v6339 = vadd.f32 %v6266, %v6338
  %v6340 = vpop.f32.mrb[0].mxu0
  %v6341 = vadd.f32 %v6268, %v6340
  %6342 = vdwg.mxu0
  %6343 = vmatprep.subr.bf16.mxu0 %v5359
  %6344 = vmatpush1.bf16.msra.mxu0 %v5358
  %6345 = vmatprep.subr.bf16.mxu0 %v5363
  %6346 = vmatpush1.bf16.msra.mxu0 %v5362
  %6347 = vmatprep.subr.bf16.mxu0 %v5367
  %6348 = vmatpush1.bf16.msra.mxu0 %v5366
  %6349 = vmatprep.subr.bf16.mxu0 %v5371
  %6350 = vmatpush1.bf16.msra.mxu0 %v5370
  %6351 = vmatprep.subr.bf16.mxu0 %v5375
  %6352 = vmatpush1.bf16.msra.mxu0 %v5374
  %6353 = vmatprep.subr.bf16.mxu0 %v5379
  %6354 = vmatpush1.bf16.msra.mxu0 %v5378
  %6355 = vmatprep.subr.bf16.mxu0 %v5383
  %6356 = vmatpush1.bf16.msra.mxu0 %v5382
  %6357 = vmatprep.subr.bf16.mxu0 %v5387
  %6358 = vmatpush1.bf16.msra.mxu0 %v5386
  %6359 = vmatprep.subr.bf16.mxu0 %v5590
  %6360 = vmatpush1.bf16.msra.mxu0 %v5589
  %6361 = vmatprep.subr.bf16.mxu0 %v5594
  %6362 = vmatpush1.bf16.msra.mxu0 %v5593
  %6363 = vmatprep.subr.bf16.mxu0 %v5598
  %6364 = vmatpush1.bf16.msra.mxu0 %v5597
  %6365 = vmatprep.subr.bf16.mxu0 %v5602
  %6366 = vmatpush1.bf16.msra.mxu0 %v5601
  %6367 = vmatprep.subr.bf16.mxu0 %v5606
  %6368 = vmatpush1.bf16.msra.mxu0 %v5605
  %6369 = vmatprep.subr.bf16.mxu0 %v5610
  %6370 = vmatpush1.bf16.msra.mxu0 %v5609
  %6371 = vmatprep.subr.bf16.mxu0 %v5614
  %6372 = vmatpush1.bf16.msra.mxu0 %v5613
  %6373 = vmatprep.subr.bf16.mxu0 %v5618
  %6374 = vmatpush1.bf16.msra.mxu0 %v5617
  %6375 = vmatprep.mubr.bf16.mxu0 %v6059
  %6376 = vmatmul.mubr.bf16.gmra.mrb[0].mxu0 %v6058
  %v6377 = vpop.f32.mrb[0].mxu0
  %v6378 = vadd.f32 %v6305, %v6377
  %v6379 = vpop.f32.mrb[0].mxu0
  %v6380 = vadd.f32 %v6307, %v6379
  %v6381 = vpop.f32.mrb[0].mxu0
  %v6382 = vadd.f32 %v6309, %v6381
  %v6383 = vpop.f32.mrb[0].mxu0
  %v6384 = vadd.f32 %v6311, %v6383
  %6385 = vmatprep.mubr.bf16.mxu0 %v6068
  %6386 = vmatmul.mubr.bf16.gmra.mrb[0].mxu0 %v6067
  %v6387 = vpop.f32.mrb[0].mxu0
  %v6388 = vadd.f32 %v6315, %v6387
  %v6389 = vpop.f32.mrb[0].mxu0
  %v6390 = vadd.f32 %v6317, %v6389
  %v6391 = vpop.f32.mrb[0].mxu0
  %v6392 = vadd.f32 %v6319, %v6391
  %v6393 = vpop.f32.mrb[0].mxu0
  %v6394 = vadd.f32 %v6321, %v6393
  %6395 = vmatprep.mubr.bf16.mxu0 %v6077
  %6396 = vmatmul.mubr.bf16.gmra.mrb[0].mxu0 %v6076
  %v6397 = vpop.f32.mrb[0].mxu0
  %v6398 = vadd.f32 %v6325, %v6397
  %v6399 = vpop.f32.mrb[0].mxu0
  %v6400 = vadd.f32 %v6327, %v6399
  %v6401 = vpop.f32.mrb[0].mxu0
  %v6402 = vadd.f32 %v6329, %v6401
  %v6403 = vpop.f32.mrb[0].mxu0
  %v6404 = vadd.f32 %v6331, %v6403
  %6405 = vmatprep.mubr.bf16.mxu0 %v6086
  %6406 = vmatmul.mubr.bf16.gmra.mrb[0].mxu0 %v6085
  %v6407 = vpop.f32.mrb[0].mxu0
  %v6408 = vadd.f32 %v6335, %v6407
  %v6409 = vpop.f32.mrb[0].mxu0
  %v6410 = vadd.f32 %v6337, %v6409
  %v6411 = vpop.f32.mrb[0].mxu0
  %v6412 = vadd.f32 %v6339, %v6411
  %v6413 = vpop.f32.mrb[0].mxu0
  %v6414 = vadd.f32 %v6341, %v6413
  %6415 = vdwg.mxu0
  %6416 = vmatprep.subr.bf16.mxu0 %v5821
  %6417 = vmatpush1.bf16.msra.mxu0 %v5820
  %6418 = vmatprep.subr.bf16.mxu0 %v5825
  %6419 = vmatpush1.bf16.msra.mxu0 %v5824
  %6420 = vmatprep.subr.bf16.mxu0 %v5829
  %6421 = vmatpush1.bf16.msra.mxu0 %v5828
  %6422 = vmatprep.subr.bf16.mxu0 %v5833
  %6423 = vmatpush1.bf16.msra.mxu0 %v5832
  %6424 = vmatprep.subr.bf16.mxu0 %v5837
  %6425 = vmatpush1.bf16.msra.mxu0 %v5836
  %6426 = vmatprep.subr.bf16.mxu0 %v5841
  %6427 = vmatpush1.bf16.msra.mxu0 %v5840
  %6428 = vmatprep.subr.bf16.mxu0 %v5845
  %6429 = vmatpush1.bf16.msra.mxu0 %v5844
  %6430 = vmatprep.subr.bf16.mxu0 %v5849
  %6431 = vmatpush1.bf16.msra.mxu0 %v5848
  %6432 = vmatprep.subr.bf16.mxu0 0
  %6433 = vmatpush1.bf16.msra.mxu0 0
  %6434 = vmatprep.subr.bf16.mxu0 0
  %6435 = vmatpush1.bf16.msra.mxu0 0
  %6436 = vmatprep.subr.bf16.mxu0 0
  %6437 = vmatpush1.bf16.msra.mxu0 0
  %6438 = vmatprep.subr.bf16.mxu0 0
  %6439 = vmatpush1.bf16.msra.mxu0 0
  %6440 = vmatprep.subr.bf16.mxu0 0
  %6441 = vmatpush1.bf16.msra.mxu0 0
  %6442 = vmatprep.subr.bf16.mxu0 0
  %6443 = vmatpush1.bf16.msra.mxu0 0
  %6444 = vmatprep.subr.bf16.mxu0 0
  %6445 = vmatpush1.bf16.msra.mxu0 0
  %6446 = vmatprep.subr.bf16.mxu0 0
  %6447 = vmatpush1.bf16.msra.mxu0 0
  %6448 = vmatprep.mubr.bf16.mxu0 0
  %6449 = vmatmul.mubr.bf16.gmra.mrb[0].mxu0 %v6060
  %v6450 = vpop.f32.mrb[0].mxu0
  %v6451 = vadd.f32 %v6378, %v6450
  %v6452 = vpop.f32.mrb[0].mxu0
  %v6453 = vadd.f32 %v6380, %v6452
  %v6454 = vpop.f32.mrb[0].mxu0
  %v6455 = vadd.f32 %v6382, %v6454
  %v6456 = vpop.f32.mrb[0].mxu0
  %v6457 = vadd.f32 %v6384, %v6456
  %6458 = vmatprep.mubr.bf16.mxu0 0
  %6459 = vmatmul.mubr.bf16.gmra.mrb[0].mxu0 %v6069
  %v6460 = vpop.f32.mrb[0].mxu0
  %v6461 = vadd.f32 %v6388, %v6460
  %v6462 = vpop.f32.mrb[0].mxu0
  %v6463 = vadd.f32 %v6390, %v6462
  %v6464 = vpop.f32.mrb[0].mxu0
  %v6465 = vadd.f32 %v6392, %v6464
  %v6466 = vpop.f32.mrb[0].mxu0
  %v6467 = vadd.f32 %v6394, %v6466
  %6468 = vmatprep.mubr.bf16.mxu0 0
  %6469 = vmatmul.mubr.bf16.gmra.mrb[0].mxu0 %v6078
  %v6470 = vpop.f32.mrb[0].mxu0
  %v6471 = vadd.f32 %v6398, %v6470
  %v6472 = vpop.f32.mrb[0].mxu0
  %v6473 = vadd.f32 %v6400, %v6472
  %v6474 = vpop.f32.mrb[0].mxu0
  %v6475 = vadd.f32 %v6402, %v6474
  %v6476 = vpop.f32.mrb[0].mxu0
  %v6477 = vadd.f32 %v6404, %v6476
  %6478 = vmatprep.mubr.bf16.mxu0 0
  %6479 = vmatmul.mubr.bf16.gmra.mrb[0].mxu0 %v6087
  %v6480 = vpop.f32.mrb[0].mxu0
  %v6481 = vadd.f32 %v6408, %v6480
  %v6482 = vpop.f32.mrb[0].mxu0
  %v6483 = vadd.f32 %v6410, %v6482
  %v6484 = vpop.f32.mrb[0].mxu0
  %v6485 = vadd.f32 %v6412, %v6484
  %v6486 = vpop.f32.mrb[0].mxu0
  %v6487 = vadd.f32 %v6414, %v6486
  %6488 = vdwg.mxu0
  %6489 = vmatprep.subr.bf16.mxu0 %v4210
  %6490 = vmatpush1.bf16.msra.mxu0 %v4209
  %6491 = vmatprep.subr.bf16.mxu0 %v4214
  %6492 = vmatpush1.bf16.msra.mxu0 %v4213
  %6493 = vmatprep.subr.bf16.mxu0 %v4218
  %6494 = vmatpush1.bf16.msra.mxu0 %v4217
  %6495 = vmatprep.subr.bf16.mxu0 %v4222
  %6496 = vmatpush1.bf16.msra.mxu0 %v4221
  %6497 = vmatprep.subr.bf16.mxu0 %v4226
  %6498 = vmatpush1.bf16.msra.mxu0 %v4225
  %6499 = vmatprep.subr.bf16.mxu0 %v4230
  %6500 = vmatpush1.bf16.msra.mxu0 %v4229
  %6501 = vmatprep.subr.bf16.mxu0 %v4234
  %6502 = vmatpush1.bf16.msra.mxu0 %v4233
  %6503 = vmatprep.subr.bf16.mxu0 %v4238
  %6504 = vmatpush1.bf16.msra.mxu0 %v4237
  %6505 = vmatprep.subr.bf16.mxu0 %v4440
  %6506 = vmatpush1.bf16.msra.mxu0 %v4439
  %6507 = vmatprep.subr.bf16.mxu0 %v4444
  %6508 = vmatpush1.bf16.msra.mxu0 %v4443
  %6509 = vmatprep.subr.bf16.mxu0 %v4448
  %6510 = vmatpush1.bf16.msra.mxu0 %v4447
  %6511 = vmatprep.subr.bf16.mxu0 %v4452
  %6512 = vmatpush1.bf16.msra.mxu0 %v4451
  %6513 = vmatprep.subr.bf16.mxu0 %v4456
  %6514 = vmatpush1.bf16.msra.mxu0 %v4455
  %6515 = vmatprep.subr.bf16.mxu0 %v4460
  %6516 = vmatpush1.bf16.msra.mxu0 %v4459
  %6517 = vmatprep.subr.bf16.mxu0 %v4464
  %6518 = vmatpush1.bf16.msra.mxu0 %v4463
  %6519 = vmatprep.subr.bf16.mxu0 %v4468
  %6520 = vmatpush1.bf16.msra.mxu0 %v4467
  %6521 = vmatprep.mubr.bf16.mxu0 %v6053
  %6522 = vmatmul.mubr.bf16.gmra.mrb[0].mxu0 %v6052
  %v6523 = vpop.f32.mrb[0].mxu0
  %v6524 = vadd.f32 %v5903, %v6523
  %v6525 = vpop.f32.mrb[0].mxu0
  %v6526 = vadd.f32 %v5903, %v6525
  %v6527 = vpop.f32.mrb[0].mxu0
  %v6528 = vadd.f32 %v5908, %v6527
  %v6529 = vpop.f32.mrb[0].mxu0
  %v6530 = vadd.f32 %v5908, %v6529
  %6531 = vmatprep.mubr.bf16.mxu0 %v6062
  %6532 = vmatmul.mubr.bf16.gmra.mrb[0].mxu0 %v6061
  %v6533 = vpop.f32.mrb[0].mxu0
  %v6534 = vadd.f32 %v5913, %v6533
  %v6535 = vpop.f32.mrb[0].mxu0
  %v6536 = vadd.f32 %v5913, %v6535
  %v6537 = vpop.f32.mrb[0].mxu0
  %v6538 = vadd.f32 %v5918, %v6537
  %v6539 = vpop.f32.mrb[0].mxu0
  %v6540 = vadd.f32 %v5918, %v6539
  %6541 = vmatprep.mubr.bf16.mxu0 %v6071
  %6542 = vmatmul.mubr.bf16.gmra.mrb[0].mxu0 %v6070
  %v6543 = vpop.f32.mrb[0].mxu0
  %v6544 = vadd.f32 %v5923, %v6543
  %v6545 = vpop.f32.mrb[0].mxu0
  %v6546 = vadd.f32 %v5923, %v6545
  %v6547 = vpop.f32.mrb[0].mxu0
  %v6548 = vadd.f32 %v5928, %v6547
  %v6549 = vpop.f32.mrb[0].mxu0
  %v6550 = vadd.f32 %v5928, %v6549
  %6551 = vmatprep.mubr.bf16.mxu0 %v6080
  %6552 = vmatmul.mubr.bf16.gmra.mrb[0].mxu0 %v6079
  %v6553 = vpop.f32.mrb[0].mxu0
  %v6554 = vadd.f32 %v5933, %v6553
  %v6555 = vpop.f32.mrb[0].mxu0
  %v6556 = vadd.f32 %v5933, %v6555
  %v6557 = vpop.f32.mrb[0].mxu0
  %v6558 = vadd.f32 %v5938, %v6557
  %v6559 = vpop.f32.mrb[0].mxu0
  %v6560 = vadd.f32 %v5938, %v6559
  %6561 = vdwg.mxu0
  %6562 = vmatprep.subr.bf16.mxu0 %v4670
  %6563 = vmatpush1.bf16.msra.mxu0 %v4669
  %6564 = vmatprep.subr.bf16.mxu0 %v4674
  %6565 = vmatpush1.bf16.msra.mxu0 %v4673
  %6566 = vmatprep.subr.bf16.mxu0 %v4678
  %6567 = vmatpush1.bf16.msra.mxu0 %v4677
  %6568 = vmatprep.subr.bf16.mxu0 %v4682
  %6569 = vmatpush1.bf16.msra.mxu0 %v4681
  %6570 = vmatprep.subr.bf16.mxu0 %v4686
  %6571 = vmatpush1.bf16.msra.mxu0 %v4685
  %6572 = vmatprep.subr.bf16.mxu0 %v4690
  %6573 = vmatpush1.bf16.msra.mxu0 %v4689
  %6574 = vmatprep.subr.bf16.mxu0 %v4694
  %6575 = vmatpush1.bf16.msra.mxu0 %v4693
  %6576 = vmatprep.subr.bf16.mxu0 %v4698
  %6577 = vmatpush1.bf16.msra.mxu0 %v4697
  %6578 = vmatprep.subr.bf16.mxu0 %v4900
  %6579 = vmatpush1.bf16.msra.mxu0 %v4899
  %6580 = vmatprep.subr.bf16.mxu0 %v4904
  %6581 = vmatpush1.bf16.msra.mxu0 %v4903
  %6582 = vmatprep.subr.bf16.mxu0 %v4908
  %6583 = vmatpush1.bf16.msra.mxu0 %v4907
  %6584 = vmatprep.subr.bf16.mxu0 %v4912
  %6585 = vmatpush1.bf16.msra.mxu0 %v4911
  %6586 = vmatprep.subr.bf16.mxu0 %v4916
  %6587 = vmatpush1.bf16.msra.mxu0 %v4915
  %6588 = vmatprep.subr.bf16.mxu0 %v4920
  %6589 = vmatpush1.bf16.msra.mxu0 %v4919
  %6590 = vmatprep.subr.bf16.mxu0 %v4924
  %6591 = vmatpush1.bf16.msra.mxu0 %v4923
  %6592 = vmatprep.subr.bf16.mxu0 %v4928
  %6593 = vmatpush1.bf16.msra.mxu0 %v4927
  %6594 = vmatprep.mubr.bf16.mxu0 %v6055
  %6595 = vmatmul.mubr.bf16.gmra.mrb[0].mxu0 %v6054
  %v6596 = vpop.f32.mrb[0].mxu0
  %v6597 = vadd.f32 %v6524, %v6596
  %v6598 = vpop.f32.mrb[0].mxu0
  %v6599 = vadd.f32 %v6526, %v6598
  %v6600 = vpop.f32.mrb[0].mxu0
  %v6601 = vadd.f32 %v6528, %v6600
  %v6602 = vpop.f32.mrb[0].mxu0
  %v6603 = vadd.f32 %v6530, %v6602
  %6604 = vmatprep.mubr.bf16.mxu0 %v6064
  %6605 = vmatmul.mubr.bf16.gmra.mrb[0].mxu0 %v6063
  %v6606 = vpop.f32.mrb[0].mxu0
  %v6607 = vadd.f32 %v6534, %v6606
  %v6608 = vpop.f32.mrb[0].mxu0
  %v6609 = vadd.f32 %v6536, %v6608
  %v6610 = vpop.f32.mrb[0].mxu0
  %v6611 = vadd.f32 %v6538, %v6610
  %v6612 = vpop.f32.mrb[0].mxu0
  %v6613 = vadd.f32 %v6540, %v6612
  %6614 = vmatprep.mubr.bf16.mxu0 %v6073
  %6615 = vmatmul.mubr.bf16.gmra.mrb[0].mxu0 %v6072
  %v6616 = vpop.f32.mrb[0].mxu0
  %v6617 = vadd.f32 %v6544, %v6616
  %v6618 = vpop.f32.mrb[0].mxu0
  %v6619 = vadd.f32 %v6546, %v6618
  %v6620 = vpop.f32.mrb[0].mxu0
  %v6621 = vadd.f32 %v6548, %v6620
  %v6622 = vpop.f32.mrb[0].mxu0
  %v6623 = vadd.f32 %v6550, %v6622
  %6624 = vmatprep.mubr.bf16.mxu0 %v6082
  %6625 = vmatmul.mubr.bf16.gmra.mrb[0].mxu0 %v6081
  %v6626 = vpop.f32.mrb[0].mxu0
  %v6627 = vadd.f32 %v6554, %v6626
  %v6628 = vpop.f32.mrb[0].mxu0
  %v6629 = vadd.f32 %v6556, %v6628
  %v6630 = vpop.f32.mrb[0].mxu0
  %v6631 = vadd.f32 %v6558, %v6630
  %v6632 = vpop.f32.mrb[0].mxu0
  %v6633 = vadd.f32 %v6560, %v6632
  %6634 = vdwg.mxu0
  %6635 = vmatprep.subr.bf16.mxu0 %v3947
  %6636 = vmatpush1.bf16.msra.mxu0 %v3946
  %6637 = vmatprep.subr.bf16.mxu0 %v3951
  %6638 = vmatpush1.bf16.msra.mxu0 %v3950
  %6639 = vmatprep.subr.bf16.mxu0 %v3955
  %6640 = vmatpush1.bf16.msra.mxu0 %v3954
  %6641 = vmatprep.subr.bf16.mxu0 %v3959
  %6642 = vmatpush1.bf16.msra.mxu0 %v3958
  %6643 = vmatprep.subr.bf16.mxu0 %v3963
  %6644 = vmatpush1.bf16.msra.mxu0 %v3962
  %6645 = vmatprep.subr.bf16.mxu0 %v3967
  %6646 = vmatpush1.bf16.msra.mxu0 %v3966
  %6647 = vmatprep.subr.bf16.mxu0 %v3971
  %6648 = vmatpush1.bf16.msra.mxu0 %v3970
  %6649 = vmatprep.subr.bf16.mxu0 %v3975
  %6650 = vmatpush1.bf16.msra.mxu0 %v3974
  %6651 = vmatprep.subr.bf16.mxu0 %v5130
  %6652 = vmatpush1.bf16.msra.mxu0 %v5129
  %6653 = vmatprep.subr.bf16.mxu0 %v5134
  %6654 = vmatpush1.bf16.msra.mxu0 %v5133
  %6655 = vmatprep.subr.bf16.mxu0 %v5138
  %6656 = vmatpush1.bf16.msra.mxu0 %v5137
  %6657 = vmatprep.subr.bf16.mxu0 %v5142
  %6658 = vmatpush1.bf16.msra.mxu0 %v5141
  %6659 = vmatprep.subr.bf16.mxu0 %v5146
  %6660 = vmatpush1.bf16.msra.mxu0 %v5145
  %6661 = vmatprep.subr.bf16.mxu0 %v5150
  %6662 = vmatpush1.bf16.msra.mxu0 %v5149
  %6663 = vmatprep.subr.bf16.mxu0 %v5154
  %6664 = vmatpush1.bf16.msra.mxu0 %v5153
  %6665 = vmatprep.subr.bf16.mxu0 %v5158
  %6666 = vmatpush1.bf16.msra.mxu0 %v5157
  %6667 = vmatprep.mubr.bf16.mxu0 %v6057
  %6668 = vmatmul.mubr.bf16.gmra.mrb[0].mxu0 %v6056
  %v6669 = vpop.f32.mrb[0].mxu0
  %v6670 = vadd.f32 %v6597, %v6669
  %v6671 = vpop.f32.mrb[0].mxu0
  %v6672 = vadd.f32 %v6599, %v6671
  %v6673 = vpop.f32.mrb[0].mxu0
  %v6674 = vadd.f32 %v6601, %v6673
  %v6675 = vpop.f32.mrb[0].mxu0
  %v6676 = vadd.f32 %v6603, %v6675
  %6677 = vmatprep.mubr.bf16.mxu0 %v6066
  %6678 = vmatmul.mubr.bf16.gmra.mrb[0].mxu0 %v6065
  %v6679 = vpop.f32.mrb[0].mxu0
  %v6680 = vadd.f32 %v6607, %v6679
  %v6681 = vpop.f32.mrb[0].mxu0
  %v6682 = vadd.f32 %v6609, %v6681
  %v6683 = vpop.f32.mrb[0].mxu0
  %v6684 = vadd.f32 %v6611, %v6683
  %v6685 = vpop.f32.mrb[0].mxu0
  %v6686 = vadd.f32 %v6613, %v6685
  %6687 = vmatprep.mubr.bf16.mxu0 %v6075
  %6688 = vmatmul.mubr.bf16.gmra.mrb[0].mxu0 %v6074
  %v6689 = vpop.f32.mrb[0].mxu0
  %v6690 = vadd.f32 %v6617, %v6689
  %v6691 = vpop.f32.mrb[0].mxu0
  %v6692 = vadd.f32 %v6619, %v6691
  %v6693 = vpop.f32.mrb[0].mxu0
  %v6694 = vadd.f32 %v6621, %v6693
  %v6695 = vpop.f32.mrb[0].mxu0
  %v6696 = vadd.f32 %v6623, %v6695
  %6697 = vmatprep.mubr.bf16.mxu0 %v6084
  %6698 = vmatmul.mubr.bf16.gmra.mrb[0].mxu0 %v6083
  %v6699 = vpop.f32.mrb[0].mxu0
  %v6700 = vadd.f32 %v6627, %v6699
  %v6701 = vpop.f32.mrb[0].mxu0
  %v6702 = vadd.f32 %v6629, %v6701
  %v6703 = vpop.f32.mrb[0].mxu0
  %v6704 = vadd.f32 %v6631, %v6703
  %v6705 = vpop.f32.mrb[0].mxu0
  %v6706 = vadd.f32 %v6633, %v6705
  %6707 = vdwg.mxu0
  %6708 = vmatprep.subr.bf16.mxu0 %v5361
  %6709 = vmatpush1.bf16.msra.mxu0 %v5360
  %6710 = vmatprep.subr.bf16.mxu0 %v5365
  %6711 = vmatpush1.bf16.msra.mxu0 %v5364
  %6712 = vmatprep.subr.bf16.mxu0 %v5369
  %6713 = vmatpush1.bf16.msra.mxu0 %v5368
  %6714 = vmatprep.subr.bf16.mxu0 %v5373
  %6715 = vmatpush1.bf16.msra.mxu0 %v5372
  %6716 = vmatprep.subr.bf16.mxu0 %v5377
  %6717 = vmatpush1.bf16.msra.mxu0 %v5376
  %6718 = vmatprep.subr.bf16.mxu0 %v5381
  %6719 = vmatpush1.bf16.msra.mxu0 %v5380
  %6720 = vmatprep.subr.bf16.mxu0 %v5385
  %6721 = vmatpush1.bf16.msra.mxu0 %v5384
  %6722 = vmatprep.subr.bf16.mxu0 %v5389
  %6723 = vmatpush1.bf16.msra.mxu0 %v5388
  %6724 = vmatprep.subr.bf16.mxu0 %v5592
  %6725 = vmatpush1.bf16.msra.mxu0 %v5591
  %6726 = vmatprep.subr.bf16.mxu0 %v5596
  %6727 = vmatpush1.bf16.msra.mxu0 %v5595
  %6728 = vmatprep.subr.bf16.mxu0 %v5600
  %6729 = vmatpush1.bf16.msra.mxu0 %v5599
  %6730 = vmatprep.subr.bf16.mxu0 %v5604
  %6731 = vmatpush1.bf16.msra.mxu0 %v5603
  %6732 = vmatprep.subr.bf16.mxu0 %v5608
  %6733 = vmatpush1.bf16.msra.mxu0 %v5607
  %6734 = vmatprep.subr.bf16.mxu0 %v5612
  %6735 = vmatpush1.bf16.msra.mxu0 %v5611
  %6736 = vmatprep.subr.bf16.mxu0 %v5616
  %6737 = vmatpush1.bf16.msra.mxu0 %v5615
  %6738 = vmatprep.subr.bf16.mxu0 %v5620
  %6739 = vmatpush1.bf16.msra.mxu0 %v5619
  %6740 = vmatprep.mubr.bf16.mxu0 %v6059
  %6741 = vmatmul.mubr.bf16.gmra.mrb[0].mxu0 %v6058
  %v6742 = vpop.f32.mrb[0].mxu0
  %v6743 = vadd.f32 %v6670, %v6742
  %v6744 = vpop.f32.mrb[0].mxu0
  %v6745 = vadd.f32 %v6672, %v6744
  %v6746 = vpop.f32.mrb[0].mxu0
  %v6747 = vadd.f32 %v6674, %v6746
  %v6748 = vpop.f32.mrb[0].mxu0
  %v6749 = vadd.f32 %v6676, %v6748
  %6750 = vmatprep.mubr.bf16.mxu0 %v6068
  %6751 = vmatmul.mubr.bf16.gmra.mrb[0].mxu0 %v6067
  %v6752 = vpop.f32.mrb[0].mxu0
  %v6753 = vadd.f32 %v6680, %v6752
  %v6754 = vpop.f32.mrb[0].mxu0
  %v6755 = vadd.f32 %v6682, %v6754
  %v6756 = vpop.f32.mrb[0].mxu0
  %v6757 = vadd.f32 %v6684, %v6756
  %v6758 = vpop.f32.mrb[0].mxu0
  %v6759 = vadd.f32 %v6686, %v6758
  %6760 = vmatprep.mubr.bf16.mxu0 %v6077
  %6761 = vmatmul.mubr.bf16.gmra.mrb[0].mxu0 %v6076
  %v6762 = vpop.f32.mrb[0].mxu0
  %v6763 = vadd.f32 %v6690, %v6762
  %v6764 = vpop.f32.mrb[0].mxu0
  %v6765 = vadd.f32 %v6692, %v6764
  %v6766 = vpop.f32.mrb[0].mxu0
  %v6767 = vadd.f32 %v6694, %v6766
  %v6768 = vpop.f32.mrb[0].mxu0
  %v6769 = vadd.f32 %v6696, %v6768
  %6770 = vmatprep.mubr.bf16.mxu0 %v6086
  %6771 = vmatmul.mubr.bf16.gmra.mrb[0].mxu0 %v6085
  %v6772 = vpop.f32.mrb[0].mxu0
  %v6773 = vadd.f32 %v6700, %v6772
  %v6774 = vpop.f32.mrb[0].mxu0
  %v6775 = vadd.f32 %v6702, %v6774
  %v6776 = vpop.f32.mrb[0].mxu0
  %v6777 = vadd.f32 %v6704, %v6776
  %v6778 = vpop.f32.mrb[0].mxu0
  %v6779 = vadd.f32 %v6706, %v6778
  %6780 = vdwg.mxu0
  %6781 = vmatprep.subr.bf16.mxu0 %v5823
  %6782 = vmatpush1.bf16.msra.mxu0 %v5822
  %6783 = vmatprep.subr.bf16.mxu0 %v5827
  %6784 = vmatpush1.bf16.msra.mxu0 %v5826
  %6785 = vmatprep.subr.bf16.mxu0 %v5831
  %6786 = vmatpush1.bf16.msra.mxu0 %v5830
  %6787 = vmatprep.subr.bf16.mxu0 %v5835
  %6788 = vmatpush1.bf16.msra.mxu0 %v5834
  %6789 = vmatprep.subr.bf16.mxu0 %v5839
  %6790 = vmatpush1.bf16.msra.mxu0 %v5838
  %6791 = vmatprep.subr.bf16.mxu0 %v5843
  %6792 = vmatpush1.bf16.msra.mxu0 %v5842
  %6793 = vmatprep.subr.bf16.mxu0 %v5847
  %6794 = vmatpush1.bf16.msra.mxu0 %v5846
  %6795 = vmatprep.subr.bf16.mxu0 %v5851
  %6796 = vmatpush1.bf16.msra.mxu0 %v5850
  %6797 = vmatprep.subr.bf16.mxu0 0
  %6798 = vmatpush1.bf16.msra.mxu0 0
  %6799 = vmatprep.subr.bf16.mxu0 0
  %6800 = vmatpush1.bf16.msra.mxu0 0
  %6801 = vmatprep.subr.bf16.mxu0 0
  %6802 = vmatpush1.bf16.msra.mxu0 0
  %6803 = vmatprep.subr.bf16.mxu0 0
  %6804 = vmatpush1.bf16.msra.mxu0 0
  %6805 = vmatprep.subr.bf16.mxu0 0
  %6806 = vmatpush1.bf16.msra.mxu0 0
  %6807 = vmatprep.subr.bf16.mxu0 0
  %6808 = vmatpush1.bf16.msra.mxu0 0
  %6809 = vmatprep.subr.bf16.mxu0 0
  %6810 = vmatpush1.bf16.msra.mxu0 0
  %6811 = vmatprep.subr.bf16.mxu0 0
  %6812 = vmatpush1.bf16.msra.mxu0 0
  %6813 = vmatprep.mubr.bf16.mxu0 0
  %6814 = vmatmul.mubr.bf16.gmra.mrb[0].mxu0 %v6060
  %v6815 = vpop.f32.mrb[0].mxu0
  %v6816 = vadd.f32 %v6743, %v6815
  %v6817 = vpop.f32.mrb[0].mxu0
  %v6818 = vadd.f32 %v6745, %v6817
  %v6819 = vpop.f32.mrb[0].mxu0
  %v6820 = vadd.f32 %v6747, %v6819
  %v6821 = vpop.f32.mrb[0].mxu0
  %v6822 = vadd.f32 %v6749, %v6821
  %6823 = vmatprep.mubr.bf16.mxu0 0
  %6824 = vmatmul.mubr.bf16.gmra.mrb[0].mxu0 %v6069
  %v6825 = vpop.f32.mrb[0].mxu0
  %v6826 = vadd.f32 %v6753, %v6825
  %v6827 = vpop.f32.mrb[0].mxu0
  %v6828 = vadd.f32 %v6755, %v6827
  %v6829 = vpop.f32.mrb[0].mxu0
  %v6830 = vadd.f32 %v6757, %v6829
  %v6831 = vpop.f32.mrb[0].mxu0
  %v6832 = vadd.f32 %v6759, %v6831
  %6833 = vmatprep.mubr.bf16.mxu0 0
  %6834 = vmatmul.mubr.bf16.gmra.mrb[0].mxu0 %v6078
  %v6835 = vpop.f32.mrb[0].mxu0
  %v6836 = vadd.f32 %v6763, %v6835
  %v6837 = vpop.f32.mrb[0].mxu0
  %v6838 = vadd.f32 %v6765, %v6837
  %v6839 = vpop.f32.mrb[0].mxu0
  %v6840 = vadd.f32 %v6767, %v6839
  %v6841 = vpop.f32.mrb[0].mxu0
  %v6842 = vadd.f32 %v6769, %v6841
  %6843 = vmatprep.mubr.bf16.mxu0 0
  %6844 = vmatmul.mubr.bf16.gmra.mrb[0].mxu0 %v6087
  %v6845 = vpop.f32.mrb[0].mxu0
  %v6846 = vadd.f32 %v6773, %v6845
  %v6847 = vpop.f32.mrb[0].mxu0
  %v6848 = vadd.f32 %v6775, %v6847
  %v6849 = vpop.f32.mrb[0].mxu0
  %v6850 = vadd.f32 %v6777, %v6849
  %v6851 = vpop.f32.mrb[0].mxu0
  %v6852 = vadd.f32 %v6779, %v6851
  %6853 = vdwg.mxu0
  %v6854 = vld [vmem:[%s17] sm:$0xff]
  %v6855 = vld [vmem:[%s17 + $0x8] sm:$0xff]
  %v6856 = vld [vmem:[%s17 + $0x10] sm:$0xff]
  %v6857 = vld [vmem:[%s17 + $0x18] sm:$0xff]
  %v6858 = vld [vmem:[%s17 + $0x20] sm:$0xff]
  %v6859 = vld [vmem:[%s17 + $0x28] sm:$0xff]
  %v6860 = vld [vmem:[%s17 + $0x30] sm:$0xff]
  %v6861 = vld [vmem:[%s17 + $0x38] sm:$0xff]
  %v6862 = vld [vmem:[%s18] sm:$0xff]
  %v6863 = vld [vmem:[%s18 + $0x8] sm:$0xff]
  %v6864 = vld [vmem:[%s18 + $0x10] sm:$0xff]
  %v6865 = vld [vmem:[%s18 + $0x18] sm:$0xff]
  %v6866 = vld [vmem:[%s18 + $0x20] sm:$0xff]
  %v6867 = vld [vmem:[%s18 + $0x28] sm:$0xff]
  %v6868 = vld [vmem:[%s18 + $0x30] sm:$0xff]
  %v6869 = vld [vmem:[%s18 + $0x38] sm:$0xff]
  %v6870 = vadd.f32 %v6451, %v6453
  %v6871 = vadd.f32 %v6870, %v6816
  %v6872 = vadd.f32 %v6871, %v6818
  %6873 = vadd.xlane.f32.xlu0 %v6872
  %v6874 = vpop.xlane.xlu0 %6873
  %v6875 = vadd.f32 %v6455, %v6457
  %v6876 = vadd.f32 %v6875, %v6820
  %v6877 = vadd.f32 %v6876, %v6822
  %6878 = vadd.xlane.f32.xlu0 %v6877
  %v6879 = vpop.xlane.xlu0 %6878
  %v6880 = vadd.f32 %v6461, %v6463
  %v6881 = vadd.f32 %v6880, %v6826
  %v6882 = vadd.f32 %v6881, %v6828
  %6883 = vadd.xlane.f32.xlu0 %v6882
  %v6884 = vpop.xlane.xlu0 %6883
  %v6885 = vadd.f32 %v6465, %v6467
  %v6886 = vadd.f32 %v6885, %v6830
  %v6887 = vadd.f32 %v6886, %v6832
  %6888 = vadd.xlane.f32.xlu0 %v6887
  %v6889 = vpop.xlane.xlu0 %6888
  %v6890 = vadd.f32 %v6471, %v6473
  %v6891 = vadd.f32 %v6890, %v6836
  %v6892 = vadd.f32 %v6891, %v6838
  %6893 = vadd.xlane.f32.xlu0 %v6892
  %v6894 = vpop.xlane.xlu0 %6893
  %v6895 = vadd.f32 %v6475, %v6477
  %v6896 = vadd.f32 %v6895, %v6840
  %v6897 = vadd.f32 %v6896, %v6842
  %6898 = vadd.xlane.f32.xlu0 %v6897
  %v6899 = vpop.xlane.xlu0 %6898
  %v6900 = vadd.f32 %v6481, %v6483
  %v6901 = vadd.f32 %v6900, %v6846
  %v6902 = vadd.f32 %v6901, %v6848
  %6903 = vadd.xlane.f32.xlu0 %v6902
  %v6904 = vpop.xlane.xlu0 %6903
  %v6905 = vadd.f32 %v6485, %v6487
  %v6906 = vadd.f32 %v6905, %v6850
  %v6907 = vadd.f32 %v6906, %v6852
  %6908 = vadd.xlane.f32.xlu0 %v6907
  %v6909 = vpop.xlane.xlu0 %6908
  %v6910 = vmul.f32 %v6451, %v6451
  %v6911 = vmul.f32 %v6453, %v6453
  %v6912 = vmul.f32 %v6816, %v6816
  %v6913 = vmul.f32 %v6818, %v6818
  %v6914 = vmul.f32 %v6455, %v6455
  %v6915 = vmul.f32 %v6457, %v6457
  %v6916 = vmul.f32 %v6820, %v6820
  %v6917 = vmul.f32 %v6822, %v6822
  %v6918 = vmul.f32 %v6461, %v6461
  %v6919 = vmul.f32 %v6463, %v6463
  %v6920 = vmul.f32 %v6826, %v6826
  %v6921 = vmul.f32 %v6828, %v6828
  %v6922 = vmul.f32 %v6465, %v6465
  %v6923 = vmul.f32 %v6467, %v6467
  %v6924 = vmul.f32 %v6830, %v6830
  %v6925 = vmul.f32 %v6832, %v6832
  %v6926 = vmul.f32 %v6471, %v6471
  %v6927 = vmul.f32 %v6473, %v6473
  %v6928 = vmul.f32 %v6836, %v6836
  %v6929 = vmul.f32 %v6838, %v6838
  %v6930 = vmul.f32 %v6475, %v6475
  %v6931 = vmul.f32 %v6477, %v6477
  %v6932 = vmul.f32 %v6840, %v6840
  %v6933 = vmul.f32 %v6842, %v6842
  %v6934 = vmul.f32 %v6481, %v6481
  %v6935 = vmul.f32 %v6483, %v6483
  %v6936 = vmul.f32 %v6846, %v6846
  %v6937 = vmul.f32 %v6848, %v6848
  %v6938 = vmul.f32 %v6485, %v6485
  %v6939 = vmul.f32 %v6487, %v6487
  %v6940 = vmul.f32 %v6850, %v6850
  %v6941 = vmul.f32 %v6852, %v6852
  %v6942 = vadd.f32 %v6910, %v6911
  %v6943 = vadd.f32 %v6942, %v6912
  %v6944 = vadd.f32 %v6943, %v6913
  %6945 = vadd.xlane.f32.xlu0 %v6944
  %v6946 = vpop.xlane.xlu0 %6945
  %v6947 = vadd.f32 %v6914, %v6915
  %v6948 = vadd.f32 %v6947, %v6916
  %v6949 = vadd.f32 %v6948, %v6917
  %6950 = vadd.xlane.f32.xlu0 %v6949
  %v6951 = vpop.xlane.xlu0 %6950
  %v6952 = vadd.f32 %v6918, %v6919
  %v6953 = vadd.f32 %v6952, %v6920
  %v6954 = vadd.f32 %v6953, %v6921
  %6955 = vadd.xlane.f32.xlu0 %v6954
  %v6956 = vpop.xlane.xlu0 %6955
  %v6957 = vadd.f32 %v6922, %v6923
  %v6958 = vadd.f32 %v6957, %v6924
  %v6959 = vadd.f32 %v6958, %v6925
  %6960 = vadd.xlane.f32.xlu0 %v6959
  %v6961 = vpop.xlane.xlu0 %6960
  %v6962 = vadd.f32 %v6926, %v6927
  %v6963 = vadd.f32 %v6962, %v6928
  %v6964 = vadd.f32 %v6963, %v6929
  %6965 = vadd.xlane.f32.xlu0 %v6964
  %v6966 = vpop.xlane.xlu0 %6965
  %v6967 = vadd.f32 %v6930, %v6931
  %v6968 = vadd.f32 %v6967, %v6932
  %v6969 = vadd.f32 %v6968, %v6933
  %6970 = vadd.xlane.f32.xlu0 %v6969
  %v6971 = vpop.xlane.xlu0 %6970
  %v6972 = vadd.f32 %v6934, %v6935
  %v6973 = vadd.f32 %v6972, %v6936
  %v6974 = vadd.f32 %v6973, %v6937
  %6975 = vadd.xlane.f32.xlu0 %v6974
  %v6976 = vpop.xlane.xlu0 %6975
  %v6977 = vadd.f32 %v6938, %v6939
  %v6978 = vadd.f32 %v6977, %v6940
  %v6979 = vadd.f32 %v6978, %v6941
  %6980 = vadd.xlane.f32.xlu0 %v6979
  %v6981 = vpop.xlane.xlu0 %6980
  %v6982 = vmul.f32 %v6874, 0.001953125
  %v6983 = vmul.f32 %v6879, 0.001953125
  %v6984 = vmul.f32 %v6884, 0.001953125
  %v6985 = vmul.f32 %v6889, 0.001953125
  %v6986 = vmul.f32 %v6894, 0.001953125
  %v6987 = vmul.f32 %v6899, 0.001953125
  %v6988 = vmul.f32 %v6904, 0.001953125
  %v6989 = vmul.f32 %v6909, 0.001953125
  %v6990 = vmul.f32 %v6946, 0.001953125
  %v6991 = vmul.f32 %v6951, 0.001953125
  %v6992 = vmul.f32 %v6956, 0.001953125
  %v6993 = vmul.f32 %v6961, 0.001953125
  %v6994 = vmul.f32 %v6966, 0.001953125
  %v6995 = vmul.f32 %v6971, 0.001953125
  %v6996 = vmul.f32 %v6976, 0.001953125
  %v6997 = vmul.f32 %v6981, 0.001953125
  %v6998 = vmul.f32 %v6982, %v6982
  %v6999 = vmul.f32 %v6983, %v6983
  %v7000 = vmul.f32 %v6984, %v6984
  %v7001 = vmul.f32 %v6985, %v6985
  %v7002 = vmul.f32 %v6986, %v6986
  %v7003 = vmul.f32 %v6987, %v6987
  %v7004 = vmul.f32 %v6988, %v6988
  %v7005 = vmul.f32 %v6989, %v6989
  %v7006 = vsub.f32 %v6990, %v6998
  %v7007 = vsub.f32 %v6991, %v6999
  %v7008 = vsub.f32 %v6992, %v7000
  %v7009 = vsub.f32 %v6993, %v7001
  %v7010 = vsub.f32 %v6994, %v7002
  %v7011 = vsub.f32 %v6995, %v7003
  %v7012 = vsub.f32 %v6996, %v7004
  %v7013 = vsub.f32 %v6997, %v7005
  %v7014 = vmax.f32 %v7006, 0.0
  %v7015 = vmax.f32 %v7007, 0.0
  %v7016 = vmax.f32 %v7008, 0.0
  %v7017 = vmax.f32 %v7009, 0.0
  %v7018 = vmax.f32 %v7010, 0.0
  %v7019 = vmax.f32 %v7011, 0.0
  %v7020 = vmax.f32 %v7012, 0.0
  %v7021 = vmax.f32 %v7013, 0.0
  %v7022 = vadd.f32 %v7014, 0.8
  %v7023 = vadd.f32 %v7015, 0.8
  %v7024 = vadd.f32 %v7016, 0.8
  %v7025 = vadd.f32 %v7017, 0.8
  %v7026 = vadd.f32 %v7018, 0.8
  %v7027 = vadd.f32 %v7019, 0.8
  %v7028 = vadd.f32 %v7020, 0.8
  %v7029 = vadd.f32 %v7021, 0.8
  %v7030 = vrsqrt.pop %v7022
  %v7031 = vrsqrt.pop %v7023
  %v7032 = vrsqrt.pop %v7024
  %v7033 = vrsqrt.pop %v7025
  %v7034 = vrsqrt.pop %v7026
  %v7035 = vrsqrt.pop %v7027
  %v7036 = vrsqrt.pop %v7028
  %v7037 = vrsqrt.pop %v7029
  %v7038 = vmul.f32 %v6854, %v7030
  %v7039 = vmul.f32 %v6855, %v7031
  %v7040 = vmul.f32 %v6856, %v7032
  %v7041 = vmul.f32 %v6857, %v7033
  %v7042 = vmul.f32 %v6858, %v7034
  %v7043 = vmul.f32 %v6859, %v7035
  %v7044 = vmul.f32 %v6860, %v7036
  %v7045 = vmul.f32 %v6861, %v7037
  %v7046 = vmul.f32 %v6982, %v7038
  %v7047 = vmul.f32 %v6983, %v7039
  %v7048 = vmul.f32 %v6984, %v7040
  %v7049 = vmul.f32 %v6985, %v7041
  %v7050 = vmul.f32 %v6986, %v7042
  %v7051 = vmul.f32 %v6987, %v7043
  %v7052 = vmul.f32 %v6988, %v7044
  %v7053 = vmul.f32 %v6989, %v7045
  %v7054 = vsub.f32 %v6862, %v7046
  %v7055 = vsub.f32 %v6863, %v7047
  %v7056 = vsub.f32 %v6864, %v7048
  %v7057 = vsub.f32 %v6865, %v7049
  %v7058 = vsub.f32 %v6866, %v7050
  %v7059 = vsub.f32 %v6867, %v7051
  %v7060 = vsub.f32 %v6868, %v7052
  %v7061 = vsub.f32 %v6869, %v7053
  %v7062 = vpack.c.bf16 %v6455, %v6451
  %v7063 = vpack.c.bf16 %v6457, %v6453
  %v7064 = vpack.c.bf16 %v6820, %v6816
  %v7065 = vpack.c.bf16 %v6822, %v6818
  %v7066 = vpack.c.bf16 %v6465, %v6461
  %v7067 = vpack.c.bf16 %v6467, %v6463
  %v7068 = vpack.c.bf16 %v6830, %v6826
  %v7069 = vpack.c.bf16 %v6832, %v6828
  %v7070 = vpack.c.bf16 %v6475, %v6471
  %v7071 = vpack.c.bf16 %v6477, %v6473
  %v7072 = vpack.c.bf16 %v6840, %v6836
  %v7073 = vpack.c.bf16 %v6842, %v6838
  %v7074 = vpack.c.bf16 %v6485, %v6481
  %v7075 = vpack.c.bf16 %v6487, %v6483
  %v7076 = vpack.c.bf16 %v6850, %v6846
  %v7077 = vpack.c.bf16 %v6852, %v6848
  %v7078 = vunpack.c.l.bf16 %v7062
  %v7079 = vunpack.c.l.bf16 %v7063
  %v7080 = vunpack.c.l.bf16 %v7064
  %v7081 = vunpack.c.l.bf16 %v7065
  %v7082 = vunpack.c.h.bf16 %v7062
  %v7083 = vunpack.c.h.bf16 %v7063
  %v7084 = vunpack.c.h.bf16 %v7064
  %v7085 = vunpack.c.h.bf16 %v7065
  %v7086 = vunpack.c.l.bf16 %v7066
  %v7087 = vunpack.c.l.bf16 %v7067
  %v7088 = vunpack.c.l.bf16 %v7068
  %v7089 = vunpack.c.l.bf16 %v7069
  %v7090 = vunpack.c.h.bf16 %v7066
  %v7091 = vunpack.c.h.bf16 %v7067
  %v7092 = vunpack.c.h.bf16 %v7068
  %v7093 = vunpack.c.h.bf16 %v7069
  %v7094 = vunpack.c.l.bf16 %v7070
  %v7095 = vunpack.c.l.bf16 %v7071
  %v7096 = vunpack.c.l.bf16 %v7072
  %v7097 = vunpack.c.l.bf16 %v7073
  %v7098 = vunpack.c.h.bf16 %v7070
  %v7099 = vunpack.c.h.bf16 %v7071
  %v7100 = vunpack.c.h.bf16 %v7072
  %v7101 = vunpack.c.h.bf16 %v7073
  %v7102 = vunpack.c.l.bf16 %v7074
  %v7103 = vunpack.c.l.bf16 %v7075
  %v7104 = vunpack.c.l.bf16 %v7076
  %v7105 = vunpack.c.l.bf16 %v7077
  %v7106 = vunpack.c.h.bf16 %v7074
  %v7107 = vunpack.c.h.bf16 %v7075
  %v7108 = vunpack.c.h.bf16 %v7076
  %v7109 = vunpack.c.h.bf16 %v7077
  %7111 = vset.pattern.permute.xlu0 0
  %7112 = vperm.xlu0 %7111, %v7038
  %v7113 = vpop.permute.xlu0 %7112
  %7116 = vset.pattern.permute.xlu0 0
  %7117 = vperm.xlu0 %7116, %v7039
  %v7118 = vpop.permute.xlu0 %7117
  %7121 = vset.pattern.permute.xlu0 0
  %7122 = vperm.xlu0 %7121, %v7040
  %v7123 = vpop.permute.xlu0 %7122
  %7126 = vset.pattern.permute.xlu0 0
  %7127 = vperm.xlu0 %7126, %v7041
  %v7128 = vpop.permute.xlu0 %7127
  %7131 = vset.pattern.permute.xlu0 0
  %7132 = vperm.xlu0 %7131, %v7042
  %v7133 = vpop.permute.xlu0 %7132
  %7136 = vset.pattern.permute.xlu0 0
  %7137 = vperm.xlu0 %7136, %v7043
  %v7138 = vpop.permute.xlu0 %7137
  %7141 = vset.pattern.permute.xlu0 0
  %7142 = vperm.xlu0 %7141, %v7044
  %v7143 = vpop.permute.xlu0 %7142
  %7146 = vset.pattern.permute.xlu0 0
  %7147 = vperm.xlu0 %7146, %v7045
  %v7148 = vpop.permute.xlu0 %7147
  %v7150 = vmul.f32 %v7078, %v7113
  %v7151 = vmul.f32 %v7079, %v7113
  %v7152 = vmul.f32 %v7080, %v7113
  %v7153 = vmul.f32 %v7081, %v7113
  %v7154 = vmul.f32 %v7082, %v7118
  %v7155 = vmul.f32 %v7083, %v7118
  %v7156 = vmul.f32 %v7084, %v7118
  %v7157 = vmul.f32 %v7085, %v7118
  %v7158 = vmul.f32 %v7086, %v7123
  %v7159 = vmul.f32 %v7087, %v7123
  %v7160 = vmul.f32 %v7088, %v7123
  %v7161 = vmul.f32 %v7089, %v7123
  %v7162 = vmul.f32 %v7090, %v7128
  %v7163 = vmul.f32 %v7091, %v7128
  %v7164 = vmul.f32 %v7092, %v7128
  %v7165 = vmul.f32 %v7093, %v7128
  %v7166 = vmul.f32 %v7094, %v7133
  %v7167 = vmul.f32 %v7095, %v7133
  %v7168 = vmul.f32 %v7096, %v7133
  %v7169 = vmul.f32 %v7097, %v7133
  %v7170 = vmul.f32 %v7098, %v7138
  %v7171 = vmul.f32 %v7099, %v7138
  %v7172 = vmul.f32 %v7100, %v7138
  %v7173 = vmul.f32 %v7101, %v7138
  %v7174 = vmul.f32 %v7102, %v7143
  %v7175 = vmul.f32 %v7103, %v7143
  %v7176 = vmul.f32 %v7104, %v7143
  %v7177 = vmul.f32 %v7105, %v7143
  %v7178 = vmul.f32 %v7106, %v7148
  %v7179 = vmul.f32 %v7107, %v7148
  %v7180 = vmul.f32 %v7108, %v7148
  %v7181 = vmul.f32 %v7109, %v7148
  %7183 = vset.pattern.permute.xlu0 0
  %7184 = vperm.xlu0 %7183, %v7054
  %v7185 = vpop.permute.xlu0 %7184
  %7188 = vset.pattern.permute.xlu0 0
  %7189 = vperm.xlu0 %7188, %v7055
  %v7190 = vpop.permute.xlu0 %7189
  %7193 = vset.pattern.permute.xlu0 0
  %7194 = vperm.xlu0 %7193, %v7056
  %v7195 = vpop.permute.xlu0 %7194
  %7198 = vset.pattern.permute.xlu0 0
  %7199 = vperm.xlu0 %7198, %v7057
  %v7200 = vpop.permute.xlu0 %7199
  %7203 = vset.pattern.permute.xlu0 0
  %7204 = vperm.xlu0 %7203, %v7058
  %v7205 = vpop.permute.xlu0 %7204
  %7208 = vset.pattern.permute.xlu0 0
  %7209 = vperm.xlu0 %7208, %v7059
  %v7210 = vpop.permute.xlu0 %7209
  %7213 = vset.pattern.permute.xlu0 0
  %7214 = vperm.xlu0 %7213, %v7060
  %v7215 = vpop.permute.xlu0 %7214
  %7218 = vset.pattern.permute.xlu0 0
  %7219 = vperm.xlu0 %7218, %v7061
  %v7220 = vpop.permute.xlu0 %7219
  %v7222 = vadd.f32 %v7150, %v7185
  %v7223 = vadd.f32 %v7151, %v7185
  %v7224 = vadd.f32 %v7152, %v7185
  %v7225 = vadd.f32 %v7153, %v7185
  %v7226 = vadd.f32 %v7154, %v7190
  %v7227 = vadd.f32 %v7155, %v7190
  %v7228 = vadd.f32 %v7156, %v7190
  %v7229 = vadd.f32 %v7157, %v7190
  %v7230 = vadd.f32 %v7158, %v7195
  %v7231 = vadd.f32 %v7159, %v7195
  %v7232 = vadd.f32 %v7160, %v7195
  %v7233 = vadd.f32 %v7161, %v7195
  %v7234 = vadd.f32 %v7162, %v7200
  %v7235 = vadd.f32 %v7163, %v7200
  %v7236 = vadd.f32 %v7164, %v7200
  %v7237 = vadd.f32 %v7165, %v7200
  %v7238 = vadd.f32 %v7166, %v7205
  %v7239 = vadd.f32 %v7167, %v7205
  %v7240 = vadd.f32 %v7168, %v7205
  %v7241 = vadd.f32 %v7169, %v7205
  %v7242 = vadd.f32 %v7170, %v7210
  %v7243 = vadd.f32 %v7171, %v7210
  %v7244 = vadd.f32 %v7172, %v7210
  %v7245 = vadd.f32 %v7173, %v7210
  %v7246 = vadd.f32 %v7174, %v7215
  %v7247 = vadd.f32 %v7175, %v7215
  %v7248 = vadd.f32 %v7176, %v7215
  %v7249 = vadd.f32 %v7177, %v7215
  %v7250 = vadd.f32 %v7178, %v7220
  %v7251 = vadd.f32 %v7179, %v7220
  %v7252 = vadd.f32 %v7180, %v7220
  %v7253 = vadd.f32 %v7181, %v7220
  %vm7254 = vcmp.ge.f32.partialorder %v7222, 0.0
  %vm7255 = vcmp.ge.f32.partialorder %v7223, 0.0
  %vm7256 = vcmp.ge.f32.partialorder %v7224, 0.0
  %vm7257 = vcmp.ge.f32.partialorder %v7225, 0.0
  %vm7258 = vcmp.ge.f32.partialorder %v7226, 0.0
  %vm7259 = vcmp.ge.f32.partialorder %v7227, 0.0
  %vm7260 = vcmp.ge.f32.partialorder %v7228, 0.0
  %vm7261 = vcmp.ge.f32.partialorder %v7229, 0.0
  %vm7262 = vcmp.ge.f32.partialorder %v7230, 0.0
  %vm7263 = vcmp.ge.f32.partialorder %v7231, 0.0
  %vm7264 = vcmp.ge.f32.partialorder %v7232, 0.0
  %vm7265 = vcmp.ge.f32.partialorder %v7233, 0.0
  %vm7266 = vcmp.ge.f32.partialorder %v7234, 0.0
  %vm7267 = vcmp.ge.f32.partialorder %v7235, 0.0
  %vm7268 = vcmp.ge.f32.partialorder %v7236, 0.0
  %vm7269 = vcmp.ge.f32.partialorder %v7237, 0.0
  %vm7270 = vcmp.ge.f32.partialorder %v7238, 0.0
  %vm7271 = vcmp.ge.f32.partialorder %v7239, 0.0
  %vm7272 = vcmp.ge.f32.partialorder %v7240, 0.0
  %vm7273 = vcmp.ge.f32.partialorder %v7241, 0.0
  %vm7274 = vcmp.ge.f32.partialorder %v7242, 0.0
  %vm7275 = vcmp.ge.f32.partialorder %v7243, 0.0
  %vm7276 = vcmp.ge.f32.partialorder %v7244, 0.0
  %vm7277 = vcmp.ge.f32.partialorder %v7245, 0.0
  %vm7278 = vcmp.ge.f32.partialorder %v7246, 0.0
  %vm7279 = vcmp.ge.f32.partialorder %v7247, 0.0
  %vm7280 = vcmp.ge.f32.partialorder %v7248, 0.0
  %vm7281 = vcmp.ge.f32.partialorder %v7249, 0.0
  %vm7282 = vcmp.ge.f32.partialorder %v7250, 0.0
  %vm7283 = vcmp.ge.f32.partialorder %v7251, 0.0
  %vm7284 = vcmp.ge.f32.partialorder %v7252, 0.0
  %vm7285 = vcmp.ge.f32.partialorder %v7253, 0.0
  %v7286 = vmul.f32 %v7222, 0.2
  %v7287 = vmul.f32 %v7223, 0.2
  %v7288 = vmul.f32 %v7224, 0.2
  %v7289 = vmul.f32 %v7225, 0.2
  %v7290 = vmul.f32 %v7226, 0.2
  %v7291 = vmul.f32 %v7227, 0.2
  %v7292 = vmul.f32 %v7228, 0.2
  %v7293 = vmul.f32 %v7229, 0.2
  %v7294 = vmul.f32 %v7230, 0.2
  %v7295 = vmul.f32 %v7231, 0.2
  %v7296 = vmul.f32 %v7232, 0.2
  %v7297 = vmul.f32 %v7233, 0.2
  %v7298 = vmul.f32 %v7234, 0.2
  %v7299 = vmul.f32 %v7235, 0.2
  %v7300 = vmul.f32 %v7236, 0.2
  %v7301 = vmul.f32 %v7237, 0.2
  %v7302 = vmul.f32 %v7238, 0.2
  %v7303 = vmul.f32 %v7239, 0.2
  %v7304 = vmul.f32 %v7240, 0.2
  %v7305 = vmul.f32 %v7241, 0.2
  %v7306 = vmul.f32 %v7242, 0.2
  %v7307 = vmul.f32 %v7243, 0.2
  %v7308 = vmul.f32 %v7244, 0.2
  %v7309 = vmul.f32 %v7245, 0.2
  %v7310 = vmul.f32 %v7246, 0.2
  %v7311 = vmul.f32 %v7247, 0.2
  %v7312 = vmul.f32 %v7248, 0.2
  %v7313 = vmul.f32 %v7249, 0.2
  %v7314 = vmul.f32 %v7250, 0.2
  %v7315 = vmul.f32 %v7251, 0.2
  %v7316 = vmul.f32 %v7252, 0.2
  %v7317 = vmul.f32 %v7253, 0.2
  %v7318 = vsel %vm7254, %v7222, %v7286
  %v7319 = vsel %vm7255, %v7223, %v7287
  %v7320 = vsel %vm7256, %v7224, %v7288
  %v7321 = vsel %vm7257, %v7225, %v7289
  %v7322 = vsel %vm7258, %v7226, %v7290
  %v7323 = vsel %vm7259, %v7227, %v7291
  %v7324 = vsel %vm7260, %v7228, %v7292
  %v7325 = vsel %vm7261, %v7229, %v7293
  %v7326 = vsel %vm7262, %v7230, %v7294
  %v7327 = vsel %vm7263, %v7231, %v7295
  %v7328 = vsel %vm7264, %v7232, %v7296
  %v7329 = vsel %vm7265, %v7233, %v7297
  %v7330 = vsel %vm7266, %v7234, %v7298
  %v7331 = vsel %vm7267, %v7235, %v7299
  %v7332 = vsel %vm7268, %v7236, %v7300
  %v7333 = vsel %vm7269, %v7237, %v7301
  %v7334 = vsel %vm7270, %v7238, %v7302
  %v7335 = vsel %vm7271, %v7239, %v7303
  %v7336 = vsel %vm7272, %v7240, %v7304
  %v7337 = vsel %vm7273, %v7241, %v7305
  %v7338 = vsel %vm7274, %v7242, %v7306
  %v7339 = vsel %vm7275, %v7243, %v7307
  %v7340 = vsel %vm7276, %v7244, %v7308
  %v7341 = vsel %vm7277, %v7245, %v7309
  %v7342 = vsel %vm7278, %v7246, %v7310
  %v7343 = vsel %vm7279, %v7247, %v7311
  %v7344 = vsel %vm7280, %v7248, %v7312
  %v7345 = vsel %vm7281, %v7249, %v7313
  %v7346 = vsel %vm7282, %v7250, %v7314
  %v7347 = vsel %vm7283, %v7251, %v7315
  %v7348 = vsel %vm7284, %v7252, %v7316
  %v7349 = vsel %vm7285, %v7253, %v7317
  %v7350 = vpack.c.bf16 %v7322, %v7318
  %v7351 = vpack.c.bf16 %v7323, %v7319
  %v7352 = vpack.c.bf16 %v7324, %v7320
  %v7353 = vpack.c.bf16 %v7325, %v7321
  %v7354 = vpack.c.bf16 %v7330, %v7326
  %v7355 = vpack.c.bf16 %v7331, %v7327
  %v7356 = vpack.c.bf16 %v7332, %v7328
  %v7357 = vpack.c.bf16 %v7333, %v7329
  %v7358 = vpack.c.bf16 %v7338, %v7334
  %v7359 = vpack.c.bf16 %v7339, %v7335
  %v7360 = vpack.c.bf16 %v7340, %v7336
  %v7361 = vpack.c.bf16 %v7341, %v7337
  %v7362 = vpack.c.bf16 %v7346, %v7342
  %v7363 = vpack.c.bf16 %v7347, %v7343
  %v7364 = vpack.c.bf16 %v7348, %v7344
  %v7365 = vpack.c.bf16 %v7349, %v7345
  %7370 = vrot.lane.b32.xlu0 %v7353, 34
  %v7371 = vpop.permute.xlu0 %7370
  %7372 = vrot.lane.b32.xlu0 %v7357, 34
  %v7373 = vpop.permute.xlu0 %7372
  %7374 = vrot.lane.b32.xlu0 %v7361, 34
  %v7375 = vpop.permute.xlu0 %7374
  %7376 = vrot.lane.b32.xlu0 %v7365, 34
  %v7377 = vpop.permute.xlu0 %7376
  %7390 = vrot.lane.b32.xlu0 %v7350, 34
  %v7391 = vpop.permute.xlu0 %7390
  %7392 = vrot.lane.b32.xlu0 %v7351, 34
  %v7393 = vpop.permute.xlu0 %7392
  %7394 = vrot.lane.b32.xlu0 %v7352, 34
  %v7395 = vpop.permute.xlu0 %7394
  %7396 = vrot.lane.b32.xlu0 %v7354, 34
  %v7397 = vpop.permute.xlu0 %7396
  %7398 = vrot.lane.b32.xlu0 %v7355, 34
  %v7399 = vpop.permute.xlu0 %7398
  %7400 = vrot.lane.b32.xlu0 %v7356, 34
  %v7401 = vpop.permute.xlu0 %7400
  %7402 = vrot.lane.b32.xlu0 %v7358, 34
  %v7403 = vpop.permute.xlu0 %7402
  %7404 = vrot.lane.b32.xlu0 %v7359, 34
  %v7405 = vpop.permute.xlu0 %7404
  %7406 = vrot.lane.b32.xlu0 %v7360, 34
  %v7407 = vpop.permute.xlu0 %7406
  %7408 = vrot.lane.b32.xlu0 %v7362, 34
  %v7409 = vpop.permute.xlu0 %7408
  %7410 = vrot.lane.b32.xlu0 %v7363, 34
  %v7411 = vpop.permute.xlu0 %7410
  %7412 = vrot.lane.b32.xlu0 %v7364, 34
  %v7413 = vpop.permute.xlu0 %7412
  %v7414 = vsel %vm4072, %v7391, %v7393
  %v7415 = vsel %vm4072, %v7393, %v7395
  %v7416 = vsel %vm4072, %v7395, %v7371
  %v7417 = vsel %vm4072, %v7397, %v7399
  %v7418 = vsel %vm4072, %v7399, %v7401
  %v7419 = vsel %vm4072, %v7401, %v7373
  %v7420 = vsel %vm4072, %v7403, %v7405
  %v7421 = vsel %vm4072, %v7405, %v7407
  %v7422 = vsel %vm4072, %v7407, %v7375
  %v7423 = vsel %vm4072, %v7409, %v7411
  %v7424 = vsel %vm4072, %v7411, %v7413
  %v7425 = vsel %vm4072, %v7413, %v7377
  %v7440 = vsel %vm4121, %v7371, %v7391
  %v7444 = vsel %vm4121, %v7373, %v7397
  %v7448 = vsel %vm4121, %v7375, %v7403
  %v7452 = vsel %vm4121, %v7377, %v7409
  %v7454 = vmul.bf16 %v7440, %v4185
  %v7455 = vmul.bf16 %v7414, %v4192
  %v7456 = vmul.bf16 %v7415, %v4199
  %v7457 = vmul.bf16 %v7416, %v4206
  %v7458 = vmul.bf16 %v7444, %v4185
  %v7459 = vmul.bf16 %v7417, %v4192
  %v7460 = vmul.bf16 %v7418, %v4199
  %v7461 = vmul.bf16 %v7419, %v4206
  %v7462 = vmul.bf16 %v7448, %v4185
  %v7463 = vmul.bf16 %v7420, %v4192
  %v7464 = vmul.bf16 %v7421, %v4199
  %v7465 = vmul.bf16 %v7422, %v4206
  %v7466 = vmul.bf16 %v7452, %v4185
  %v7467 = vmul.bf16 %v7423, %v4192
  %v7468 = vmul.bf16 %v7424, %v4199
  %v7469 = vmul.bf16 %v7425, %v4206
  %7470 = vrot.lane.b32.xlu0 %v7353, 32
  %v7471 = vpop.permute.xlu0 %7470
  %7472 = vrot.lane.b32.xlu0 %v7357, 32
  %v7473 = vpop.permute.xlu0 %7472
  %7474 = vrot.lane.b32.xlu0 %v7361, 32
  %v7475 = vpop.permute.xlu0 %7474
  %7476 = vrot.lane.b32.xlu0 %v7365, 32
  %v7477 = vpop.permute.xlu0 %7476
  %7478 = vrot.lane.b32.xlu0 %v7350, 32
  %v7479 = vpop.permute.xlu0 %7478
  %7480 = vrot.lane.b32.xlu0 %v7351, 32
  %v7481 = vpop.permute.xlu0 %7480
  %7482 = vrot.lane.b32.xlu0 %v7352, 32
  %v7483 = vpop.permute.xlu0 %7482
  %7484 = vrot.lane.b32.xlu0 %v7354, 32
  %v7485 = vpop.permute.xlu0 %7484
  %7486 = vrot.lane.b32.xlu0 %v7355, 32
  %v7487 = vpop.permute.xlu0 %7486
  %7488 = vrot.lane.b32.xlu0 %v7356, 32
  %v7489 = vpop.permute.xlu0 %7488
  %7490 = vrot.lane.b32.xlu0 %v7358, 32
  %v7491 = vpop.permute.xlu0 %7490
  %7492 = vrot.lane.b32.xlu0 %v7359, 32
  %v7493 = vpop.permute.xlu0 %7492
  %7494 = vrot.lane.b32.xlu0 %v7360, 32
  %v7495 = vpop.permute.xlu0 %7494
  %7496 = vrot.lane.b32.xlu0 %v7362, 32
  %v7497 = vpop.permute.xlu0 %7496
  %7498 = vrot.lane.b32.xlu0 %v7363, 32
  %v7499 = vpop.permute.xlu0 %7498
  %7500 = vrot.lane.b32.xlu0 %v7364, 32
  %v7501 = vpop.permute.xlu0 %7500
  %v7502 = vsel %vm4303, %v7479, %v7481
  %v7503 = vsel %vm4303, %v7481, %v7483
  %v7504 = vsel %vm4303, %v7483, %v7471
  %v7505 = vsel %vm4303, %v7485, %v7487
  %v7506 = vsel %vm4303, %v7487, %v7489
  %v7507 = vsel %vm4303, %v7489, %v7473
  %v7508 = vsel %vm4303, %v7491, %v7493
  %v7509 = vsel %vm4303, %v7493, %v7495
  %v7510 = vsel %vm4303, %v7495, %v7475
  %v7511 = vsel %vm4303, %v7497, %v7499
  %v7512 = vsel %vm4303, %v7499, %v7501
  %v7513 = vsel %vm4303, %v7501, %v7477
  %v7528 = vsel %vm950, %v7471, %v7479
  %v7532 = vsel %vm950, %v7473, %v7485
  %v7536 = vsel %vm950, %v7475, %v7491
  %v7540 = vsel %vm950, %v7477, %v7497
  %v7542 = vmul.bf16 %v7528, %v4415
  %v7543 = vmul.bf16 %v7502, %v4422
  %v7544 = vmul.bf16 %v7503, %v4429
  %v7545 = vmul.bf16 %v7504, %v4436
  %v7546 = vmul.bf16 %v7532, %v4415
  %v7547 = vmul.bf16 %v7505, %v4422
  %v7548 = vmul.bf16 %v7506, %v4429
  %v7549 = vmul.bf16 %v7507, %v4436
  %v7550 = vmul.bf16 %v7536, %v4415
  %v7551 = vmul.bf16 %v7508, %v4422
  %v7552 = vmul.bf16 %v7509, %v4429
  %v7553 = vmul.bf16 %v7510, %v4436
  %v7554 = vmul.bf16 %v7540, %v4415
  %v7555 = vmul.bf16 %v7511, %v4422
  %v7556 = vmul.bf16 %v7512, %v4429
  %v7557 = vmul.bf16 %v7513, %v4436
  %7558 = vrot.lane.b32.xlu0 %v7353, 30
  %v7559 = vpop.permute.xlu0 %7558
  %7560 = vrot.lane.b32.xlu0 %v7357, 30
  %v7561 = vpop.permute.xlu0 %7560
  %7562 = vrot.lane.b32.xlu0 %v7361, 30
  %v7563 = vpop.permute.xlu0 %7562
  %7564 = vrot.lane.b32.xlu0 %v7365, 30
  %v7565 = vpop.permute.xlu0 %7564
  %7566 = vrot.lane.b32.xlu0 %v7350, 30
  %v7567 = vpop.permute.xlu0 %7566
  %7568 = vrot.lane.b32.xlu0 %v7351, 30
  %v7569 = vpop.permute.xlu0 %7568
  %7570 = vrot.lane.b32.xlu0 %v7352, 30
  %v7571 = vpop.permute.xlu0 %7570
  %7572 = vrot.lane.b32.xlu0 %v7354, 30
  %v7573 = vpop.permute.xlu0 %7572
  %7574 = vrot.lane.b32.xlu0 %v7355, 30
  %v7575 = vpop.permute.xlu0 %7574
  %7576 = vrot.lane.b32.xlu0 %v7356, 30
  %v7577 = vpop.permute.xlu0 %7576
  %7578 = vrot.lane.b32.xlu0 %v7358, 30
  %v7579 = vpop.permute.xlu0 %7578
  %7580 = vrot.lane.b32.xlu0 %v7359, 30
  %v7581 = vpop.permute.xlu0 %7580
  %7582 = vrot.lane.b32.xlu0 %v7360, 30
  %v7583 = vpop.permute.xlu0 %7582
  %7584 = vrot.lane.b32.xlu0 %v7362, 30
  %v7585 = vpop.permute.xlu0 %7584
  %7586 = vrot.lane.b32.xlu0 %v7363, 30
  %v7587 = vpop.permute.xlu0 %7586
  %7588 = vrot.lane.b32.xlu0 %v7364, 30
  %v7589 = vpop.permute.xlu0 %7588
  %v7590 = vsel %vm4533, %v7567, %v7569
  %v7591 = vsel %vm4533, %v7569, %v7571
  %v7592 = vsel %vm4533, %v7571, %v7559
  %v7593 = vsel %vm4533, %v7573, %v7575
  %v7594 = vsel %vm4533, %v7575, %v7577
  %v7595 = vsel %vm4533, %v7577, %v7561
  %v7596 = vsel %vm4533, %v7579, %v7581
  %v7597 = vsel %vm4533, %v7581, %v7583
  %v7598 = vsel %vm4533, %v7583, %v7563
  %v7599 = vsel %vm4533, %v7585, %v7587
  %v7600 = vsel %vm4533, %v7587, %v7589
  %v7601 = vsel %vm4533, %v7589, %v7565
  %v7616 = vsel %vm351, %v7559, %v7567
  %v7620 = vsel %vm351, %v7561, %v7573
  %v7624 = vsel %vm351, %v7563, %v7579
  %v7628 = vsel %vm351, %v7565, %v7585
  %v7630 = vmul.bf16 %v7616, %v4645
  %v7631 = vmul.bf16 %v7590, %v4652
  %v7632 = vmul.bf16 %v7591, %v4659
  %v7633 = vmul.bf16 %v7592, %v4666
  %v7634 = vmul.bf16 %v7620, %v4645
  %v7635 = vmul.bf16 %v7593, %v4652
  %v7636 = vmul.bf16 %v7594, %v4659
  %v7637 = vmul.bf16 %v7595, %v4666
  %v7638 = vmul.bf16 %v7624, %v4645
  %v7639 = vmul.bf16 %v7596, %v4652
  %v7640 = vmul.bf16 %v7597, %v4659
  %v7641 = vmul.bf16 %v7598, %v4666
  %v7642 = vmul.bf16 %v7628, %v4645
  %v7643 = vmul.bf16 %v7599, %v4652
  %v7644 = vmul.bf16 %v7600, %v4659
  %v7645 = vmul.bf16 %v7601, %v4666
  %7646 = vrot.lane.b32.xlu0 %v7353, 2
  %v7647 = vpop.permute.xlu0 %7646
  %7648 = vrot.lane.b32.xlu0 %v7357, 2
  %v7649 = vpop.permute.xlu0 %7648
  %7650 = vrot.lane.b32.xlu0 %v7361, 2
  %v7651 = vpop.permute.xlu0 %7650
  %7652 = vrot.lane.b32.xlu0 %v7365, 2
  %v7653 = vpop.permute.xlu0 %7652
  %7654 = vrot.lane.b32.xlu0 %v7350, 2
  %v7655 = vpop.permute.xlu0 %7654
  %7656 = vrot.lane.b32.xlu0 %v7351, 2
  %v7657 = vpop.permute.xlu0 %7656
  %7658 = vrot.lane.b32.xlu0 %v7352, 2
  %v7659 = vpop.permute.xlu0 %7658
  %7660 = vrot.lane.b32.xlu0 %v7354, 2
  %v7661 = vpop.permute.xlu0 %7660
  %7662 = vrot.lane.b32.xlu0 %v7355, 2
  %v7663 = vpop.permute.xlu0 %7662
  %7664 = vrot.lane.b32.xlu0 %v7356, 2
  %v7665 = vpop.permute.xlu0 %7664
  %7666 = vrot.lane.b32.xlu0 %v7358, 2
  %v7667 = vpop.permute.xlu0 %7666
  %7668 = vrot.lane.b32.xlu0 %v7359, 2
  %v7669 = vpop.permute.xlu0 %7668
  %7670 = vrot.lane.b32.xlu0 %v7360, 2
  %v7671 = vpop.permute.xlu0 %7670
  %7672 = vrot.lane.b32.xlu0 %v7362, 2
  %v7673 = vpop.permute.xlu0 %7672
  %7674 = vrot.lane.b32.xlu0 %v7363, 2
  %v7675 = vpop.permute.xlu0 %7674
  %7676 = vrot.lane.b32.xlu0 %v7364, 2
  %v7677 = vpop.permute.xlu0 %7676
  %v7678 = vsel %vm4763, %v7655, %v7657
  %v7679 = vsel %vm4763, %v7657, %v7659
  %v7680 = vsel %vm4763, %v7659, %v7647
  %v7681 = vsel %vm4763, %v7661, %v7663
  %v7682 = vsel %vm4763, %v7663, %v7665
  %v7683 = vsel %vm4763, %v7665, %v7649
  %v7684 = vsel %vm4763, %v7667, %v7669
  %v7685 = vsel %vm4763, %v7669, %v7671
  %v7686 = vsel %vm4763, %v7671, %v7651
  %v7687 = vsel %vm4763, %v7673, %v7675
  %v7688 = vsel %vm4763, %v7675, %v7677
  %v7689 = vsel %vm4763, %v7677, %v7653
  %v7704 = vsel %vm281, %v7647, %v7655
  %v7708 = vsel %vm281, %v7649, %v7661
  %v7712 = vsel %vm281, %v7651, %v7667
  %v7716 = vsel %vm281, %v7653, %v7673
  %v7718 = vmul.bf16 %v7704, %v4875
  %v7719 = vmul.bf16 %v7678, %v4882
  %v7720 = vmul.bf16 %v7679, %v4889
  %v7721 = vmul.bf16 %v7680, %v4896
  %v7722 = vmul.bf16 %v7708, %v4875
  %v7723 = vmul.bf16 %v7681, %v4882
  %v7724 = vmul.bf16 %v7682, %v4889
  %v7725 = vmul.bf16 %v7683, %v4896
  %v7726 = vmul.bf16 %v7712, %v4875
  %v7727 = vmul.bf16 %v7684, %v4882
  %v7728 = vmul.bf16 %v7685, %v4889
  %v7729 = vmul.bf16 %v7686, %v4896
  %v7730 = vmul.bf16 %v7716, %v4875
  %v7731 = vmul.bf16 %v7687, %v4882
  %v7732 = vmul.bf16 %v7688, %v4889
  %v7733 = vmul.bf16 %v7689, %v4896
  %7734 = vrot.lane.b32.xlu0 %v7350, 126
  %v7735 = vpop.permute.xlu0 %7734
  %7736 = vrot.lane.b32.xlu0 %v7351, 126
  %v7737 = vpop.permute.xlu0 %7736
  %7738 = vrot.lane.b32.xlu0 %v7352, 126
  %v7739 = vpop.permute.xlu0 %7738
  %7740 = vrot.lane.b32.xlu0 %v7353, 126
  %v7741 = vpop.permute.xlu0 %7740
  %7742 = vrot.lane.b32.xlu0 %v7354, 126
  %v7743 = vpop.permute.xlu0 %7742
  %7744 = vrot.lane.b32.xlu0 %v7355, 126
  %v7745 = vpop.permute.xlu0 %7744
  %7746 = vrot.lane.b32.xlu0 %v7356, 126
  %v7747 = vpop.permute.xlu0 %7746
  %7748 = vrot.lane.b32.xlu0 %v7357, 126
  %v7749 = vpop.permute.xlu0 %7748
  %7750 = vrot.lane.b32.xlu0 %v7358, 126
  %v7751 = vpop.permute.xlu0 %7750
  %7752 = vrot.lane.b32.xlu0 %v7359, 126
  %v7753 = vpop.permute.xlu0 %7752
  %7754 = vrot.lane.b32.xlu0 %v7360, 126
  %v7755 = vpop.permute.xlu0 %7754
  %7756 = vrot.lane.b32.xlu0 %v7361, 126
  %v7757 = vpop.permute.xlu0 %7756
  %7758 = vrot.lane.b32.xlu0 %v7362, 126
  %v7759 = vpop.permute.xlu0 %7758
  %7760 = vrot.lane.b32.xlu0 %v7363, 126
  %v7761 = vpop.permute.xlu0 %7760
  %7762 = vrot.lane.b32.xlu0 %v7364, 126
  %v7763 = vpop.permute.xlu0 %7762
  %7764 = vrot.lane.b32.xlu0 %v7365, 126
  %v7765 = vpop.permute.xlu0 %7764
  %v7766 = vsel %vm4993, %v7735, %v7737
  %v7767 = vsel %vm4993, %v7737, %v7739
  %v7768 = vsel %vm4993, %v7739, %v7741
  %v7769 = vsel %vm4993, %v7743, %v7745
  %v7770 = vsel %vm4993, %v7745, %v7747
  %v7771 = vsel %vm4993, %v7747, %v7749
  %v7772 = vsel %vm4993, %v7751, %v7753
  %v7773 = vsel %vm4993, %v7753, %v7755
  %v7774 = vsel %vm4993, %v7755, %v7757
  %v7775 = vsel %vm4993, %v7759, %v7761
  %v7776 = vsel %vm4993, %v7761, %v7763
  %v7777 = vsel %vm4993, %v7763, %v7765
  %v7792 = vsel %vm1780, %v7741, %v7735
  %v7796 = vsel %vm1780, %v7749, %v7743
  %v7800 = vsel %vm1780, %v7757, %v7751
  %v7804 = vsel %vm1780, %v7765, %v7759
  %v7806 = vmul.bf16 %v7766, %v5105
  %v7807 = vmul.bf16 %v7767, %v5112
  %v7808 = vmul.bf16 %v7768, %v5119
  %v7809 = vmul.bf16 %v7792, %v5126
  %v7810 = vmul.bf16 %v7769, %v5105
  %v7811 = vmul.bf16 %v7770, %v5112
  %v7812 = vmul.bf16 %v7771, %v5119
  %v7813 = vmul.bf16 %v7796, %v5126
  %v7814 = vmul.bf16 %v7772, %v5105
  %v7815 = vmul.bf16 %v7773, %v5112
  %v7816 = vmul.bf16 %v7774, %v5119
  %v7817 = vmul.bf16 %v7800, %v5126
  %v7818 = vmul.bf16 %v7775, %v5105
  %v7819 = vmul.bf16 %v7776, %v5112
  %v7820 = vmul.bf16 %v7777, %v5119
  %v7821 = vmul.bf16 %v7804, %v5126
  %7822 = vrot.lane.b32.xlu0 %v7350, 98
  %v7823 = vpop.permute.xlu0 %7822
  %7824 = vrot.lane.b32.xlu0 %v7351, 98
  %v7825 = vpop.permute.xlu0 %7824
  %7826 = vrot.lane.b32.xlu0 %v7352, 98
  %v7827 = vpop.permute.xlu0 %7826
  %7828 = vrot.lane.b32.xlu0 %v7353, 98
  %v7829 = vpop.permute.xlu0 %7828
  %7830 = vrot.lane.b32.xlu0 %v7354, 98
  %v7831 = vpop.permute.xlu0 %7830
  %7832 = vrot.lane.b32.xlu0 %v7355, 98
  %v7833 = vpop.permute.xlu0 %7832
  %7834 = vrot.lane.b32.xlu0 %v7356, 98
  %v7835 = vpop.permute.xlu0 %7834
  %7836 = vrot.lane.b32.xlu0 %v7357, 98
  %v7837 = vpop.permute.xlu0 %7836
  %7838 = vrot.lane.b32.xlu0 %v7358, 98
  %v7839 = vpop.permute.xlu0 %7838
  %7840 = vrot.lane.b32.xlu0 %v7359, 98
  %v7841 = vpop.permute.xlu0 %7840
  %7842 = vrot.lane.b32.xlu0 %v7360, 98
  %v7843 = vpop.permute.xlu0 %7842
  %7844 = vrot.lane.b32.xlu0 %v7361, 98
  %v7845 = vpop.permute.xlu0 %7844
  %7846 = vrot.lane.b32.xlu0 %v7362, 98
  %v7847 = vpop.permute.xlu0 %7846
  %7848 = vrot.lane.b32.xlu0 %v7363, 98
  %v7849 = vpop.permute.xlu0 %7848
  %7850 = vrot.lane.b32.xlu0 %v7364, 98
  %v7851 = vpop.permute.xlu0 %7850
  %7852 = vrot.lane.b32.xlu0 %v7365, 98
  %v7853 = vpop.permute.xlu0 %7852
  %v7854 = vsel %vm5223, %v7823, %v7825
  %v7855 = vsel %vm5223, %v7825, %v7827
  %v7856 = vsel %vm5223, %v7827, %v7829
  %v7857 = vsel %vm5223, %v7831, %v7833
  %v7858 = vsel %vm5223, %v7833, %v7835
  %v7859 = vsel %vm5223, %v7835, %v7837
  %v7860 = vsel %vm5223, %v7839, %v7841
  %v7861 = vsel %vm5223, %v7841, %v7843
  %v7862 = vsel %vm5223, %v7843, %v7845
  %v7863 = vsel %vm5223, %v7847, %v7849
  %v7864 = vsel %vm5223, %v7849, %v7851
  %v7865 = vsel %vm5223, %v7851, %v7853
  %v7880 = vsel %vm5272, %v7829, %v7823
  %v7884 = vsel %vm5272, %v7837, %v7831
  %v7888 = vsel %vm5272, %v7845, %v7839
  %v7892 = vsel %vm5272, %v7853, %v7847
  %v7894 = vmul.bf16 %v7854, %v5336
  %v7895 = vmul.bf16 %v7855, %v5343
  %v7896 = vmul.bf16 %v7856, %v5350
  %v7897 = vmul.bf16 %v7880, %v5357
  %v7898 = vmul.bf16 %v7857, %v5336
  %v7899 = vmul.bf16 %v7858, %v5343
  %v7900 = vmul.bf16 %v7859, %v5350
  %v7901 = vmul.bf16 %v7884, %v5357
  %v7902 = vmul.bf16 %v7860, %v5336
  %v7903 = vmul.bf16 %v7861, %v5343
  %v7904 = vmul.bf16 %v7862, %v5350
  %v7905 = vmul.bf16 %v7888, %v5357
  %v7906 = vmul.bf16 %v7863, %v5336
  %v7907 = vmul.bf16 %v7864, %v5343
  %v7908 = vmul.bf16 %v7865, %v5350
  %v7909 = vmul.bf16 %v7892, %v5357
  %7910 = vrot.lane.b32.xlu0 %v7350, 96
  %v7911 = vpop.permute.xlu0 %7910
  %7912 = vrot.lane.b32.xlu0 %v7351, 96
  %v7913 = vpop.permute.xlu0 %7912
  %7914 = vrot.lane.b32.xlu0 %v7352, 96
  %v7915 = vpop.permute.xlu0 %7914
  %7916 = vrot.lane.b32.xlu0 %v7353, 96
  %v7917 = vpop.permute.xlu0 %7916
  %7918 = vrot.lane.b32.xlu0 %v7354, 96
  %v7919 = vpop.permute.xlu0 %7918
  %7920 = vrot.lane.b32.xlu0 %v7355, 96
  %v7921 = vpop.permute.xlu0 %7920
  %7922 = vrot.lane.b32.xlu0 %v7356, 96
  %v7923 = vpop.permute.xlu0 %7922
  %7924 = vrot.lane.b32.xlu0 %v7357, 96
  %v7925 = vpop.permute.xlu0 %7924
  %7926 = vrot.lane.b32.xlu0 %v7358, 96
  %v7927 = vpop.permute.xlu0 %7926
  %7928 = vrot.lane.b32.xlu0 %v7359, 96
  %v7929 = vpop.permute.xlu0 %7928
  %7930 = vrot.lane.b32.xlu0 %v7360, 96
  %v7931 = vpop.permute.xlu0 %7930
  %7932 = vrot.lane.b32.xlu0 %v7361, 96
  %v7933 = vpop.permute.xlu0 %7932
  %7934 = vrot.lane.b32.xlu0 %v7362, 96
  %v7935 = vpop.permute.xlu0 %7934
  %7936 = vrot.lane.b32.xlu0 %v7363, 96
  %v7937 = vpop.permute.xlu0 %7936
  %7938 = vrot.lane.b32.xlu0 %v7364, 96
  %v7939 = vpop.permute.xlu0 %7938
  %7940 = vrot.lane.b32.xlu0 %v7365, 96
  %v7941 = vpop.permute.xlu0 %7940
  %v7942 = vsel %vm5454, %v7911, %v7913
  %v7943 = vsel %vm5454, %v7913, %v7915
  %v7944 = vsel %vm5454, %v7915, %v7917
  %v7945 = vsel %vm5454, %v7919, %v7921
  %v7946 = vsel %vm5454, %v7921, %v7923
  %v7947 = vsel %vm5454, %v7923, %v7925
  %v7948 = vsel %vm5454, %v7927, %v7929
  %v7949 = vsel %vm5454, %v7929, %v7931
  %v7950 = vsel %vm5454, %v7931, %v7933
  %v7951 = vsel %vm5454, %v7935, %v7937
  %v7952 = vsel %vm5454, %v7937, %v7939
  %v7953 = vsel %vm5454, %v7939, %v7941
  %v7968 = vsel %vm5503, %v7917, %v7911
  %v7972 = vsel %vm5503, %v7925, %v7919
  %v7976 = vsel %vm5503, %v7933, %v7927
  %v7980 = vsel %vm5503, %v7941, %v7935
  %v7982 = vmul.bf16 %v7942, %v5567
  %v7983 = vmul.bf16 %v7943, %v5574
  %v7984 = vmul.bf16 %v7944, %v5581
  %v7985 = vmul.bf16 %v7968, %v5588
  %v7986 = vmul.bf16 %v7945, %v5567
  %v7987 = vmul.bf16 %v7946, %v5574
  %v7988 = vmul.bf16 %v7947, %v5581
  %v7989 = vmul.bf16 %v7972, %v5588
  %v7990 = vmul.bf16 %v7948, %v5567
  %v7991 = vmul.bf16 %v7949, %v5574
  %v7992 = vmul.bf16 %v7950, %v5581
  %v7993 = vmul.bf16 %v7976, %v5588
  %v7994 = vmul.bf16 %v7951, %v5567
  %v7995 = vmul.bf16 %v7952, %v5574
  %v7996 = vmul.bf16 %v7953, %v5581
  %v7997 = vmul.bf16 %v7980, %v5588
  %7998 = vrot.lane.b32.xlu0 %v7350, 94
  %v7999 = vpop.permute.xlu0 %7998
  %8000 = vrot.lane.b32.xlu0 %v7351, 94
  %v8001 = vpop.permute.xlu0 %8000
  %8002 = vrot.lane.b32.xlu0 %v7352, 94
  %v8003 = vpop.permute.xlu0 %8002
  %8004 = vrot.lane.b32.xlu0 %v7353, 94
  %v8005 = vpop.permute.xlu0 %8004
  %8006 = vrot.lane.b32.xlu0 %v7354, 94
  %v8007 = vpop.permute.xlu0 %8006
  %8008 = vrot.lane.b32.xlu0 %v7355, 94
  %v8009 = vpop.permute.xlu0 %8008
  %8010 = vrot.lane.b32.xlu0 %v7356, 94
  %v8011 = vpop.permute.xlu0 %8010
  %8012 = vrot.lane.b32.xlu0 %v7357, 94
  %v8013 = vpop.permute.xlu0 %8012
  %8014 = vrot.lane.b32.xlu0 %v7358, 94
  %v8015 = vpop.permute.xlu0 %8014
  %8016 = vrot.lane.b32.xlu0 %v7359, 94
  %v8017 = vpop.permute.xlu0 %8016
  %8018 = vrot.lane.b32.xlu0 %v7360, 94
  %v8019 = vpop.permute.xlu0 %8018
  %8020 = vrot.lane.b32.xlu0 %v7361, 94
  %v8021 = vpop.permute.xlu0 %8020
  %8022 = vrot.lane.b32.xlu0 %v7362, 94
  %v8023 = vpop.permute.xlu0 %8022
  %8024 = vrot.lane.b32.xlu0 %v7363, 94
  %v8025 = vpop.permute.xlu0 %8024
  %8026 = vrot.lane.b32.xlu0 %v7364, 94
  %v8027 = vpop.permute.xlu0 %8026
  %8028 = vrot.lane.b32.xlu0 %v7365, 94
  %v8029 = vpop.permute.xlu0 %8028
  %v8030 = vsel %vm5685, %v7999, %v8001
  %v8031 = vsel %vm5685, %v8001, %v8003
  %v8032 = vsel %vm5685, %v8003, %v8005
  %v8033 = vsel %vm5685, %v8007, %v8009
  %v8034 = vsel %vm5685, %v8009, %v8011
  %v8035 = vsel %vm5685, %v8011, %v8013
  %v8036 = vsel %vm5685, %v8015, %v8017
  %v8037 = vsel %vm5685, %v8017, %v8019
  %v8038 = vsel %vm5685, %v8019, %v8021
  %v8039 = vsel %vm5685, %v8023, %v8025
  %v8040 = vsel %vm5685, %v8025, %v8027
  %v8041 = vsel %vm5685, %v8027, %v8029
  %v8056 = vsel %vm5734, %v8005, %v7999
  %v8060 = vsel %vm5734, %v8013, %v8007
  %v8064 = vsel %vm5734, %v8021, %v8015
  %v8068 = vsel %vm5734, %v8029, %v8023
  %v8070 = vmul.bf16 %v8030, %v5798
  %v8071 = vmul.bf16 %v8031, %v5805
  %v8072 = vmul.bf16 %v8032, %v5812
  %v8073 = vmul.bf16 %v8056, %v5819
  %v8074 = vmul.bf16 %v8033, %v5798
  %v8075 = vmul.bf16 %v8034, %v5805
  %v8076 = vmul.bf16 %v8035, %v5812
  %v8077 = vmul.bf16 %v8060, %v5819
  %v8078 = vmul.bf16 %v8036, %v5798
  %v8079 = vmul.bf16 %v8037, %v5805
  %v8080 = vmul.bf16 %v8038, %v5812
  %v8081 = vmul.bf16 %v8064, %v5819
  %v8082 = vmul.bf16 %v8039, %v5798
  %v8083 = vmul.bf16 %v8040, %v5805
  %v8084 = vmul.bf16 %v8041, %v5812
  %v8085 = vmul.bf16 %v8068, %v5819
  %v8086 = vld [vmem:[%s19] sm:$0xff]
  %v8087 = vld [vmem:[%s19 + $0x8] sm:$0x3]
  %v8088 = vld [vmem:[%s20] sm:$0x7]
  %8090 = vset.pattern.permute.xlu0 0
  %8091 = vperm.xlu0 %8090, %v8088
  %v8092 = vpop.permute.xlu0 %8091
  %v8096 = vcombine.high %v8086, %v8086
  %v8098 = vunpack.c.l.s4 1983009808
  %v8099 = vunpack.c.0.s8 %v8098
  %v8100 = vlaneseq
  %v8101 = vshrl.u32 %v8100, 7
  %v8102 = vsub.s32 %v8099, %v8101
  %v8103 = vrot.slane %v8086, %v8102
  %v8105 = vunpack.c.l.s4 1983009808
  %v8106 = vunpack.c.0.s8 %v8105
  %v8107 = vlaneseq
  %v8108 = vshrl.u32 %v8107, 7
  %v8109 = vsub.s32 %v8106, %v8108
  %v8110 = vrot.slane %v8096, %v8109
  %v8111 = vcombine.high %v8103, %v8103
  %v8112 = vcombine.high %v8110, %v8110
  %v8114 = vunpack.c.l.s4 1983009808
  %v8115 = vunpack.c.0.s8 %v8114
  %v8116 = vlaneseq
  %v8117 = vshrl.u32 %v8116, 7
  %v8118 = vsub.s32 %v8115, %v8117
  %v8119 = vrot.slane %v8087, %v8118
  %vm8124 = vcmask 523264
  %v8126 = vsel %vm8124, %v8119, 0
  %8128 = vmatprep.subr.bf16.mxu0 %v7455
  %8129 = vmatpush1.bf16.msra.mxu0 %v7454
  %8130 = vmatprep.subr.bf16.mxu0 %v7459
  %8131 = vmatpush1.bf16.msra.mxu0 %v7458
  %8132 = vmatprep.subr.bf16.mxu0 %v7463
  %8133 = vmatpush1.bf16.msra.mxu0 %v7462
  %8134 = vmatprep.subr.bf16.mxu0 %v7467
  %8135 = vmatpush1.bf16.msra.mxu0 %v7466
  %8136 = vmatprep.subr.bf16.mxu0 %v7543
  %8137 = vmatpush1.bf16.msra.mxu0 %v7542
  %8138 = vmatprep.subr.bf16.mxu0 %v7547
  %8139 = vmatpush1.bf16.msra.mxu0 %v7546
  %8140 = vmatprep.subr.bf16.mxu0 %v7551
  %8141 = vmatpush1.bf16.msra.mxu0 %v7550
  %8142 = vmatprep.subr.bf16.mxu0 %v7555
  %8143 = vmatpush1.bf16.msra.mxu0 %v7554
  %8144 = vmatprep.subr.bf16.mxu0 %v7631
  %8145 = vmatpush1.bf16.msra.mxu0 %v7630
  %8146 = vmatprep.subr.bf16.mxu0 %v7635
  %8147 = vmatpush1.bf16.msra.mxu0 %v7634
  %8148 = vmatprep.subr.bf16.mxu0 %v7639
  %8149 = vmatpush1.bf16.msra.mxu0 %v7638
  %8150 = vmatprep.subr.bf16.mxu0 %v7643
  %8151 = vmatpush1.bf16.msra.mxu0 %v7642
  %8152 = vmatprep.subr.bf16.mxu0 %v7719
  %8153 = vmatpush1.bf16.msra.mxu0 %v7718
  %8154 = vmatprep.subr.bf16.mxu0 %v7723
  %8155 = vmatpush1.bf16.msra.mxu0 %v7722
  %8156 = vmatprep.subr.bf16.mxu0 %v7727
  %8157 = vmatpush1.bf16.msra.mxu0 %v7726
  %8158 = vmatprep.subr.bf16.mxu0 %v7731
  %8159 = vmatpush1.bf16.msra.mxu0 %v7730
  %8160 = vmatprep.mubr.bf16.mxu0 %v8111
  %8161 = vmatmul.mubr.bf16.gmra.mrb[0].mxu0 %v8103
  %v8162 = vpop.f32.mrb[0].mxu0
  %v8163 = vadd.f32 %v8092, %v8162
  %v8164 = vpop.f32.mrb[0].mxu0
  %v8165 = vadd.f32 %v8092, %v8164
  %v8166 = vpop.f32.mrb[0].mxu0
  %v8167 = vpop.f32.mrb[0].mxu0
  %8168 = vdwg.mxu0
  %8169 = vmatprep.subr.bf16.mxu0 %v7351
  %8170 = vmatpush1.bf16.msra.mxu0 %v7350
  %8171 = vmatprep.subr.bf16.mxu0 %v7355
  %8172 = vmatpush1.bf16.msra.mxu0 %v7354
  %8173 = vmatprep.subr.bf16.mxu0 %v7359
  %8174 = vmatpush1.bf16.msra.mxu0 %v7358
  %8175 = vmatprep.subr.bf16.mxu0 %v7363
  %8176 = vmatpush1.bf16.msra.mxu0 %v7362
  %8177 = vmatprep.subr.bf16.mxu0 %v7807
  %8178 = vmatpush1.bf16.msra.mxu0 %v7806
  %8179 = vmatprep.subr.bf16.mxu0 %v7811
  %8180 = vmatpush1.bf16.msra.mxu0 %v7810
  %8181 = vmatprep.subr.bf16.mxu0 %v7815
  %8182 = vmatpush1.bf16.msra.mxu0 %v7814
  %8183 = vmatprep.subr.bf16.mxu0 %v7819
  %8184 = vmatpush1.bf16.msra.mxu0 %v7818
  %8185 = vmatprep.subr.bf16.mxu0 %v7895
  %8186 = vmatpush1.bf16.msra.mxu0 %v7894
  %8187 = vmatprep.subr.bf16.mxu0 %v7899
  %8188 = vmatpush1.bf16.msra.mxu0 %v7898
  %8189 = vmatprep.subr.bf16.mxu0 %v7903
  %8190 = vmatpush1.bf16.msra.mxu0 %v7902
  %8191 = vmatprep.subr.bf16.mxu0 %v7907
  %8192 = vmatpush1.bf16.msra.mxu0 %v7906
  %8193 = vmatprep.subr.bf16.mxu0 %v7983
  %8194 = vmatpush1.bf16.msra.mxu0 %v7982
  %8195 = vmatprep.subr.bf16.mxu0 %v7987
  %8196 = vmatpush1.bf16.msra.mxu0 %v7986
  %8197 = vmatprep.subr.bf16.mxu0 %v7991
  %8198 = vmatpush1.bf16.msra.mxu0 %v7990
  %8199 = vmatprep.subr.bf16.mxu0 %v7995
  %8200 = vmatpush1.bf16.msra.mxu0 %v7994
  %8201 = vmatprep.mubr.bf16.mxu0 %v8112
  %8202 = vmatmul.mubr.bf16.gmra.mrb[0].mxu0 %v8110
  %v8203 = vpop.f32.mrb[0].mxu0
  %v8204 = vadd.f32 %v8163, %v8203
  %v8205 = vpop.f32.mrb[0].mxu0
  %v8206 = vadd.f32 %v8165, %v8205
  %v8207 = vpop.f32.mrb[0].mxu0
  %v8208 = vpop.f32.mrb[0].mxu0
  %8209 = vdwg.mxu0
  %8210 = vmatprep.subr.bf16.mxu0 %v8071
  %8211 = vmatpush1.bf16.msra.mxu0 %v8070
  %8212 = vmatprep.subr.bf16.mxu0 %v8075
  %8213 = vmatpush1.bf16.msra.mxu0 %v8074
  %8214 = vmatprep.subr.bf16.mxu0 %v8079
  %8215 = vmatpush1.bf16.msra.mxu0 %v8078
  %8216 = vmatprep.subr.bf16.mxu0 %v8083
  %8217 = vmatpush1.bf16.msra.mxu0 %v8082
  %8218 = vmatprep.subr.bf16.mxu0 0
  %8219 = vmatpush1.bf16.msra.mxu0 0
  %8220 = vmatprep.subr.bf16.mxu0 0
  %8221 = vmatpush1.bf16.msra.mxu0 0
  %8222 = vmatprep.subr.bf16.mxu0 0
  %8223 = vmatpush1.bf16.msra.mxu0 0
  %8224 = vmatprep.subr.bf16.mxu0 0
  %8225 = vmatpush1.bf16.msra.mxu0 0
  %8226 = vmatprep.subr.bf16.mxu0 0
  %8227 = vmatpush1.bf16.msra.mxu0 0
  %8228 = vmatprep.subr.bf16.mxu0 0
  %8229 = vmatpush1.bf16.msra.mxu0 0
  %8230 = vmatprep.subr.bf16.mxu0 0
  %8231 = vmatpush1.bf16.msra.mxu0 0
  %8232 = vmatprep.subr.bf16.mxu0 0
  %8233 = vmatpush1.bf16.msra.mxu0 0
  %8234 = vmatprep.subr.bf16.mxu0 0
  %8235 = vmatpush1.bf16.msra.mxu0 0
  %8236 = vmatprep.subr.bf16.mxu0 0
  %8237 = vmatpush1.bf16.msra.mxu0 0
  %8238 = vmatprep.subr.bf16.mxu0 0
  %8239 = vmatpush1.bf16.msra.mxu0 0
  %8240 = vmatprep.subr.bf16.mxu0 0
  %8241 = vmatpush1.bf16.msra.mxu0 0
  %8242 = vmatprep.mubr.bf16.mxu0 0
  %8243 = vmatmul.mubr.bf16.gmra.mrb[0].mxu0 %v8126
  %v8244 = vpop.f32.mrb[0].mxu0
  %v8245 = vadd.f32 %v8204, %v8244
  %v8246 = vpop.f32.mrb[0].mxu0
  %v8247 = vadd.f32 %v8206, %v8246
  %v8248 = vpop.f32.mrb[0].mxu0
  %v8249 = vpop.f32.mrb[0].mxu0
  %8250 = vdwg.mxu0
  %8251 = vmatprep.subr.bf16.mxu0 %v7457
  %8252 = vmatpush1.bf16.msra.mxu0 %v7456
  %8253 = vmatprep.subr.bf16.mxu0 %v7461
  %8254 = vmatpush1.bf16.msra.mxu0 %v7460
  %8255 = vmatprep.subr.bf16.mxu0 %v7465
  %8256 = vmatpush1.bf16.msra.mxu0 %v7464
  %8257 = vmatprep.subr.bf16.mxu0 %v7469
  %8258 = vmatpush1.bf16.msra.mxu0 %v7468
  %8259 = vmatprep.subr.bf16.mxu0 %v7545
  %8260 = vmatpush1.bf16.msra.mxu0 %v7544
  %8261 = vmatprep.subr.bf16.mxu0 %v7549
  %8262 = vmatpush1.bf16.msra.mxu0 %v7548
  %8263 = vmatprep.subr.bf16.mxu0 %v7553
  %8264 = vmatpush1.bf16.msra.mxu0 %v7552
  %8265 = vmatprep.subr.bf16.mxu0 %v7557
  %8266 = vmatpush1.bf16.msra.mxu0 %v7556
  %8267 = vmatprep.subr.bf16.mxu0 %v7633
  %8268 = vmatpush1.bf16.msra.mxu0 %v7632
  %8269 = vmatprep.subr.bf16.mxu0 %v7637
  %8270 = vmatpush1.bf16.msra.mxu0 %v7636
  %8271 = vmatprep.subr.bf16.mxu0 %v7641
  %8272 = vmatpush1.bf16.msra.mxu0 %v7640
  %8273 = vmatprep.subr.bf16.mxu0 %v7645
  %8274 = vmatpush1.bf16.msra.mxu0 %v7644
  %8275 = vmatprep.subr.bf16.mxu0 %v7721
  %8276 = vmatpush1.bf16.msra.mxu0 %v7720
  %8277 = vmatprep.subr.bf16.mxu0 %v7725
  %8278 = vmatpush1.bf16.msra.mxu0 %v7724
  %8279 = vmatprep.subr.bf16.mxu0 %v7729
  %8280 = vmatpush1.bf16.msra.mxu0 %v7728
  %8281 = vmatprep.subr.bf16.mxu0 %v7733
  %8282 = vmatpush1.bf16.msra.mxu0 %v7732
  %8283 = vmatprep.mubr.bf16.mxu0 %v8111
  %8284 = vmatmul.mubr.bf16.gmra.mrb[0].mxu0 %v8103
  %v8285 = vpop.f32.mrb[0].mxu0
  %v8286 = vadd.f32 %v8092, %v8285
  %v8287 = vpop.f32.mrb[0].mxu0
  %v8288 = vadd.f32 %v8092, %v8287
  %v8289 = vpop.f32.mrb[0].mxu0
  %v8290 = vpop.f32.mrb[0].mxu0
  %8291 = vdwg.mxu0
  %8292 = vmatprep.subr.bf16.mxu0 %v7353
  %8293 = vmatpush1.bf16.msra.mxu0 %v7352
  %8294 = vmatprep.subr.bf16.mxu0 %v7357
  %8295 = vmatpush1.bf16.msra.mxu0 %v7356
  %8296 = vmatprep.subr.bf16.mxu0 %v7361
  %8297 = vmatpush1.bf16.msra.mxu0 %v7360
  %8298 = vmatprep.subr.bf16.mxu0 %v7365
  %8299 = vmatpush1.bf16.msra.mxu0 %v7364
  %8300 = vmatprep.subr.bf16.mxu0 %v7809
  %8301 = vmatpush1.bf16.msra.mxu0 %v7808
  %8302 = vmatprep.subr.bf16.mxu0 %v7813
  %8303 = vmatpush1.bf16.msra.mxu0 %v7812
  %8304 = vmatprep.subr.bf16.mxu0 %v7817
  %8305 = vmatpush1.bf16.msra.mxu0 %v7816
  %8306 = vmatprep.subr.bf16.mxu0 %v7821
  %8307 = vmatpush1.bf16.msra.mxu0 %v7820
  %8308 = vmatprep.subr.bf16.mxu0 %v7897
  %8309 = vmatpush1.bf16.msra.mxu0 %v7896
  %8310 = vmatprep.subr.bf16.mxu0 %v7901
  %8311 = vmatpush1.bf16.msra.mxu0 %v7900
  %8312 = vmatprep.subr.bf16.mxu0 %v7905
  %8313 = vmatpush1.bf16.msra.mxu0 %v7904
  %8314 = vmatprep.subr.bf16.mxu0 %v7909
  %8315 = vmatpush1.bf16.msra.mxu0 %v7908
  %8316 = vmatprep.subr.bf16.mxu0 %v7985
  %8317 = vmatpush1.bf16.msra.mxu0 %v7984
  %8318 = vmatprep.subr.bf16.mxu0 %v7989
  %8319 = vmatpush1.bf16.msra.mxu0 %v7988
  %8320 = vmatprep.subr.bf16.mxu0 %v7993
  %8321 = vmatpush1.bf16.msra.mxu0 %v7992
  %8322 = vmatprep.subr.bf16.mxu0 %v7997
  %8323 = vmatpush1.bf16.msra.mxu0 %v7996
  %8324 = vmatprep.mubr.bf16.mxu0 %v8112
  %8325 = vmatmul.mubr.bf16.gmra.mrb[0].mxu0 %v8110
  %v8326 = vpop.f32.mrb[0].mxu0
  %v8327 = vadd.f32 %v8286, %v8326
  %v8328 = vpop.f32.mrb[0].mxu0
  %v8329 = vadd.f32 %v8288, %v8328
  %v8330 = vpop.f32.mrb[0].mxu0
  %v8331 = vpop.f32.mrb[0].mxu0
  %8332 = vdwg.mxu0
  %8333 = vmatprep.subr.bf16.mxu0 %v8073
  %8334 = vmatpush1.bf16.msra.mxu0 %v8072
  %8335 = vmatprep.subr.bf16.mxu0 %v8077
  %8336 = vmatpush1.bf16.msra.mxu0 %v8076
  %8337 = vmatprep.subr.bf16.mxu0 %v8081
  %8338 = vmatpush1.bf16.msra.mxu0 %v8080
  %8339 = vmatprep.subr.bf16.mxu0 %v8085
  %8340 = vmatpush1.bf16.msra.mxu0 %v8084
  %8341 = vmatprep.subr.bf16.mxu0 0
  %8342 = vmatpush1.bf16.msra.mxu0 0
  %8343 = vmatprep.subr.bf16.mxu0 0
  %8344 = vmatpush1.bf16.msra.mxu0 0
  %8345 = vmatprep.subr.bf16.mxu0 0
  %8346 = vmatpush1.bf16.msra.mxu0 0
  %8347 = vmatprep.subr.bf16.mxu0 0
  %8348 = vmatpush1.bf16.msra.mxu0 0
  %8349 = vmatprep.subr.bf16.mxu0 0
  %8350 = vmatpush1.bf16.msra.mxu0 0
  %8351 = vmatprep.subr.bf16.mxu0 0
  %8352 = vmatpush1.bf16.msra.mxu0 0
  %8353 = vmatprep.subr.bf16.mxu0 0
  %8354 = vmatpush1.bf16.msra.mxu0 0
  %8355 = vmatprep.subr.bf16.mxu0 0
  %8356 = vmatpush1.bf16.msra.mxu0 0
  %8357 = vmatprep.subr.bf16.mxu0 0
  %8358 = vmatpush1.bf16.msra.mxu0 0
  %8359 = vmatprep.subr.bf16.mxu0 0
  %8360 = vmatpush1.bf16.msra.mxu0 0
  %8361 = vmatprep.subr.bf16.mxu0 0
  %8362 = vmatpush1.bf16.msra.mxu0 0
  %8363 = vmatprep.subr.bf16.mxu0 0
  %8364 = vmatpush1.bf16.msra.mxu0 0
  %8365 = vmatprep.mubr.bf16.mxu0 0
  %8366 = vmatmul.mubr.bf16.gmra.mrb[0].mxu0 %v8126
  %v8367 = vpop.f32.mrb[0].mxu0
  %v8368 = vadd.f32 %v8327, %v8367
  %v8369 = vpop.f32.mrb[0].mxu0
  %v8370 = vadd.f32 %v8329, %v8369
  %v8371 = vpop.f32.mrb[0].mxu0
  %v8372 = vpop.f32.mrb[0].mxu0
  %8373 = vdwg.mxu0
  %v8374 = vtanh.pop %v8245
  %v8375 = vtanh.pop %v8247
  %v8376 = vtanh.pop %v8368
  %v8377 = vtanh.pop %v8370
  %v8382 = vcombine.low %v8374, %v8375
  %v8383 = vcombine.low %v8376, %v8377
  %8386 = vst [vmem:[%s21] sm:$0x77] %v8382
  %8387 = vst [vmem:[%s21 + $0x8] sm:$0x77] %v8383
  // Predicated region
  $region86: #{generator_forward.1} parent=0 // pred_check
    _
  $region87: #{generator_forward.1} parent=0 // pred_check_branch
    %8389 = sbr.rel (0) target = $region89
  $region88: #{generator_forward.1} parent=0 // pred_region
    _
  $region89: #{generator_forward.1} parent=0 // pred_fallthru
    _
  // Predicated region
  $region90: #{generator_forward.1} parent=0 // pred_check
    _
  $region91: #{generator_forward.1} parent=0 // pred_check_branch
    %8391 = sbr.rel (0) target = $region93
  $region92: #{generator_forward.1} parent=0 // pred_region
    _
  $region93: #{generator_forward.1} parent=0 // pred_fallthru
    _

</llo_original>
